<compile_context>
chip_gen: v7x
topology: tpu7x:2x2x1
jax: 0.10.0
libtpu: 0.0.40
codegen_flags: <defaults>
</compile_context>

<pallas_src>
import jax
import jax.numpy as jnp
from jax import lax
from jax.experimental import pallas as pl
from jax.experimental.pallas import tpu as pltpu


# ---------------------------------------------------------------------------
# Per-generation VMEM budgets (v7x: 64 MiB / TensorCore; v5e / v6e: 128 MiB)
# ---------------------------------------------------------------------------

def _hw_budgets():
    vmem_bytes = 128 * 1024 * 1024
    try:
        info = pltpu.get_tpu_info()
        vmem_bytes = int(getattr(info, "vmem_capacity_bytes", vmem_bytes))
    except Exception:
        pass
    if vmem_bytes <= 96 * 1024 * 1024:               # v7x-class part
        return {"conv_td_budget": 8 * 1024 * 1024,
                "conv_vmem_limit": 32 * 1024 * 1024,
                "mm_vmem_limit": 32 * 1024 * 1024}
    return {"conv_td_budget": 20 * 1024 * 1024,      # v5e / v6e (128 MiB VMEM)
            "conv_vmem_limit": 64 * 1024 * 1024,
            "mm_vmem_limit": 48 * 1024 * 1024}


# ---------------------------------------------------------------------------
# Tile-size heuristics
# ---------------------------------------------------------------------------

def _pick_tm(m, target=512):
    """Largest row-tile from a candidate list that divides m (fallback: whole M)."""
    for t in (target, 256, 128, 64, 32, 16, 8):
        if t <= m and m % t == 0:
            return t
    return m  # block == full dim is always a legal BlockSpec


def _pick_td(d, h, w, cin, cout, budget_bytes):
    """Largest D-tile (divisor of d) whose working set (pipeline buffers + in-kernel
    temporaries) fits the per-generation budget."""
    divisors = [t for t in range(1, d + 1) if d % t == 0]

    def need(td):
        bf = 2                                               # bf16 bytes
        in_x = td * h * w * cin * bf                         # center activation tile
        in_halo = 2 * h * w * cin * bf                       # two 1-row D-halo blocks
        out_y = td * h * w * cout * bf                       # bf16 output tile
        wgt = 27 * cin * cout * bf                           # bf16 weights
        pipeline = 2 * (in_x + in_halo + out_y + wgt)        # double-buffered DMA bufs
        act_f32 = (td + 2) * h * w * cin * 4                 # f32 activations pre-cast
        slab = (td + 2) * (h + 2) * (w + 2) * cin * bf       # padded bf16 slab
        slab_cat = (td + 2) * (h + 2) * w * 3 * cin * bf     # kw-folded slab
        patch = 2 * td * h * w * 3 * cin * bf                # live MXU patches
        acc = td * h * w * cout * 4                          # f32 accumulator
        return pipeline + act_f32 + slab + slab_cat + patch + acc

    fitting = [t for t in divisors if need(t) <= budget_bytes] or [1]
    td = max(fitting)
    if td == d and d >= 4:                 # keep >=2 D-tiles for pipelining / megacore
        smaller = [t for t in fitting if t < d]
        if smaller:
            td = max(smaller)
    return td


# ---------------------------------------------------------------------------
# Pallas kernels
# ---------------------------------------------------------------------------

def _stats_kernel(x_ref, sum_ref, sq_ref):
    """Per-channel partial sum / sum-of-squares of a (tm, C) tile (for BN1 stats)."""
    xv = x_ref[...].astype(jnp.float32)
    sum_ref[0] = jnp.sum(xv, axis=0, keepdims=True)
    sq_ref[0] = jnp.sum(xv * xv, axis=0, keepdims=True)


def _bn_relu_matmul_stats_kernel(x_ref, scale_ref, bias_ref, w_ref,
                                 o_ref, sum_ref, sq_ref):
    """y = relu(x*scale+bias) @ w (bf16 MXU, f32 acc); bf16 store + per-tile stats of y."""
    a = jnp.maximum(x_ref[...].astype(jnp.float32) * scale_ref[...] + bias_ref[...], 0.0)
    y = jnp.dot(a.astype(jnp.bfloat16), w_ref[...],
                preferred_element_type=jnp.float32)
    o_ref[...] = y.astype(o_ref.dtype)                 # bf16 intermediate (HBM-bound stage)
    sum_ref[0] = jnp.sum(y, axis=0, keepdims=True)     # stats from the f32 accumulator
    sq_ref[0] = jnp.sum(y * y, axis=0, keepdims=True)


def _bn_relu_matmul_add_kernel(x_ref, scale_ref, bias_ref, w_ref, res_ref, o_ref):
    """y = relu(x*scale+bias) @ w + residual (final 1x1x1 conv + skip add)."""
    a = jnp.maximum(x_ref[...].astype(jnp.float32) * scale_ref[...] + bias_ref[...], 0.0)
    o_ref[...] = (jnp.dot(a.astype(jnp.bfloat16), w_ref[...],
                          preferred_element_type=jnp.float32)
                  + res_ref[...]).astype(o_ref.dtype)


def _bn_relu_conv3x3x3_stats_kernel(lo_ref, x_ref, hi_ref, scale_ref, bias_ref,
                                    w_ref, o_ref, sum_ref, sq_ref):
    """Fused BN + ReLU + (in-VMEM zero pad) + 3x3x3 conv on a D-tile + per-tile y stats.

    lo_ref/hi_ref: 1-row D-halo blocks (clamped index maps; masked at volume boundaries).
    x_ref: (1, tD, H, W, Cin) bf16 center tile, w_ref: (3, 3, 3*Cin, Cout) bf16 (kw folded
    into the contraction), o_ref: (1, tD, H, W, Cout) bf16.
    """
    dt = pl.program_id(1)
    ndt = pl.num_programs(1)

    _, td, h, w, cin = x_ref.shape
    cout = o_ref.shape[-1]

    scale = scale_ref[...].reshape(1, 1, 1, cin)
    bias = bias_ref[...].reshape(1, 1, 1, cin)

    def act(v, gate=None):
        a = jnp.maximum(v.astype(jnp.float32) * scale + bias, 0.0)
        if gate is not None:
            a = a * gate                               # zero the halo at volume boundaries
        return a

    xc = act(x_ref[0])                                           # (td, h, w, cin) f32
    lo = act(lo_ref[0], (dt > 0).astype(jnp.float32))            # (1, h, w, cin)
    hi = act(hi_ref[0], (dt < ndt - 1).astype(jnp.float32))

    # Padded activation slab assembled entirely in VMEM, in bf16 (no HBM pad pass).
    core = jnp.concatenate([lo, xc, hi], axis=0).astype(jnp.bfloat16)   # (td+2, h, w, cin)
    zh = jnp.zeros((td + 2, 1, w, cin), jnp.bfloat16)
    slab = jnp.concatenate([zh, core, zh], axis=1)                      # (td+2, h+2, w, cin)
    zw = jnp.zeros((td + 2, h + 2, 1, cin), jnp.bfloat16)
    slab = jnp.concatenate([zw, slab, zw], axis=2)                      # (td+2, h+2, w+2, cin)

    # Hoisted kw fold: ONE channel-axis concat of the 3 W-shifted windows -> K = 3*cin.
    slab_cat = jnp.concatenate([slab[:, :, kw:kw + w, :] for kw in range(3)],
                               axis=-1)                                 # (td+2, h+2, w, 3*cin)

    wv = w_ref[...]                                                     # (3, 3, 3*cin, cout)
    acc = None
    for kd in range(3):
        for kh in range(3):
            patch = slab_cat[kd:kd + td, kh:kh + h]                     # (td, h, w, 3*cin)
            part = jnp.dot(patch.reshape(td * h * w, 3 * cin), wv[kd, kh],
                           preferred_element_type=jnp.float32)
            acc = part if acc is None else acc + part                   # init from 1st matmul

    o_ref[0] = acc.reshape(td, h, w, cout).astype(o_ref.dtype)          # bf16 intermediate
    sum_ref[...] = jnp.sum(acc, axis=0).reshape(1, 1, 1, cout)          # f32 per-tile stats
    sq_ref[...] = jnp.sum(acc * acc, axis=0).reshape(1, 1, 1, cout)


# ---------------------------------------------------------------------------
# pallas_call wrappers
# ---------------------------------------------------------------------------

def channel_stats(x, tm, budgets):
    """x: (M, C) -> per-tile partial (sum, sumsq), each (M//tm, 1, C). Fully parallel grid."""
    m, c = x.shape
    nt = m // tm
    return pl.pallas_call(
        _stats_kernel,
        out_shape=(jax.ShapeDtypeStruct((nt, 1, c), jnp.float32),
                   jax.ShapeDtypeStruct((nt, 1, c), jnp.float32)),
        grid=(nt,),
        in_specs=[pl.BlockSpec((tm, c), lambda i: (i, 0))],
        out_specs=(pl.BlockSpec((1, 1, c), lambda i: (i, 0, 0)),
                   pl.BlockSpec((1, 1, c), lambda i: (i, 0, 0))),
        compiler_params=pltpu.CompilerParams(
            dimension_semantics=("parallel",),
            vmem_limit_bytes=budgets["mm_vmem_limit"]),
    )(x)


def bn_relu_matmul_stats(x, scale, bias, w_bf16, tm, budgets):
    """x: (M, Cin), w: (Cin, Cout) bf16 -> (y (M, Cout) bf16, partial sum/sumsq (nt,1,Cout))."""
    m, cin = x.shape
    cout = w_bf16.shape[1]
    nt = m // tm
    return pl.pallas_call(
        _bn_relu_matmul_stats_kernel,
        out_shape=(jax.ShapeDtypeStruct((m, cout), jnp.bfloat16),
                   jax.ShapeDtypeStruct((nt, 1, cout), jnp.float32),
                   jax.ShapeDtypeStruct((nt, 1, cout), jnp.float32)),
        grid=(nt,),
        in_specs=[pl.BlockSpec((tm, cin), lambda i: (i, 0)),
                  pl.BlockSpec((1, cin), lambda i: (0, 0)),
                  pl.BlockSpec((1, cin), lambda i: (0, 0)),
                  pl.BlockSpec((cin, cout), lambda i: (0, 0))],
        out_specs=(pl.BlockSpec((tm, cout), lambda i: (i, 0)),
                   pl.BlockSpec((1, 1, cout), lambda i: (i, 0, 0)),
                   pl.BlockSpec((1, 1, cout), lambda i: (i, 0, 0))),
        compiler_params=pltpu.CompilerParams(
            dimension_semantics=("parallel",),          # no revisited accumulator anymore
            vmem_limit_bytes=budgets["mm_vmem_limit"]),
    )(x, scale, bias, w_bf16)


def bn_relu_matmul_add(x, scale, bias, w_bf16, residual, tm, budgets):
    """x: (M, Cin) bf16, residual: (M, Cout) f32 -> relu(bn(x)) @ w + residual (f32)."""
    m, cin = x.shape
    cout = w_bf16.shape[1]
    return pl.pallas_call(
        _bn_relu_matmul_add_kernel,
        out_shape=jax.ShapeDtypeStruct((m, cout), jnp.float32),
        grid=(m // tm,),
        in_specs=[pl.BlockSpec((tm, cin), lambda i: (i, 0)),
                  pl.BlockSpec((1, cin), lambda i: (0, 0)),
                  pl.BlockSpec((1, cin), lambda i: (0, 0)),
                  pl.BlockSpec((cin, cout), lambda i: (0, 0)),
                  pl.BlockSpec((tm, cout), lambda i: (i, 0))],
        out_specs=pl.BlockSpec((tm, cout), lambda i: (i, 0)),
        compiler_params=pltpu.CompilerParams(
            dimension_semantics=("parallel",),
            vmem_limit_bytes=budgets["mm_vmem_limit"]),
    )(x, scale, bias, w_bf16, residual)


def bn_relu_conv3x3x3_stats(y, scale, bias, wcat_bf16, budgets):
    """y: (N, D, H, W, Cin) bf16, wcat: (3, 3, 3*Cin, Cout) bf16.

    Returns (conv output (N, D, H, W, Cout) bf16,
             per-(n, d-tile) partial sum / sumsq, each (N, nd, 1, Cout) f32).
    Both grid axes are parallel (2-TC utilization on v7x even for N=1).
    """
    n, d, h, w, cin = y.shape
    cout = wcat_bf16.shape[-1]
    td = _pick_td(d, h, w, cin, cout, budgets["conv_td_budget"])
    nd = d // td

    center_map = lambda b, dt: (b, dt, 0, 0, 0)
    lo_map = lambda b, dt: (b, jnp.maximum(dt * td - 1, 0), 0, 0, 0)   # block size 1 -> element index
    hi_map = lambda b, dt: (b, jnp.minimum(dt * td + td, d - 1), 0, 0, 0)

    return pl.pallas_call(
        _bn_relu_conv3x3x3_stats_kernel,
        out_shape=(jax.ShapeDtypeStruct((n, d, h, w, cout), jnp.bfloat16),
                   jax.ShapeDtypeStruct((n, nd, 1, cout), jnp.float32),
                   jax.ShapeDtypeStruct((n, nd, 1, cout), jnp.float32)),
        grid=(n, nd),
        in_specs=[pl.BlockSpec((1, 1, h, w, cin), lo_map),
                  pl.BlockSpec((1, td, h, w, cin), center_map),
                  pl.BlockSpec((1, 1, h, w, cin), hi_map),
                  pl.BlockSpec((1, cin), lambda b, dt: (0, 0)),
                  pl.BlockSpec((1, cin), lambda b, dt: (0, 0)),
                  pl.BlockSpec((3, 3, 3 * cin, cout), lambda b, dt: (0, 0, 0, 0))],
        out_specs=(pl.BlockSpec((1, td, h, w, cout), center_map),
                   pl.BlockSpec((1, 1, 1, cout), lambda b, dt: (b, dt, 0, 0)),
                   pl.BlockSpec((1, 1, 1, cout), lambda b, dt: (b, dt, 0, 0))),
        compiler_params=pltpu.CompilerParams(
            dimension_semantics=("parallel", "parallel"),
            vmem_limit_bytes=budgets["conv_vmem_limit"]),
    )(y, y, y, scale, bias, wcat_bf16)


# ---------------------------------------------------------------------------
# BatchNorm folding from (sum, sumsq) batch statistics
# ---------------------------------------------------------------------------

def fold_from_stats(s, q, count, gamma, beta, eps=1e-5):
    """sum/sumsq (any shape, C total) -> (scale, bias) with bn(x) == x*scale + bias."""
    mean = s.reshape(-1) / count
    var = jnp.maximum(q.reshape(-1) / count - mean * mean, 0.0)  # biased var (PyTorch train)
    inv = gamma / jnp.sqrt(var + eps)
    return inv[None, :], (beta - mean * inv)[None, :]


# ---------------------------------------------------------------------------
# PreActivationBottleneck forward (stride=1, downsample=None)
# ---------------------------------------------------------------------------

def pre_act_bottleneck_forward(x_ncdhw, params):
    (g1, b1, w1_mat, g2, b2, w2_dhwio, g3, b3, w3_mat) = params
    n, cin, d, h, w = x_ncdhw.shape
    planes = w1_mat.shape[1]
    cout = w3_mat.shape[1]
    m = n * d * h * w

    budgets = _hw_budgets()

    # MXU weights in bf16 (f32 accumulation inside kernels); kw folded into K for conv2.
    w1_bf = w1_mat.astype(jnp.bfloat16)                                 # (Cin, planes)
    w2_cat = w2_dhwio.reshape(3, 3, 3 * planes, planes).astype(jnp.bfloat16)
    w3_bf = w3_mat.astype(jnp.bfloat16)                                 # (planes, Cin)

    # NCDHW -> NDHWC, flattened rows. (TODO(synk): still an XLA transpose pass.)
    x_flat = jnp.transpose(x_ncdhw, (0, 2, 3, 4, 1)).reshape(m, cin).astype(jnp.float32)

    tm = _pick_tm(m)

    # BN1 batch stats (single parallel Pallas reduction pass; partials reduced in XLA).
    s1p, q1p = channel_stats(x_flat, tm, budgets)
    scale1, bias1 = fold_from_stats(jnp.sum(s1p, axis=(0, 1)), jnp.sum(q1p, axis=(0, 1)),
                                    m, g1, b1)

    # Stage 1: BN1 + ReLU + conv1 (1x1x1), emitting BN2 partial stats of y1 in the same pass.
    y1, s2p, q2p = bn_relu_matmul_stats(x_flat, scale1, bias1, w1_bf, tm, budgets)
    scale2, bias2 = fold_from_stats(jnp.sum(s2p, axis=(0, 1)), jnp.sum(q2p, axis=(0, 1)),
                                    m, g2, b2)

    # Stage 2: fused BN2 + ReLU + zero-pad + conv2 (3x3x3, stride 1), + BN3 partial stats.
    y1_5d = y1.reshape(n, d, h, w, planes)
    y2_5d, s3p, q3p = bn_relu_conv3x3x3_stats(y1_5d, scale2, bias2, w2_cat, budgets)
    scale3, bias3 = fold_from_stats(jnp.sum(s3p, axis=(0, 1, 2)), jnp.sum(q3p, axis=(0, 1, 2)),
                                    m, g3, b3)

    # Stage 3: BN3 + ReLU + conv3 (1x1x1) + residual add (downsample is None).
    y2 = y2_5d.reshape(m, planes)
    out_flat = bn_relu_matmul_add(y2, scale3, bias3, w3_bf, x_flat, tm, budgets)

    # back to NCDHW
    return out_flat.reshape(n, d, h, w, cout).transpose(0, 4, 1, 2, 3)


# ---------------------------------------------------------------------------
# Pure-JAX reference for correctness checking
# ---------------------------------------------------------------------------

def reference_forward(x_ncdhw, params):
    (g1, b1, w1_mat, g2, b2, w2_dhwio, g3, b3, w3_mat) = params
    x = jnp.transpose(x_ncdhw, (0, 2, 3, 4, 1))

    def bn(v, g, b):
        axes = (0, 1, 2, 3)
        mu = v.mean(axes)
        var = v.var(axes)
        return (v - mu) / jnp.sqrt(var + 1e-5) * g + b

    hi = jax.nn.relu(bn(x, g1, b1))
    y1 = jnp.einsum("ndhwc,co->ndhwo", hi, w1_mat,
                    precision=lax.Precision.HIGHEST)
    hi = jax.nn.relu(bn(y1, g2, b2))
    hp = jnp.pad(hi, ((0, 0), (1, 1), (1, 1), (1, 1), (0, 0)))
    y2 = lax.conv_general_dilated(
        hp, w2_dhwio, window_strides=(1, 1, 1), padding="VALID",
        dimension_numbers=("NDHWC", "DHWIO", "NDHWC"),
        precision=lax.Precision.HIGHEST)
    hi = jax.nn.relu(bn(y2, g3, b3))
    y3 = jnp.einsum("ndhwc,co->ndhwo", hi, w3_mat,
                    precision=lax.Precision.HIGHEST) + x
    return jnp.transpose(y3, (0, 4, 1, 2, 3))


if __name__ == "__main__":
    # Small shapes: inplanes = planes * expansion so the identity skip is valid
    # (stride=1, downsample=None — the module's defaults).
    N, planes = 2, 4
    inplanes = planes * 4          # 16
    D = H = W = 8

    key = jax.random.PRNGKey(0)
    kx, kw1, kw2, kw3 = jax.random.split(key, 4)

    x = jax.random.normal(kx, (N, inplanes, D, H, W), jnp.float32)

    # Deterministic parameter init (synthetic; no checkpoint loading).
    def affine(c, off):
        g = 1.0 + 0.01 * (jnp.arange(c, dtype=jnp.float32) + off)
        b = 0.02 * (jnp.arange(c, dtype=jnp.float32) - off)
        return g, b

    g1, b1 = affine(inplanes, 0.0)
    g2, b2 = affine(planes, 1.0)
    g3, b3 = affine(planes, 2.0)

    # PyTorch conv weights: (Cout, Cin, kD, kH, kW)
    w1_t = 0.1 * jax.random.normal(kw1, (planes, inplanes, 1, 1, 1), jnp.float32)
    w2_t = 0.1 * jax.random.normal(kw2, (planes, planes, 3, 3, 3), jnp.float32)
    w3_t = 0.1 * jax.random.normal(kw3, (planes * 4, planes, 1, 1, 1), jnp.float32)

    # Shared (f32) parameter layouts: 1x1x1 -> (Cin, Cout) matmul, 3x3x3 -> DHWIO.
    w1_mat = jnp.transpose(w1_t[:, :, 0, 0, 0], (1, 0))            # (inplanes, planes)
    w2_dhwio = jnp.transpose(w2_t, (2, 3, 4, 1, 0))                # (3,3,3,Cin,Cout)
    w3_mat = jnp.transpose(w3_t[:, :, 0, 0, 0], (1, 0))            # (planes, 4*planes)

    params = (g1, b1, w1_mat, g2, b2, w2_dhwio, g3, b3, w3_mat)

    fwd = jax.jit(pre_act_bottleneck_forward)
    out = jax.block_until_ready(fwd(x, params))

    ref = jax.block_until_ready(reference_forward(x, params))
    assert out.shape == (N, inplanes, D, H, W)
    max_err = float(jnp.max(jnp.abs(out - ref)))
    mean_err = float(jnp.mean(jnp.abs(out - ref)))
    # bf16 MXU inputs + bf16 intermediates (f32 accumulation) bound the error below these.
    assert max_err < 1e-1, f"mismatch vs reference: max abs err {max_err}"
    assert mean_err < 1e-2, f"mismatch vs reference: mean abs err {mean_err}"

    print("KERNEL_OK")
</pallas_src>

<mosaic_0001>
module attributes {stable_mosaic.version = 11 : i64} {
  func.func @_stats_kernel(%arg0: i32, %arg1: memref<512x16xf32, #tpu.memory_space<vmem>>, %arg2: memref<1x1x16xf32, #tpu.memory_space<vmem>>, %arg3: memref<1x1x16xf32, #tpu.memory_space<vmem>>) attributes {dimension_semantics = [#tpu.dimension_semantics<parallel>], iteration_bounds = array<i64: 2>, scalar_prefetch = 0 : i64, scratch_operands = 0 : i64, tpu.core_type = #tpu.core_type<tc>, window_params = [{transform_indices = @transform_0, window_bounds = array<i64: 512, 16>}, {transform_indices = @transform_1, window_bounds = array<i64: 1, 1, 16>}, {transform_indices = @transform_2, window_bounds = array<i64: 1, 1, 16>}]} {
    %c0 = arith.constant 0 : index
    %c0_0 = arith.constant 0 : index
    %0 = vector.load %arg1[%c0, %c0_0] : memref<512x16xf32, #tpu.memory_space<vmem>>, vector<512x16xf32>
    %cst = arith.constant dense<0.000000e+00> : vector<16xf32>
    %1 = vector.multi_reduction <add>, %0, %cst [0] : vector<512x16xf32> to vector<16xf32>
    %2 = vector.shape_cast %1 : vector<16xf32> to vector<1x16xf32>
    %c0_1 = arith.constant 0 : index
    %c0_2 = arith.constant 0 : index
    %c0_3 = arith.constant 0 : index
    %3 = vector.load %arg2[%c0_1, %c0_2, %c0_3] : memref<1x1x16xf32, #tpu.memory_space<vmem>>, vector<1x1x16xf32>
    %4 = vector.shape_cast %3 : vector<1x1x16xf32> to vector<1x16xf32>
    %5 = vector.shape_cast %2 : vector<1x16xf32> to vector<1x1x16xf32>
    tpu.vector_store %arg2[%c0_1, %c0_2, %c0_3], %5 {strides = array<i32>} : memref<1x1x16xf32, #tpu.memory_space<vmem>>, vector<1x1x16xf32>,
    %6 = arith.mulf %0, %0 : vector<512x16xf32>
    %cst_4 = arith.constant dense<0.000000e+00> : vector<16xf32>
    %7 = vector.multi_reduction <add>, %6, %cst_4 [0] : vector<512x16xf32> to vector<16xf32>
    %8 = vector.shape_cast %7 : vector<16xf32> to vector<1x16xf32>
    %c0_5 = arith.constant 0 : index
    %c0_6 = arith.constant 0 : index
    %c0_7 = arith.constant 0 : index
    %9 = vector.load %arg3[%c0_5, %c0_6, %c0_7] : memref<1x1x16xf32, #tpu.memory_space<vmem>>, vector<1x1x16xf32>
    %10 = vector.shape_cast %9 : vector<1x1x16xf32> to vector<1x16xf32>
    %11 = vector.shape_cast %8 : vector<1x16xf32> to vector<1x1x16xf32>
    tpu.vector_store %arg3[%c0_5, %c0_6, %c0_7], %11 {strides = array<i32>} : memref<1x1x16xf32, #tpu.memory_space<vmem>>, vector<1x1x16xf32>,
    return
  }
  func.func @transform_0(%arg0: i32) -> (i32, i32) {
    %c0_i32 = arith.constant 0 : i32
    %c0_i32_0 = arith.constant 0 : i32
    return %arg0, %c0_i32 : i32, i32
  }
  func.func @transform_1(%arg0: i32) -> (i32, i32, i32) {
    %c0_i32 = arith.constant 0 : i32
    %c0_i32_0 = arith.constant 0 : i32
    %c0_i32_1 = arith.constant 0 : i32
    return %arg0, %c0_i32, %c0_i32_0 : i32, i32, i32
  }
  func.func @transform_2(%arg0: i32) -> (i32, i32, i32) {
    %c0_i32 = arith.constant 0 : i32
    %c0_i32_0 = arith.constant 0 : i32
    %c0_i32_1 = arith.constant 0 : i32
    return %arg0, %c0_i32, %c0_i32_0 : i32, i32, i32
  }
}

module attributes {stable_mosaic.version = 11 : i64} {
  func.func @_bn_relu_matmul_stats_kernel(%arg0: i32, %arg1: memref<512x16xf32, #tpu.memory_space<vmem>>, %arg2: memref<1x16xf32, #tpu.memory_space<vmem>>, %arg3: memref<1x16xf32, #tpu.memory_space<vmem>>, %arg4: memref<16x4xbf16, #tpu.memory_space<vmem>>, %arg5: memref<512x4xbf16, #tpu.memory_space<vmem>>, %arg6: memref<1x1x4xf32, #tpu.memory_space<vmem>>, %arg7: memref<1x1x4xf32, #tpu.memory_space<vmem>>) attributes {dimension_semantics = [#tpu.dimension_semantics<parallel>], iteration_bounds = array<i64: 2>, scalar_prefetch = 0 : i64, scratch_operands = 0 : i64, tpu.core_type = #tpu.core_type<tc>, window_params = [{transform_indices = @transform_0, window_bounds = array<i64: 512, 16>}, {pipeline_mode = #tpu.pipeline_mode<synchronous>, transform_indices = @transform_1, window_bounds = array<i64: 1, 16>}, {pipeline_mode = #tpu.pipeline_mode<synchronous>, transform_indices = @transform_2, window_bounds = array<i64: 1, 16>}, {pipeline_mode = #tpu.pipeline_mode<synchronous>, transform_indices = @transform_3, window_bounds = array<i64: 16, 4>}, {transform_indices = @transform_4, window_bounds = array<i64: 512, 4>}, {transform_indices = @transform_5, window_bounds = array<i64: 1, 1, 4>}, {transform_indices = @transform_6, window_bounds = array<i64: 1, 1, 4>}]} {
    %c0 = arith.constant 0 : index
    %c0_0 = arith.constant 0 : index
    %0 = vector.load %arg1[%c0, %c0_0] : memref<512x16xf32, #tpu.memory_space<vmem>>, vector<512x16xf32>
    %c0_1 = arith.constant 0 : index
    %c0_2 = arith.constant 0 : index
    %1 = vector.load %arg2[%c0_1, %c0_2] : memref<1x16xf32, #tpu.memory_space<vmem>>, vector<1x16xf32>
    %2 = vector.broadcast %1 : vector<1x16xf32> to vector<512x16xf32>
    %3 = arith.mulf %0, %2 : vector<512x16xf32>
    %c0_3 = arith.constant 0 : index
    %c0_4 = arith.constant 0 : index
    %4 = vector.load %arg3[%c0_3, %c0_4] : memref<1x16xf32, #tpu.memory_space<vmem>>, vector<1x16xf32>
    %5 = vector.broadcast %4 : vector<1x16xf32> to vector<512x16xf32>
    %6 = arith.addf %3, %5 : vector<512x16xf32>
    %cst = arith.constant 0.000000e+00 : f32
    %7 = vector.broadcast %cst : f32 to vector<512x16xf32>
    %8 = arith.maximumf %6, %7 : vector<512x16xf32>
    %9 = arith.truncf %8 : vector<512x16xf32> to vector<512x16xbf16>
    %c0_5 = arith.constant 0 : index
    %c0_6 = arith.constant 0 : index
    %10 = vector.load %arg4[%c0_5, %c0_6] : memref<16x4xbf16, #tpu.memory_space<vmem>>, vector<16x4xbf16>
    %cst_7 = arith.constant dense<0.000000e+00> : vector<512x4xf32>
    %11 = tpu.matmul %9, %10, %cst_7 {dimension_numbers = #tpu.dot_dimension_numbers<[1], [0], [0], [1], [0, 0, 1, 1], [], []>} : vector<512x16xbf16>, vector<16x4xbf16>, vector<512x4xf32> -> vector<512x4xf32>
    %12 = arith.truncf %11 : vector<512x4xf32> to vector<512x4xbf16>
    %c0_8 = arith.constant 0 : index
    %c0_9 = arith.constant 0 : index
    %13 = vector.load %arg5[%c0_8, %c0_9] : memref<512x4xbf16, #tpu.memory_space<vmem>>, vector<512x4xbf16>
    tpu.vector_store %arg5[%c0_8, %c0_9], %12 {strides = array<i32>} : memref<512x4xbf16, #tpu.memory_space<vmem>>, vector<512x4xbf16>,
    %cst_10 = arith.constant dense<0.000000e+00> : vector<4xf32>
    %14 = vector.multi_reduction <add>, %11, %cst_10 [0] : vector<512x4xf32> to vector<4xf32>
    %15 = vector.shape_cast %14 : vector<4xf32> to vector<1x4xf32>
    %c0_11 = arith.constant 0 : index
    %c0_12 = arith.constant 0 : index
    %c0_13 = arith.constant 0 : index
    %16 = vector.load %arg6[%c0_11, %c0_12, %c0_13] : memref<1x1x4xf32, #tpu.memory_space<vmem>>, vector<1x1x4xf32>
    %17 = vector.shape_cast %16 : vector<1x1x4xf32> to vector<1x4xf32>
    %18 = vector.shape_cast %15 : vector<1x4xf32> to vector<1x1x4xf32>
    tpu.vector_store %arg6[%c0_11, %c0_12, %c0_13], %18 {strides = array<i32>} : memref<1x1x4xf32, #tpu.memory_space<vmem>>, vector<1x1x4xf32>,
    %19 = arith.mulf %11, %11 : vector<512x4xf32>
    %cst_14 = arith.constant dense<0.000000e+00> : vector<4xf32>
    %20 = vector.multi_reduction <add>, %19, %cst_14 [0] : vector<512x4xf32> to vector<4xf32>
    %21 = vector.shape_cast %20 : vector<4xf32> to vector<1x4xf32>
    %c0_15 = arith.constant 0 : index
    %c0_16 = arith.constant 0 : index
    %c0_17 = arith.constant 0 : index
    %22 = vector.load %arg7[%c0_15, %c0_16, %c0_17] : memref<1x1x4xf32, #tpu.memory_space<vmem>>, vector<1x1x4xf32>
    %23 = vector.shape_cast %22 : vector<1x1x4xf32> to vector<1x4xf32>
    %24 = vector.shape_cast %21 : vector<1x4xf32> to vector<1x1x4xf32>
    tpu.vector_store %arg7[%c0_15, %c0_16, %c0_17], %24 {strides = array<i32>} : memref<1x1x4xf32, #tpu.memory_space<vmem>>, vector<1x1x4xf32>,
    return
  }
  func.func @transform_0(%arg0: i32) -> (i32, i32) {
    %c0_i32 = arith.constant 0 : i32
    %c0_i32_0 = arith.constant 0 : i32
    return %arg0, %c0_i32 : i32, i32
  }
  func.func @transform_1(%arg0: i32) -> (i32, i32) {
    %c0_i32 = arith.constant 0 : i32
    %c0_i32_0 = arith.constant 0 : i32
    %c0_i32_1 = arith.constant 0 : i32
    return %c0_i32, %c0_i32_0 : i32, i32
  }
  func.func @transform_2(%arg0: i32) -> (i32, i32) {
    %c0_i32 = arith.constant 0 : i32
    %c0_i32_0 = arith.constant 0 : i32
    %c0_i32_1 = arith.constant 0 : i32
    return %c0_i32, %c0_i32_0 : i32, i32
  }
  func.func @transform_3(%arg0: i32) -> (i32, i32) {
    %c0_i32 = arith.constant 0 : i32
    %c0_i32_0 = arith.constant 0 : i32
    %c0_i32_1 = arith.constant 0 : i32
    return %c0_i32, %c0_i32_0 : i32, i32
  }
  func.func @transform_4(%arg0: i32) -> (i32, i32) {
    %c0_i32 = arith.constant 0 : i32
    %c0_i32_0 = arith.constant 0 : i32
    return %arg0, %c0_i32 : i32, i32
  }
  func.func @transform_5(%arg0: i32) -> (i32, i32, i32) {
    %c0_i32 = arith.constant 0 : i32
    %c0_i32_0 = arith.constant 0 : i32
    %c0_i32_1 = arith.constant 0 : i32
    return %arg0, %c0_i32, %c0_i32_0 : i32, i32, i32
  }
  func.func @transform_6(%arg0: i32) -> (i32, i32, i32) {
    %c0_i32 = arith.constant 0 : i32
    %c0_i32_0 = arith.constant 0 : i32
    %c0_i32_1 = arith.constant 0 : i32
    return %arg0, %c0_i32, %c0_i32_0 : i32, i32, i32
  }
}

module attributes {stable_mosaic.version = 11 : i64} {
  func.func @_bn_relu_matmul_add_kernel(%arg0: i32, %arg1: memref<512x4xbf16, #tpu.memory_space<vmem>>, %arg2: memref<1x4xf32, #tpu.memory_space<vmem>>, %arg3: memref<1x4xf32, #tpu.memory_space<vmem>>, %arg4: memref<4x16xbf16, #tpu.memory_space<vmem>>, %arg5: memref<512x16xf32, #tpu.memory_space<vmem>>, %arg6: memref<512x16xf32, #tpu.memory_space<vmem>>) attributes {dimension_semantics = [#tpu.dimension_semantics<parallel>], iteration_bounds = array<i64: 2>, scalar_prefetch = 0 : i64, scratch_operands = 0 : i64, tpu.core_type = #tpu.core_type<tc>, window_params = [{transform_indices = @transform_0, window_bounds = array<i64: 512, 4>}, {pipeline_mode = #tpu.pipeline_mode<synchronous>, transform_indices = @transform_1, window_bounds = array<i64: 1, 4>}, {pipeline_mode = #tpu.pipeline_mode<synchronous>, transform_indices = @transform_2, window_bounds = array<i64: 1, 4>}, {pipeline_mode = #tpu.pipeline_mode<synchronous>, transform_indices = @transform_3, window_bounds = array<i64: 4, 16>}, {transform_indices = @transform_4, window_bounds = array<i64: 512, 16>}, {transform_indices = @transform_5, window_bounds = array<i64: 512, 16>}]} {
    %c0 = arith.constant 0 : index
    %c0_0 = arith.constant 0 : index
    %0 = vector.load %arg1[%c0, %c0_0] : memref<512x4xbf16, #tpu.memory_space<vmem>>, vector<512x4xbf16>
    %1 = arith.extf %0 : vector<512x4xbf16> to vector<512x4xf32>
    %c0_1 = arith.constant 0 : index
    %c0_2 = arith.constant 0 : index
    %2 = vector.load %arg2[%c0_1, %c0_2] : memref<1x4xf32, #tpu.memory_space<vmem>>, vector<1x4xf32>
    %3 = vector.broadcast %2 : vector<1x4xf32> to vector<512x4xf32>
    %4 = arith.mulf %1, %3 : vector<512x4xf32>
    %c0_3 = arith.constant 0 : index
    %c0_4 = arith.constant 0 : index
    %5 = vector.load %arg3[%c0_3, %c0_4] : memref<1x4xf32, #tpu.memory_space<vmem>>, vector<1x4xf32>
    %6 = vector.broadcast %5 : vector<1x4xf32> to vector<512x4xf32>
    %7 = arith.addf %4, %6 : vector<512x4xf32>
    %cst = arith.constant 0.000000e+00 : f32
    %8 = vector.broadcast %cst : f32 to vector<512x4xf32>
    %9 = arith.maximumf %7, %8 : vector<512x4xf32>
    %10 = arith.truncf %9 : vector<512x4xf32> to vector<512x4xbf16>
    %c0_5 = arith.constant 0 : index
    %c0_6 = arith.constant 0 : index
    %11 = vector.load %arg4[%c0_5, %c0_6] : memref<4x16xbf16, #tpu.memory_space<vmem>>, vector<4x16xbf16>
    %cst_7 = arith.constant dense<0.000000e+00> : vector<512x16xf32>
    %12 = tpu.matmul %10, %11, %cst_7 {dimension_numbers = #tpu.dot_dimension_numbers<[1], [0], [0], [1], [0, 0, 1, 1], [], []>} : vector<512x4xbf16>, vector<4x16xbf16>, vector<512x16xf32> -> vector<512x16xf32>
    %c0_8 = arith.constant 0 : index
    %c0_9 = arith.constant 0 : index
    %13 = vector.load %arg5[%c0_8, %c0_9] : memref<512x16xf32, #tpu.memory_space<vmem>>, vector<512x16xf32>
    %14 = arith.addf %12, %13 : vector<512x16xf32>
    %c0_10 = arith.constant 0 : index
    %c0_11 = arith.constant 0 : index
    %15 = vector.load %arg6[%c0_10, %c0_11] : memref<512x16xf32, #tpu.memory_space<vmem>>, vector<512x16xf32>
    tpu.vector_store %arg6[%c0_10, %c0_11], %14 {strides = array<i32>} : memref<512x16xf32, #tpu.memory_space<vmem>>, vector<512x16xf32>,
    return
  }
  func.func @transform_0(%arg0: i32) -> (i32, i32) {
    %c0_i32 = arith.constant 0 : i32
    %c0_i32_0 = arith.constant 0 : i32
    return %arg0, %c0_i32 : i32, i32
  }
  func.func @transform_1(%arg0: i32) -> (i32, i32) {
    %c0_i32 = arith.constant 0 : i32
    %c0_i32_0 = arith.constant 0 : i32
    %c0_i32_1 = arith.constant 0 : i32
    return %c0_i32, %c0_i32_0 : i32, i32
  }
  func.func @transform_2(%arg0: i32) -> (i32, i32) {
    %c0_i32 = arith.constant 0 : i32
    %c0_i32_0 = arith.constant 0 : i32
    %c0_i32_1 = arith.constant 0 : i32
    return %c0_i32, %c0_i32_0 : i32, i32
  }
  func.func @transform_3(%arg0: i32) -> (i32, i32) {
    %c0_i32 = arith.constant 0 : i32
    %c0_i32_0 = arith.constant 0 : i32
    %c0_i32_1 = arith.constant 0 : i32
    return %c0_i32, %c0_i32_0 : i32, i32
  }
  func.func @transform_4(%arg0: i32) -> (i32, i32) {
    %c0_i32 = arith.constant 0 : i32
    %c0_i32_0 = arith.constant 0 : i32
    return %arg0, %c0_i32 : i32, i32
  }
  func.func @transform_5(%arg0: i32) -> (i32, i32) {
    %c0_i32 = arith.constant 0 : i32
    %c0_i32_0 = arith.constant 0 : i32
    return %arg0, %c0_i32 : i32, i32
  }
}

module attributes {stable_mosaic.version = 11 : i64} {
  func.func @_bn_relu_conv3x3x3_stats_kernel(%arg0: i32, %arg1: i32, %arg2: memref<1x1x8x8x4xbf16, #tpu.memory_space<vmem>>, %arg3: memref<1x4x8x8x4xbf16, #tpu.memory_space<vmem>>, %arg4: memref<1x1x8x8x4xbf16, #tpu.memory_space<vmem>>, %arg5: memref<1x4xf32, #tpu.memory_space<vmem>>, %arg6: memref<1x4xf32, #tpu.memory_space<vmem>>, %arg7: memref<3x3x12x4xbf16, #tpu.memory_space<vmem>>, %arg8: memref<1x4x8x8x4xbf16, #tpu.memory_space<vmem>>, %arg9: memref<1x1x1x4xf32, #tpu.memory_space<vmem>>, %arg10: memref<1x1x1x4xf32, #tpu.memory_space<vmem>>) attributes {dimension_semantics = [#tpu.dimension_semantics<parallel>, #tpu.dimension_semantics<parallel>], iteration_bounds = array<i64: 2, 2>, scalar_prefetch = 0 : i64, scratch_operands = 0 : i64, tpu.core_type = #tpu.core_type<tc>, window_params = [{transform_indices = @transform_0, window_bounds = array<i64: 1, 1, 8, 8, 4>}, {transform_indices = @transform_1, window_bounds = array<i64: 1, 4, 8, 8, 4>}, {transform_indices = @transform_2, window_bounds = array<i64: 1, 1, 8, 8, 4>}, {pipeline_mode = #tpu.pipeline_mode<synchronous>, transform_indices = @transform_3, window_bounds = array<i64: 1, 4>}, {pipeline_mode = #tpu.pipeline_mode<synchronous>, transform_indices = @transform_4, window_bounds = array<i64: 1, 4>}, {pipeline_mode = #tpu.pipeline_mode<synchronous>, transform_indices = @transform_5, window_bounds = array<i64: 3, 3, 12, 4>}, {transform_indices = @transform_6, window_bounds = array<i64: 1, 4, 8, 8, 4>}, {transform_indices = @transform_7, window_bounds = array<i64: 1, 1, 1, 4>}, {transform_indices = @transform_8, window_bounds = array<i64: 1, 1, 1, 4>}]} {
    %c0 = arith.constant 0 : index
    %c0_0 = arith.constant 0 : index
    %0 = vector.load %arg5[%c0, %c0_0] : memref<1x4xf32, #tpu.memory_space<vmem>>, vector<1x4xf32>
    %1 = vector.shape_cast %0 : vector<1x4xf32> to vector<1x1x1x4xf32>
    %c0_1 = arith.constant 0 : index
    %c0_2 = arith.constant 0 : index
    %2 = vector.load %arg6[%c0_1, %c0_2] : memref<1x4xf32, #tpu.memory_space<vmem>>, vector<1x4xf32>
    %3 = vector.shape_cast %2 : vector<1x4xf32> to vector<1x1x1x4xf32>
    %c0_3 = arith.constant 0 : index
    %c0_4 = arith.constant 0 : index
    %c0_5 = arith.constant 0 : index
    %c0_6 = arith.constant 0 : index
    %c0_7 = arith.constant 0 : index
    %4 = vector.load %arg3[%c0_3, %c0_4, %c0_5, %c0_6, %c0_7] : memref<1x4x8x8x4xbf16, #tpu.memory_space<vmem>>, vector<1x4x8x8x4xbf16>
    %5 = vector.shape_cast %4 : vector<1x4x8x8x4xbf16> to vector<4x8x8x4xbf16>
    %6 = arith.extf %5 : vector<4x8x8x4xbf16> to vector<4x8x8x4xf32>
    %7 = vector.broadcast %1 : vector<1x1x1x4xf32> to vector<4x8x8x4xf32>
    %8 = arith.mulf %6, %7 : vector<4x8x8x4xf32>
    %9 = vector.broadcast %3 : vector<1x1x1x4xf32> to vector<4x8x8x4xf32>
    %10 = arith.addf %8, %9 : vector<4x8x8x4xf32>
    %cst = arith.constant 0.000000e+00 : f32
    %11 = vector.broadcast %cst : f32 to vector<4x8x8x4xf32>
    %12 = arith.maximumf %10, %11 : vector<4x8x8x4xf32>
    %c0_8 = arith.constant 0 : index
    %c0_9 = arith.constant 0 : index
    %c0_10 = arith.constant 0 : index
    %c0_11 = arith.constant 0 : index
    %c0_12 = arith.constant 0 : index
    %13 = vector.load %arg2[%c0_8, %c0_9, %c0_10, %c0_11, %c0_12] : memref<1x1x8x8x4xbf16, #tpu.memory_space<vmem>>, vector<1x1x8x8x4xbf16>
    %14 = vector.shape_cast %13 : vector<1x1x8x8x4xbf16> to vector<1x8x8x4xbf16>
    %c0_i32 = arith.constant 0 : i32
    %15 = arith.cmpi sgt, %arg1, %c0_i32 : i32
    %16 = arith.extui %15 : i1 to i32
    %17 = arith.sitofp %16 : i32 to f32
    %18 = arith.extf %14 : vector<1x8x8x4xbf16> to vector<1x8x8x4xf32>
    %19 = vector.broadcast %1 : vector<1x1x1x4xf32> to vector<1x8x8x4xf32>
    %20 = arith.mulf %18, %19 : vector<1x8x8x4xf32>
    %21 = vector.broadcast %3 : vector<1x1x1x4xf32> to vector<1x8x8x4xf32>
    %22 = arith.addf %20, %21 : vector<1x8x8x4xf32>
    %cst_13 = arith.constant 0.000000e+00 : f32
    %23 = vector.broadcast %cst_13 : f32 to vector<1x8x8x4xf32>
    %24 = arith.maximumf %22, %23 : vector<1x8x8x4xf32>
    %25 = vector.broadcast %17 : f32 to vector<1x8x8x4xf32>
    %26 = arith.mulf %24, %25 : vector<1x8x8x4xf32>
    %c0_14 = arith.constant 0 : index
    %c0_15 = arith.constant 0 : index
    %c0_16 = arith.constant 0 : index
    %c0_17 = arith.constant 0 : index
    %c0_18 = arith.constant 0 : index
    %27 = vector.load %arg4[%c0_14, %c0_15, %c0_16, %c0_17, %c0_18] : memref<1x1x8x8x4xbf16, #tpu.memory_space<vmem>>, vector<1x1x8x8x4xbf16>
    %28 = vector.shape_cast %27 : vector<1x1x8x8x4xbf16> to vector<1x8x8x4xbf16>
    %c1_i32 = arith.constant 1 : i32
    %29 = arith.cmpi slt, %arg1, %c1_i32 : i32
    %30 = arith.extui %29 : i1 to i32
    %31 = arith.sitofp %30 : i32 to f32
    %32 = arith.extf %28 : vector<1x8x8x4xbf16> to vector<1x8x8x4xf32>
    %33 = vector.broadcast %1 : vector<1x1x1x4xf32> to vector<1x8x8x4xf32>
    %34 = arith.mulf %32, %33 : vector<1x8x8x4xf32>
    %35 = vector.broadcast %3 : vector<1x1x1x4xf32> to vector<1x8x8x4xf32>
    %36 = arith.addf %34, %35 : vector<1x8x8x4xf32>
    %cst_19 = arith.constant 0.000000e+00 : f32
    %37 = vector.broadcast %cst_19 : f32 to vector<1x8x8x4xf32>
    %38 = arith.maximumf %36, %37 : vector<1x8x8x4xf32>
    %39 = vector.broadcast %31 : f32 to vector<1x8x8x4xf32>
    %40 = arith.mulf %38, %39 : vector<1x8x8x4xf32>
    %41 = tpu.concatenate %26, %12, %40 in 0 : vector<1x8x8x4xf32>, vector<4x8x8x4xf32>, vector<1x8x8x4xf32> -> vector<6x8x8x4xf32>
    %42 = arith.truncf %41 : vector<6x8x8x4xf32> to vector<6x8x8x4xbf16>
    %cst_20 = arith.constant 0.000000e+00 : bf16
    %43 = vector.broadcast %cst_20 : bf16 to vector<6x1x8x4xbf16>
    %44 = tpu.concatenate %43, %42, %43 in 1 : vector<6x1x8x4xbf16>, vector<6x8x8x4xbf16>, vector<6x1x8x4xbf16> -> vector<6x10x8x4xbf16>
    %cst_21 = arith.constant 0.000000e+00 : bf16
    %45 = vector.broadcast %cst_21 : bf16 to vector<6x10x1x4xbf16>
    %46 = tpu.concatenate %45, %44, %45 in 2 : vector<6x10x1x4xbf16>, vector<6x10x8x4xbf16>, vector<6x10x1x4xbf16> -> vector<6x10x10x4xbf16>
    %47 = vector.extract_strided_slice %46 {offsets = [0, 0, 0, 0], sizes = [6, 10, 8, 4], strides = [1, 1, 1, 1]} : vector<6x10x10x4xbf16> to vector<6x10x8x4xbf16>
    %48 = vector.extract_strided_slice %46 {offsets = [0, 0, 1, 0], sizes = [6, 10, 8, 4], strides = [1, 1, 1, 1]} : vector<6x10x10x4xbf16> to vector<6x10x8x4xbf16>
    %49 = vector.extract_strided_slice %46 {offsets = [0, 0, 2, 0], sizes = [6, 10, 8, 4], strides = [1, 1, 1, 1]} : vector<6x10x10x4xbf16> to vector<6x10x8x4xbf16>
    %50 = tpu.concatenate %47, %48, %49 in 3 : vector<6x10x8x4xbf16>, vector<6x10x8x4xbf16>, vector<6x10x8x4xbf16> -> vector<6x10x8x12xbf16>
    %c0_22 = arith.constant 0 : index
    %c0_23 = arith.constant 0 : index
    %c0_24 = arith.constant 0 : index
    %c0_25 = arith.constant 0 : index
    %51 = vector.load %arg7[%c0_22, %c0_23, %c0_24, %c0_25] : memref<3x3x12x4xbf16, #tpu.memory_space<vmem>>, vector<3x3x12x4xbf16>
    %52 = vector.extract_strided_slice %50 {offsets = [0, 0, 0, 0], sizes = [4, 8, 8, 12], strides = [1, 1, 1, 1]} : vector<6x10x8x12xbf16> to vector<4x8x8x12xbf16>
    %53 = vector.shape_cast %52 : vector<4x8x8x12xbf16> to vector<256x12xbf16>
    %54 = vector.extract_strided_slice %51 {offsets = [0, 0, 0, 0], sizes = [1, 1, 12, 4], strides = [1, 1, 1, 1]} : vector<3x3x12x4xbf16> to vector<1x1x12x4xbf16>
    %55 = vector.shape_cast %54 : vector<1x1x12x4xbf16> to vector<12x4xbf16>
    %cst_26 = arith.constant dense<0.000000e+00> : vector<256x4xf32>
    %56 = tpu.matmul %53, %55, %cst_26 {dimension_numbers = #tpu.dot_dimension_numbers<[1], [0], [0], [1], [0, 0, 1, 1], [], []>} : vector<256x12xbf16>, vector<12x4xbf16>, vector<256x4xf32> -> vector<256x4xf32>
    %57 = vector.extract_strided_slice %50 {offsets = [0, 1, 0, 0], sizes = [4, 8, 8, 12], strides = [1, 1, 1, 1]} : vector<6x10x8x12xbf16> to vector<4x8x8x12xbf16>
    %58 = vector.shape_cast %57 : vector<4x8x8x12xbf16> to vector<256x12xbf16>
    %59 = vector.extract_strided_slice %51 {offsets = [0, 1, 0, 0], sizes = [1, 1, 12, 4], strides = [1, 1, 1, 1]} : vector<3x3x12x4xbf16> to vector<1x1x12x4xbf16>
    %60 = vector.shape_cast %59 : vector<1x1x12x4xbf16> to vector<12x4xbf16>
    %cst_27 = arith.constant dense<0.000000e+00> : vector<256x4xf32>
    %61 = tpu.matmul %58, %60, %cst_27 {dimension_numbers = #tpu.dot_dimension_numbers<[1], [0], [0], [1], [0, 0, 1, 1], [], []>} : vector<256x12xbf16>, vector<12x4xbf16>, vector<256x4xf32> -> vector<256x4xf32>
    %62 = arith.addf %56, %61 : vector<256x4xf32>
    %63 = vector.extract_strided_slice %50 {offsets = [0, 2, 0, 0], sizes = [4, 8, 8, 12], strides = [1, 1, 1, 1]} : vector<6x10x8x12xbf16> to vector<4x8x8x12xbf16>
    %64 = vector.shape_cast %63 : vector<4x8x8x12xbf16> to vector<256x12xbf16>
    %65 = vector.extract_strided_slice %51 {offsets = [0, 2, 0, 0], sizes = [1, 1, 12, 4], strides = [1, 1, 1, 1]} : vector<3x3x12x4xbf16> to vector<1x1x12x4xbf16>
    %66 = vector.shape_cast %65 : vector<1x1x12x4xbf16> to vector<12x4xbf16>
    %cst_28 = arith.constant dense<0.000000e+00> : vector<256x4xf32>
    %67 = tpu.matmul %64, %66, %cst_28 {dimension_numbers = #tpu.dot_dimension_numbers<[1], [0], [0], [1], [0, 0, 1, 1], [], []>} : vector<256x12xbf16>, vector<12x4xbf16>, vector<256x4xf32> -> vector<256x4xf32>
    %68 = arith.addf %62, %67 : vector<256x4xf32>
    %69 = vector.extract_strided_slice %50 {offsets = [1, 0, 0, 0], sizes = [4, 8, 8, 12], strides = [1, 1, 1, 1]} : vector<6x10x8x12xbf16> to vector<4x8x8x12xbf16>
    %70 = vector.shape_cast %69 : vector<4x8x8x12xbf16> to vector<256x12xbf16>
    %71 = vector.extract_strided_slice %51 {offsets = [1, 0, 0, 0], sizes = [1, 1, 12, 4], strides = [1, 1, 1, 1]} : vector<3x3x12x4xbf16> to vector<1x1x12x4xbf16>
    %72 = vector.shape_cast %71 : vector<1x1x12x4xbf16> to vector<12x4xbf16>
    %cst_29 = arith.constant dense<0.000000e+00> : vector<256x4xf32>
    %73 = tpu.matmul %70, %72, %cst_29 {dimension_numbers = #tpu.dot_dimension_numbers<[1], [0], [0], [1], [0, 0, 1, 1], [], []>} : vector<256x12xbf16>, vector<12x4xbf16>, vector<256x4xf32> -> vector<256x4xf32>
    %74 = arith.addf %68, %73 : vector<256x4xf32>
    %75 = vector.extract_strided_slice %50 {offsets = [1, 1, 0, 0], sizes = [4, 8, 8, 12], strides = [1, 1, 1, 1]} : vector<6x10x8x12xbf16> to vector<4x8x8x12xbf16>
    %76 = vector.shape_cast %75 : vector<4x8x8x12xbf16> to vector<256x12xbf16>
    %77 = vector.extract_strided_slice %51 {offsets = [1, 1, 0, 0], sizes = [1, 1, 12, 4], strides = [1, 1, 1, 1]} : vector<3x3x12x4xbf16> to vector<1x1x12x4xbf16>
    %78 = vector.shape_cast %77 : vector<1x1x12x4xbf16> to vector<12x4xbf16>
    %cst_30 = arith.constant dense<0.000000e+00> : vector<256x4xf32>
    %79 = tpu.matmul %76, %78, %cst_30 {dimension_numbers = #tpu.dot_dimension_numbers<[1], [0], [0], [1], [0, 0, 1, 1], [], []>} : vector<256x12xbf16>, vector<12x4xbf16>, vector<256x4xf32> -> vector<256x4xf32>
    %80 = arith.addf %74, %79 : vector<256x4xf32>
    %81 = vector.extract_strided_slice %50 {offsets = [1, 2, 0, 0], sizes = [4, 8, 8, 12], strides = [1, 1, 1, 1]} : vector<6x10x8x12xbf16> to vector<4x8x8x12xbf16>
    %82 = vector.shape_cast %81 : vector<4x8x8x12xbf16> to vector<256x12xbf16>
    %83 = vector.extract_strided_slice %51 {offsets = [1, 2, 0, 0], sizes = [1, 1, 12, 4], strides = [1, 1, 1, 1]} : vector<3x3x12x4xbf16> to vector<1x1x12x4xbf16>
    %84 = vector.shape_cast %83 : vector<1x1x12x4xbf16> to vector<12x4xbf16>
    %cst_31 = arith.constant dense<0.000000e+00> : vector<256x4xf32>
    %85 = tpu.matmul %82, %84, %cst_31 {dimension_numbers = #tpu.dot_dimension_numbers<[1], [0], [0], [1], [0, 0, 1, 1], [], []>} : vector<256x12xbf16>, vector<12x4xbf16>, vector<256x4xf32> -> vector<256x4xf32>
    %86 = arith.addf %80, %85 : vector<256x4xf32>
    %87 = vector.extract_strided_slice %50 {offsets = [2, 0, 0, 0], sizes = [4, 8, 8, 12], strides = [1, 1, 1, 1]} : vector<6x10x8x12xbf16> to vector<4x8x8x12xbf16>
    %88 = vector.shape_cast %87 : vector<4x8x8x12xbf16> to vector<256x12xbf16>
    %89 = vector.extract_strided_slice %51 {offsets = [2, 0, 0, 0], sizes = [1, 1, 12, 4], strides = [1, 1, 1, 1]} : vector<3x3x12x4xbf16> to vector<1x1x12x4xbf16>
    %90 = vector.shape_cast %89 : vector<1x1x12x4xbf16> to vector<12x4xbf16>
    %cst_32 = arith.constant dense<0.000000e+00> : vector<256x4xf32>
    %91 = tpu.matmul %88, %90, %cst_32 {dimension_numbers = #tpu.dot_dimension_numbers<[1], [0], [0], [1], [0, 0, 1, 1], [], []>} : vector<256x12xbf16>, vector<12x4xbf16>, vector<256x4xf32> -> vector<256x4xf32>
    %92 = arith.addf %86, %91 : vector<256x4xf32>
    %93 = vector.extract_strided_slice %50 {offsets = [2, 1, 0, 0], sizes = [4, 8, 8, 12], strides = [1, 1, 1, 1]} : vector<6x10x8x12xbf16> to vector<4x8x8x12xbf16>
    %94 = vector.shape_cast %93 : vector<4x8x8x12xbf16> to vector<256x12xbf16>
    %95 = vector.extract_strided_slice %51 {offsets = [2, 1, 0, 0], sizes = [1, 1, 12, 4], strides = [1, 1, 1, 1]} : vector<3x3x12x4xbf16> to vector<1x1x12x4xbf16>
    %96 = vector.shape_cast %95 : vector<1x1x12x4xbf16> to vector<12x4xbf16>
    %cst_33 = arith.constant dense<0.000000e+00> : vector<256x4xf32>
    %97 = tpu.matmul %94, %96, %cst_33 {dimension_numbers = #tpu.dot_dimension_numbers<[1], [0], [0], [1], [0, 0, 1, 1], [], []>} : vector<256x12xbf16>, vector<12x4xbf16>, vector<256x4xf32> -> vector<256x4xf32>
    %98 = arith.addf %92, %97 : vector<256x4xf32>
    %99 = vector.extract_strided_slice %50 {offsets = [2, 2, 0, 0], sizes = [4, 8, 8, 12], strides = [1, 1, 1, 1]} : vector<6x10x8x12xbf16> to vector<4x8x8x12xbf16>
    %100 = vector.shape_cast %99 : vector<4x8x8x12xbf16> to vector<256x12xbf16>
    %101 = vector.extract_strided_slice %51 {offsets = [2, 2, 0, 0], sizes = [1, 1, 12, 4], strides = [1, 1, 1, 1]} : vector<3x3x12x4xbf16> to vector<1x1x12x4xbf16>
    %102 = vector.shape_cast %101 : vector<1x1x12x4xbf16> to vector<12x4xbf16>
    %cst_34 = arith.constant dense<0.000000e+00> : vector<256x4xf32>
    %103 = tpu.matmul %100, %102, %cst_34 {dimension_numbers = #tpu.dot_dimension_numbers<[1], [0], [0], [1], [0, 0, 1, 1], [], []>} : vector<256x12xbf16>, vector<12x4xbf16>, vector<256x4xf32> -> vector<256x4xf32>
    %104 = arith.addf %98, %103 : vector<256x4xf32>
    %105 = vector.shape_cast %104 : vector<256x4xf32> to vector<4x8x8x4xf32>
    %106 = arith.truncf %105 : vector<4x8x8x4xf32> to vector<4x8x8x4xbf16>
    %c0_35 = arith.constant 0 : index
    %c0_36 = arith.constant 0 : index
    %c0_37 = arith.constant 0 : index
    %c0_38 = arith.constant 0 : index
    %c0_39 = arith.constant 0 : index
    %107 = vector.load %arg8[%c0_35, %c0_36, %c0_37, %c0_38, %c0_39] : memref<1x4x8x8x4xbf16, #tpu.memory_space<vmem>>, vector<1x4x8x8x4xbf16>
    %108 = vector.shape_cast %107 : vector<1x4x8x8x4xbf16> to vector<4x8x8x4xbf16>
    %109 = vector.shape_cast %106 : vector<4x8x8x4xbf16> to vector<1x4x8x8x4xbf16>
    tpu.vector_store %arg8[%c0_35, %c0_36, %c0_37, %c0_38, %c0_39], %109 {strides = array<i32>} : memref<1x4x8x8x4xbf16, #tpu.memory_space<vmem>>, vector<1x4x8x8x4xbf16>,
    %cst_40 = arith.constant dense<0.000000e+00> : vector<4xf32>
    %110 = vector.multi_reduction <add>, %104, %cst_40 [0] : vector<256x4xf32> to vector<4xf32>
    %111 = vector.shape_cast %110 : vector<4xf32> to vector<1x1x1x4xf32>
    %c0_41 = arith.constant 0 : index
    %c0_42 = arith.constant 0 : index
    %c0_43 = arith.constant 0 : index
    %c0_44 = arith.constant 0 : index
    %112 = vector.load %arg9[%c0_41, %c0_42, %c0_43, %c0_44] : memref<1x1x1x4xf32, #tpu.memory_space<vmem>>, vector<1x1x1x4xf32>
    tpu.vector_store %arg9[%c0_41, %c0_42, %c0_43, %c0_44], %111 {strides = array<i32>} : memref<1x1x1x4xf32, #tpu.memory_space<vmem>>, vector<1x1x1x4xf32>,
    %113 = arith.mulf %104, %104 : vector<256x4xf32>
    %cst_45 = arith.constant dense<0.000000e+00> : vector<4xf32>
    %114 = vector.multi_reduction <add>, %113, %cst_45 [0] : vector<256x4xf32> to vector<4xf32>
    %115 = vector.shape_cast %114 : vector<4xf32> to vector<1x1x1x4xf32>
    %c0_46 = arith.constant 0 : index
    %c0_47 = arith.constant 0 : index
    %c0_48 = arith.constant 0 : index
    %c0_49 = arith.constant 0 : index
    %116 = vector.load %arg10[%c0_46, %c0_47, %c0_48, %c0_49] : memref<1x1x1x4xf32, #tpu.memory_space<vmem>>, vector<1x1x1x4xf32>
    tpu.vector_store %arg10[%c0_46, %c0_47, %c0_48, %c0_49], %115 {strides = array<i32>} : memref<1x1x1x4xf32, #tpu.memory_space<vmem>>, vector<1x1x1x4xf32>,
    return
  }
  func.func @transform_0(%arg0: i32, %arg1: i32) -> (i32, i32, i32, i32, i32) {
    %c4_i32 = arith.constant 4 : i32
    %0 = arith.muli %arg1, %c4_i32 : i32
    %c1_i32 = arith.constant 1 : i32
    %1 = arith.subi %0, %c1_i32 : i32
    %c0_i32 = arith.constant 0 : i32
    %2 = arith.maxsi %1, %c0_i32 : i32
    %c0_i32_0 = arith.constant 0 : i32
    %c0_i32_1 = arith.constant 0 : i32
    %c0_i32_2 = arith.constant 0 : i32
    %c0_i32_3 = arith.constant 0 : i32
    return %arg0, %2, %c0_i32_0, %c0_i32_1, %c0_i32_2 : i32, i32, i32, i32, i32
  }
  func.func @transform_1(%arg0: i32, %arg1: i32) -> (i32, i32, i32, i32, i32) {
    %c0_i32 = arith.constant 0 : i32
    %c0_i32_0 = arith.constant 0 : i32
    %c0_i32_1 = arith.constant 0 : i32
    %c0_i32_2 = arith.constant 0 : i32
    return %arg0, %arg1, %c0_i32, %c0_i32_0, %c0_i32_1 : i32, i32, i32, i32, i32
  }
  func.func @transform_2(%arg0: i32, %arg1: i32) -> (i32, i32, i32, i32, i32) {
    %c4_i32 = arith.constant 4 : i32
    %0 = arith.muli %arg1, %c4_i32 : i32
    %c4_i32_0 = arith.constant 4 : i32
    %1 = arith.addi %0, %c4_i32_0 : i32
    %c7_i32 = arith.constant 7 : i32
    %2 = arith.minsi %1, %c7_i32 : i32
    %c0_i32 = arith.constant 0 : i32
    %c0_i32_1 = arith.constant 0 : i32
    %c0_i32_2 = arith.constant 0 : i32
    %c0_i32_3 = arith.constant 0 : i32
    return %arg0, %2, %c0_i32, %c0_i32_1, %c0_i32_2 : i32, i32, i32, i32, i32
  }
  func.func @transform_3(%arg0: i32, %arg1: i32) -> (i32, i32) {
    %c0_i32 = arith.constant 0 : i32
    %c0_i32_0 = arith.constant 0 : i32
    %c0_i32_1 = arith.constant 0 : i32
    return %c0_i32, %c0_i32_0 : i32, i32
  }
  func.func @transform_4(%arg0: i32, %arg1: i32) -> (i32, i32) {
    %c0_i32 = arith.constant 0 : i32
    %c0_i32_0 = arith.constant 0 : i32
    %c0_i32_1 = arith.constant 0 : i32
    return %c0_i32, %c0_i32_0 : i32, i32
  }
  func.func @transform_5(%arg0: i32, %arg1: i32) -> (i32, i32, i32, i32) {
    %c0_i32 = arith.constant 0 : i32
    %c0_i32_0 = arith.constant 0 : i32
    %c0_i32_1 = arith.constant 0 : i32
    %c0_i32_2 = arith.constant 0 : i32
    %c0_i32_3 = arith.constant 0 : i32
    return %c0_i32, %c0_i32_0, %c0_i32_1, %c0_i32_2 : i32, i32, i32, i32
  }
  func.func @transform_6(%arg0: i32, %arg1: i32) -> (i32, i32, i32, i32, i32) {
    %c0_i32 = arith.constant 0 : i32
    %c0_i32_0 = arith.constant 0 : i32
    %c0_i32_1 = arith.constant 0 : i32
    %c0_i32_2 = arith.constant 0 : i32
    return %arg0, %arg1, %c0_i32, %c0_i32_0, %c0_i32_1 : i32, i32, i32, i32, i32
  }
  func.func @transform_7(%arg0: i32, %arg1: i32) -> (i32, i32, i32, i32) {
    %c0_i32 = arith.constant 0 : i32
    %c0_i32_0 = arith.constant 0 : i32
    %c0_i32_1 = arith.constant 0 : i32
    return %arg0, %arg1, %c0_i32, %c0_i32_0 : i32, i32, i32, i32
  }
  func.func @transform_8(%arg0: i32, %arg1: i32) -> (i32, i32, i32, i32) {
    %c0_i32 = arith.constant 0 : i32
    %c0_i32_0 = arith.constant 0 : i32
    %c0_i32_1 = arith.constant 0 : i32
    return %arg0, %arg1, %c0_i32, %c0_i32_0 : i32, i32, i32, i32
  }
}

</mosaic_0001>

<llo_original>
// kernel: pre_act_bottleneck_forward.4
$region0: #{pre_act_bottleneck_forward.4}
  #allocation0 [shape = 'u32[]', space=smem, size = 0x4, offset = 0x4, fixed_abs, tag = 'smem constant byte address 0x4 - core index']
  #allocation1 [shape = 'u32[144,128]{1,0:T(1,128)}', space=vmem, size = 0x12000, scoped, tag = 'internal scratch']
  %s0 = inlined_call_operand.hbm [shape: f32[1024,16], index: 0, kind: input, shape index: {}]
  %s1 = inlined_call_operand.vmem [shape: f32[2,1,16], index: 1, kind: output, shape index: {0}]
  %s2 = inlined_call_operand.vmem [shape: f32[2,1,16], index: 2, kind: output, shape index: {1}]
  %3 = xla_tuple %s1, %s2
  %s4 = sld [smem:[#allocation0]]
  $region49: #{pre_act_bottleneck_forward.4} parent=0
    _
  %s6 = ssub.s32 1, %s4
  %s7 = scalar_select 0, %s6, %s4
  $region1: #{pre_act_bottleneck_forward.4} parent=0
    #allocation2 [shape = 'u8[524288]{0}', space=vmem, size = 0x80000, scoped, tag = 'input window, operand 0']
    #allocation3 [shape = 's32[2]{0}', space=sflag, size = 0x8, scoped, tag = 'scoped memory for pre_act_bottleneck_forward.4']
    %8 = vsyncpa [#allocation3], 0
    %s9 = scalar_lea.sflag [#allocation3], 1
    %10 = vsyncpa %s9, 0
    loop: start=0, step=1, limit=4
    $region2: #{pre_act_bottleneck_forward.4} parent=1 // loop_pre_header
      _
    $region3: #{pre_act_bottleneck_forward.4} parent=1 // loop_header
      %s12 = sphi 0, %s16
      %p13 = scmp.ge.s32.totalorder %s12, 4
      %s22 = sphi 0, %s24
      %s25 = sphi 0, %s22
      %s26 = sphi 0, %s25
      %s42 = sphi 0, %s26
      %s48 = sphi 0, %s50
      %s51 = sphi 0, %s48
      %s52 = sphi 0, %s51
      %s68 = sphi 0, %s52
      %s74 = sphi 0, %s76
      %s77 = sphi 0, %s74
      %s78 = sphi 0, %s77
      %s94 = sphi 0, %s78
    $region4: #{pre_act_bottleneck_forward.4} parent=1 // loop_header_branch
      %15 = sbr.rel (%p13) target = $region8
    $region5: #{pre_act_bottleneck_forward.4} parent=1 // loop_body
      %s17 = ssub.s32 %s12, 1
      %s18 = ssub.s32 %s12, 2
      %s19 = sadd.s32 %s12, 1
      %s20 = ssub.s32 %s12, %s19
      %p21 = scmp.eq.s32.totalorder %s20, 0
      %s23 = sadd.s32 %s22, 1
      %s24 = scalar_select %p21, %s22, %s23
      %p27 = pneg %p21
      %p28 = scmp.eq.s32.totalorder %s12, 1
      %p29 = por %p27, %p28
      %p30 = scmp.ne.s32.totalorder %s22, %s25
      %p31 = scmp.eq.s32.totalorder %s12, 0
      %p32 = por %p30, %p31
      %p33 = scmp.ne.s32.totalorder %s22, %s25
      %p34 = scmp.eq.s32.totalorder %s17, 1
      %p35 = por %p33, %p34
      %p36 = scmp.ne.s32.totalorder %s25, %s26
      %p37 = scmp.eq.s32.totalorder %s17, 0
      %p38 = por %p36, %p37
      %p39 = scmp.ne.s32.totalorder %s25, %s26
      %p40 = scmp.eq.s32.totalorder %s18, 1
      %p41 = por %p39, %p40
      %p43 = scmp.ne.s32.totalorder %s26, %s42
      %p44 = scmp.eq.s32.totalorder %s18, 0
      %p45 = por %p43, %p44
      %s46 = ssub.s32 %s12, %s19
      %p47 = scmp.eq.s32.totalorder %s46, 0
      %s49 = sadd.s32 %s48, 1
      %s50 = scalar_select %p47, %s48, %s49
      %p53 = pneg %p47
      %p54 = scmp.eq.s32.totalorder %s12, 1
      %p55 = por %p53, %p54
      %p56 = scmp.ne.s32.totalorder %s48, %s51
      %p57 = scmp.eq.s32.totalorder %s12, 0
      %p58 = por %p56, %p57
      %p59 = scmp.ne.s32.totalorder %s48, %s51
      %p60 = scmp.eq.s32.totalorder %s17, 1
      %p61 = por %p59, %p60
      %p62 = scmp.ne.s32.totalorder %s51, %s52
      %p63 = scmp.eq.s32.totalorder %s17, 0
      %p64 = por %p62, %p63
      %p65 = scmp.ne.s32.totalorder %s51, %s52
      %p66 = scmp.eq.s32.totalorder %s18, 1
      %p67 = por %p65, %p66
      %p69 = scmp.ne.s32.totalorder %s52, %s68
      %p70 = scmp.eq.s32.totalorder %s18, 0
      %p71 = por %p69, %p70
      %s72 = ssub.s32 %s12, %s19
      %p73 = scmp.eq.s32.totalorder %s72, 0
      %s75 = sadd.s32 %s74, 1
      %s76 = scalar_select %p73, %s74, %s75
      %p79 = pneg %p73
      %p80 = scmp.eq.s32.totalorder %s12, 1
      %p81 = por %p79, %p80
      %p82 = scmp.ne.s32.totalorder %s74, %s77
      %p83 = scmp.eq.s32.totalorder %s12, 0
      %p84 = por %p82, %p83
      %p85 = scmp.ne.s32.totalorder %s74, %s77
      %p86 = scmp.eq.s32.totalorder %s17, 1
      %p87 = por %p85, %p86
      %p88 = scmp.ne.s32.totalorder %s77, %s78
      %p89 = scmp.eq.s32.totalorder %s17, 0
      %p90 = por %p88, %p89
      %p91 = scmp.ne.s32.totalorder %s77, %s78
      %p92 = scmp.eq.s32.totalorder %s18, 1
      %p93 = por %p91, %p92
      %p95 = scmp.ne.s32.totalorder %s78, %s94
      %p96 = scmp.eq.s32.totalorder %s18, 0
      %p97 = por %p95, %p96
      %p98 = scmp.le.s32.totalorder 1, %s12
      %p99 = scmp.lt.s32.totalorder %s12, 3
      %p100 = pnand %p98, %p99
      %p101 = pneg %p100
      // Predicated region
      $region9: #{pre_act_bottleneck_forward.4} parent=5 // pred_check
        _
      $region10: #{pre_act_bottleneck_forward.4} parent=5 // pred_check_branch
        %103 = sbr.rel (%p100) target = $region12
      $region11: #{pre_act_bottleneck_forward.4} parent=5 // pred_region
        %s104 = ssub.s32 %s12, 1
      $region12: #{pre_act_bottleneck_forward.4} parent=5 // pred_fallthru
        _
      %p105 = scmp.lt.s32.totalorder %s12, 2
      // Predicated region
      $region13: #{pre_act_bottleneck_forward.4} parent=5 // pred_check
        %p106 = pneg %p105
      $region14: #{pre_act_bottleneck_forward.4} parent=5 // pred_check_branch
        %108 = sbr.rel (%p106) target = $region16
      $region15: #{pre_act_bottleneck_forward.4} parent=5 // pred_region
        // Predicated region
        $region17: #{pre_act_bottleneck_forward.4} parent=15 // pred_check
          %p109 = pneg %p32
        $region18: #{pre_act_bottleneck_forward.4} parent=15 // pred_check_branch
          %111 = sbr.rel (%p109) target = $region20
        $region19: #{pre_act_bottleneck_forward.4} parent=15 // pred_region
          %s112 = sand.u32 %s22, 1
          %s113 = scalar_lea.sflag [#allocation3], %s112
          %s114 = sand.u32 %s22, 1
          %s115 = smul.addr %s114, 512
          %s116 = scalar_lea.vmem [#allocation2], %s115
          %s117 = smul.u32 64, %s12
          %s119 = ssub.s32 8192, 8192
          %120 = vsyncadd %s113, %s119
          %s121 = smul.addr %s117, 128
          %s122 = scalar_lea.hbm %s0, %s121
          %s123 = sshll.u32 %s116, 4
          %s124 = int_to_ptr.vmem [resolvable:$true] %s123
          %129 = dma.hbm_to_vmem [thread:$0]  %s122, 8192, %s124, %s113, 128, 128, 8
        $region20: #{pre_act_bottleneck_forward.4} parent=15 // pred_fallthru
          _
      $region16: #{pre_act_bottleneck_forward.4} parent=5 // pred_fallthru
        _
      %p130 = scmp.le.s32.totalorder 1, %s12
      %p131 = scmp.lt.s32.totalorder %s12, 3
      %p132 = pnand %p130, %p131
      %p133 = pneg %p132
      // Predicated region
      $region21: #{pre_act_bottleneck_forward.4} parent=5 // pred_check
        _
      $region22: #{pre_act_bottleneck_forward.4} parent=5 // pred_check_branch
        %135 = sbr.rel (%p132) target = $region24
      $region23: #{pre_act_bottleneck_forward.4} parent=5 // pred_region
        %s136 = ssub.s32 %s12, 1
        %s137 = sand.u32 %s25, 1
        %s138 = scalar_lea.sflag [#allocation3], %s137
        %s139 = sand.u32 %s25, 1
        %s140 = smul.addr %s139, 512
        %s141 = scalar_lea.vmem [#allocation2], %s140
        // Predicated region
        $region25: #{pre_act_bottleneck_forward.4} parent=23 // pred_check
          %p142 = pneg %p38
        $region26: #{pre_act_bottleneck_forward.4} parent=23 // pred_check_branch
          %144 = sbr.rel (%p142) target = $region28
        $region27: #{pre_act_bottleneck_forward.4} parent=23 // pred_region
          %145 = dma.done %s138, 8192
        $region28: #{pre_act_bottleneck_forward.4} parent=23 // pred_fallthru
          _
        %s146 = sand.u32 %s25, 1
        %s147 = scalar_lea.sflag [#allocation3], %s146
        %s148 = sand.u32 %s25, 1
        %s149 = smul.addr %s148, 512
        %s150 = scalar_lea.vmem [#allocation2], %s149
        %p151 = pneg %p38
        %p152 = pneg %p35
        %p153 = pneg %p64
        %p154 = pneg %p61
        %p155 = scmp.lt.s32.totalorder %s17, 1
        %s156 = scalar_select %p155, %s17, 1
        %s157 = scalar_lea.vmem %s1, %s156
        %p158 = pneg %p90
        %p159 = pneg %p87
        %p160 = scmp.lt.s32.totalorder %s17, 1
        %s161 = scalar_select %p160, %s17, 1
        %s162 = scalar_lea.vmem %s2, %s161
        %s163 = smul.u32 64, %s17
        %p164 = scmp.lt.s32.totalorder %s17, 1
        %s165 = scalar_select %p164, %s17, 1
        %s166 = scalar_lea.vmem %s1, %s165
        %p167 = scmp.lt.s32.totalorder %s17, 1
        %s168 = scalar_select %p167, %s17, 1
        %s169 = scalar_lea.vmem %s2, %s168
        %v170 = vld [vmem:[%s141] sm:$0xff]
        %v171 = vld [vmem:[%s141 + $0x8] sm:$0xff]
        %v172 = vld [vmem:[%s141 + $0x10] sm:$0xff]
        %v173 = vld [vmem:[%s141 + $0x18] sm:$0xff]
        %v174 = vld [vmem:[%s141 + $0x20] sm:$0xff]
        %v175 = vld [vmem:[%s141 + $0x28] sm:$0xff]
        %v176 = vld [vmem:[%s141 + $0x30] sm:$0xff]
        %v177 = vld [vmem:[%s141 + $0x38] sm:$0xff]
        %v178 = vld [vmem:[%s141 + $0x40] sm:$0xff]
        %v179 = vld [vmem:[%s141 + $0x48] sm:$0xff]
        %v180 = vld [vmem:[%s141 + $0x50] sm:$0xff]
        %v181 = vld [vmem:[%s141 + $0x58] sm:$0xff]
        %v182 = vld [vmem:[%s141 + $0x60] sm:$0xff]
        %v183 = vld [vmem:[%s141 + $0x68] sm:$0xff]
        %v184 = vld [vmem:[%s141 + $0x70] sm:$0xff]
        %v185 = vld [vmem:[%s141 + $0x78] sm:$0xff]
        %v186 = vld [vmem:[%s141 + $0x80] sm:$0xff]
        %v187 = vld [vmem:[%s141 + $0x88] sm:$0xff]
        %v188 = vld [vmem:[%s141 + $0x90] sm:$0xff]
        %v189 = vld [vmem:[%s141 + $0x98] sm:$0xff]
        %v190 = vld [vmem:[%s141 + $0xa0] sm:$0xff]
        %v191 = vld [vmem:[%s141 + $0xa8] sm:$0xff]
        %v192 = vld [vmem:[%s141 + $0xb0] sm:$0xff]
        %v193 = vld [vmem:[%s141 + $0xb8] sm:$0xff]
        %v194 = vld [vmem:[%s141 + $0xc0] sm:$0xff]
        %v195 = vld [vmem:[%s141 + $0xc8] sm:$0xff]
        %v196 = vld [vmem:[%s141 + $0xd0] sm:$0xff]
        %v197 = vld [vmem:[%s141 + $0xd8] sm:$0xff]
        %v198 = vld [vmem:[%s141 + $0xe0] sm:$0xff]
        %v199 = vld [vmem:[%s141 + $0xe8] sm:$0xff]
        %v200 = vld [vmem:[%s141 + $0xf0] sm:$0xff]
        %v201 = vld [vmem:[%s141 + $0xf8] sm:$0xff]
        %v202 = vld [vmem:[%s141 + $0x100] sm:$0xff]
        %v203 = vld [vmem:[%s141 + $0x108] sm:$0xff]
        %v204 = vld [vmem:[%s141 + $0x110] sm:$0xff]
        %v205 = vld [vmem:[%s141 + $0x118] sm:$0xff]
        %v206 = vld [vmem:[%s141 + $0x120] sm:$0xff]
        %v207 = vld [vmem:[%s141 + $0x128] sm:$0xff]
        %v208 = vld [vmem:[%s141 + $0x130] sm:$0xff]
        %v209 = vld [vmem:[%s141 + $0x138] sm:$0xff]
        %v210 = vld [vmem:[%s141 + $0x140] sm:$0xff]
        %v211 = vld [vmem:[%s141 + $0x148] sm:$0xff]
        %v212 = vld [vmem:[%s141 + $0x150] sm:$0xff]
        %v213 = vld [vmem:[%s141 + $0x158] sm:$0xff]
        %v214 = vld [vmem:[%s141 + $0x160] sm:$0xff]
        %v215 = vld [vmem:[%s141 + $0x168] sm:$0xff]
        %v216 = vld [vmem:[%s141 + $0x170] sm:$0xff]
        %v217 = vld [vmem:[%s141 + $0x178] sm:$0xff]
        %v218 = vld [vmem:[%s141 + $0x180] sm:$0xff]
        %v219 = vld [vmem:[%s141 + $0x188] sm:$0xff]
        %v220 = vld [vmem:[%s141 + $0x190] sm:$0xff]
        %v221 = vld [vmem:[%s141 + $0x198] sm:$0xff]
        %v222 = vld [vmem:[%s141 + $0x1a0] sm:$0xff]
        %v223 = vld [vmem:[%s141 + $0x1a8] sm:$0xff]
        %v224 = vld [vmem:[%s141 + $0x1b0] sm:$0xff]
        %v225 = vld [vmem:[%s141 + $0x1b8] sm:$0xff]
        %v226 = vld [vmem:[%s141 + $0x1c0] sm:$0xff]
        %v227 = vld [vmem:[%s141 + $0x1c8] sm:$0xff]
        %v228 = vld [vmem:[%s141 + $0x1d0] sm:$0xff]
        %v229 = vld [vmem:[%s141 + $0x1d8] sm:$0xff]
        %v230 = vld [vmem:[%s141 + $0x1e0] sm:$0xff]
        %v231 = vld [vmem:[%s141 + $0x1e8] sm:$0xff]
        %v232 = vld [vmem:[%s141 + $0x1f0] sm:$0xff]
        %v233 = vld [vmem:[%s141 + $0x1f8] sm:$0xff]
        %vm234 = vcmask 130048
        %v235 = vsel %vm234, %v170, 0.0
        %v236 = vsel %vm234, %v171, 0.0
        %v237 = vadd.f32 %v235, %v236
        %v238 = vsel %vm234, %v172, 0.0
        %v239 = vadd.f32 %v237, %v238
        %v240 = vsel %vm234, %v173, 0.0
        %v241 = vadd.f32 %v239, %v240
        %v242 = vsel %vm234, %v174, 0.0
        %v243 = vadd.f32 %v241, %v242
        %v244 = vsel %vm234, %v175, 0.0
        %v245 = vadd.f32 %v243, %v244
        %v246 = vsel %vm234, %v176, 0.0
        %v247 = vadd.f32 %v245, %v246
        %v248 = vsel %vm234, %v177, 0.0
        %v249 = vadd.f32 %v247, %v248
        %v250 = vsel %vm234, %v178, 0.0
        %v251 = vadd.f32 %v249, %v250
        %v252 = vsel %vm234, %v179, 0.0
        %v253 = vadd.f32 %v251, %v252
        %v254 = vsel %vm234, %v180, 0.0
        %v255 = vadd.f32 %v253, %v254
        %v256 = vsel %vm234, %v181, 0.0
        %v257 = vadd.f32 %v255, %v256
        %v258 = vsel %vm234, %v182, 0.0
        %v259 = vadd.f32 %v257, %v258
        %v260 = vsel %vm234, %v183, 0.0
        %v261 = vadd.f32 %v259, %v260
        %v262 = vsel %vm234, %v184, 0.0
        %v263 = vadd.f32 %v261, %v262
        %v264 = vsel %vm234, %v185, 0.0
        %v265 = vadd.f32 %v263, %v264
        %v266 = vsel %vm234, %v186, 0.0
        %v267 = vadd.f32 %v265, %v266
        %v268 = vsel %vm234, %v187, 0.0
        %v269 = vadd.f32 %v267, %v268
        %v270 = vsel %vm234, %v188, 0.0
        %v271 = vadd.f32 %v269, %v270
        %v272 = vsel %vm234, %v189, 0.0
        %v273 = vadd.f32 %v271, %v272
        %v274 = vsel %vm234, %v190, 0.0
        %v275 = vadd.f32 %v273, %v274
        %v276 = vsel %vm234, %v191, 0.0
        %v277 = vadd.f32 %v275, %v276
        %v278 = vsel %vm234, %v192, 0.0
        %v279 = vadd.f32 %v277, %v278
        %v280 = vsel %vm234, %v193, 0.0
        %v281 = vadd.f32 %v279, %v280
        %v282 = vsel %vm234, %v194, 0.0
        %v283 = vadd.f32 %v281, %v282
        %v284 = vsel %vm234, %v195, 0.0
        %v285 = vadd.f32 %v283, %v284
        %v286 = vsel %vm234, %v196, 0.0
        %v287 = vadd.f32 %v285, %v286
        %v288 = vsel %vm234, %v197, 0.0
        %v289 = vadd.f32 %v287, %v288
        %v290 = vsel %vm234, %v198, 0.0
        %v291 = vadd.f32 %v289, %v290
        %v292 = vsel %vm234, %v199, 0.0
        %v293 = vadd.f32 %v291, %v292
        %v294 = vsel %vm234, %v200, 0.0
        %v295 = vadd.f32 %v293, %v294
        %v296 = vsel %vm234, %v201, 0.0
        %v297 = vadd.f32 %v295, %v296
        %v298 = vsel %vm234, %v202, 0.0
        %v299 = vadd.f32 %v297, %v298
        %v300 = vsel %vm234, %v203, 0.0
        %v301 = vadd.f32 %v299, %v300
        %v302 = vsel %vm234, %v204, 0.0
        %v303 = vadd.f32 %v301, %v302
        %v304 = vsel %vm234, %v205, 0.0
        %v305 = vadd.f32 %v303, %v304
        %v306 = vsel %vm234, %v206, 0.0
        %v307 = vadd.f32 %v305, %v306
        %v308 = vsel %vm234, %v207, 0.0
        %v309 = vadd.f32 %v307, %v308
        %v310 = vsel %vm234, %v208, 0.0
        %v311 = vadd.f32 %v309, %v310
        %v312 = vsel %vm234, %v209, 0.0
        %v313 = vadd.f32 %v311, %v312
        %v314 = vsel %vm234, %v210, 0.0
        %v315 = vadd.f32 %v313, %v314
        %v316 = vsel %vm234, %v211, 0.0
        %v317 = vadd.f32 %v315, %v316
        %v318 = vsel %vm234, %v212, 0.0
        %v319 = vadd.f32 %v317, %v318
        %v320 = vsel %vm234, %v213, 0.0
        %v321 = vadd.f32 %v319, %v320
        %v322 = vsel %vm234, %v214, 0.0
        %v323 = vadd.f32 %v321, %v322
        %v324 = vsel %vm234, %v215, 0.0
        %v325 = vadd.f32 %v323, %v324
        %v326 = vsel %vm234, %v216, 0.0
        %v327 = vadd.f32 %v325, %v326
        %v328 = vsel %vm234, %v217, 0.0
        %v329 = vadd.f32 %v327, %v328
        %v330 = vsel %vm234, %v218, 0.0
        %v331 = vadd.f32 %v329, %v330
        %v332 = vsel %vm234, %v219, 0.0
        %v333 = vadd.f32 %v331, %v332
        %v334 = vsel %vm234, %v220, 0.0
        %v335 = vadd.f32 %v333, %v334
        %v336 = vsel %vm234, %v221, 0.0
        %v337 = vadd.f32 %v335, %v336
        %v338 = vsel %vm234, %v222, 0.0
        %v339 = vadd.f32 %v337, %v338
        %v340 = vsel %vm234, %v223, 0.0
        %v341 = vadd.f32 %v339, %v340
        %v342 = vsel %vm234, %v224, 0.0
        %v343 = vadd.f32 %v341, %v342
        %v344 = vsel %vm234, %v225, 0.0
        %v345 = vadd.f32 %v343, %v344
        %v346 = vsel %vm234, %v226, 0.0
        %v347 = vadd.f32 %v345, %v346
        %v348 = vsel %vm234, %v227, 0.0
        %v349 = vadd.f32 %v347, %v348
        %v350 = vsel %vm234, %v228, 0.0
        %v351 = vadd.f32 %v349, %v350
        %v352 = vsel %vm234, %v229, 0.0
        %v353 = vadd.f32 %v351, %v352
        %v354 = vsel %vm234, %v230, 0.0
        %v355 = vadd.f32 %v353, %v354
        %v356 = vsel %vm234, %v231, 0.0
        %v357 = vadd.f32 %v355, %v356
        %v358 = vsel %vm234, %v232, 0.0
        %v359 = vadd.f32 %v357, %v358
        %v360 = vsel %vm234, %v233, 0.0
        %v361 = vadd.f32 %v359, %v360
        %v362 = vrot.slane %v361, 4
        %v363 = vadd.f32 %v361, %v362
        %v364 = vrot.slane %v363, 2
        %v365 = vadd.f32 %v363, %v364
        %v366 = vrot.slane %v365, 1
        %v367 = vadd.f32 %v365, %v366
        %vm368 = vcmask 122880
        %369 = vst.msk [vmem:[%s166] sm:$0x1] %vm368, %v367
        %v370 = vmul.f32 %v170, %v170
        %v371 = vmul.f32 %v171, %v171
        %v372 = vmul.f32 %v172, %v172
        %v373 = vmul.f32 %v173, %v173
        %v374 = vmul.f32 %v174, %v174
        %v375 = vmul.f32 %v175, %v175
        %v376 = vmul.f32 %v176, %v176
        %v377 = vmul.f32 %v177, %v177
        %v378 = vmul.f32 %v178, %v178
        %v379 = vmul.f32 %v179, %v179
        %v380 = vmul.f32 %v180, %v180
        %v381 = vmul.f32 %v181, %v181
        %v382 = vmul.f32 %v182, %v182
        %v383 = vmul.f32 %v183, %v183
        %v384 = vmul.f32 %v184, %v184
        %v385 = vmul.f32 %v185, %v185
        %v386 = vmul.f32 %v186, %v186
        %v387 = vmul.f32 %v187, %v187
        %v388 = vmul.f32 %v188, %v188
        %v389 = vmul.f32 %v189, %v189
        %v390 = vmul.f32 %v190, %v190
        %v391 = vmul.f32 %v191, %v191
        %v392 = vmul.f32 %v192, %v192
        %v393 = vmul.f32 %v193, %v193
        %v394 = vmul.f32 %v194, %v194
        %v395 = vmul.f32 %v195, %v195
        %v396 = vmul.f32 %v196, %v196
        %v397 = vmul.f32 %v197, %v197
        %v398 = vmul.f32 %v198, %v198
        %v399 = vmul.f32 %v199, %v199
        %v400 = vmul.f32 %v200, %v200
        %v401 = vmul.f32 %v201, %v201
        %v402 = vmul.f32 %v202, %v202
        %v403 = vmul.f32 %v203, %v203
        %v404 = vmul.f32 %v204, %v204
        %v405 = vmul.f32 %v205, %v205
        %v406 = vmul.f32 %v206, %v206
        %v407 = vmul.f32 %v207, %v207
        %v408 = vmul.f32 %v208, %v208
        %v409 = vmul.f32 %v209, %v209
        %v410 = vmul.f32 %v210, %v210
        %v411 = vmul.f32 %v211, %v211
        %v412 = vmul.f32 %v212, %v212
        %v413 = vmul.f32 %v213, %v213
        %v414 = vmul.f32 %v214, %v214
        %v415 = vmul.f32 %v215, %v215
        %v416 = vmul.f32 %v216, %v216
        %v417 = vmul.f32 %v217, %v217
        %v418 = vmul.f32 %v218, %v218
        %v419 = vmul.f32 %v219, %v219
        %v420 = vmul.f32 %v220, %v220
        %v421 = vmul.f32 %v221, %v221
        %v422 = vmul.f32 %v222, %v222
        %v423 = vmul.f32 %v223, %v223
        %v424 = vmul.f32 %v224, %v224
        %v425 = vmul.f32 %v225, %v225
        %v426 = vmul.f32 %v226, %v226
        %v427 = vmul.f32 %v227, %v227
        %v428 = vmul.f32 %v228, %v228
        %v429 = vmul.f32 %v229, %v229
        %v430 = vmul.f32 %v230, %v230
        %v431 = vmul.f32 %v231, %v231
        %v432 = vmul.f32 %v232, %v232
        %v433 = vmul.f32 %v233, %v233
        %v434 = vsel %vm234, %v370, 0.0
        %v435 = vsel %vm234, %v371, 0.0
        %v436 = vadd.f32 %v434, %v435
        %v437 = vsel %vm234, %v372, 0.0
        %v438 = vadd.f32 %v436, %v437
        %v439 = vsel %vm234, %v373, 0.0
        %v440 = vadd.f32 %v438, %v439
        %v441 = vsel %vm234, %v374, 0.0
        %v442 = vadd.f32 %v440, %v441
        %v443 = vsel %vm234, %v375, 0.0
        %v444 = vadd.f32 %v442, %v443
        %v445 = vsel %vm234, %v376, 0.0
        %v446 = vadd.f32 %v444, %v445
        %v447 = vsel %vm234, %v377, 0.0
        %v448 = vadd.f32 %v446, %v447
        %v449 = vsel %vm234, %v378, 0.0
        %v450 = vadd.f32 %v448, %v449
        %v451 = vsel %vm234, %v379, 0.0
        %v452 = vadd.f32 %v450, %v451
        %v453 = vsel %vm234, %v380, 0.0
        %v454 = vadd.f32 %v452, %v453
        %v455 = vsel %vm234, %v381, 0.0
        %v456 = vadd.f32 %v454, %v455
        %v457 = vsel %vm234, %v382, 0.0
        %v458 = vadd.f32 %v456, %v457
        %v459 = vsel %vm234, %v383, 0.0
        %v460 = vadd.f32 %v458, %v459
        %v461 = vsel %vm234, %v384, 0.0
        %v462 = vadd.f32 %v460, %v461
        %v463 = vsel %vm234, %v385, 0.0
        %v464 = vadd.f32 %v462, %v463
        %v465 = vsel %vm234, %v386, 0.0
        %v466 = vadd.f32 %v464, %v465
        %v467 = vsel %vm234, %v387, 0.0
        %v468 = vadd.f32 %v466, %v467
        %v469 = vsel %vm234, %v388, 0.0
        %v470 = vadd.f32 %v468, %v469
        %v471 = vsel %vm234, %v389, 0.0
        %v472 = vadd.f32 %v470, %v471
        %v473 = vsel %vm234, %v390, 0.0
        %v474 = vadd.f32 %v472, %v473
        %v475 = vsel %vm234, %v391, 0.0
        %v476 = vadd.f32 %v474, %v475
        %v477 = vsel %vm234, %v392, 0.0
        %v478 = vadd.f32 %v476, %v477
        %v479 = vsel %vm234, %v393, 0.0
        %v480 = vadd.f32 %v478, %v479
        %v481 = vsel %vm234, %v394, 0.0
        %v482 = vadd.f32 %v480, %v481
        %v483 = vsel %vm234, %v395, 0.0
        %v484 = vadd.f32 %v482, %v483
        %v485 = vsel %vm234, %v396, 0.0
        %v486 = vadd.f32 %v484, %v485
        %v487 = vsel %vm234, %v397, 0.0
        %v488 = vadd.f32 %v486, %v487
        %v489 = vsel %vm234, %v398, 0.0
        %v490 = vadd.f32 %v488, %v489
        %v491 = vsel %vm234, %v399, 0.0
        %v492 = vadd.f32 %v490, %v491
        %v493 = vsel %vm234, %v400, 0.0
        %v494 = vadd.f32 %v492, %v493
        %v495 = vsel %vm234, %v401, 0.0
        %v496 = vadd.f32 %v494, %v495
        %v497 = vsel %vm234, %v402, 0.0
        %v498 = vadd.f32 %v496, %v497
        %v499 = vsel %vm234, %v403, 0.0
        %v500 = vadd.f32 %v498, %v499
        %v501 = vsel %vm234, %v404, 0.0
        %v502 = vadd.f32 %v500, %v501
        %v503 = vsel %vm234, %v405, 0.0
        %v504 = vadd.f32 %v502, %v503
        %v505 = vsel %vm234, %v406, 0.0
        %v506 = vadd.f32 %v504, %v505
        %v507 = vsel %vm234, %v407, 0.0
        %v508 = vadd.f32 %v506, %v507
        %v509 = vsel %vm234, %v408, 0.0
        %v510 = vadd.f32 %v508, %v509
        %v511 = vsel %vm234, %v409, 0.0
        %v512 = vadd.f32 %v510, %v511
        %v513 = vsel %vm234, %v410, 0.0
        %v514 = vadd.f32 %v512, %v513
        %v515 = vsel %vm234, %v411, 0.0
        %v516 = vadd.f32 %v514, %v515
        %v517 = vsel %vm234, %v412, 0.0
        %v518 = vadd.f32 %v516, %v517
        %v519 = vsel %vm234, %v413, 0.0
        %v520 = vadd.f32 %v518, %v519
        %v521 = vsel %vm234, %v414, 0.0
        %v522 = vadd.f32 %v520, %v521
        %v523 = vsel %vm234, %v415, 0.0
        %v524 = vadd.f32 %v522, %v523
        %v525 = vsel %vm234, %v416, 0.0
        %v526 = vadd.f32 %v524, %v525
        %v527 = vsel %vm234, %v417, 0.0
        %v528 = vadd.f32 %v526, %v527
        %v529 = vsel %vm234, %v418, 0.0
        %v530 = vadd.f32 %v528, %v529
        %v531 = vsel %vm234, %v419, 0.0
        %v532 = vadd.f32 %v530, %v531
        %v533 = vsel %vm234, %v420, 0.0
        %v534 = vadd.f32 %v532, %v533
        %v535 = vsel %vm234, %v421, 0.0
        %v536 = vadd.f32 %v534, %v535
        %v537 = vsel %vm234, %v422, 0.0
        %v538 = vadd.f32 %v536, %v537
        %v539 = vsel %vm234, %v423, 0.0
        %v540 = vadd.f32 %v538, %v539
        %v541 = vsel %vm234, %v424, 0.0
        %v542 = vadd.f32 %v540, %v541
        %v543 = vsel %vm234, %v425, 0.0
        %v544 = vadd.f32 %v542, %v543
        %v545 = vsel %vm234, %v426, 0.0
        %v546 = vadd.f32 %v544, %v545
        %v547 = vsel %vm234, %v427, 0.0
        %v548 = vadd.f32 %v546, %v547
        %v549 = vsel %vm234, %v428, 0.0
        %v550 = vadd.f32 %v548, %v549
        %v551 = vsel %vm234, %v429, 0.0
        %v552 = vadd.f32 %v550, %v551
        %v553 = vsel %vm234, %v430, 0.0
        %v554 = vadd.f32 %v552, %v553
        %v555 = vsel %vm234, %v431, 0.0
        %v556 = vadd.f32 %v554, %v555
        %v557 = vsel %vm234, %v432, 0.0
        %v558 = vadd.f32 %v556, %v557
        %v559 = vsel %vm234, %v433, 0.0
        %v560 = vadd.f32 %v558, %v559
        %v561 = vrot.slane %v560, 4
        %v562 = vadd.f32 %v560, %v561
        %v563 = vrot.slane %v562, 2
        %v564 = vadd.f32 %v562, %v563
        %v565 = vrot.slane %v564, 1
        %v566 = vadd.f32 %v564, %v565
        %567 = vst.msk [vmem:[%s169] sm:$0x1] %vm368, %v566
        %p568 = scmp.lt.s32.totalorder %s17, 1
        %s569 = scalar_select %p568, %s17, 1
        %s570 = scalar_lea.vmem %s1, %s569
        %p571 = scmp.lt.s32.totalorder %s17, 1
        %s572 = scalar_select %p571, %s17, 1
        %s573 = scalar_lea.vmem %s2, %s572
        // Predicated region
        $region29: #{pre_act_bottleneck_forward.4} parent=23 // pred_check
          %p574 = pneg %p61
        $region30: #{pre_act_bottleneck_forward.4} parent=23 // pred_check_branch
          %576 = sbr.rel (%p574) target = $region32
        $region31: #{pre_act_bottleneck_forward.4} parent=23 // pred_region
          _
        $region32: #{pre_act_bottleneck_forward.4} parent=23 // pred_fallthru
          _
        // Predicated region
        $region33: #{pre_act_bottleneck_forward.4} parent=23 // pred_check
          %p577 = pneg %p87
        $region34: #{pre_act_bottleneck_forward.4} parent=23 // pred_check_branch
          %579 = sbr.rel (%p577) target = $region36
        $region35: #{pre_act_bottleneck_forward.4} parent=23 // pred_region
          _
        $region36: #{pre_act_bottleneck_forward.4} parent=23 // pred_fallthru
          _
      $region24: #{pre_act_bottleneck_forward.4} parent=5 // pred_fallthru
        _
      %p580 = scmp.le.s32.totalorder 2, %s12
      // Predicated region
      $region37: #{pre_act_bottleneck_forward.4} parent=5 // pred_check
        %p581 = pneg %p580
      $region38: #{pre_act_bottleneck_forward.4} parent=5 // pred_check_branch
        %583 = sbr.rel (%p581) target = $region40
      $region39: #{pre_act_bottleneck_forward.4} parent=5 // pred_region
        %s584 = ssub.s32 %s12, 2
        // Predicated region
        $region41: #{pre_act_bottleneck_forward.4} parent=39 // pred_check
          %p585 = pneg %p67
        $region42: #{pre_act_bottleneck_forward.4} parent=39 // pred_check_branch
          %587 = sbr.rel (%p585) target = $region44
        $region43: #{pre_act_bottleneck_forward.4} parent=39 // pred_region
          %p588 = scmp.lt.s32.totalorder %s18, 1
          %s589 = scalar_select %p588, %s18, 1
          %s590 = scalar_lea.vmem %s1, %s589
        $region44: #{pre_act_bottleneck_forward.4} parent=39 // pred_fallthru
          _
        // Predicated region
        $region45: #{pre_act_bottleneck_forward.4} parent=39 // pred_check
          %p591 = pneg %p93
        $region46: #{pre_act_bottleneck_forward.4} parent=39 // pred_check_branch
          %593 = sbr.rel (%p591) target = $region48
        $region47: #{pre_act_bottleneck_forward.4} parent=39 // pred_region
          %p594 = scmp.lt.s32.totalorder %s18, 1
          %s595 = scalar_select %p594, %s18, 1
          %s596 = scalar_lea.vmem %s2, %s595
        $region48: #{pre_act_bottleneck_forward.4} parent=39 // pred_fallthru
          _
      $region40: #{pre_act_bottleneck_forward.4} parent=5 // pred_fallthru
        _
    $region6: #{pre_act_bottleneck_forward.4} parent=1 // loop_footer
      %s16 = sadd.s32 1, %s12
    $region7: #{pre_act_bottleneck_forward.4} parent=1 // loop_footer_branch
      %11 = sbr.rel target = $region3
    $region8: #{pre_act_bottleneck_forward.4} parent=1 // loop_exit
      _
    %597 = vsyncpa [#allocation3], 1
    %s598 = scalar_lea.sflag [#allocation3], 1
    %599 = vsyncpa %s598, 1

// kernel: pre_act_bottleneck_forward.7
$region0: #{pre_act_bottleneck_forward.7}
  #allocation0 [shape = 'u32[]', space=smem, size = 0x4, offset = 0x4, fixed_abs, tag = 'smem constant byte address 0x4 - core index']
  #allocation1 [shape = 'u32[144,128]{1,0:T(1,128)}', space=vmem, size = 0x12000, scoped, tag = 'internal scratch']
  %s0 = inlined_call_operand.hbm [shape: bf16[1024,4], index: 0, kind: input, shape index: {}]
  %s1 = inlined_call_operand.vmem [shape: f32[1,4], index: 1, kind: input, shape index: {}]
  %s2 = inlined_call_operand.vmem [shape: f32[1,4], index: 2, kind: input, shape index: {}]
  %s3 = inlined_call_operand.vmem [shape: bf16[4,16], index: 3, kind: input, shape index: {}]
  %s4 = inlined_call_operand.hbm [shape: f32[1024,16], index: 4, kind: input, shape index: {}]
  %s5 = inlined_call_operand.hbm [shape: f32[1024,16], index: 5, kind: output, shape index: {}]
  %s6 = sld [smem:[#allocation0]]
  $region61: #{pre_act_bottleneck_forward.7} parent=0
    _
  %s8 = ssub.s32 1, %s6
  %s9 = scalar_select 0, %s8, %s6
  $region1: #{pre_act_bottleneck_forward.7} parent=0
    #allocation2 [shape = 'u8[262144]{0}', space=vmem, size = 0x40000, scoped, tag = 'input window, operand 0']
    #allocation3 [shape = 's32[2]{0}', space=sflag, size = 0x8, scoped, tag = 'scoped memory for pre_act_bottleneck_forward.7']
    #allocation4 [shape = 's32[2]{0}', space=sflag, size = 0x8, scoped, tag = 'scoped memory for pre_act_bottleneck_forward.7']
    #allocation5 [shape = 'u8[524288]{0}', space=vmem, size = 0x80000, scoped, tag = 'input window, operand 4']
    #allocation6 [shape = 's32[2]{0}', space=sflag, size = 0x8, scoped, tag = 'scoped memory for pre_act_bottleneck_forward.7']
    #allocation7 [shape = 'u8[524288]{0}', space=vmem, size = 0x80000, scoped, tag = 'output window, operand 0']
    %10 = vsyncpa [#allocation3], 0
    %s11 = scalar_lea.sflag [#allocation3], 1
    %12 = vsyncpa %s11, 0
    %13 = vsyncpa [#allocation6], 0
    %s14 = scalar_lea.sflag [#allocation6], 1
    %15 = vsyncpa %s14, 0
    %16 = vsyncpa [#allocation4], 0
    %s17 = scalar_lea.sflag [#allocation4], 1
    %18 = vsyncpa %s17, 0
    loop: start=0, step=1, limit=4
    $region2: #{pre_act_bottleneck_forward.7} parent=1 // loop_pre_header
      _
    $region3: #{pre_act_bottleneck_forward.7} parent=1 // loop_header
      %s20 = sphi 0, %s24
      %p21 = scmp.ge.s32.totalorder %s20, 4
      %s30 = sphi 0, %s32
      %s33 = sphi 0, %s30
      %s34 = sphi 0, %s33
      %s50 = sphi 0, %s34
      %s54 = sphi 0, %s54
      %s56 = sphi 0, %s54
      %s57 = sphi 0, %s56
      %s71 = sphi 0, %s57
      %s75 = sphi 0, %s75
      %s77 = sphi 0, %s75
      %s78 = sphi 0, %s77
      %s92 = sphi 0, %s78
      %s96 = sphi 0, %s96
      %s98 = sphi 0, %s96
      %s99 = sphi 0, %s98
      %s113 = sphi 0, %s99
      %s119 = sphi 0, %s121
      %s122 = sphi 0, %s119
      %s123 = sphi 0, %s122
      %s139 = sphi 0, %s123
      %s145 = sphi 0, %s147
      %s148 = sphi 0, %s145
      %s149 = sphi 0, %s148
      %s165 = sphi 0, %s149
    $region4: #{pre_act_bottleneck_forward.7} parent=1 // loop_header_branch
      %23 = sbr.rel (%p21) target = $region8
    $region5: #{pre_act_bottleneck_forward.7} parent=1 // loop_body
      %s25 = ssub.s32 %s20, 1
      %s26 = ssub.s32 %s20, 2
      %s27 = sadd.s32 %s20, 1
      %s28 = ssub.s32 %s20, %s27
      %p29 = scmp.eq.s32.totalorder %s28, 0
      %s31 = sadd.s32 %s30, 1
      %s32 = scalar_select %p29, %s30, %s31
      %p35 = pneg %p29
      %p36 = scmp.eq.s32.totalorder %s20, 1
      %p37 = por %p35, %p36
      %p38 = scmp.ne.s32.totalorder %s30, %s33
      %p39 = scmp.eq.s32.totalorder %s20, 0
      %p40 = por %p38, %p39
      %p41 = scmp.ne.s32.totalorder %s30, %s33
      %p42 = scmp.eq.s32.totalorder %s25, 1
      %p43 = por %p41, %p42
      %p44 = scmp.ne.s32.totalorder %s33, %s34
      %p45 = scmp.eq.s32.totalorder %s25, 0
      %p46 = por %p44, %p45
      %p47 = scmp.ne.s32.totalorder %s33, %s34
      %p48 = scmp.eq.s32.totalorder %s26, 1
      %p49 = por %p47, %p48
      %p51 = scmp.ne.s32.totalorder %s34, %s50
      %p52 = scmp.eq.s32.totalorder %s26, 0
      %p53 = por %p51, %p52
      %s55 = sadd.s32 %s54, 1
      %p58 = scmp.eq.s32.totalorder %s20, 1
      %p59 = scmp.ne.s32.totalorder %s54, %s56
      %p60 = scmp.eq.s32.totalorder %s20, 0
      %p61 = por %p59, %p60
      %p62 = scmp.ne.s32.totalorder %s54, %s56
      %p63 = scmp.eq.s32.totalorder %s25, 1
      %p64 = por %p62, %p63
      %p65 = scmp.ne.s32.totalorder %s56, %s57
      %p66 = scmp.eq.s32.totalorder %s25, 0
      %p67 = por %p65, %p66
      %p68 = scmp.ne.s32.totalorder %s56, %s57
      %p69 = scmp.eq.s32.totalorder %s26, 1
      %p70 = por %p68, %p69
      %p72 = scmp.ne.s32.totalorder %s57, %s71
      %p73 = scmp.eq.s32.totalorder %s26, 0
      %p74 = por %p72, %p73
      %s76 = sadd.s32 %s75, 1
      %p79 = scmp.eq.s32.totalorder %s20, 1
      %p80 = scmp.ne.s32.totalorder %s75, %s77
      %p81 = scmp.eq.s32.totalorder %s20, 0
      %p82 = por %p80, %p81
      %p83 = scmp.ne.s32.totalorder %s75, %s77
      %p84 = scmp.eq.s32.totalorder %s25, 1
      %p85 = por %p83, %p84
      %p86 = scmp.ne.s32.totalorder %s77, %s78
      %p87 = scmp.eq.s32.totalorder %s25, 0
      %p88 = por %p86, %p87
      %p89 = scmp.ne.s32.totalorder %s77, %s78
      %p90 = scmp.eq.s32.totalorder %s26, 1
      %p91 = por %p89, %p90
      %p93 = scmp.ne.s32.totalorder %s78, %s92
      %p94 = scmp.eq.s32.totalorder %s26, 0
      %p95 = por %p93, %p94
      %s97 = sadd.s32 %s96, 1
      %p100 = scmp.eq.s32.totalorder %s20, 1
      %p101 = scmp.ne.s32.totalorder %s96, %s98
      %p102 = scmp.eq.s32.totalorder %s20, 0
      %p103 = por %p101, %p102
      %p104 = scmp.ne.s32.totalorder %s96, %s98
      %p105 = scmp.eq.s32.totalorder %s25, 1
      %p106 = por %p104, %p105
      %p107 = scmp.ne.s32.totalorder %s98, %s99
      %p108 = scmp.eq.s32.totalorder %s25, 0
      %p109 = por %p107, %p108
      %p110 = scmp.ne.s32.totalorder %s98, %s99
      %p111 = scmp.eq.s32.totalorder %s26, 1
      %p112 = por %p110, %p111
      %p114 = scmp.ne.s32.totalorder %s99, %s113
      %p115 = scmp.eq.s32.totalorder %s26, 0
      %p116 = por %p114, %p115
      %s117 = ssub.s32 %s20, %s27
      %p118 = scmp.eq.s32.totalorder %s117, 0
      %s120 = sadd.s32 %s119, 1
      %s121 = scalar_select %p118, %s119, %s120
      %p124 = pneg %p118
      %p125 = scmp.eq.s32.totalorder %s20, 1
      %p126 = por %p124, %p125
      %p127 = scmp.ne.s32.totalorder %s119, %s122
      %p128 = scmp.eq.s32.totalorder %s20, 0
      %p129 = por %p127, %p128
      %p130 = scmp.ne.s32.totalorder %s119, %s122
      %p131 = scmp.eq.s32.totalorder %s25, 1
      %p132 = por %p130, %p131
      %p133 = scmp.ne.s32.totalorder %s122, %s123
      %p134 = scmp.eq.s32.totalorder %s25, 0
      %p135 = por %p133, %p134
      %p136 = scmp.ne.s32.totalorder %s122, %s123
      %p137 = scmp.eq.s32.totalorder %s26, 1
      %p138 = por %p136, %p137
      %p140 = scmp.ne.s32.totalorder %s123, %s139
      %p141 = scmp.eq.s32.totalorder %s26, 0
      %p142 = por %p140, %p141
      %s143 = ssub.s32 %s20, %s27
      %p144 = scmp.eq.s32.totalorder %s143, 0
      %s146 = sadd.s32 %s145, 1
      %s147 = scalar_select %p144, %s145, %s146
      %p150 = pneg %p144
      %p151 = scmp.eq.s32.totalorder %s20, 1
      %p152 = por %p150, %p151
      %p153 = scmp.ne.s32.totalorder %s145, %s148
      %p154 = scmp.eq.s32.totalorder %s20, 0
      %p155 = por %p153, %p154
      %p156 = scmp.ne.s32.totalorder %s145, %s148
      %p157 = scmp.eq.s32.totalorder %s25, 1
      %p158 = por %p156, %p157
      %p159 = scmp.ne.s32.totalorder %s148, %s149
      %p160 = scmp.eq.s32.totalorder %s25, 0
      %p161 = por %p159, %p160
      %p162 = scmp.ne.s32.totalorder %s148, %s149
      %p163 = scmp.eq.s32.totalorder %s26, 1
      %p164 = por %p162, %p163
      %p166 = scmp.ne.s32.totalorder %s149, %s165
      %p167 = scmp.eq.s32.totalorder %s26, 0
      %p168 = por %p166, %p167
      %p169 = scmp.le.s32.totalorder 1, %s20
      %p170 = scmp.lt.s32.totalorder %s20, 3
      %p171 = pnand %p169, %p170
      %p172 = pneg %p171
      // Predicated region
      $region9: #{pre_act_bottleneck_forward.7} parent=5 // pred_check
        _
      $region10: #{pre_act_bottleneck_forward.7} parent=5 // pred_check_branch
        %174 = sbr.rel (%p171) target = $region12
      $region11: #{pre_act_bottleneck_forward.7} parent=5 // pred_region
        %s175 = ssub.s32 %s20, 1
        // Predicated region
        $region13: #{pre_act_bottleneck_forward.7} parent=11 // pred_check
          %p176 = pneg %p67
        $region14: #{pre_act_bottleneck_forward.7} parent=11 // pred_check_branch
          %178 = sbr.rel (%p176) target = $region16
        $region15: #{pre_act_bottleneck_forward.7} parent=11 // pred_region
          _
        $region16: #{pre_act_bottleneck_forward.7} parent=11 // pred_fallthru
          _
        // Predicated region
        $region17: #{pre_act_bottleneck_forward.7} parent=11 // pred_check
          %p179 = pneg %p88
        $region18: #{pre_act_bottleneck_forward.7} parent=11 // pred_check_branch
          %181 = sbr.rel (%p179) target = $region20
        $region19: #{pre_act_bottleneck_forward.7} parent=11 // pred_region
          _
        $region20: #{pre_act_bottleneck_forward.7} parent=11 // pred_fallthru
          _
        // Predicated region
        $region21: #{pre_act_bottleneck_forward.7} parent=11 // pred_check
          %p182 = pneg %p109
        $region22: #{pre_act_bottleneck_forward.7} parent=11 // pred_check_branch
          %184 = sbr.rel (%p182) target = $region24
        $region23: #{pre_act_bottleneck_forward.7} parent=11 // pred_region
          _
        $region24: #{pre_act_bottleneck_forward.7} parent=11 // pred_fallthru
          _
      $region12: #{pre_act_bottleneck_forward.7} parent=5 // pred_fallthru
        _
      %p185 = scmp.lt.s32.totalorder %s20, 2
      // Predicated region
      $region25: #{pre_act_bottleneck_forward.7} parent=5 // pred_check
        %p186 = pneg %p185
      $region26: #{pre_act_bottleneck_forward.7} parent=5 // pred_check_branch
        %188 = sbr.rel (%p186) target = $region28
      $region27: #{pre_act_bottleneck_forward.7} parent=5 // pred_region
        // Predicated region
        $region29: #{pre_act_bottleneck_forward.7} parent=27 // pred_check
          %p189 = pneg %p40
        $region30: #{pre_act_bottleneck_forward.7} parent=27 // pred_check_branch
          %191 = sbr.rel (%p189) target = $region32
        $region31: #{pre_act_bottleneck_forward.7} parent=27 // pred_region
          %s192 = sand.u32 %s30, 1
          %s193 = scalar_lea.sflag [#allocation3], %s192
          %s194 = sand.u32 %s30, 1
          %s195 = smul.addr %s194, 256
          %s196 = scalar_lea.vmem [#allocation2], %s195
          %s197 = smul.u32 64, %s20
          %s199 = ssub.s32 4096, 4096
          %200 = vsyncadd %s193, %s199
          %s201 = smul.addr %s197, 64
          %s202 = scalar_lea.hbm %s0, %s201
          %s203 = sshll.u32 %s196, 4
          %s204 = int_to_ptr.vmem [resolvable:$true] %s203
          %209 = dma.hbm_to_vmem [thread:$0]  %s202, 4096, %s204, %s193, 64, 64, 4
        $region32: #{pre_act_bottleneck_forward.7} parent=27 // pred_fallthru
          _
        // Predicated region
        $region33: #{pre_act_bottleneck_forward.7} parent=27 // pred_check
          %p210 = pneg %p129
        $region34: #{pre_act_bottleneck_forward.7} parent=27 // pred_check_branch
          %212 = sbr.rel (%p210) target = $region36
        $region35: #{pre_act_bottleneck_forward.7} parent=27 // pred_region
          %s213 = sand.u32 %s119, 1
          %s214 = scalar_lea.sflag [#allocation6], %s213
          %s215 = sand.u32 %s119, 1
          %s216 = smul.addr %s215, 512
          %s217 = scalar_lea.vmem [#allocation5], %s216
          %s218 = smul.u32 64, %s20
          %s220 = ssub.s32 8192, 8192
          %221 = vsyncadd %s214, %s220
          %s222 = smul.addr %s218, 128
          %s223 = scalar_lea.hbm %s4, %s222
          %s224 = sshll.u32 %s217, 4
          %s225 = int_to_ptr.vmem [resolvable:$true] %s224
          %230 = dma.hbm_to_vmem [thread:$0]  %s223, 8192, %s225, %s214, 128, 128, 8
        $region36: #{pre_act_bottleneck_forward.7} parent=27 // pred_fallthru
          _
      $region28: #{pre_act_bottleneck_forward.7} parent=5 // pred_fallthru
        _
      %p231 = scmp.le.s32.totalorder 1, %s20
      %p232 = scmp.lt.s32.totalorder %s20, 3
      %p233 = pnand %p231, %p232
      %p234 = pneg %p233
      // Predicated region
      $region37: #{pre_act_bottleneck_forward.7} parent=5 // pred_check
        _
      $region38: #{pre_act_bottleneck_forward.7} parent=5 // pred_check_branch
        %236 = sbr.rel (%p233) target = $region40
      $region39: #{pre_act_bottleneck_forward.7} parent=5 // pred_region
        %s237 = ssub.s32 %s20, 1
        %s238 = sand.u32 %s33, 1
        %s239 = scalar_lea.sflag [#allocation3], %s238
        %s240 = sand.u32 %s33, 1
        %s241 = smul.addr %s240, 256
        %s242 = scalar_lea.vmem [#allocation2], %s241
        // Predicated region
        $region41: #{pre_act_bottleneck_forward.7} parent=39 // pred_check
          %p243 = pneg %p46
        $region42: #{pre_act_bottleneck_forward.7} parent=39 // pred_check_branch
          %245 = sbr.rel (%p243) target = $region44
        $region43: #{pre_act_bottleneck_forward.7} parent=39 // pred_region
          %246 = dma.done %s239, 4096
        $region44: #{pre_act_bottleneck_forward.7} parent=39 // pred_fallthru
          _
        %s247 = sand.u32 %s122, 1
        %s248 = scalar_lea.sflag [#allocation6], %s247
        %s249 = sand.u32 %s122, 1
        %s250 = smul.addr %s249, 512
        %s251 = scalar_lea.vmem [#allocation5], %s250
        // Predicated region
        $region45: #{pre_act_bottleneck_forward.7} parent=39 // pred_check
          %p252 = pneg %p135
        $region46: #{pre_act_bottleneck_forward.7} parent=39 // pred_check_branch
          %254 = sbr.rel (%p252) target = $region48
        $region47: #{pre_act_bottleneck_forward.7} parent=39 // pred_region
          %255 = dma.done %s248, 8192
        $region48: #{pre_act_bottleneck_forward.7} parent=39 // pred_fallthru
          _
        %s256 = sand.u32 %s33, 1
        %s257 = scalar_lea.sflag [#allocation3], %s256
        %s258 = sand.u32 %s33, 1
        %s259 = smul.addr %s258, 256
        %s260 = scalar_lea.vmem [#allocation2], %s259
        %p261 = pneg %p46
        %p262 = pneg %p43
        %p263 = pneg %p67
        %p264 = pneg %p64
        %p265 = pneg %p88
        %p266 = pneg %p85
        %p267 = pneg %p109
        %p268 = pneg %p106
        %s269 = sand.u32 %s122, 1
        %s270 = scalar_lea.sflag [#allocation6], %s269
        %s271 = sand.u32 %s122, 1
        %s272 = smul.addr %s271, 512
        %s273 = scalar_lea.vmem [#allocation5], %s272
        %p274 = pneg %p135
        %p275 = pneg %p132
        %p276 = pneg %p161
        %p277 = pneg %p158
        %s278 = sand.u32 %s148, 1
        %s279 = scalar_lea.sflag [#allocation4], %s278
        %s280 = sand.u32 %s148, 1
        %s281 = smul.addr %s280, 512
        %s282 = scalar_lea.vmem [#allocation7], %s281
        %s283 = smul.u32 64, %s25
        %s284 = smul.u32 64, %s25
        %s285 = smul.u32 64, %s25
        %v287 = vld [vmem:[%s242] sm:$0xf]
        %v288 = vld [vmem:[%s242 + $0x4] sm:$0xf]
        %v289 = vld [vmem:[%s242 + $0x8] sm:$0xf]
        %v290 = vld [vmem:[%s242 + $0xc] sm:$0xf]
        %v291 = vld [vmem:[%s242 + $0x10] sm:$0xf]
        %v292 = vld [vmem:[%s242 + $0x14] sm:$0xf]
        %v293 = vld [vmem:[%s242 + $0x18] sm:$0xf]
        %v294 = vld [vmem:[%s242 + $0x1c] sm:$0xf]
        %v295 = vld [vmem:[%s242 + $0x20] sm:$0xf]
        %v296 = vld [vmem:[%s242 + $0x24] sm:$0xf]
        %v297 = vld [vmem:[%s242 + $0x28] sm:$0xf]
        %v298 = vld [vmem:[%s242 + $0x2c] sm:$0xf]
        %v299 = vld [vmem:[%s242 + $0x30] sm:$0xf]
        %v300 = vld [vmem:[%s242 + $0x34] sm:$0xf]
        %v301 = vld [vmem:[%s242 + $0x38] sm:$0xf]
        %v302 = vld [vmem:[%s242 + $0x3c] sm:$0xf]
        %v303 = vld [vmem:[%s242 + $0x40] sm:$0xf]
        %v304 = vld [vmem:[%s242 + $0x44] sm:$0xf]
        %v305 = vld [vmem:[%s242 + $0x48] sm:$0xf]
        %v306 = vld [vmem:[%s242 + $0x4c] sm:$0xf]
        %v307 = vld [vmem:[%s242 + $0x50] sm:$0xf]
        %v308 = vld [vmem:[%s242 + $0x54] sm:$0xf]
        %v309 = vld [vmem:[%s242 + $0x58] sm:$0xf]
        %v310 = vld [vmem:[%s242 + $0x5c] sm:$0xf]
        %v311 = vld [vmem:[%s242 + $0x60] sm:$0xf]
        %v312 = vld [vmem:[%s242 + $0x64] sm:$0xf]
        %v313 = vld [vmem:[%s242 + $0x68] sm:$0xf]
        %v314 = vld [vmem:[%s242 + $0x6c] sm:$0xf]
        %v315 = vld [vmem:[%s242 + $0x70] sm:$0xf]
        %v316 = vld [vmem:[%s242 + $0x74] sm:$0xf]
        %v317 = vld [vmem:[%s242 + $0x78] sm:$0xf]
        %v318 = vld [vmem:[%s242 + $0x7c] sm:$0xf]
        %v319 = vld [vmem:[%s242 + $0x80] sm:$0xf]
        %v320 = vld [vmem:[%s242 + $0x84] sm:$0xf]
        %v321 = vld [vmem:[%s242 + $0x88] sm:$0xf]
        %v322 = vld [vmem:[%s242 + $0x8c] sm:$0xf]
        %v323 = vld [vmem:[%s242 + $0x90] sm:$0xf]
        %v324 = vld [vmem:[%s242 + $0x94] sm:$0xf]
        %v325 = vld [vmem:[%s242 + $0x98] sm:$0xf]
        %v326 = vld [vmem:[%s242 + $0x9c] sm:$0xf]
        %v327 = vld [vmem:[%s242 + $0xa0] sm:$0xf]
        %v328 = vld [vmem:[%s242 + $0xa4] sm:$0xf]
        %v329 = vld [vmem:[%s242 + $0xa8] sm:$0xf]
        %v330 = vld [vmem:[%s242 + $0xac] sm:$0xf]
        %v331 = vld [vmem:[%s242 + $0xb0] sm:$0xf]
        %v332 = vld [vmem:[%s242 + $0xb4] sm:$0xf]
        %v333 = vld [vmem:[%s242 + $0xb8] sm:$0xf]
        %v334 = vld [vmem:[%s242 + $0xbc] sm:$0xf]
        %v335 = vld [vmem:[%s242 + $0xc0] sm:$0xf]
        %v336 = vld [vmem:[%s242 + $0xc4] sm:$0xf]
        %v337 = vld [vmem:[%s242 + $0xc8] sm:$0xf]
        %v338 = vld [vmem:[%s242 + $0xcc] sm:$0xf]
        %v339 = vld [vmem:[%s242 + $0xd0] sm:$0xf]
        %v340 = vld [vmem:[%s242 + $0xd4] sm:$0xf]
        %v341 = vld [vmem:[%s242 + $0xd8] sm:$0xf]
        %v342 = vld [vmem:[%s242 + $0xdc] sm:$0xf]
        %v343 = vld [vmem:[%s242 + $0xe0] sm:$0xf]
        %v344 = vld [vmem:[%s242 + $0xe4] sm:$0xf]
        %v345 = vld [vmem:[%s242 + $0xe8] sm:$0xf]
        %v346 = vld [vmem:[%s242 + $0xec] sm:$0xf]
        %v347 = vld [vmem:[%s242 + $0xf0] sm:$0xf]
        %v348 = vld [vmem:[%s242 + $0xf4] sm:$0xf]
        %v349 = vld [vmem:[%s242 + $0xf8] sm:$0xf]
        %v350 = vld [vmem:[%s242 + $0xfc] sm:$0xf]
        %v351 = vunpack.c.l.bf16 %v287
        %v352 = vunpack.c.l.bf16 %v288
        %v353 = vunpack.c.l.bf16 %v289
        %v354 = vunpack.c.l.bf16 %v290
        %v355 = vunpack.c.l.bf16 %v291
        %v356 = vunpack.c.l.bf16 %v292
        %v357 = vunpack.c.l.bf16 %v293
        %v358 = vunpack.c.l.bf16 %v294
        %v359 = vunpack.c.l.bf16 %v295
        %v360 = vunpack.c.l.bf16 %v296
        %v361 = vunpack.c.l.bf16 %v297
        %v362 = vunpack.c.l.bf16 %v298
        %v363 = vunpack.c.l.bf16 %v299
        %v364 = vunpack.c.l.bf16 %v300
        %v365 = vunpack.c.l.bf16 %v301
        %v366 = vunpack.c.l.bf16 %v302
        %v367 = vunpack.c.l.bf16 %v303
        %v368 = vunpack.c.l.bf16 %v304
        %v369 = vunpack.c.l.bf16 %v305
        %v370 = vunpack.c.l.bf16 %v306
        %v371 = vunpack.c.l.bf16 %v307
        %v372 = vunpack.c.l.bf16 %v308
        %v373 = vunpack.c.l.bf16 %v309
        %v374 = vunpack.c.l.bf16 %v310
        %v375 = vunpack.c.l.bf16 %v311
        %v376 = vunpack.c.l.bf16 %v312
        %v377 = vunpack.c.l.bf16 %v313
        %v378 = vunpack.c.l.bf16 %v314
        %v379 = vunpack.c.l.bf16 %v315
        %v380 = vunpack.c.l.bf16 %v316
        %v381 = vunpack.c.l.bf16 %v317
        %v382 = vunpack.c.l.bf16 %v318
        %v383 = vunpack.c.l.bf16 %v319
        %v384 = vunpack.c.l.bf16 %v320
        %v385 = vunpack.c.l.bf16 %v321
        %v386 = vunpack.c.l.bf16 %v322
        %v387 = vunpack.c.l.bf16 %v323
        %v388 = vunpack.c.l.bf16 %v324
        %v389 = vunpack.c.l.bf16 %v325
        %v390 = vunpack.c.l.bf16 %v326
        %v391 = vunpack.c.l.bf16 %v327
        %v392 = vunpack.c.l.bf16 %v328
        %v393 = vunpack.c.l.bf16 %v329
        %v394 = vunpack.c.l.bf16 %v330
        %v395 = vunpack.c.l.bf16 %v331
        %v396 = vunpack.c.l.bf16 %v332
        %v397 = vunpack.c.l.bf16 %v333
        %v398 = vunpack.c.l.bf16 %v334
        %v399 = vunpack.c.l.bf16 %v335
        %v400 = vunpack.c.l.bf16 %v336
        %v401 = vunpack.c.l.bf16 %v337
        %v402 = vunpack.c.l.bf16 %v338
        %v403 = vunpack.c.l.bf16 %v339
        %v404 = vunpack.c.l.bf16 %v340
        %v405 = vunpack.c.l.bf16 %v341
        %v406 = vunpack.c.l.bf16 %v342
        %v407 = vunpack.c.l.bf16 %v343
        %v408 = vunpack.c.l.bf16 %v344
        %v409 = vunpack.c.l.bf16 %v345
        %v410 = vunpack.c.l.bf16 %v346
        %v411 = vunpack.c.l.bf16 %v347
        %v412 = vunpack.c.l.bf16 %v348
        %v413 = vunpack.c.l.bf16 %v349
        %v414 = vunpack.c.l.bf16 %v350
        %v415 = vld [vmem:[%s1] sm:$0x1]
        %v417 = vlaneseq
        %v418 = vshrl.u32 %v417, 7
        %v419 = vsub.s32 0, %v418
        %v420 = vrot.slane %v415, %v419
        %v422 = vmul.f32 %v351, %v420
        %v423 = vmul.f32 %v352, %v420
        %v424 = vmul.f32 %v353, %v420
        %v425 = vmul.f32 %v354, %v420
        %v426 = vmul.f32 %v355, %v420
        %v427 = vmul.f32 %v356, %v420
        %v428 = vmul.f32 %v357, %v420
        %v429 = vmul.f32 %v358, %v420
        %v430 = vmul.f32 %v359, %v420
        %v431 = vmul.f32 %v360, %v420
        %v432 = vmul.f32 %v361, %v420
        %v433 = vmul.f32 %v362, %v420
        %v434 = vmul.f32 %v363, %v420
        %v435 = vmul.f32 %v364, %v420
        %v436 = vmul.f32 %v365, %v420
        %v437 = vmul.f32 %v366, %v420
        %v438 = vmul.f32 %v367, %v420
        %v439 = vmul.f32 %v368, %v420
        %v440 = vmul.f32 %v369, %v420
        %v441 = vmul.f32 %v370, %v420
        %v442 = vmul.f32 %v371, %v420
        %v443 = vmul.f32 %v372, %v420
        %v444 = vmul.f32 %v373, %v420
        %v445 = vmul.f32 %v374, %v420
        %v446 = vmul.f32 %v375, %v420
        %v447 = vmul.f32 %v376, %v420
        %v448 = vmul.f32 %v377, %v420
        %v449 = vmul.f32 %v378, %v420
        %v450 = vmul.f32 %v379, %v420
        %v451 = vmul.f32 %v380, %v420
        %v452 = vmul.f32 %v381, %v420
        %v453 = vmul.f32 %v382, %v420
        %v454 = vmul.f32 %v383, %v420
        %v455 = vmul.f32 %v384, %v420
        %v456 = vmul.f32 %v385, %v420
        %v457 = vmul.f32 %v386, %v420
        %v458 = vmul.f32 %v387, %v420
        %v459 = vmul.f32 %v388, %v420
        %v460 = vmul.f32 %v389, %v420
        %v461 = vmul.f32 %v390, %v420
        %v462 = vmul.f32 %v391, %v420
        %v463 = vmul.f32 %v392, %v420
        %v464 = vmul.f32 %v393, %v420
        %v465 = vmul.f32 %v394, %v420
        %v466 = vmul.f32 %v395, %v420
        %v467 = vmul.f32 %v396, %v420
        %v468 = vmul.f32 %v397, %v420
        %v469 = vmul.f32 %v398, %v420
        %v470 = vmul.f32 %v399, %v420
        %v471 = vmul.f32 %v400, %v420
        %v472 = vmul.f32 %v401, %v420
        %v473 = vmul.f32 %v402, %v420
        %v474 = vmul.f32 %v403, %v420
        %v475 = vmul.f32 %v404, %v420
        %v476 = vmul.f32 %v405, %v420
        %v477 = vmul.f32 %v406, %v420
        %v478 = vmul.f32 %v407, %v420
        %v479 = vmul.f32 %v408, %v420
        %v480 = vmul.f32 %v409, %v420
        %v481 = vmul.f32 %v410, %v420
        %v482 = vmul.f32 %v411, %v420
        %v483 = vmul.f32 %v412, %v420
        %v484 = vmul.f32 %v413, %v420
        %v485 = vmul.f32 %v414, %v420
        %v486 = vld [vmem:[%s2] sm:$0x1]
        %v488 = vlaneseq
        %v489 = vshrl.u32 %v488, 7
        %v490 = vsub.s32 0, %v489
        %v491 = vrot.slane %v486, %v490
        %v493 = vadd.f32 %v422, %v491
        %v494 = vadd.f32 %v423, %v491
        %v495 = vadd.f32 %v424, %v491
        %v496 = vadd.f32 %v425, %v491
        %v497 = vadd.f32 %v426, %v491
        %v498 = vadd.f32 %v427, %v491
        %v499 = vadd.f32 %v428, %v491
        %v500 = vadd.f32 %v429, %v491
        %v501 = vadd.f32 %v430, %v491
        %v502 = vadd.f32 %v431, %v491
        %v503 = vadd.f32 %v432, %v491
        %v504 = vadd.f32 %v433, %v491
        %v505 = vadd.f32 %v434, %v491
        %v506 = vadd.f32 %v435, %v491
        %v507 = vadd.f32 %v436, %v491
        %v508 = vadd.f32 %v437, %v491
        %v509 = vadd.f32 %v438, %v491
        %v510 = vadd.f32 %v439, %v491
        %v511 = vadd.f32 %v440, %v491
        %v512 = vadd.f32 %v441, %v491
        %v513 = vadd.f32 %v442, %v491
        %v514 = vadd.f32 %v443, %v491
        %v515 = vadd.f32 %v444, %v491
        %v516 = vadd.f32 %v445, %v491
        %v517 = vadd.f32 %v446, %v491
        %v518 = vadd.f32 %v447, %v491
        %v519 = vadd.f32 %v448, %v491
        %v520 = vadd.f32 %v449, %v491
        %v521 = vadd.f32 %v450, %v491
        %v522 = vadd.f32 %v451, %v491
        %v523 = vadd.f32 %v452, %v491
        %v524 = vadd.f32 %v453, %v491
        %v525 = vadd.f32 %v454, %v491
        %v526 = vadd.f32 %v455, %v491
        %v527 = vadd.f32 %v456, %v491
        %v528 = vadd.f32 %v457, %v491
        %v529 = vadd.f32 %v458, %v491
        %v530 = vadd.f32 %v459, %v491
        %v531 = vadd.f32 %v460, %v491
        %v532 = vadd.f32 %v461, %v491
        %v533 = vadd.f32 %v462, %v491
        %v534 = vadd.f32 %v463, %v491
        %v535 = vadd.f32 %v464, %v491
        %v536 = vadd.f32 %v465, %v491
        %v537 = vadd.f32 %v466, %v491
        %v538 = vadd.f32 %v467, %v491
        %v539 = vadd.f32 %v468, %v491
        %v540 = vadd.f32 %v469, %v491
        %v541 = vadd.f32 %v470, %v491
        %v542 = vadd.f32 %v471, %v491
        %v543 = vadd.f32 %v472, %v491
        %v544 = vadd.f32 %v473, %v491
        %v545 = vadd.f32 %v474, %v491
        %v546 = vadd.f32 %v475, %v491
        %v547 = vadd.f32 %v476, %v491
        %v548 = vadd.f32 %v477, %v491
        %v549 = vadd.f32 %v478, %v491
        %v550 = vadd.f32 %v479, %v491
        %v551 = vadd.f32 %v480, %v491
        %v552 = vadd.f32 %v481, %v491
        %v553 = vadd.f32 %v482, %v491
        %v554 = vadd.f32 %v483, %v491
        %v555 = vadd.f32 %v484, %v491
        %v556 = vadd.f32 %v485, %v491
        %v557 = vmax.f32 %v493, 0.0
        %v558 = vmax.f32 %v494, 0.0
        %v559 = vmax.f32 %v495, 0.0
        %v560 = vmax.f32 %v496, 0.0
        %v561 = vmax.f32 %v497, 0.0
        %v562 = vmax.f32 %v498, 0.0
        %v563 = vmax.f32 %v499, 0.0
        %v564 = vmax.f32 %v500, 0.0
        %v565 = vmax.f32 %v501, 0.0
        %v566 = vmax.f32 %v502, 0.0
        %v567 = vmax.f32 %v503, 0.0
        %v568 = vmax.f32 %v504, 0.0
        %v569 = vmax.f32 %v505, 0.0
        %v570 = vmax.f32 %v506, 0.0
        %v571 = vmax.f32 %v507, 0.0
        %v572 = vmax.f32 %v508, 0.0
        %v573 = vmax.f32 %v509, 0.0
        %v574 = vmax.f32 %v510, 0.0
        %v575 = vmax.f32 %v511, 0.0
        %v576 = vmax.f32 %v512, 0.0
        %v577 = vmax.f32 %v513, 0.0
        %v578 = vmax.f32 %v514, 0.0
        %v579 = vmax.f32 %v515, 0.0
        %v580 = vmax.f32 %v516, 0.0
        %v581 = vmax.f32 %v517, 0.0
        %v582 = vmax.f32 %v518, 0.0
        %v583 = vmax.f32 %v519, 0.0
        %v584 = vmax.f32 %v520, 0.0
        %v585 = vmax.f32 %v521, 0.0
        %v586 = vmax.f32 %v522, 0.0
        %v587 = vmax.f32 %v523, 0.0
        %v588 = vmax.f32 %v524, 0.0
        %v589 = vmax.f32 %v525, 0.0
        %v590 = vmax.f32 %v526, 0.0
        %v591 = vmax.f32 %v527, 0.0
        %v592 = vmax.f32 %v528, 0.0
        %v593 = vmax.f32 %v529, 0.0
        %v594 = vmax.f32 %v530, 0.0
        %v595 = vmax.f32 %v531, 0.0
        %v596 = vmax.f32 %v532, 0.0
        %v597 = vmax.f32 %v533, 0.0
        %v598 = vmax.f32 %v534, 0.0
        %v599 = vmax.f32 %v535, 0.0
        %v600 = vmax.f32 %v536, 0.0
        %v601 = vmax.f32 %v537, 0.0
        %v602 = vmax.f32 %v538, 0.0
        %v603 = vmax.f32 %v539, 0.0
        %v604 = vmax.f32 %v540, 0.0
        %v605 = vmax.f32 %v541, 0.0
        %v606 = vmax.f32 %v542, 0.0
        %v607 = vmax.f32 %v543, 0.0
        %v608 = vmax.f32 %v544, 0.0
        %v609 = vmax.f32 %v545, 0.0
        %v610 = vmax.f32 %v546, 0.0
        %v611 = vmax.f32 %v547, 0.0
        %v612 = vmax.f32 %v548, 0.0
        %v613 = vmax.f32 %v549, 0.0
        %v614 = vmax.f32 %v550, 0.0
        %v615 = vmax.f32 %v551, 0.0
        %v616 = vmax.f32 %v552, 0.0
        %v617 = vmax.f32 %v553, 0.0
        %v618 = vmax.f32 %v554, 0.0
        %v619 = vmax.f32 %v555, 0.0
        %v620 = vmax.f32 %v556, 0.0
        %v621 = vpack.c.bf16 %v558, %v557
        %v622 = vpack.c.bf16 %v560, %v559
        %v623 = vpack.c.bf16 %v562, %v561
        %v624 = vpack.c.bf16 %v564, %v563
        %v625 = vpack.c.bf16 %v566, %v565
        %v626 = vpack.c.bf16 %v568, %v567
        %v627 = vpack.c.bf16 %v570, %v569
        %v628 = vpack.c.bf16 %v572, %v571
        %v629 = vpack.c.bf16 %v574, %v573
        %v630 = vpack.c.bf16 %v576, %v575
        %v631 = vpack.c.bf16 %v578, %v577
        %v632 = vpack.c.bf16 %v580, %v579
        %v633 = vpack.c.bf16 %v582, %v581
        %v634 = vpack.c.bf16 %v584, %v583
        %v635 = vpack.c.bf16 %v586, %v585
        %v636 = vpack.c.bf16 %v588, %v587
        %v637 = vpack.c.bf16 %v590, %v589
        %v638 = vpack.c.bf16 %v592, %v591
        %v639 = vpack.c.bf16 %v594, %v593
        %v640 = vpack.c.bf16 %v596, %v595
        %v641 = vpack.c.bf16 %v598, %v597
        %v642 = vpack.c.bf16 %v600, %v599
        %v643 = vpack.c.bf16 %v602, %v601
        %v644 = vpack.c.bf16 %v604, %v603
        %v645 = vpack.c.bf16 %v606, %v605
        %v646 = vpack.c.bf16 %v608, %v607
        %v647 = vpack.c.bf16 %v610, %v609
        %v648 = vpack.c.bf16 %v612, %v611
        %v649 = vpack.c.bf16 %v614, %v613
        %v650 = vpack.c.bf16 %v616, %v615
        %v651 = vpack.c.bf16 %v618, %v617
        %v652 = vpack.c.bf16 %v620, %v619
        %v653 = vld [vmem:[%s3] sm:$0x3]
        %v654 = vld [vmem:[%s251] sm:$0xff]
        %v655 = vld [vmem:[%s251 + $0x8] sm:$0xff]
        %v656 = vld [vmem:[%s251 + $0x10] sm:$0xff]
        %v657 = vld [vmem:[%s251 + $0x18] sm:$0xff]
        %v658 = vld [vmem:[%s251 + $0x20] sm:$0xff]
        %v659 = vld [vmem:[%s251 + $0x28] sm:$0xff]
        %v660 = vld [vmem:[%s251 + $0x30] sm:$0xff]
        %v661 = vld [vmem:[%s251 + $0x38] sm:$0xff]
        %v662 = vld [vmem:[%s251 + $0x40] sm:$0xff]
        %v663 = vld [vmem:[%s251 + $0x48] sm:$0xff]
        %v664 = vld [vmem:[%s251 + $0x50] sm:$0xff]
        %v665 = vld [vmem:[%s251 + $0x58] sm:$0xff]
        %v666 = vld [vmem:[%s251 + $0x60] sm:$0xff]
        %v667 = vld [vmem:[%s251 + $0x68] sm:$0xff]
        %v668 = vld [vmem:[%s251 + $0x70] sm:$0xff]
        %v669 = vld [vmem:[%s251 + $0x78] sm:$0xff]
        %v670 = vld [vmem:[%s251 + $0x80] sm:$0xff]
        %v671 = vld [vmem:[%s251 + $0x88] sm:$0xff]
        %v672 = vld [vmem:[%s251 + $0x90] sm:$0xff]
        %v673 = vld [vmem:[%s251 + $0x98] sm:$0xff]
        %v674 = vld [vmem:[%s251 + $0xa0] sm:$0xff]
        %v675 = vld [vmem:[%s251 + $0xa8] sm:$0xff]
        %v676 = vld [vmem:[%s251 + $0xb0] sm:$0xff]
        %v677 = vld [vmem:[%s251 + $0xb8] sm:$0xff]
        %v678 = vld [vmem:[%s251 + $0xc0] sm:$0xff]
        %v679 = vld [vmem:[%s251 + $0xc8] sm:$0xff]
        %v680 = vld [vmem:[%s251 + $0xd0] sm:$0xff]
        %v681 = vld [vmem:[%s251 + $0xd8] sm:$0xff]
        %v682 = vld [vmem:[%s251 + $0xe0] sm:$0xff]
        %v683 = vld [vmem:[%s251 + $0xe8] sm:$0xff]
        %v684 = vld [vmem:[%s251 + $0xf0] sm:$0xff]
        %v685 = vld [vmem:[%s251 + $0xf8] sm:$0xff]
        %v686 = vld [vmem:[%s251 + $0x100] sm:$0xff]
        %v687 = vld [vmem:[%s251 + $0x108] sm:$0xff]
        %v688 = vld [vmem:[%s251 + $0x110] sm:$0xff]
        %v689 = vld [vmem:[%s251 + $0x118] sm:$0xff]
        %v690 = vld [vmem:[%s251 + $0x120] sm:$0xff]
        %v691 = vld [vmem:[%s251 + $0x128] sm:$0xff]
        %v692 = vld [vmem:[%s251 + $0x130] sm:$0xff]
        %v693 = vld [vmem:[%s251 + $0x138] sm:$0xff]
        %v694 = vld [vmem:[%s251 + $0x140] sm:$0xff]
        %v695 = vld [vmem:[%s251 + $0x148] sm:$0xff]
        %v696 = vld [vmem:[%s251 + $0x150] sm:$0xff]
        %v697 = vld [vmem:[%s251 + $0x158] sm:$0xff]
        %v698 = vld [vmem:[%s251 + $0x160] sm:$0xff]
        %v699 = vld [vmem:[%s251 + $0x168] sm:$0xff]
        %v700 = vld [vmem:[%s251 + $0x170] sm:$0xff]
        %v701 = vld [vmem:[%s251 + $0x178] sm:$0xff]
        %v702 = vld [vmem:[%s251 + $0x180] sm:$0xff]
        %v703 = vld [vmem:[%s251 + $0x188] sm:$0xff]
        %v704 = vld [vmem:[%s251 + $0x190] sm:$0xff]
        %v705 = vld [vmem:[%s251 + $0x198] sm:$0xff]
        %v706 = vld [vmem:[%s251 + $0x1a0] sm:$0xff]
        %v707 = vld [vmem:[%s251 + $0x1a8] sm:$0xff]
        %v708 = vld [vmem:[%s251 + $0x1b0] sm:$0xff]
        %v709 = vld [vmem:[%s251 + $0x1b8] sm:$0xff]
        %v710 = vld [vmem:[%s251 + $0x1c0] sm:$0xff]
        %v711 = vld [vmem:[%s251 + $0x1c8] sm:$0xff]
        %v712 = vld [vmem:[%s251 + $0x1d0] sm:$0xff]
        %v713 = vld [vmem:[%s251 + $0x1d8] sm:$0xff]
        %v714 = vld [vmem:[%s251 + $0x1e0] sm:$0xff]
        %v715 = vld [vmem:[%s251 + $0x1e8] sm:$0xff]
        %v716 = vld [vmem:[%s251 + $0x1f0] sm:$0xff]
        %v717 = vld [vmem:[%s251 + $0x1f8] sm:$0xff]
        %vm718 = vcmask 31744
        %v720 = vsel %vm718, %v621, 0
        %v723 = vsel %vm718, %v622, 0
        %v726 = vsel %vm718, %v623, 0
        %v729 = vsel %vm718, %v624, 0
        %v732 = vsel %vm718, %v625, 0
        %v735 = vsel %vm718, %v626, 0
        %v738 = vsel %vm718, %v627, 0
        %v741 = vsel %vm718, %v628, 0
        %v744 = vsel %vm718, %v629, 0
        %v747 = vsel %vm718, %v630, 0
        %v750 = vsel %vm718, %v631, 0
        %v753 = vsel %vm718, %v632, 0
        %v756 = vsel %vm718, %v633, 0
        %v759 = vsel %vm718, %v634, 0
        %v762 = vsel %vm718, %v635, 0
        %v765 = vsel %vm718, %v636, 0
        %v768 = vsel %vm718, %v637, 0
        %v771 = vsel %vm718, %v638, 0
        %v774 = vsel %vm718, %v639, 0
        %v777 = vsel %vm718, %v640, 0
        %v780 = vsel %vm718, %v641, 0
        %v783 = vsel %vm718, %v642, 0
        %v786 = vsel %vm718, %v643, 0
        %v789 = vsel %vm718, %v644, 0
        %v792 = vsel %vm718, %v645, 0
        %v795 = vsel %vm718, %v646, 0
        %v798 = vsel %vm718, %v647, 0
        %v801 = vsel %vm718, %v648, 0
        %v804 = vsel %vm718, %v649, 0
        %v807 = vsel %vm718, %v650, 0
        %v810 = vsel %vm718, %v651, 0
        %v813 = vsel %vm718, %v652, 0
        %vm815 = vcmask 1041408
        %v817 = vsel %vm815, %v653, 0
        %819 = vmatprep.subr.bf16.mxu0 0
        %820 = vmatpush1.bf16.msra.mxu0 %v817
        %821 = vmatprep.subr.bf16.mxu0 0
        %822 = vmatpush1.bf16.msra.mxu0 0
        %823 = vmatprep.subr.bf16.mxu0 0
        %824 = vmatpush1.bf16.msra.mxu0 0
        %825 = vmatprep.subr.bf16.mxu0 0
        %826 = vmatpush1.bf16.msra.mxu0 0
        %827 = vmatprep.subr.bf16.mxu0 0
        %828 = vmatpush1.bf16.msra.mxu0 0
        %829 = vmatprep.subr.bf16.mxu0 0
        %830 = vmatpush1.bf16.msra.mxu0 0
        %831 = vmatprep.subr.bf16.mxu0 0
        %832 = vmatpush1.bf16.msra.mxu0 0
        %833 = vmatprep.subr.bf16.mxu0 0
        %834 = vmatpush1.bf16.msra.mxu0 0
        %835 = vmatprep.subr.bf16.mxu0 0
        %836 = vmatpush1.bf16.msra.mxu0 0
        %837 = vmatprep.subr.bf16.mxu0 0
        %838 = vmatpush1.bf16.msra.mxu0 0
        %839 = vmatprep.subr.bf16.mxu0 0
        %840 = vmatpush1.bf16.msra.mxu0 0
        %841 = vmatprep.subr.bf16.mxu0 0
        %842 = vmatpush1.bf16.msra.mxu0 0
        %843 = vmatprep.subr.bf16.mxu0 0
        %844 = vmatpush1.bf16.msra.mxu0 0
        %845 = vmatprep.subr.bf16.mxu0 0
        %846 = vmatpush1.bf16.msra.mxu0 0
        %847 = vmatprep.subr.bf16.mxu0 0
        %848 = vmatpush1.bf16.msra.mxu0 0
        %849 = vmatprep.subr.bf16.mxu0 0
        %850 = vmatpush1.bf16.msra.mxu0 0
        %851 = vmatprep.mubr.bf16.mxu0 0
        %852 = vmatmul.mubr.bf16.gmra.mrb[0].mxu0 %v720
        %v853 = vpop.f32.mrb[0].mxu0
        %v854 = vadd.f32 %v654, %v853
        %v855 = vpop.f32.mrb[0].mxu0
        %v856 = vpop.f32.mrb[0].mxu0
        %v857 = vadd.f32 %v655, %v856
        %v858 = vpop.f32.mrb[0].mxu0
        %859 = vmatprep.mubr.bf16.mxu0 0
        %860 = vmatmul.mubr.bf16.gmra.mrb[0].mxu0 %v723
        %v861 = vpop.f32.mrb[0].mxu0
        %v862 = vadd.f32 %v656, %v861
        %v863 = vpop.f32.mrb[0].mxu0
        %v864 = vpop.f32.mrb[0].mxu0
        %v865 = vadd.f32 %v657, %v864
        %v866 = vpop.f32.mrb[0].mxu0
        %867 = vmatprep.mubr.bf16.mxu0 0
        %868 = vmatmul.mubr.bf16.gmra.mrb[0].mxu0 %v726
        %v869 = vpop.f32.mrb[0].mxu0
        %v870 = vadd.f32 %v658, %v869
        %v871 = vpop.f32.mrb[0].mxu0
        %v872 = vpop.f32.mrb[0].mxu0
        %v873 = vadd.f32 %v659, %v872
        %v874 = vpop.f32.mrb[0].mxu0
        %875 = vmatprep.mubr.bf16.mxu0 0
        %876 = vmatmul.mubr.bf16.gmra.mrb[0].mxu0 %v729
        %v877 = vpop.f32.mrb[0].mxu0
        %v878 = vadd.f32 %v660, %v877
        %v879 = vpop.f32.mrb[0].mxu0
        %v880 = vpop.f32.mrb[0].mxu0
        %v881 = vadd.f32 %v661, %v880
        %v882 = vpop.f32.mrb[0].mxu0
        %883 = vmatprep.mubr.bf16.mxu0 0
        %884 = vmatmul.mubr.bf16.gmra.mrb[0].mxu0 %v732
        %v885 = vpop.f32.mrb[0].mxu0
        %v886 = vadd.f32 %v662, %v885
        %v887 = vpop.f32.mrb[0].mxu0
        %v888 = vpop.f32.mrb[0].mxu0
        %v889 = vadd.f32 %v663, %v888
        %v890 = vpop.f32.mrb[0].mxu0
        %891 = vmatprep.mubr.bf16.mxu0 0
        %892 = vmatmul.mubr.bf16.gmra.mrb[0].mxu0 %v735
        %v893 = vpop.f32.mrb[0].mxu0
        %v894 = vadd.f32 %v664, %v893
        %v895 = vpop.f32.mrb[0].mxu0
        %v896 = vpop.f32.mrb[0].mxu0
        %v897 = vadd.f32 %v665, %v896
        %v898 = vpop.f32.mrb[0].mxu0
        %899 = vmatprep.mubr.bf16.mxu0 0
        %900 = vmatmul.mubr.bf16.gmra.mrb[0].mxu0 %v738
        %v901 = vpop.f32.mrb[0].mxu0
        %v902 = vadd.f32 %v666, %v901
        %v903 = vpop.f32.mrb[0].mxu0
        %v904 = vpop.f32.mrb[0].mxu0
        %v905 = vadd.f32 %v667, %v904
        %v906 = vpop.f32.mrb[0].mxu0
        %907 = vmatprep.mubr.bf16.mxu0 0
        %908 = vmatmul.mubr.bf16.gmra.mrb[0].mxu0 %v741
        %v909 = vpop.f32.mrb[0].mxu0
        %v910 = vadd.f32 %v668, %v909
        %v911 = vpop.f32.mrb[0].mxu0
        %v912 = vpop.f32.mrb[0].mxu0
        %v913 = vadd.f32 %v669, %v912
        %v914 = vpop.f32.mrb[0].mxu0
        %915 = vmatprep.mubr.bf16.mxu0 0
        %916 = vmatmul.mubr.bf16.gmra.mrb[0].mxu0 %v744
        %v917 = vpop.f32.mrb[0].mxu0
        %v918 = vadd.f32 %v670, %v917
        %v919 = vpop.f32.mrb[0].mxu0
        %v920 = vpop.f32.mrb[0].mxu0
        %v921 = vadd.f32 %v671, %v920
        %v922 = vpop.f32.mrb[0].mxu0
        %923 = vmatprep.mubr.bf16.mxu0 0
        %924 = vmatmul.mubr.bf16.gmra.mrb[0].mxu0 %v747
        %v925 = vpop.f32.mrb[0].mxu0
        %v926 = vadd.f32 %v672, %v925
        %v927 = vpop.f32.mrb[0].mxu0
        %v928 = vpop.f32.mrb[0].mxu0
        %v929 = vadd.f32 %v673, %v928
        %v930 = vpop.f32.mrb[0].mxu0
        %931 = vmatprep.mubr.bf16.mxu0 0
        %932 = vmatmul.mubr.bf16.gmra.mrb[0].mxu0 %v750
        %v933 = vpop.f32.mrb[0].mxu0
        %v934 = vadd.f32 %v674, %v933
        %v935 = vpop.f32.mrb[0].mxu0
        %v936 = vpop.f32.mrb[0].mxu0
        %v937 = vadd.f32 %v675, %v936
        %v938 = vpop.f32.mrb[0].mxu0
        %939 = vmatprep.mubr.bf16.mxu0 0
        %940 = vmatmul.mubr.bf16.gmra.mrb[0].mxu0 %v753
        %v941 = vpop.f32.mrb[0].mxu0
        %v942 = vadd.f32 %v676, %v941
        %v943 = vpop.f32.mrb[0].mxu0
        %v944 = vpop.f32.mrb[0].mxu0
        %v945 = vadd.f32 %v677, %v944
        %v946 = vpop.f32.mrb[0].mxu0
        %947 = vmatprep.mubr.bf16.mxu0 0
        %948 = vmatmul.mubr.bf16.gmra.mrb[0].mxu0 %v756
        %v949 = vpop.f32.mrb[0].mxu0
        %v950 = vadd.f32 %v678, %v949
        %v951 = vpop.f32.mrb[0].mxu0
        %v952 = vpop.f32.mrb[0].mxu0
        %v953 = vadd.f32 %v679, %v952
        %v954 = vpop.f32.mrb[0].mxu0
        %955 = vmatprep.mubr.bf16.mxu0 0
        %956 = vmatmul.mubr.bf16.gmra.mrb[0].mxu0 %v759
        %v957 = vpop.f32.mrb[0].mxu0
        %v958 = vadd.f32 %v680, %v957
        %v959 = vpop.f32.mrb[0].mxu0
        %v960 = vpop.f32.mrb[0].mxu0
        %v961 = vadd.f32 %v681, %v960
        %v962 = vpop.f32.mrb[0].mxu0
        %963 = vmatprep.mubr.bf16.mxu0 0
        %964 = vmatmul.mubr.bf16.gmra.mrb[0].mxu0 %v762
        %v965 = vpop.f32.mrb[0].mxu0
        %v966 = vadd.f32 %v682, %v965
        %v967 = vpop.f32.mrb[0].mxu0
        %v968 = vpop.f32.mrb[0].mxu0
        %v969 = vadd.f32 %v683, %v968
        %v970 = vpop.f32.mrb[0].mxu0
        %971 = vmatprep.mubr.bf16.mxu0 0
        %972 = vmatmul.mubr.bf16.gmra.mrb[0].mxu0 %v765
        %v973 = vpop.f32.mrb[0].mxu0
        %v974 = vadd.f32 %v684, %v973
        %v975 = vpop.f32.mrb[0].mxu0
        %v976 = vpop.f32.mrb[0].mxu0
        %v977 = vadd.f32 %v685, %v976
        %v978 = vpop.f32.mrb[0].mxu0
        %979 = vmatprep.mubr.bf16.mxu0 0
        %980 = vmatmul.mubr.bf16.gmra.mrb[0].mxu0 %v768
        %v981 = vpop.f32.mrb[0].mxu0
        %v982 = vadd.f32 %v686, %v981
        %v983 = vpop.f32.mrb[0].mxu0
        %v984 = vpop.f32.mrb[0].mxu0
        %v985 = vadd.f32 %v687, %v984
        %v986 = vpop.f32.mrb[0].mxu0
        %987 = vmatprep.mubr.bf16.mxu0 0
        %988 = vmatmul.mubr.bf16.gmra.mrb[0].mxu0 %v771
        %v989 = vpop.f32.mrb[0].mxu0
        %v990 = vadd.f32 %v688, %v989
        %v991 = vpop.f32.mrb[0].mxu0
        %v992 = vpop.f32.mrb[0].mxu0
        %v993 = vadd.f32 %v689, %v992
        %v994 = vpop.f32.mrb[0].mxu0
        %995 = vmatprep.mubr.bf16.mxu0 0
        %996 = vmatmul.mubr.bf16.gmra.mrb[0].mxu0 %v774
        %v997 = vpop.f32.mrb[0].mxu0
        %v998 = vadd.f32 %v690, %v997
        %v999 = vpop.f32.mrb[0].mxu0
        %v1000 = vpop.f32.mrb[0].mxu0
        %v1001 = vadd.f32 %v691, %v1000
        %v1002 = vpop.f32.mrb[0].mxu0
        %1003 = vmatprep.mubr.bf16.mxu0 0
        %1004 = vmatmul.mubr.bf16.gmra.mrb[0].mxu0 %v777
        %v1005 = vpop.f32.mrb[0].mxu0
        %v1006 = vadd.f32 %v692, %v1005
        %v1007 = vpop.f32.mrb[0].mxu0
        %v1008 = vpop.f32.mrb[0].mxu0
        %v1009 = vadd.f32 %v693, %v1008
        %v1010 = vpop.f32.mrb[0].mxu0
        %1011 = vmatprep.mubr.bf16.mxu0 0
        %1012 = vmatmul.mubr.bf16.gmra.mrb[0].mxu0 %v780
        %v1013 = vpop.f32.mrb[0].mxu0
        %v1014 = vadd.f32 %v694, %v1013
        %v1015 = vpop.f32.mrb[0].mxu0
        %v1016 = vpop.f32.mrb[0].mxu0
        %v1017 = vadd.f32 %v695, %v1016
        %v1018 = vpop.f32.mrb[0].mxu0
        %1019 = vmatprep.mubr.bf16.mxu0 0
        %1020 = vmatmul.mubr.bf16.gmra.mrb[0].mxu0 %v783
        %v1021 = vpop.f32.mrb[0].mxu0
        %v1022 = vadd.f32 %v696, %v1021
        %v1023 = vpop.f32.mrb[0].mxu0
        %v1024 = vpop.f32.mrb[0].mxu0
        %v1025 = vadd.f32 %v697, %v1024
        %v1026 = vpop.f32.mrb[0].mxu0
        %1027 = vmatprep.mubr.bf16.mxu0 0
        %1028 = vmatmul.mubr.bf16.gmra.mrb[0].mxu0 %v786
        %v1029 = vpop.f32.mrb[0].mxu0
        %v1030 = vadd.f32 %v698, %v1029
        %v1031 = vpop.f32.mrb[0].mxu0
        %v1032 = vpop.f32.mrb[0].mxu0
        %v1033 = vadd.f32 %v699, %v1032
        %v1034 = vpop.f32.mrb[0].mxu0
        %1035 = vmatprep.mubr.bf16.mxu0 0
        %1036 = vmatmul.mubr.bf16.gmra.mrb[0].mxu0 %v789
        %v1037 = vpop.f32.mrb[0].mxu0
        %v1038 = vadd.f32 %v700, %v1037
        %v1039 = vpop.f32.mrb[0].mxu0
        %v1040 = vpop.f32.mrb[0].mxu0
        %v1041 = vadd.f32 %v701, %v1040
        %v1042 = vpop.f32.mrb[0].mxu0
        %1043 = vmatprep.mubr.bf16.mxu0 0
        %1044 = vmatmul.mubr.bf16.gmra.mrb[0].mxu0 %v792
        %v1045 = vpop.f32.mrb[0].mxu0
        %v1046 = vadd.f32 %v702, %v1045
        %v1047 = vpop.f32.mrb[0].mxu0
        %v1048 = vpop.f32.mrb[0].mxu0
        %v1049 = vadd.f32 %v703, %v1048
        %v1050 = vpop.f32.mrb[0].mxu0
        %1051 = vmatprep.mubr.bf16.mxu0 0
        %1052 = vmatmul.mubr.bf16.gmra.mrb[0].mxu0 %v795
        %v1053 = vpop.f32.mrb[0].mxu0
        %v1054 = vadd.f32 %v704, %v1053
        %v1055 = vpop.f32.mrb[0].mxu0
        %v1056 = vpop.f32.mrb[0].mxu0
        %v1057 = vadd.f32 %v705, %v1056
        %v1058 = vpop.f32.mrb[0].mxu0
        %1059 = vmatprep.mubr.bf16.mxu0 0
        %1060 = vmatmul.mubr.bf16.gmra.mrb[0].mxu0 %v798
        %v1061 = vpop.f32.mrb[0].mxu0
        %v1062 = vadd.f32 %v706, %v1061
        %v1063 = vpop.f32.mrb[0].mxu0
        %v1064 = vpop.f32.mrb[0].mxu0
        %v1065 = vadd.f32 %v707, %v1064
        %v1066 = vpop.f32.mrb[0].mxu0
        %1067 = vmatprep.mubr.bf16.mxu0 0
        %1068 = vmatmul.mubr.bf16.gmra.mrb[0].mxu0 %v801
        %v1069 = vpop.f32.mrb[0].mxu0
        %v1070 = vadd.f32 %v708, %v1069
        %v1071 = vpop.f32.mrb[0].mxu0
        %v1072 = vpop.f32.mrb[0].mxu0
        %v1073 = vadd.f32 %v709, %v1072
        %v1074 = vpop.f32.mrb[0].mxu0
        %1075 = vmatprep.mubr.bf16.mxu0 0
        %1076 = vmatmul.mubr.bf16.gmra.mrb[0].mxu0 %v804
        %v1077 = vpop.f32.mrb[0].mxu0
        %v1078 = vadd.f32 %v710, %v1077
        %v1079 = vpop.f32.mrb[0].mxu0
        %v1080 = vpop.f32.mrb[0].mxu0
        %v1081 = vadd.f32 %v711, %v1080
        %v1082 = vpop.f32.mrb[0].mxu0
        %1083 = vmatprep.mubr.bf16.mxu0 0
        %1084 = vmatmul.mubr.bf16.gmra.mrb[0].mxu0 %v807
        %v1085 = vpop.f32.mrb[0].mxu0
        %v1086 = vadd.f32 %v712, %v1085
        %v1087 = vpop.f32.mrb[0].mxu0
        %v1088 = vpop.f32.mrb[0].mxu0
        %v1089 = vadd.f32 %v713, %v1088
        %v1090 = vpop.f32.mrb[0].mxu0
        %1091 = vmatprep.mubr.bf16.mxu0 0
        %1092 = vmatmul.mubr.bf16.gmra.mrb[0].mxu0 %v810
        %v1093 = vpop.f32.mrb[0].mxu0
        %v1094 = vadd.f32 %v714, %v1093
        %v1095 = vpop.f32.mrb[0].mxu0
        %v1096 = vpop.f32.mrb[0].mxu0
        %v1097 = vadd.f32 %v715, %v1096
        %v1098 = vpop.f32.mrb[0].mxu0
        %1099 = vmatprep.mubr.bf16.mxu0 0
        %1100 = vmatmul.mubr.bf16.gmra.mrb[0].mxu0 %v813
        %v1101 = vpop.f32.mrb[0].mxu0
        %v1102 = vadd.f32 %v716, %v1101
        %v1103 = vpop.f32.mrb[0].mxu0
        %v1104 = vpop.f32.mrb[0].mxu0
        %v1105 = vadd.f32 %v717, %v1104
        %v1106 = vpop.f32.mrb[0].mxu0
        %1107 = vdwg.mxu0
        %vm1108 = vcmask 130048
        %1109 = vst.msk [vmem:[%s282] sm:$0xff] %vm1108, %v854
        %1110 = vst.msk [vmem:[%s282 + $0x8] sm:$0xff] %vm1108, %v857
        %1111 = vst.msk [vmem:[%s282 + $0x10] sm:$0xff] %vm1108, %v862
        %1112 = vst.msk [vmem:[%s282 + $0x18] sm:$0xff] %vm1108, %v865
        %1113 = vst.msk [vmem:[%s282 + $0x20] sm:$0xff] %vm1108, %v870
        %1114 = vst.msk [vmem:[%s282 + $0x28] sm:$0xff] %vm1108, %v873
        %1115 = vst.msk [vmem:[%s282 + $0x30] sm:$0xff] %vm1108, %v878
        %1116 = vst.msk [vmem:[%s282 + $0x38] sm:$0xff] %vm1108, %v881
        %1117 = vst.msk [vmem:[%s282 + $0x40] sm:$0xff] %vm1108, %v886
        %1118 = vst.msk [vmem:[%s282 + $0x48] sm:$0xff] %vm1108, %v889
        %1119 = vst.msk [vmem:[%s282 + $0x50] sm:$0xff] %vm1108, %v894
        %1120 = vst.msk [vmem:[%s282 + $0x58] sm:$0xff] %vm1108, %v897
        %1121 = vst.msk [vmem:[%s282 + $0x60] sm:$0xff] %vm1108, %v902
        %1122 = vst.msk [vmem:[%s282 + $0x68] sm:$0xff] %vm1108, %v905
        %1123 = vst.msk [vmem:[%s282 + $0x70] sm:$0xff] %vm1108, %v910
        %1124 = vst.msk [vmem:[%s282 + $0x78] sm:$0xff] %vm1108, %v913
        %1125 = vst.msk [vmem:[%s282 + $0x80] sm:$0xff] %vm1108, %v918
        %1126 = vst.msk [vmem:[%s282 + $0x88] sm:$0xff] %vm1108, %v921
        %1127 = vst.msk [vmem:[%s282 + $0x90] sm:$0xff] %vm1108, %v926
        %1128 = vst.msk [vmem:[%s282 + $0x98] sm:$0xff] %vm1108, %v929
        %1129 = vst.msk [vmem:[%s282 + $0xa0] sm:$0xff] %vm1108, %v934
        %1130 = vst.msk [vmem:[%s282 + $0xa8] sm:$0xff] %vm1108, %v937
        %1131 = vst.msk [vmem:[%s282 + $0xb0] sm:$0xff] %vm1108, %v942
        %1132 = vst.msk [vmem:[%s282 + $0xb8] sm:$0xff] %vm1108, %v945
        %1133 = vst.msk [vmem:[%s282 + $0xc0] sm:$0xff] %vm1108, %v950
        %1134 = vst.msk [vmem:[%s282 + $0xc8] sm:$0xff] %vm1108, %v953
        %1135 = vst.msk [vmem:[%s282 + $0xd0] sm:$0xff] %vm1108, %v958
        %1136 = vst.msk [vmem:[%s282 + $0xd8] sm:$0xff] %vm1108, %v961
        %1137 = vst.msk [vmem:[%s282 + $0xe0] sm:$0xff] %vm1108, %v966
        %1138 = vst.msk [vmem:[%s282 + $0xe8] sm:$0xff] %vm1108, %v969
        %1139 = vst.msk [vmem:[%s282 + $0xf0] sm:$0xff] %vm1108, %v974
        %1140 = vst.msk [vmem:[%s282 + $0xf8] sm:$0xff] %vm1108, %v977
        %1141 = vst.msk [vmem:[%s282 + $0x100] sm:$0xff] %vm1108, %v982
        %1142 = vst.msk [vmem:[%s282 + $0x108] sm:$0xff] %vm1108, %v985
        %1143 = vst.msk [vmem:[%s282 + $0x110] sm:$0xff] %vm1108, %v990
        %1144 = vst.msk [vmem:[%s282 + $0x118] sm:$0xff] %vm1108, %v993
        %1145 = vst.msk [vmem:[%s282 + $0x120] sm:$0xff] %vm1108, %v998
        %1146 = vst.msk [vmem:[%s282 + $0x128] sm:$0xff] %vm1108, %v1001
        %1147 = vst.msk [vmem:[%s282 + $0x130] sm:$0xff] %vm1108, %v1006
        %1148 = vst.msk [vmem:[%s282 + $0x138] sm:$0xff] %vm1108, %v1009
        %1149 = vst.msk [vmem:[%s282 + $0x140] sm:$0xff] %vm1108, %v1014
        %1150 = vst.msk [vmem:[%s282 + $0x148] sm:$0xff] %vm1108, %v1017
        %1151 = vst.msk [vmem:[%s282 + $0x150] sm:$0xff] %vm1108, %v1022
        %1152 = vst.msk [vmem:[%s282 + $0x158] sm:$0xff] %vm1108, %v1025
        %1153 = vst.msk [vmem:[%s282 + $0x160] sm:$0xff] %vm1108, %v1030
        %1154 = vst.msk [vmem:[%s282 + $0x168] sm:$0xff] %vm1108, %v1033
        %1155 = vst.msk [vmem:[%s282 + $0x170] sm:$0xff] %vm1108, %v1038
        %1156 = vst.msk [vmem:[%s282 + $0x178] sm:$0xff] %vm1108, %v1041
        %1157 = vst.msk [vmem:[%s282 + $0x180] sm:$0xff] %vm1108, %v1046
        %1158 = vst.msk [vmem:[%s282 + $0x188] sm:$0xff] %vm1108, %v1049
        %1159 = vst.msk [vmem:[%s282 + $0x190] sm:$0xff] %vm1108, %v1054
        %1160 = vst.msk [vmem:[%s282 + $0x198] sm:$0xff] %vm1108, %v1057
        %1161 = vst.msk [vmem:[%s282 + $0x1a0] sm:$0xff] %vm1108, %v1062
        %1162 = vst.msk [vmem:[%s282 + $0x1a8] sm:$0xff] %vm1108, %v1065
        %1163 = vst.msk [vmem:[%s282 + $0x1b0] sm:$0xff] %vm1108, %v1070
        %1164 = vst.msk [vmem:[%s282 + $0x1b8] sm:$0xff] %vm1108, %v1073
        %1165 = vst.msk [vmem:[%s282 + $0x1c0] sm:$0xff] %vm1108, %v1078
        %1166 = vst.msk [vmem:[%s282 + $0x1c8] sm:$0xff] %vm1108, %v1081
        %1167 = vst.msk [vmem:[%s282 + $0x1d0] sm:$0xff] %vm1108, %v1086
        %1168 = vst.msk [vmem:[%s282 + $0x1d8] sm:$0xff] %vm1108, %v1089
        %1169 = vst.msk [vmem:[%s282 + $0x1e0] sm:$0xff] %vm1108, %v1094
        %1170 = vst.msk [vmem:[%s282 + $0x1e8] sm:$0xff] %vm1108, %v1097
        %1171 = vst.msk [vmem:[%s282 + $0x1f0] sm:$0xff] %vm1108, %v1102
        %1172 = vst.msk [vmem:[%s282 + $0x1f8] sm:$0xff] %vm1108, %v1105
        %s1173 = sand.u32 %s148, 1
        %s1174 = scalar_lea.sflag [#allocation4], %s1173
        %s1175 = sand.u32 %s148, 1
        %s1176 = smul.addr %s1175, 512
        %s1177 = scalar_lea.vmem [#allocation7], %s1176
        // Predicated region
        $region49: #{pre_act_bottleneck_forward.7} parent=39 // pred_check
          %p1178 = pneg %p158
        $region50: #{pre_act_bottleneck_forward.7} parent=39 // pred_check_branch
          %1180 = sbr.rel (%p1178) target = $region52
        $region51: #{pre_act_bottleneck_forward.7} parent=39 // pred_region
          %s1181 = smul.u32 64, %s25
          %s1183 = ssub.s32 8192, 8192
          %1184 = vsyncadd %s1174, %s1183
          %s1185 = smul.addr %s1181, 128
          %s1186 = scalar_lea.hbm %s5, %s1185
          %s1187 = sshll.u32 %s1177, 4
          %s1188 = int_to_ptr.vmem [resolvable:$true] %s1187
          %1193 = dma.vmem_to_hbm [thread:$0]  %s1188, 8192, %s1186, %s1174, 128, 128, 8
        $region52: #{pre_act_bottleneck_forward.7} parent=39 // pred_fallthru
          _
      $region40: #{pre_act_bottleneck_forward.7} parent=5 // pred_fallthru
        _
      %p1194 = scmp.le.s32.totalorder 2, %s20
      // Predicated region
      $region53: #{pre_act_bottleneck_forward.7} parent=5 // pred_check
        %p1195 = pneg %p1194
      $region54: #{pre_act_bottleneck_forward.7} parent=5 // pred_check_branch
        %1197 = sbr.rel (%p1195) target = $region56
      $region55: #{pre_act_bottleneck_forward.7} parent=5 // pred_region
        %s1198 = ssub.s32 %s20, 2
        // Predicated region
        $region57: #{pre_act_bottleneck_forward.7} parent=55 // pred_check
          %p1199 = pneg %p164
        $region58: #{pre_act_bottleneck_forward.7} parent=55 // pred_check_branch
          %1201 = sbr.rel (%p1199) target = $region60
        $region59: #{pre_act_bottleneck_forward.7} parent=55 // pred_region
          %s1202 = sand.u32 %s149, 1
          %s1203 = scalar_lea.sflag [#allocation4], %s1202
          %s1204 = sand.u32 %s149, 1
          %s1205 = smul.addr %s1204, 512
          %s1206 = scalar_lea.vmem [#allocation7], %s1205
          %1207 = dma.done %s1203, 8192
        $region60: #{pre_act_bottleneck_forward.7} parent=55 // pred_fallthru
          _
      $region56: #{pre_act_bottleneck_forward.7} parent=5 // pred_fallthru
        _
    $region6: #{pre_act_bottleneck_forward.7} parent=1 // loop_footer
      %s24 = sadd.s32 1, %s20
    $region7: #{pre_act_bottleneck_forward.7} parent=1 // loop_footer_branch
      %19 = sbr.rel target = $region3
    $region8: #{pre_act_bottleneck_forward.7} parent=1 // loop_exit
      _
    %1208 = vsyncpa [#allocation3], 1
    %s1209 = scalar_lea.sflag [#allocation3], 1
    %1210 = vsyncpa %s1209, 1
    %1211 = vsyncpa [#allocation6], 1
    %s1212 = scalar_lea.sflag [#allocation6], 1
    %1213 = vsyncpa %s1212, 1
    %1214 = vsyncpa [#allocation4], 1
    %s1215 = scalar_lea.sflag [#allocation4], 1
    %1216 = vsyncpa %s1215, 1

// kernel: pre_act_bottleneck_forward.5
$region0: #{pre_act_bottleneck_forward.5}
  #allocation0 [shape = 'u32[]', space=smem, size = 0x4, offset = 0x4, fixed_abs, tag = 'smem constant byte address 0x4 - core index']
  #allocation1 [shape = 'u32[144,128]{1,0:T(1,128)}', space=vmem, size = 0x12000, scoped, tag = 'internal scratch']
  %s0 = inlined_call_operand.vmem [shape: f32[1024,16], index: 0, kind: input, shape index: {}]
  %s1 = inlined_call_operand.vmem [shape: f32[1,16], index: 1, kind: input, shape index: {}]
  %s2 = inlined_call_operand.vmem [shape: f32[1,16], index: 2, kind: input, shape index: {}]
  %s3 = inlined_call_operand.vmem [shape: bf16[16,4], index: 3, kind: input, shape index: {}]
  %s4 = inlined_call_operand.hbm [shape: bf16[1024,4], index: 4, kind: output, shape index: {0}]
  %s5 = inlined_call_operand.vmem [shape: f32[2,1,4], index: 5, kind: output, shape index: {1}]
  %s6 = inlined_call_operand.vmem [shape: f32[2,1,4], index: 6, kind: output, shape index: {2}]
  %7 = xla_tuple %s4, %s5, %s6
  %s8 = sld [smem:[#allocation0]]
  $region65: #{pre_act_bottleneck_forward.5} parent=0
    _
  %s10 = ssub.s32 1, %s8
  %s11 = scalar_select 0, %s10, %s8
  $region1: #{pre_act_bottleneck_forward.5} parent=0
    #allocation2 [shape = 'u8[262144]{0}', space=vmem, size = 0x40000, scoped, tag = 'output window, operand 0']
    #allocation3 [shape = 's32[2]{0}', space=sflag, size = 0x8, scoped, tag = 'scoped memory for pre_act_bottleneck_forward.5']
    %12 = vsyncpa [#allocation3], 0
    %s13 = scalar_lea.sflag [#allocation3], 1
    %14 = vsyncpa %s13, 0
    loop: start=0, step=1, limit=4
    $region2: #{pre_act_bottleneck_forward.5} parent=1 // loop_pre_header
      _
    $region3: #{pre_act_bottleneck_forward.5} parent=1 // loop_header
      %s16 = sphi 0, %s20
      %p17 = scmp.ge.s32.totalorder %s16, 4
      %s26 = sphi 0, %s28
      %s29 = sphi 0, %s26
      %s30 = sphi 0, %s29
      %s46 = sphi 0, %s30
      %s50 = sphi 0, %s50
      %s52 = sphi 0, %s50
      %s53 = sphi 0, %s52
      %s67 = sphi 0, %s53
      %s71 = sphi 0, %s71
      %s73 = sphi 0, %s71
      %s74 = sphi 0, %s73
      %s88 = sphi 0, %s74
      %s92 = sphi 0, %s92
      %s94 = sphi 0, %s92
      %s95 = sphi 0, %s94
      %s109 = sphi 0, %s95
      %s115 = sphi 0, %s117
      %s118 = sphi 0, %s115
      %s119 = sphi 0, %s118
      %s135 = sphi 0, %s119
      %s141 = sphi 0, %s143
      %s144 = sphi 0, %s141
      %s145 = sphi 0, %s144
      %s161 = sphi 0, %s145
      %s167 = sphi 0, %s169
      %s170 = sphi 0, %s167
      %s171 = sphi 0, %s170
      %s187 = sphi 0, %s171
    $region4: #{pre_act_bottleneck_forward.5} parent=1 // loop_header_branch
      %19 = sbr.rel (%p17) target = $region8
    $region5: #{pre_act_bottleneck_forward.5} parent=1 // loop_body
      %s21 = ssub.s32 %s16, 1
      %s22 = ssub.s32 %s16, 2
      %s23 = sadd.s32 %s16, 1
      %s24 = ssub.s32 %s16, %s23
      %p25 = scmp.eq.s32.totalorder %s24, 0
      %s27 = sadd.s32 %s26, 1
      %s28 = scalar_select %p25, %s26, %s27
      %p31 = pneg %p25
      %p32 = scmp.eq.s32.totalorder %s16, 1
      %p33 = por %p31, %p32
      %p34 = scmp.ne.s32.totalorder %s26, %s29
      %p35 = scmp.eq.s32.totalorder %s16, 0
      %p36 = por %p34, %p35
      %p37 = scmp.ne.s32.totalorder %s26, %s29
      %p38 = scmp.eq.s32.totalorder %s21, 1
      %p39 = por %p37, %p38
      %p40 = scmp.ne.s32.totalorder %s29, %s30
      %p41 = scmp.eq.s32.totalorder %s21, 0
      %p42 = por %p40, %p41
      %p43 = scmp.ne.s32.totalorder %s29, %s30
      %p44 = scmp.eq.s32.totalorder %s22, 1
      %p45 = por %p43, %p44
      %p47 = scmp.ne.s32.totalorder %s30, %s46
      %p48 = scmp.eq.s32.totalorder %s22, 0
      %p49 = por %p47, %p48
      %s51 = sadd.s32 %s50, 1
      %p54 = scmp.eq.s32.totalorder %s16, 1
      %p55 = scmp.ne.s32.totalorder %s50, %s52
      %p56 = scmp.eq.s32.totalorder %s16, 0
      %p57 = por %p55, %p56
      %p58 = scmp.ne.s32.totalorder %s50, %s52
      %p59 = scmp.eq.s32.totalorder %s21, 1
      %p60 = por %p58, %p59
      %p61 = scmp.ne.s32.totalorder %s52, %s53
      %p62 = scmp.eq.s32.totalorder %s21, 0
      %p63 = por %p61, %p62
      %p64 = scmp.ne.s32.totalorder %s52, %s53
      %p65 = scmp.eq.s32.totalorder %s22, 1
      %p66 = por %p64, %p65
      %p68 = scmp.ne.s32.totalorder %s53, %s67
      %p69 = scmp.eq.s32.totalorder %s22, 0
      %p70 = por %p68, %p69
      %s72 = sadd.s32 %s71, 1
      %p75 = scmp.eq.s32.totalorder %s16, 1
      %p76 = scmp.ne.s32.totalorder %s71, %s73
      %p77 = scmp.eq.s32.totalorder %s16, 0
      %p78 = por %p76, %p77
      %p79 = scmp.ne.s32.totalorder %s71, %s73
      %p80 = scmp.eq.s32.totalorder %s21, 1
      %p81 = por %p79, %p80
      %p82 = scmp.ne.s32.totalorder %s73, %s74
      %p83 = scmp.eq.s32.totalorder %s21, 0
      %p84 = por %p82, %p83
      %p85 = scmp.ne.s32.totalorder %s73, %s74
      %p86 = scmp.eq.s32.totalorder %s22, 1
      %p87 = por %p85, %p86
      %p89 = scmp.ne.s32.totalorder %s74, %s88
      %p90 = scmp.eq.s32.totalorder %s22, 0
      %p91 = por %p89, %p90
      %s93 = sadd.s32 %s92, 1
      %p96 = scmp.eq.s32.totalorder %s16, 1
      %p97 = scmp.ne.s32.totalorder %s92, %s94
      %p98 = scmp.eq.s32.totalorder %s16, 0
      %p99 = por %p97, %p98
      %p100 = scmp.ne.s32.totalorder %s92, %s94
      %p101 = scmp.eq.s32.totalorder %s21, 1
      %p102 = por %p100, %p101
      %p103 = scmp.ne.s32.totalorder %s94, %s95
      %p104 = scmp.eq.s32.totalorder %s21, 0
      %p105 = por %p103, %p104
      %p106 = scmp.ne.s32.totalorder %s94, %s95
      %p107 = scmp.eq.s32.totalorder %s22, 1
      %p108 = por %p106, %p107
      %p110 = scmp.ne.s32.totalorder %s95, %s109
      %p111 = scmp.eq.s32.totalorder %s22, 0
      %p112 = por %p110, %p111
      %s113 = ssub.s32 %s16, %s23
      %p114 = scmp.eq.s32.totalorder %s113, 0
      %s116 = sadd.s32 %s115, 1
      %s117 = scalar_select %p114, %s115, %s116
      %p120 = pneg %p114
      %p121 = scmp.eq.s32.totalorder %s16, 1
      %p122 = por %p120, %p121
      %p123 = scmp.ne.s32.totalorder %s115, %s118
      %p124 = scmp.eq.s32.totalorder %s16, 0
      %p125 = por %p123, %p124
      %p126 = scmp.ne.s32.totalorder %s115, %s118
      %p127 = scmp.eq.s32.totalorder %s21, 1
      %p128 = por %p126, %p127
      %p129 = scmp.ne.s32.totalorder %s118, %s119
      %p130 = scmp.eq.s32.totalorder %s21, 0
      %p131 = por %p129, %p130
      %p132 = scmp.ne.s32.totalorder %s118, %s119
      %p133 = scmp.eq.s32.totalorder %s22, 1
      %p134 = por %p132, %p133
      %p136 = scmp.ne.s32.totalorder %s119, %s135
      %p137 = scmp.eq.s32.totalorder %s22, 0
      %p138 = por %p136, %p137
      %s139 = ssub.s32 %s16, %s23
      %p140 = scmp.eq.s32.totalorder %s139, 0
      %s142 = sadd.s32 %s141, 1
      %s143 = scalar_select %p140, %s141, %s142
      %p146 = pneg %p140
      %p147 = scmp.eq.s32.totalorder %s16, 1
      %p148 = por %p146, %p147
      %p149 = scmp.ne.s32.totalorder %s141, %s144
      %p150 = scmp.eq.s32.totalorder %s16, 0
      %p151 = por %p149, %p150
      %p152 = scmp.ne.s32.totalorder %s141, %s144
      %p153 = scmp.eq.s32.totalorder %s21, 1
      %p154 = por %p152, %p153
      %p155 = scmp.ne.s32.totalorder %s144, %s145
      %p156 = scmp.eq.s32.totalorder %s21, 0
      %p157 = por %p155, %p156
      %p158 = scmp.ne.s32.totalorder %s144, %s145
      %p159 = scmp.eq.s32.totalorder %s22, 1
      %p160 = por %p158, %p159
      %p162 = scmp.ne.s32.totalorder %s145, %s161
      %p163 = scmp.eq.s32.totalorder %s22, 0
      %p164 = por %p162, %p163
      %s165 = ssub.s32 %s16, %s23
      %p166 = scmp.eq.s32.totalorder %s165, 0
      %s168 = sadd.s32 %s167, 1
      %s169 = scalar_select %p166, %s167, %s168
      %p172 = pneg %p166
      %p173 = scmp.eq.s32.totalorder %s16, 1
      %p174 = por %p172, %p173
      %p175 = scmp.ne.s32.totalorder %s167, %s170
      %p176 = scmp.eq.s32.totalorder %s16, 0
      %p177 = por %p175, %p176
      %p178 = scmp.ne.s32.totalorder %s167, %s170
      %p179 = scmp.eq.s32.totalorder %s21, 1
      %p180 = por %p178, %p179
      %p181 = scmp.ne.s32.totalorder %s170, %s171
      %p182 = scmp.eq.s32.totalorder %s21, 0
      %p183 = por %p181, %p182
      %p184 = scmp.ne.s32.totalorder %s170, %s171
      %p185 = scmp.eq.s32.totalorder %s22, 1
      %p186 = por %p184, %p185
      %p188 = scmp.ne.s32.totalorder %s171, %s187
      %p189 = scmp.eq.s32.totalorder %s22, 0
      %p190 = por %p188, %p189
      %p191 = scmp.le.s32.totalorder 1, %s16
      %p192 = scmp.lt.s32.totalorder %s16, 3
      %p193 = pnand %p191, %p192
      %p194 = pneg %p193
      // Predicated region
      $region9: #{pre_act_bottleneck_forward.5} parent=5 // pred_check
        _
      $region10: #{pre_act_bottleneck_forward.5} parent=5 // pred_check_branch
        %196 = sbr.rel (%p193) target = $region12
      $region11: #{pre_act_bottleneck_forward.5} parent=5 // pred_region
        %s197 = ssub.s32 %s16, 1
        // Predicated region
        $region13: #{pre_act_bottleneck_forward.5} parent=11 // pred_check
          %p198 = pneg %p63
        $region14: #{pre_act_bottleneck_forward.5} parent=11 // pred_check_branch
          %200 = sbr.rel (%p198) target = $region16
        $region15: #{pre_act_bottleneck_forward.5} parent=11 // pred_region
          _
        $region16: #{pre_act_bottleneck_forward.5} parent=11 // pred_fallthru
          _
        // Predicated region
        $region17: #{pre_act_bottleneck_forward.5} parent=11 // pred_check
          %p201 = pneg %p84
        $region18: #{pre_act_bottleneck_forward.5} parent=11 // pred_check_branch
          %203 = sbr.rel (%p201) target = $region20
        $region19: #{pre_act_bottleneck_forward.5} parent=11 // pred_region
          _
        $region20: #{pre_act_bottleneck_forward.5} parent=11 // pred_fallthru
          _
        // Predicated region
        $region21: #{pre_act_bottleneck_forward.5} parent=11 // pred_check
          %p204 = pneg %p105
        $region22: #{pre_act_bottleneck_forward.5} parent=11 // pred_check_branch
          %206 = sbr.rel (%p204) target = $region24
        $region23: #{pre_act_bottleneck_forward.5} parent=11 // pred_region
          _
        $region24: #{pre_act_bottleneck_forward.5} parent=11 // pred_fallthru
          _
      $region12: #{pre_act_bottleneck_forward.5} parent=5 // pred_fallthru
        _
      %p207 = scmp.lt.s32.totalorder %s16, 2
      // Predicated region
      $region25: #{pre_act_bottleneck_forward.5} parent=5 // pred_check
        %p208 = pneg %p207
      $region26: #{pre_act_bottleneck_forward.5} parent=5 // pred_check_branch
        %210 = sbr.rel (%p208) target = $region28
      $region27: #{pre_act_bottleneck_forward.5} parent=5 // pred_region
        // Predicated region
        $region29: #{pre_act_bottleneck_forward.5} parent=27 // pred_check
          %p211 = pneg %p36
        $region30: #{pre_act_bottleneck_forward.5} parent=27 // pred_check_branch
          %213 = sbr.rel (%p211) target = $region32
        $region31: #{pre_act_bottleneck_forward.5} parent=27 // pred_region
          %s214 = smul.u32 64, %s16
          %p215 = scmp.lt.s32.totalorder %s214, 127
          %s216 = scalar_select %p215, %s214, 127
          %s217 = smul.addr %s216, 8
          %s218 = scalar_lea.vmem %s0, %s217
          %s219 = smul.u32 64, %s16
        $region32: #{pre_act_bottleneck_forward.5} parent=27 // pred_fallthru
          _
      $region28: #{pre_act_bottleneck_forward.5} parent=5 // pred_fallthru
        _
      %p220 = scmp.le.s32.totalorder 1, %s16
      %p221 = scmp.lt.s32.totalorder %s16, 3
      %p222 = pnand %p220, %p221
      %p223 = pneg %p222
      // Predicated region
      $region33: #{pre_act_bottleneck_forward.5} parent=5 // pred_check
        _
      $region34: #{pre_act_bottleneck_forward.5} parent=5 // pred_check_branch
        %225 = sbr.rel (%p222) target = $region36
      $region35: #{pre_act_bottleneck_forward.5} parent=5 // pred_region
        %s226 = ssub.s32 %s16, 1
        %s227 = smul.u32 64, %s21
        %p228 = scmp.lt.s32.totalorder %s227, 127
        %s229 = scalar_select %p228, %s227, 127
        %s230 = smul.addr %s229, 8
        %s231 = scalar_lea.vmem %s0, %s230
        %p232 = pneg %p42
        %p233 = pneg %p39
        %p234 = pneg %p63
        %p235 = pneg %p60
        %p236 = pneg %p84
        %p237 = pneg %p81
        %p238 = pneg %p105
        %p239 = pneg %p102
        %p240 = pneg %p131
        %p241 = pneg %p128
        %s242 = sand.u32 %s118, 1
        %s243 = scalar_lea.sflag [#allocation3], %s242
        %s244 = sand.u32 %s118, 1
        %s245 = smul.addr %s244, 256
        %s246 = scalar_lea.vmem [#allocation2], %s245
        %p247 = pneg %p157
        %p248 = pneg %p154
        %p249 = scmp.lt.s32.totalorder %s21, 1
        %s250 = scalar_select %p249, %s21, 1
        %s251 = scalar_lea.vmem %s5, %s250
        %p252 = pneg %p183
        %p253 = pneg %p180
        %p254 = scmp.lt.s32.totalorder %s21, 1
        %s255 = scalar_select %p254, %s21, 1
        %s256 = scalar_lea.vmem %s6, %s255
        %s257 = smul.u32 64, %s21
        %p258 = scmp.lt.s32.totalorder %s257, 127
        %s259 = scalar_select %p258, %s257, 127
        %s260 = smul.addr %s259, 8
        %s261 = scalar_lea.vmem %s0, %s260
        %s262 = smul.u32 64, %s21
        %s263 = smul.u32 64, %s21
        %p264 = scmp.lt.s32.totalorder %s21, 1
        %s265 = scalar_select %p264, %s21, 1
        %s266 = scalar_lea.vmem %s5, %s265
        %p267 = scmp.lt.s32.totalorder %s21, 1
        %s268 = scalar_select %p267, %s21, 1
        %s269 = scalar_lea.vmem %s6, %s268
        %v271 = vld [vmem:[%s261] sm:$0xff]
        %v272 = vld [vmem:[%s261 + $0x8] sm:$0xff]
        %v273 = vld [vmem:[%s261 + $0x10] sm:$0xff]
        %v274 = vld [vmem:[%s261 + $0x18] sm:$0xff]
        %v275 = vld [vmem:[%s261 + $0x20] sm:$0xff]
        %v276 = vld [vmem:[%s261 + $0x28] sm:$0xff]
        %v277 = vld [vmem:[%s261 + $0x30] sm:$0xff]
        %v278 = vld [vmem:[%s261 + $0x38] sm:$0xff]
        %v279 = vld [vmem:[%s261 + $0x40] sm:$0xff]
        %v280 = vld [vmem:[%s261 + $0x48] sm:$0xff]
        %v281 = vld [vmem:[%s261 + $0x50] sm:$0xff]
        %v282 = vld [vmem:[%s261 + $0x58] sm:$0xff]
        %v283 = vld [vmem:[%s261 + $0x60] sm:$0xff]
        %v284 = vld [vmem:[%s261 + $0x68] sm:$0xff]
        %v285 = vld [vmem:[%s261 + $0x70] sm:$0xff]
        %v286 = vld [vmem:[%s261 + $0x78] sm:$0xff]
        %v287 = vld [vmem:[%s261 + $0x80] sm:$0xff]
        %v288 = vld [vmem:[%s261 + $0x88] sm:$0xff]
        %v289 = vld [vmem:[%s261 + $0x90] sm:$0xff]
        %v290 = vld [vmem:[%s261 + $0x98] sm:$0xff]
        %v291 = vld [vmem:[%s261 + $0xa0] sm:$0xff]
        %v292 = vld [vmem:[%s261 + $0xa8] sm:$0xff]
        %v293 = vld [vmem:[%s261 + $0xb0] sm:$0xff]
        %v294 = vld [vmem:[%s261 + $0xb8] sm:$0xff]
        %v295 = vld [vmem:[%s261 + $0xc0] sm:$0xff]
        %v296 = vld [vmem:[%s261 + $0xc8] sm:$0xff]
        %v297 = vld [vmem:[%s261 + $0xd0] sm:$0xff]
        %v298 = vld [vmem:[%s261 + $0xd8] sm:$0xff]
        %v299 = vld [vmem:[%s261 + $0xe0] sm:$0xff]
        %v300 = vld [vmem:[%s261 + $0xe8] sm:$0xff]
        %v301 = vld [vmem:[%s261 + $0xf0] sm:$0xff]
        %v302 = vld [vmem:[%s261 + $0xf8] sm:$0xff]
        %v303 = vld [vmem:[%s261 + $0x100] sm:$0xff]
        %v304 = vld [vmem:[%s261 + $0x108] sm:$0xff]
        %v305 = vld [vmem:[%s261 + $0x110] sm:$0xff]
        %v306 = vld [vmem:[%s261 + $0x118] sm:$0xff]
        %v307 = vld [vmem:[%s261 + $0x120] sm:$0xff]
        %v308 = vld [vmem:[%s261 + $0x128] sm:$0xff]
        %v309 = vld [vmem:[%s261 + $0x130] sm:$0xff]
        %v310 = vld [vmem:[%s261 + $0x138] sm:$0xff]
        %v311 = vld [vmem:[%s261 + $0x140] sm:$0xff]
        %v312 = vld [vmem:[%s261 + $0x148] sm:$0xff]
        %v313 = vld [vmem:[%s261 + $0x150] sm:$0xff]
        %v314 = vld [vmem:[%s261 + $0x158] sm:$0xff]
        %v315 = vld [vmem:[%s261 + $0x160] sm:$0xff]
        %v316 = vld [vmem:[%s261 + $0x168] sm:$0xff]
        %v317 = vld [vmem:[%s261 + $0x170] sm:$0xff]
        %v318 = vld [vmem:[%s261 + $0x178] sm:$0xff]
        %v319 = vld [vmem:[%s261 + $0x180] sm:$0xff]
        %v320 = vld [vmem:[%s261 + $0x188] sm:$0xff]
        %v321 = vld [vmem:[%s261 + $0x190] sm:$0xff]
        %v322 = vld [vmem:[%s261 + $0x198] sm:$0xff]
        %v323 = vld [vmem:[%s261 + $0x1a0] sm:$0xff]
        %v324 = vld [vmem:[%s261 + $0x1a8] sm:$0xff]
        %v325 = vld [vmem:[%s261 + $0x1b0] sm:$0xff]
        %v326 = vld [vmem:[%s261 + $0x1b8] sm:$0xff]
        %v327 = vld [vmem:[%s261 + $0x1c0] sm:$0xff]
        %v328 = vld [vmem:[%s261 + $0x1c8] sm:$0xff]
        %v329 = vld [vmem:[%s261 + $0x1d0] sm:$0xff]
        %v330 = vld [vmem:[%s261 + $0x1d8] sm:$0xff]
        %v331 = vld [vmem:[%s261 + $0x1e0] sm:$0xff]
        %v332 = vld [vmem:[%s261 + $0x1e8] sm:$0xff]
        %v333 = vld [vmem:[%s261 + $0x1f0] sm:$0xff]
        %v334 = vld [vmem:[%s261 + $0x1f8] sm:$0xff]
        %v335 = vld [vmem:[%s1] sm:$0x1]
        %v337 = vlaneseq
        %v338 = vshrl.u32 %v337, 7
        %v339 = vsub.s32 0, %v338
        %v340 = vrot.slane %v335, %v339
        %v342 = vmul.f32 %v271, %v340
        %v343 = vmul.f32 %v272, %v340
        %v344 = vmul.f32 %v273, %v340
        %v345 = vmul.f32 %v274, %v340
        %v346 = vmul.f32 %v275, %v340
        %v347 = vmul.f32 %v276, %v340
        %v348 = vmul.f32 %v277, %v340
        %v349 = vmul.f32 %v278, %v340
        %v350 = vmul.f32 %v279, %v340
        %v351 = vmul.f32 %v280, %v340
        %v352 = vmul.f32 %v281, %v340
        %v353 = vmul.f32 %v282, %v340
        %v354 = vmul.f32 %v283, %v340
        %v355 = vmul.f32 %v284, %v340
        %v356 = vmul.f32 %v285, %v340
        %v357 = vmul.f32 %v286, %v340
        %v358 = vmul.f32 %v287, %v340
        %v359 = vmul.f32 %v288, %v340
        %v360 = vmul.f32 %v289, %v340
        %v361 = vmul.f32 %v290, %v340
        %v362 = vmul.f32 %v291, %v340
        %v363 = vmul.f32 %v292, %v340
        %v364 = vmul.f32 %v293, %v340
        %v365 = vmul.f32 %v294, %v340
        %v366 = vmul.f32 %v295, %v340
        %v367 = vmul.f32 %v296, %v340
        %v368 = vmul.f32 %v297, %v340
        %v369 = vmul.f32 %v298, %v340
        %v370 = vmul.f32 %v299, %v340
        %v371 = vmul.f32 %v300, %v340
        %v372 = vmul.f32 %v301, %v340
        %v373 = vmul.f32 %v302, %v340
        %v374 = vmul.f32 %v303, %v340
        %v375 = vmul.f32 %v304, %v340
        %v376 = vmul.f32 %v305, %v340
        %v377 = vmul.f32 %v306, %v340
        %v378 = vmul.f32 %v307, %v340
        %v379 = vmul.f32 %v308, %v340
        %v380 = vmul.f32 %v309, %v340
        %v381 = vmul.f32 %v310, %v340
        %v382 = vmul.f32 %v311, %v340
        %v383 = vmul.f32 %v312, %v340
        %v384 = vmul.f32 %v313, %v340
        %v385 = vmul.f32 %v314, %v340
        %v386 = vmul.f32 %v315, %v340
        %v387 = vmul.f32 %v316, %v340
        %v388 = vmul.f32 %v317, %v340
        %v389 = vmul.f32 %v318, %v340
        %v390 = vmul.f32 %v319, %v340
        %v391 = vmul.f32 %v320, %v340
        %v392 = vmul.f32 %v321, %v340
        %v393 = vmul.f32 %v322, %v340
        %v394 = vmul.f32 %v323, %v340
        %v395 = vmul.f32 %v324, %v340
        %v396 = vmul.f32 %v325, %v340
        %v397 = vmul.f32 %v326, %v340
        %v398 = vmul.f32 %v327, %v340
        %v399 = vmul.f32 %v328, %v340
        %v400 = vmul.f32 %v329, %v340
        %v401 = vmul.f32 %v330, %v340
        %v402 = vmul.f32 %v331, %v340
        %v403 = vmul.f32 %v332, %v340
        %v404 = vmul.f32 %v333, %v340
        %v405 = vmul.f32 %v334, %v340
        %v406 = vld [vmem:[%s2] sm:$0x1]
        %v408 = vlaneseq
        %v409 = vshrl.u32 %v408, 7
        %v410 = vsub.s32 0, %v409
        %v411 = vrot.slane %v406, %v410
        %v413 = vadd.f32 %v342, %v411
        %v414 = vadd.f32 %v343, %v411
        %v415 = vadd.f32 %v344, %v411
        %v416 = vadd.f32 %v345, %v411
        %v417 = vadd.f32 %v346, %v411
        %v418 = vadd.f32 %v347, %v411
        %v419 = vadd.f32 %v348, %v411
        %v420 = vadd.f32 %v349, %v411
        %v421 = vadd.f32 %v350, %v411
        %v422 = vadd.f32 %v351, %v411
        %v423 = vadd.f32 %v352, %v411
        %v424 = vadd.f32 %v353, %v411
        %v425 = vadd.f32 %v354, %v411
        %v426 = vadd.f32 %v355, %v411
        %v427 = vadd.f32 %v356, %v411
        %v428 = vadd.f32 %v357, %v411
        %v429 = vadd.f32 %v358, %v411
        %v430 = vadd.f32 %v359, %v411
        %v431 = vadd.f32 %v360, %v411
        %v432 = vadd.f32 %v361, %v411
        %v433 = vadd.f32 %v362, %v411
        %v434 = vadd.f32 %v363, %v411
        %v435 = vadd.f32 %v364, %v411
        %v436 = vadd.f32 %v365, %v411
        %v437 = vadd.f32 %v366, %v411
        %v438 = vadd.f32 %v367, %v411
        %v439 = vadd.f32 %v368, %v411
        %v440 = vadd.f32 %v369, %v411
        %v441 = vadd.f32 %v370, %v411
        %v442 = vadd.f32 %v371, %v411
        %v443 = vadd.f32 %v372, %v411
        %v444 = vadd.f32 %v373, %v411
        %v445 = vadd.f32 %v374, %v411
        %v446 = vadd.f32 %v375, %v411
        %v447 = vadd.f32 %v376, %v411
        %v448 = vadd.f32 %v377, %v411
        %v449 = vadd.f32 %v378, %v411
        %v450 = vadd.f32 %v379, %v411
        %v451 = vadd.f32 %v380, %v411
        %v452 = vadd.f32 %v381, %v411
        %v453 = vadd.f32 %v382, %v411
        %v454 = vadd.f32 %v383, %v411
        %v455 = vadd.f32 %v384, %v411
        %v456 = vadd.f32 %v385, %v411
        %v457 = vadd.f32 %v386, %v411
        %v458 = vadd.f32 %v387, %v411
        %v459 = vadd.f32 %v388, %v411
        %v460 = vadd.f32 %v389, %v411
        %v461 = vadd.f32 %v390, %v411
        %v462 = vadd.f32 %v391, %v411
        %v463 = vadd.f32 %v392, %v411
        %v464 = vadd.f32 %v393, %v411
        %v465 = vadd.f32 %v394, %v411
        %v466 = vadd.f32 %v395, %v411
        %v467 = vadd.f32 %v396, %v411
        %v468 = vadd.f32 %v397, %v411
        %v469 = vadd.f32 %v398, %v411
        %v470 = vadd.f32 %v399, %v411
        %v471 = vadd.f32 %v400, %v411
        %v472 = vadd.f32 %v401, %v411
        %v473 = vadd.f32 %v402, %v411
        %v474 = vadd.f32 %v403, %v411
        %v475 = vadd.f32 %v404, %v411
        %v476 = vadd.f32 %v405, %v411
        %v477 = vmax.f32 %v413, 0.0
        %v478 = vmax.f32 %v414, 0.0
        %v479 = vmax.f32 %v415, 0.0
        %v480 = vmax.f32 %v416, 0.0
        %v481 = vmax.f32 %v417, 0.0
        %v482 = vmax.f32 %v418, 0.0
        %v483 = vmax.f32 %v419, 0.0
        %v484 = vmax.f32 %v420, 0.0
        %v485 = vmax.f32 %v421, 0.0
        %v486 = vmax.f32 %v422, 0.0
        %v487 = vmax.f32 %v423, 0.0
        %v488 = vmax.f32 %v424, 0.0
        %v489 = vmax.f32 %v425, 0.0
        %v490 = vmax.f32 %v426, 0.0
        %v491 = vmax.f32 %v427, 0.0
        %v492 = vmax.f32 %v428, 0.0
        %v493 = vmax.f32 %v429, 0.0
        %v494 = vmax.f32 %v430, 0.0
        %v495 = vmax.f32 %v431, 0.0
        %v496 = vmax.f32 %v432, 0.0
        %v497 = vmax.f32 %v433, 0.0
        %v498 = vmax.f32 %v434, 0.0
        %v499 = vmax.f32 %v435, 0.0
        %v500 = vmax.f32 %v436, 0.0
        %v501 = vmax.f32 %v437, 0.0
        %v502 = vmax.f32 %v438, 0.0
        %v503 = vmax.f32 %v439, 0.0
        %v504 = vmax.f32 %v440, 0.0
        %v505 = vmax.f32 %v441, 0.0
        %v506 = vmax.f32 %v442, 0.0
        %v507 = vmax.f32 %v443, 0.0
        %v508 = vmax.f32 %v444, 0.0
        %v509 = vmax.f32 %v445, 0.0
        %v510 = vmax.f32 %v446, 0.0
        %v511 = vmax.f32 %v447, 0.0
        %v512 = vmax.f32 %v448, 0.0
        %v513 = vmax.f32 %v449, 0.0
        %v514 = vmax.f32 %v450, 0.0
        %v515 = vmax.f32 %v451, 0.0
        %v516 = vmax.f32 %v452, 0.0
        %v517 = vmax.f32 %v453, 0.0
        %v518 = vmax.f32 %v454, 0.0
        %v519 = vmax.f32 %v455, 0.0
        %v520 = vmax.f32 %v456, 0.0
        %v521 = vmax.f32 %v457, 0.0
        %v522 = vmax.f32 %v458, 0.0
        %v523 = vmax.f32 %v459, 0.0
        %v524 = vmax.f32 %v460, 0.0
        %v525 = vmax.f32 %v461, 0.0
        %v526 = vmax.f32 %v462, 0.0
        %v527 = vmax.f32 %v463, 0.0
        %v528 = vmax.f32 %v464, 0.0
        %v529 = vmax.f32 %v465, 0.0
        %v530 = vmax.f32 %v466, 0.0
        %v531 = vmax.f32 %v467, 0.0
        %v532 = vmax.f32 %v468, 0.0
        %v533 = vmax.f32 %v469, 0.0
        %v534 = vmax.f32 %v470, 0.0
        %v535 = vmax.f32 %v471, 0.0
        %v536 = vmax.f32 %v472, 0.0
        %v537 = vmax.f32 %v473, 0.0
        %v538 = vmax.f32 %v474, 0.0
        %v539 = vmax.f32 %v475, 0.0
        %v540 = vmax.f32 %v476, 0.0
        %v541 = vpack.c.bf16 %v478, %v477
        %v542 = vpack.c.bf16 %v480, %v479
        %v543 = vpack.c.bf16 %v482, %v481
        %v544 = vpack.c.bf16 %v484, %v483
        %v545 = vpack.c.bf16 %v486, %v485
        %v546 = vpack.c.bf16 %v488, %v487
        %v547 = vpack.c.bf16 %v490, %v489
        %v548 = vpack.c.bf16 %v492, %v491
        %v549 = vpack.c.bf16 %v494, %v493
        %v550 = vpack.c.bf16 %v496, %v495
        %v551 = vpack.c.bf16 %v498, %v497
        %v552 = vpack.c.bf16 %v500, %v499
        %v553 = vpack.c.bf16 %v502, %v501
        %v554 = vpack.c.bf16 %v504, %v503
        %v555 = vpack.c.bf16 %v506, %v505
        %v556 = vpack.c.bf16 %v508, %v507
        %v557 = vpack.c.bf16 %v510, %v509
        %v558 = vpack.c.bf16 %v512, %v511
        %v559 = vpack.c.bf16 %v514, %v513
        %v560 = vpack.c.bf16 %v516, %v515
        %v561 = vpack.c.bf16 %v518, %v517
        %v562 = vpack.c.bf16 %v520, %v519
        %v563 = vpack.c.bf16 %v522, %v521
        %v564 = vpack.c.bf16 %v524, %v523
        %v565 = vpack.c.bf16 %v526, %v525
        %v566 = vpack.c.bf16 %v528, %v527
        %v567 = vpack.c.bf16 %v530, %v529
        %v568 = vpack.c.bf16 %v532, %v531
        %v569 = vpack.c.bf16 %v534, %v533
        %v570 = vpack.c.bf16 %v536, %v535
        %v571 = vpack.c.bf16 %v538, %v537
        %v572 = vpack.c.bf16 %v540, %v539
        %v573 = vld [vmem:[%s3] sm:$0xf]
        %v574 = vld [vmem:[%s3 + $0x4] sm:$0xf]
        %v577 = vunpack.c.l.b16 %v573
        %v578 = vunpack.c.l.b16 %v574
        %v579 = vpack.c.b16 %v578, %v577
        %vm581 = vcmask 130048
        %v583 = vsel %vm581, %v541, 0
        %v586 = vsel %vm581, %v542, 0
        %v589 = vsel %vm581, %v543, 0
        %v592 = vsel %vm581, %v544, 0
        %v595 = vsel %vm581, %v545, 0
        %v598 = vsel %vm581, %v546, 0
        %v601 = vsel %vm581, %v547, 0
        %v604 = vsel %vm581, %v548, 0
        %v607 = vsel %vm581, %v549, 0
        %v610 = vsel %vm581, %v550, 0
        %v613 = vsel %vm581, %v551, 0
        %v616 = vsel %vm581, %v552, 0
        %v619 = vsel %vm581, %v553, 0
        %v622 = vsel %vm581, %v554, 0
        %v625 = vsel %vm581, %v555, 0
        %v628 = vsel %vm581, %v556, 0
        %v631 = vsel %vm581, %v557, 0
        %v634 = vsel %vm581, %v558, 0
        %v637 = vsel %vm581, %v559, 0
        %v640 = vsel %vm581, %v560, 0
        %v643 = vsel %vm581, %v561, 0
        %v646 = vsel %vm581, %v562, 0
        %v649 = vsel %vm581, %v563, 0
        %v652 = vsel %vm581, %v564, 0
        %v655 = vsel %vm581, %v565, 0
        %v658 = vsel %vm581, %v566, 0
        %v661 = vsel %vm581, %v567, 0
        %v664 = vsel %vm581, %v568, 0
        %v667 = vsel %vm581, %v569, 0
        %v670 = vsel %vm581, %v570, 0
        %v673 = vsel %vm581, %v571, 0
        %v676 = vsel %vm581, %v572, 0
        %678 = vmatprep.subr.bf16.mxu0 0
        %679 = vmatpush1.bf16.msra.mxu0 %v579
        %680 = vmatprep.subr.bf16.mxu0 0
        %681 = vmatpush1.bf16.msra.mxu0 0
        %682 = vmatprep.subr.bf16.mxu0 0
        %683 = vmatpush1.bf16.msra.mxu0 0
        %684 = vmatprep.subr.bf16.mxu0 0
        %685 = vmatpush1.bf16.msra.mxu0 0
        %686 = vmatprep.subr.bf16.mxu0 0
        %687 = vmatpush1.bf16.msra.mxu0 0
        %688 = vmatprep.subr.bf16.mxu0 0
        %689 = vmatpush1.bf16.msra.mxu0 0
        %690 = vmatprep.subr.bf16.mxu0 0
        %691 = vmatpush1.bf16.msra.mxu0 0
        %692 = vmatprep.subr.bf16.mxu0 0
        %693 = vmatpush1.bf16.msra.mxu0 0
        %694 = vmatprep.subr.bf16.mxu0 0
        %695 = vmatpush1.bf16.msra.mxu0 0
        %696 = vmatprep.subr.bf16.mxu0 0
        %697 = vmatpush1.bf16.msra.mxu0 0
        %698 = vmatprep.subr.bf16.mxu0 0
        %699 = vmatpush1.bf16.msra.mxu0 0
        %700 = vmatprep.subr.bf16.mxu0 0
        %701 = vmatpush1.bf16.msra.mxu0 0
        %702 = vmatprep.subr.bf16.mxu0 0
        %703 = vmatpush1.bf16.msra.mxu0 0
        %704 = vmatprep.subr.bf16.mxu0 0
        %705 = vmatpush1.bf16.msra.mxu0 0
        %706 = vmatprep.subr.bf16.mxu0 0
        %707 = vmatpush1.bf16.msra.mxu0 0
        %708 = vmatprep.subr.bf16.mxu0 0
        %709 = vmatpush1.bf16.msra.mxu0 0
        %710 = vmatprep.mubr.bf16.mxu0 0
        %711 = vmatmul.mubr.bf16.gmra.mrb[0].mxu0 %v583
        %v712 = vpop.f32.mrb[0].mxu0
        %v713 = vadd.f32 0.0, %v712
        %v714 = vpop.f32.mrb[0].mxu0
        %v715 = vpop.f32.mrb[0].mxu0
        %v716 = vadd.f32 0.0, %v715
        %v717 = vpop.f32.mrb[0].mxu0
        %718 = vmatprep.mubr.bf16.mxu0 0
        %719 = vmatmul.mubr.bf16.gmra.mrb[0].mxu0 %v586
        %v720 = vpop.f32.mrb[0].mxu0
        %v721 = vadd.f32 0.0, %v720
        %v722 = vpop.f32.mrb[0].mxu0
        %v723 = vpop.f32.mrb[0].mxu0
        %v724 = vadd.f32 0.0, %v723
        %v725 = vpop.f32.mrb[0].mxu0
        %726 = vmatprep.mubr.bf16.mxu0 0
        %727 = vmatmul.mubr.bf16.gmra.mrb[0].mxu0 %v589
        %v728 = vpop.f32.mrb[0].mxu0
        %v729 = vadd.f32 0.0, %v728
        %v730 = vpop.f32.mrb[0].mxu0
        %v731 = vpop.f32.mrb[0].mxu0
        %v732 = vadd.f32 0.0, %v731
        %v733 = vpop.f32.mrb[0].mxu0
        %734 = vmatprep.mubr.bf16.mxu0 0
        %735 = vmatmul.mubr.bf16.gmra.mrb[0].mxu0 %v592
        %v736 = vpop.f32.mrb[0].mxu0
        %v737 = vadd.f32 0.0, %v736
        %v738 = vpop.f32.mrb[0].mxu0
        %v739 = vpop.f32.mrb[0].mxu0
        %v740 = vadd.f32 0.0, %v739
        %v741 = vpop.f32.mrb[0].mxu0
        %742 = vmatprep.mubr.bf16.mxu0 0
        %743 = vmatmul.mubr.bf16.gmra.mrb[0].mxu0 %v595
        %v744 = vpop.f32.mrb[0].mxu0
        %v745 = vadd.f32 0.0, %v744
        %v746 = vpop.f32.mrb[0].mxu0
        %v747 = vpop.f32.mrb[0].mxu0
        %v748 = vadd.f32 0.0, %v747
        %v749 = vpop.f32.mrb[0].mxu0
        %750 = vmatprep.mubr.bf16.mxu0 0
        %751 = vmatmul.mubr.bf16.gmra.mrb[0].mxu0 %v598
        %v752 = vpop.f32.mrb[0].mxu0
        %v753 = vadd.f32 0.0, %v752
        %v754 = vpop.f32.mrb[0].mxu0
        %v755 = vpop.f32.mrb[0].mxu0
        %v756 = vadd.f32 0.0, %v755
        %v757 = vpop.f32.mrb[0].mxu0
        %758 = vmatprep.mubr.bf16.mxu0 0
        %759 = vmatmul.mubr.bf16.gmra.mrb[0].mxu0 %v601
        %v760 = vpop.f32.mrb[0].mxu0
        %v761 = vadd.f32 0.0, %v760
        %v762 = vpop.f32.mrb[0].mxu0
        %v763 = vpop.f32.mrb[0].mxu0
        %v764 = vadd.f32 0.0, %v763
        %v765 = vpop.f32.mrb[0].mxu0
        %766 = vmatprep.mubr.bf16.mxu0 0
        %767 = vmatmul.mubr.bf16.gmra.mrb[0].mxu0 %v604
        %v768 = vpop.f32.mrb[0].mxu0
        %v769 = vadd.f32 0.0, %v768
        %v770 = vpop.f32.mrb[0].mxu0
        %v771 = vpop.f32.mrb[0].mxu0
        %v772 = vadd.f32 0.0, %v771
        %v773 = vpop.f32.mrb[0].mxu0
        %774 = vmatprep.mubr.bf16.mxu0 0
        %775 = vmatmul.mubr.bf16.gmra.mrb[0].mxu0 %v607
        %v776 = vpop.f32.mrb[0].mxu0
        %v777 = vadd.f32 0.0, %v776
        %v778 = vpop.f32.mrb[0].mxu0
        %v779 = vpop.f32.mrb[0].mxu0
        %v780 = vadd.f32 0.0, %v779
        %v781 = vpop.f32.mrb[0].mxu0
        %782 = vmatprep.mubr.bf16.mxu0 0
        %783 = vmatmul.mubr.bf16.gmra.mrb[0].mxu0 %v610
        %v784 = vpop.f32.mrb[0].mxu0
        %v785 = vadd.f32 0.0, %v784
        %v786 = vpop.f32.mrb[0].mxu0
        %v787 = vpop.f32.mrb[0].mxu0
        %v788 = vadd.f32 0.0, %v787
        %v789 = vpop.f32.mrb[0].mxu0
        %790 = vmatprep.mubr.bf16.mxu0 0
        %791 = vmatmul.mubr.bf16.gmra.mrb[0].mxu0 %v613
        %v792 = vpop.f32.mrb[0].mxu0
        %v793 = vadd.f32 0.0, %v792
        %v794 = vpop.f32.mrb[0].mxu0
        %v795 = vpop.f32.mrb[0].mxu0
        %v796 = vadd.f32 0.0, %v795
        %v797 = vpop.f32.mrb[0].mxu0
        %798 = vmatprep.mubr.bf16.mxu0 0
        %799 = vmatmul.mubr.bf16.gmra.mrb[0].mxu0 %v616
        %v800 = vpop.f32.mrb[0].mxu0
        %v801 = vadd.f32 0.0, %v800
        %v802 = vpop.f32.mrb[0].mxu0
        %v803 = vpop.f32.mrb[0].mxu0
        %v804 = vadd.f32 0.0, %v803
        %v805 = vpop.f32.mrb[0].mxu0
        %806 = vmatprep.mubr.bf16.mxu0 0
        %807 = vmatmul.mubr.bf16.gmra.mrb[0].mxu0 %v619
        %v808 = vpop.f32.mrb[0].mxu0
        %v809 = vadd.f32 0.0, %v808
        %v810 = vpop.f32.mrb[0].mxu0
        %v811 = vpop.f32.mrb[0].mxu0
        %v812 = vadd.f32 0.0, %v811
        %v813 = vpop.f32.mrb[0].mxu0
        %814 = vmatprep.mubr.bf16.mxu0 0
        %815 = vmatmul.mubr.bf16.gmra.mrb[0].mxu0 %v622
        %v816 = vpop.f32.mrb[0].mxu0
        %v817 = vadd.f32 0.0, %v816
        %v818 = vpop.f32.mrb[0].mxu0
        %v819 = vpop.f32.mrb[0].mxu0
        %v820 = vadd.f32 0.0, %v819
        %v821 = vpop.f32.mrb[0].mxu0
        %822 = vmatprep.mubr.bf16.mxu0 0
        %823 = vmatmul.mubr.bf16.gmra.mrb[0].mxu0 %v625
        %v824 = vpop.f32.mrb[0].mxu0
        %v825 = vadd.f32 0.0, %v824
        %v826 = vpop.f32.mrb[0].mxu0
        %v827 = vpop.f32.mrb[0].mxu0
        %v828 = vadd.f32 0.0, %v827
        %v829 = vpop.f32.mrb[0].mxu0
        %830 = vmatprep.mubr.bf16.mxu0 0
        %831 = vmatmul.mubr.bf16.gmra.mrb[0].mxu0 %v628
        %v832 = vpop.f32.mrb[0].mxu0
        %v833 = vadd.f32 0.0, %v832
        %v834 = vpop.f32.mrb[0].mxu0
        %v835 = vpop.f32.mrb[0].mxu0
        %v836 = vadd.f32 0.0, %v835
        %v837 = vpop.f32.mrb[0].mxu0
        %838 = vmatprep.mubr.bf16.mxu0 0
        %839 = vmatmul.mubr.bf16.gmra.mrb[0].mxu0 %v631
        %v840 = vpop.f32.mrb[0].mxu0
        %v841 = vadd.f32 0.0, %v840
        %v842 = vpop.f32.mrb[0].mxu0
        %v843 = vpop.f32.mrb[0].mxu0
        %v844 = vadd.f32 0.0, %v843
        %v845 = vpop.f32.mrb[0].mxu0
        %846 = vmatprep.mubr.bf16.mxu0 0
        %847 = vmatmul.mubr.bf16.gmra.mrb[0].mxu0 %v634
        %v848 = vpop.f32.mrb[0].mxu0
        %v849 = vadd.f32 0.0, %v848
        %v850 = vpop.f32.mrb[0].mxu0
        %v851 = vpop.f32.mrb[0].mxu0
        %v852 = vadd.f32 0.0, %v851
        %v853 = vpop.f32.mrb[0].mxu0
        %854 = vmatprep.mubr.bf16.mxu0 0
        %855 = vmatmul.mubr.bf16.gmra.mrb[0].mxu0 %v637
        %v856 = vpop.f32.mrb[0].mxu0
        %v857 = vadd.f32 0.0, %v856
        %v858 = vpop.f32.mrb[0].mxu0
        %v859 = vpop.f32.mrb[0].mxu0
        %v860 = vadd.f32 0.0, %v859
        %v861 = vpop.f32.mrb[0].mxu0
        %862 = vmatprep.mubr.bf16.mxu0 0
        %863 = vmatmul.mubr.bf16.gmra.mrb[0].mxu0 %v640
        %v864 = vpop.f32.mrb[0].mxu0
        %v865 = vadd.f32 0.0, %v864
        %v866 = vpop.f32.mrb[0].mxu0
        %v867 = vpop.f32.mrb[0].mxu0
        %v868 = vadd.f32 0.0, %v867
        %v869 = vpop.f32.mrb[0].mxu0
        %870 = vmatprep.mubr.bf16.mxu0 0
        %871 = vmatmul.mubr.bf16.gmra.mrb[0].mxu0 %v643
        %v872 = vpop.f32.mrb[0].mxu0
        %v873 = vadd.f32 0.0, %v872
        %v874 = vpop.f32.mrb[0].mxu0
        %v875 = vpop.f32.mrb[0].mxu0
        %v876 = vadd.f32 0.0, %v875
        %v877 = vpop.f32.mrb[0].mxu0
        %878 = vmatprep.mubr.bf16.mxu0 0
        %879 = vmatmul.mubr.bf16.gmra.mrb[0].mxu0 %v646
        %v880 = vpop.f32.mrb[0].mxu0
        %v881 = vadd.f32 0.0, %v880
        %v882 = vpop.f32.mrb[0].mxu0
        %v883 = vpop.f32.mrb[0].mxu0
        %v884 = vadd.f32 0.0, %v883
        %v885 = vpop.f32.mrb[0].mxu0
        %886 = vmatprep.mubr.bf16.mxu0 0
        %887 = vmatmul.mubr.bf16.gmra.mrb[0].mxu0 %v649
        %v888 = vpop.f32.mrb[0].mxu0
        %v889 = vadd.f32 0.0, %v888
        %v890 = vpop.f32.mrb[0].mxu0
        %v891 = vpop.f32.mrb[0].mxu0
        %v892 = vadd.f32 0.0, %v891
        %v893 = vpop.f32.mrb[0].mxu0
        %894 = vmatprep.mubr.bf16.mxu0 0
        %895 = vmatmul.mubr.bf16.gmra.mrb[0].mxu0 %v652
        %v896 = vpop.f32.mrb[0].mxu0
        %v897 = vadd.f32 0.0, %v896
        %v898 = vpop.f32.mrb[0].mxu0
        %v899 = vpop.f32.mrb[0].mxu0
        %v900 = vadd.f32 0.0, %v899
        %v901 = vpop.f32.mrb[0].mxu0
        %902 = vmatprep.mubr.bf16.mxu0 0
        %903 = vmatmul.mubr.bf16.gmra.mrb[0].mxu0 %v655
        %v904 = vpop.f32.mrb[0].mxu0
        %v905 = vadd.f32 0.0, %v904
        %v906 = vpop.f32.mrb[0].mxu0
        %v907 = vpop.f32.mrb[0].mxu0
        %v908 = vadd.f32 0.0, %v907
        %v909 = vpop.f32.mrb[0].mxu0
        %910 = vmatprep.mubr.bf16.mxu0 0
        %911 = vmatmul.mubr.bf16.gmra.mrb[0].mxu0 %v658
        %v912 = vpop.f32.mrb[0].mxu0
        %v913 = vadd.f32 0.0, %v912
        %v914 = vpop.f32.mrb[0].mxu0
        %v915 = vpop.f32.mrb[0].mxu0
        %v916 = vadd.f32 0.0, %v915
        %v917 = vpop.f32.mrb[0].mxu0
        %918 = vmatprep.mubr.bf16.mxu0 0
        %919 = vmatmul.mubr.bf16.gmra.mrb[0].mxu0 %v661
        %v920 = vpop.f32.mrb[0].mxu0
        %v921 = vadd.f32 0.0, %v920
        %v922 = vpop.f32.mrb[0].mxu0
        %v923 = vpop.f32.mrb[0].mxu0
        %v924 = vadd.f32 0.0, %v923
        %v925 = vpop.f32.mrb[0].mxu0
        %926 = vmatprep.mubr.bf16.mxu0 0
        %927 = vmatmul.mubr.bf16.gmra.mrb[0].mxu0 %v664
        %v928 = vpop.f32.mrb[0].mxu0
        %v929 = vadd.f32 0.0, %v928
        %v930 = vpop.f32.mrb[0].mxu0
        %v931 = vpop.f32.mrb[0].mxu0
        %v932 = vadd.f32 0.0, %v931
        %v933 = vpop.f32.mrb[0].mxu0
        %934 = vmatprep.mubr.bf16.mxu0 0
        %935 = vmatmul.mubr.bf16.gmra.mrb[0].mxu0 %v667
        %v936 = vpop.f32.mrb[0].mxu0
        %v937 = vadd.f32 0.0, %v936
        %v938 = vpop.f32.mrb[0].mxu0
        %v939 = vpop.f32.mrb[0].mxu0
        %v940 = vadd.f32 0.0, %v939
        %v941 = vpop.f32.mrb[0].mxu0
        %942 = vmatprep.mubr.bf16.mxu0 0
        %943 = vmatmul.mubr.bf16.gmra.mrb[0].mxu0 %v670
        %v944 = vpop.f32.mrb[0].mxu0
        %v945 = vadd.f32 0.0, %v944
        %v946 = vpop.f32.mrb[0].mxu0
        %v947 = vpop.f32.mrb[0].mxu0
        %v948 = vadd.f32 0.0, %v947
        %v949 = vpop.f32.mrb[0].mxu0
        %950 = vmatprep.mubr.bf16.mxu0 0
        %951 = vmatmul.mubr.bf16.gmra.mrb[0].mxu0 %v673
        %v952 = vpop.f32.mrb[0].mxu0
        %v953 = vadd.f32 0.0, %v952
        %v954 = vpop.f32.mrb[0].mxu0
        %v955 = vpop.f32.mrb[0].mxu0
        %v956 = vadd.f32 0.0, %v955
        %v957 = vpop.f32.mrb[0].mxu0
        %958 = vmatprep.mubr.bf16.mxu0 0
        %959 = vmatmul.mubr.bf16.gmra.mrb[0].mxu0 %v676
        %v960 = vpop.f32.mrb[0].mxu0
        %v961 = vadd.f32 0.0, %v960
        %v962 = vpop.f32.mrb[0].mxu0
        %v963 = vpop.f32.mrb[0].mxu0
        %v964 = vadd.f32 0.0, %v963
        %v965 = vpop.f32.mrb[0].mxu0
        %966 = vdwg.mxu0
        %v967 = vpack.c.bf16 %v716, %v713
        %v968 = vpack.c.bf16 %v724, %v721
        %v969 = vpack.c.bf16 %v732, %v729
        %v970 = vpack.c.bf16 %v740, %v737
        %v971 = vpack.c.bf16 %v748, %v745
        %v972 = vpack.c.bf16 %v756, %v753
        %v973 = vpack.c.bf16 %v764, %v761
        %v974 = vpack.c.bf16 %v772, %v769
        %v975 = vpack.c.bf16 %v780, %v777
        %v976 = vpack.c.bf16 %v788, %v785
        %v977 = vpack.c.bf16 %v796, %v793
        %v978 = vpack.c.bf16 %v804, %v801
        %v979 = vpack.c.bf16 %v812, %v809
        %v980 = vpack.c.bf16 %v820, %v817
        %v981 = vpack.c.bf16 %v828, %v825
        %v982 = vpack.c.bf16 %v836, %v833
        %v983 = vpack.c.bf16 %v844, %v841
        %v984 = vpack.c.bf16 %v852, %v849
        %v985 = vpack.c.bf16 %v860, %v857
        %v986 = vpack.c.bf16 %v868, %v865
        %v987 = vpack.c.bf16 %v876, %v873
        %v988 = vpack.c.bf16 %v884, %v881
        %v989 = vpack.c.bf16 %v892, %v889
        %v990 = vpack.c.bf16 %v900, %v897
        %v991 = vpack.c.bf16 %v908, %v905
        %v992 = vpack.c.bf16 %v916, %v913
        %v993 = vpack.c.bf16 %v924, %v921
        %v994 = vpack.c.bf16 %v932, %v929
        %v995 = vpack.c.bf16 %v940, %v937
        %v996 = vpack.c.bf16 %v948, %v945
        %v997 = vpack.c.bf16 %v956, %v953
        %v998 = vpack.c.bf16 %v964, %v961
        %v1031 = vunpack.c.l.b16 %v967
        %v1032 = vunpack.c.h.b16 %v967
        %v1033 = vunpack.c.l.b16 %v968
        %v1034 = vunpack.c.h.b16 %v968
        %v1035 = vunpack.c.l.b16 %v969
        %v1036 = vunpack.c.h.b16 %v969
        %v1037 = vunpack.c.l.b16 %v970
        %v1038 = vunpack.c.h.b16 %v970
        %v1039 = vunpack.c.l.b16 %v971
        %v1040 = vunpack.c.h.b16 %v971
        %v1041 = vunpack.c.l.b16 %v972
        %v1042 = vunpack.c.h.b16 %v972
        %v1043 = vunpack.c.l.b16 %v973
        %v1044 = vunpack.c.h.b16 %v973
        %v1045 = vunpack.c.l.b16 %v974
        %v1046 = vunpack.c.h.b16 %v974
        %v1047 = vunpack.c.l.b16 %v975
        %v1048 = vunpack.c.h.b16 %v975
        %v1049 = vunpack.c.l.b16 %v976
        %v1050 = vunpack.c.h.b16 %v976
        %v1051 = vunpack.c.l.b16 %v977
        %v1052 = vunpack.c.h.b16 %v977
        %v1053 = vunpack.c.l.b16 %v978
        %v1054 = vunpack.c.h.b16 %v978
        %v1055 = vunpack.c.l.b16 %v979
        %v1056 = vunpack.c.h.b16 %v979
        %v1057 = vunpack.c.l.b16 %v980
        %v1058 = vunpack.c.h.b16 %v980
        %v1059 = vunpack.c.l.b16 %v981
        %v1060 = vunpack.c.h.b16 %v981
        %v1061 = vunpack.c.l.b16 %v982
        %v1062 = vunpack.c.h.b16 %v982
        %v1063 = vunpack.c.l.b16 %v983
        %v1064 = vunpack.c.h.b16 %v983
        %v1065 = vunpack.c.l.b16 %v984
        %v1066 = vunpack.c.h.b16 %v984
        %v1067 = vunpack.c.l.b16 %v985
        %v1068 = vunpack.c.h.b16 %v985
        %v1069 = vunpack.c.l.b16 %v986
        %v1070 = vunpack.c.h.b16 %v986
        %v1071 = vunpack.c.l.b16 %v987
        %v1072 = vunpack.c.h.b16 %v987
        %v1073 = vunpack.c.l.b16 %v988
        %v1074 = vunpack.c.h.b16 %v988
        %v1075 = vunpack.c.l.b16 %v989
        %v1076 = vunpack.c.h.b16 %v989
        %v1077 = vunpack.c.l.b16 %v990
        %v1078 = vunpack.c.h.b16 %v990
        %v1079 = vunpack.c.l.b16 %v991
        %v1080 = vunpack.c.h.b16 %v991
        %v1081 = vunpack.c.l.b16 %v992
        %v1082 = vunpack.c.h.b16 %v992
        %v1083 = vunpack.c.l.b16 %v993
        %v1084 = vunpack.c.h.b16 %v993
        %v1085 = vunpack.c.l.b16 %v994
        %v1086 = vunpack.c.h.b16 %v994
        %v1087 = vunpack.c.l.b16 %v995
        %v1088 = vunpack.c.h.b16 %v995
        %v1089 = vunpack.c.l.b16 %v996
        %v1090 = vunpack.c.h.b16 %v996
        %v1091 = vunpack.c.l.b16 %v997
        %v1092 = vunpack.c.h.b16 %v997
        %v1093 = vunpack.c.l.b16 %v998
        %v1094 = vunpack.c.h.b16 %v998
        %v1095 = vpack.c.b16 %v1031, %v1031
        %v1096 = vpack.c.b16 %v1032, %v1032
        %v1097 = vpack.c.b16 %v1033, %v1033
        %v1098 = vpack.c.b16 %v1034, %v1034
        %v1099 = vpack.c.b16 %v1035, %v1035
        %v1100 = vpack.c.b16 %v1036, %v1036
        %v1101 = vpack.c.b16 %v1037, %v1037
        %v1102 = vpack.c.b16 %v1038, %v1038
        %v1103 = vpack.c.b16 %v1039, %v1039
        %v1104 = vpack.c.b16 %v1040, %v1040
        %v1105 = vpack.c.b16 %v1041, %v1041
        %v1106 = vpack.c.b16 %v1042, %v1042
        %v1107 = vpack.c.b16 %v1043, %v1043
        %v1108 = vpack.c.b16 %v1044, %v1044
        %v1109 = vpack.c.b16 %v1045, %v1045
        %v1110 = vpack.c.b16 %v1046, %v1046
        %v1111 = vpack.c.b16 %v1047, %v1047
        %v1112 = vpack.c.b16 %v1048, %v1048
        %v1113 = vpack.c.b16 %v1049, %v1049
        %v1114 = vpack.c.b16 %v1050, %v1050
        %v1115 = vpack.c.b16 %v1051, %v1051
        %v1116 = vpack.c.b16 %v1052, %v1052
        %v1117 = vpack.c.b16 %v1053, %v1053
        %v1118 = vpack.c.b16 %v1054, %v1054
        %v1119 = vpack.c.b16 %v1055, %v1055
        %v1120 = vpack.c.b16 %v1056, %v1056
        %v1121 = vpack.c.b16 %v1057, %v1057
        %v1122 = vpack.c.b16 %v1058, %v1058
        %v1123 = vpack.c.b16 %v1059, %v1059
        %v1124 = vpack.c.b16 %v1060, %v1060
        %v1125 = vpack.c.b16 %v1061, %v1061
        %v1126 = vpack.c.b16 %v1062, %v1062
        %v1127 = vpack.c.b16 %v1063, %v1063
        %v1128 = vpack.c.b16 %v1064, %v1064
        %v1129 = vpack.c.b16 %v1065, %v1065
        %v1130 = vpack.c.b16 %v1066, %v1066
        %v1131 = vpack.c.b16 %v1067, %v1067
        %v1132 = vpack.c.b16 %v1068, %v1068
        %v1133 = vpack.c.b16 %v1069, %v1069
        %v1134 = vpack.c.b16 %v1070, %v1070
        %v1135 = vpack.c.b16 %v1071, %v1071
        %v1136 = vpack.c.b16 %v1072, %v1072
        %v1137 = vpack.c.b16 %v1073, %v1073
        %v1138 = vpack.c.b16 %v1074, %v1074
        %v1139 = vpack.c.b16 %v1075, %v1075
        %v1140 = vpack.c.b16 %v1076, %v1076
        %v1141 = vpack.c.b16 %v1077, %v1077
        %v1142 = vpack.c.b16 %v1078, %v1078
        %v1143 = vpack.c.b16 %v1079, %v1079
        %v1144 = vpack.c.b16 %v1080, %v1080
        %v1145 = vpack.c.b16 %v1081, %v1081
        %v1146 = vpack.c.b16 %v1082, %v1082
        %v1147 = vpack.c.b16 %v1083, %v1083
        %v1148 = vpack.c.b16 %v1084, %v1084
        %v1149 = vpack.c.b16 %v1085, %v1085
        %v1150 = vpack.c.b16 %v1086, %v1086
        %v1151 = vpack.c.b16 %v1087, %v1087
        %v1152 = vpack.c.b16 %v1088, %v1088
        %v1153 = vpack.c.b16 %v1089, %v1089
        %v1154 = vpack.c.b16 %v1090, %v1090
        %v1155 = vpack.c.b16 %v1091, %v1091
        %v1156 = vpack.c.b16 %v1092, %v1092
        %v1157 = vpack.c.b16 %v1093, %v1093
        %v1158 = vpack.c.b16 %v1094, %v1094
        %vm1223 = vcmask 27648
        %1224 = vst.msk [vmem:[%s246] sm:$0xf] %vm1223, %v1095
        %1225 = vst.msk [vmem:[%s246 + $0x4] sm:$0xf] %vm1223, %v1096
        %1226 = vst.msk [vmem:[%s246 + $0x8] sm:$0xf] %vm1223, %v1097
        %1227 = vst.msk [vmem:[%s246 + $0xc] sm:$0xf] %vm1223, %v1098
        %1228 = vst.msk [vmem:[%s246 + $0x10] sm:$0xf] %vm1223, %v1099
        %1229 = vst.msk [vmem:[%s246 + $0x14] sm:$0xf] %vm1223, %v1100
        %1230 = vst.msk [vmem:[%s246 + $0x18] sm:$0xf] %vm1223, %v1101
        %1231 = vst.msk [vmem:[%s246 + $0x1c] sm:$0xf] %vm1223, %v1102
        %1232 = vst.msk [vmem:[%s246 + $0x20] sm:$0xf] %vm1223, %v1103
        %1233 = vst.msk [vmem:[%s246 + $0x24] sm:$0xf] %vm1223, %v1104
        %1234 = vst.msk [vmem:[%s246 + $0x28] sm:$0xf] %vm1223, %v1105
        %1235 = vst.msk [vmem:[%s246 + $0x2c] sm:$0xf] %vm1223, %v1106
        %1236 = vst.msk [vmem:[%s246 + $0x30] sm:$0xf] %vm1223, %v1107
        %1237 = vst.msk [vmem:[%s246 + $0x34] sm:$0xf] %vm1223, %v1108
        %1238 = vst.msk [vmem:[%s246 + $0x38] sm:$0xf] %vm1223, %v1109
        %1239 = vst.msk [vmem:[%s246 + $0x3c] sm:$0xf] %vm1223, %v1110
        %1240 = vst.msk [vmem:[%s246 + $0x40] sm:$0xf] %vm1223, %v1111
        %1241 = vst.msk [vmem:[%s246 + $0x44] sm:$0xf] %vm1223, %v1112
        %1242 = vst.msk [vmem:[%s246 + $0x48] sm:$0xf] %vm1223, %v1113
        %1243 = vst.msk [vmem:[%s246 + $0x4c] sm:$0xf] %vm1223, %v1114
        %1244 = vst.msk [vmem:[%s246 + $0x50] sm:$0xf] %vm1223, %v1115
        %1245 = vst.msk [vmem:[%s246 + $0x54] sm:$0xf] %vm1223, %v1116
        %1246 = vst.msk [vmem:[%s246 + $0x58] sm:$0xf] %vm1223, %v1117
        %1247 = vst.msk [vmem:[%s246 + $0x5c] sm:$0xf] %vm1223, %v1118
        %1248 = vst.msk [vmem:[%s246 + $0x60] sm:$0xf] %vm1223, %v1119
        %1249 = vst.msk [vmem:[%s246 + $0x64] sm:$0xf] %vm1223, %v1120
        %1250 = vst.msk [vmem:[%s246 + $0x68] sm:$0xf] %vm1223, %v1121
        %1251 = vst.msk [vmem:[%s246 + $0x6c] sm:$0xf] %vm1223, %v1122
        %1252 = vst.msk [vmem:[%s246 + $0x70] sm:$0xf] %vm1223, %v1123
        %1253 = vst.msk [vmem:[%s246 + $0x74] sm:$0xf] %vm1223, %v1124
        %1254 = vst.msk [vmem:[%s246 + $0x78] sm:$0xf] %vm1223, %v1125
        %1255 = vst.msk [vmem:[%s246 + $0x7c] sm:$0xf] %vm1223, %v1126
        %1256 = vst.msk [vmem:[%s246 + $0x80] sm:$0xf] %vm1223, %v1127
        %1257 = vst.msk [vmem:[%s246 + $0x84] sm:$0xf] %vm1223, %v1128
        %1258 = vst.msk [vmem:[%s246 + $0x88] sm:$0xf] %vm1223, %v1129
        %1259 = vst.msk [vmem:[%s246 + $0x8c] sm:$0xf] %vm1223, %v1130
        %1260 = vst.msk [vmem:[%s246 + $0x90] sm:$0xf] %vm1223, %v1131
        %1261 = vst.msk [vmem:[%s246 + $0x94] sm:$0xf] %vm1223, %v1132
        %1262 = vst.msk [vmem:[%s246 + $0x98] sm:$0xf] %vm1223, %v1133
        %1263 = vst.msk [vmem:[%s246 + $0x9c] sm:$0xf] %vm1223, %v1134
        %1264 = vst.msk [vmem:[%s246 + $0xa0] sm:$0xf] %vm1223, %v1135
        %1265 = vst.msk [vmem:[%s246 + $0xa4] sm:$0xf] %vm1223, %v1136
        %1266 = vst.msk [vmem:[%s246 + $0xa8] sm:$0xf] %vm1223, %v1137
        %1267 = vst.msk [vmem:[%s246 + $0xac] sm:$0xf] %vm1223, %v1138
        %1268 = vst.msk [vmem:[%s246 + $0xb0] sm:$0xf] %vm1223, %v1139
        %1269 = vst.msk [vmem:[%s246 + $0xb4] sm:$0xf] %vm1223, %v1140
        %1270 = vst.msk [vmem:[%s246 + $0xb8] sm:$0xf] %vm1223, %v1141
        %1271 = vst.msk [vmem:[%s246 + $0xbc] sm:$0xf] %vm1223, %v1142
        %1272 = vst.msk [vmem:[%s246 + $0xc0] sm:$0xf] %vm1223, %v1143
        %1273 = vst.msk [vmem:[%s246 + $0xc4] sm:$0xf] %vm1223, %v1144
        %1274 = vst.msk [vmem:[%s246 + $0xc8] sm:$0xf] %vm1223, %v1145
        %1275 = vst.msk [vmem:[%s246 + $0xcc] sm:$0xf] %vm1223, %v1146
        %1276 = vst.msk [vmem:[%s246 + $0xd0] sm:$0xf] %vm1223, %v1147
        %1277 = vst.msk [vmem:[%s246 + $0xd4] sm:$0xf] %vm1223, %v1148
        %1278 = vst.msk [vmem:[%s246 + $0xd8] sm:$0xf] %vm1223, %v1149
        %1279 = vst.msk [vmem:[%s246 + $0xdc] sm:$0xf] %vm1223, %v1150
        %1280 = vst.msk [vmem:[%s246 + $0xe0] sm:$0xf] %vm1223, %v1151
        %1281 = vst.msk [vmem:[%s246 + $0xe4] sm:$0xf] %vm1223, %v1152
        %1282 = vst.msk [vmem:[%s246 + $0xe8] sm:$0xf] %vm1223, %v1153
        %1283 = vst.msk [vmem:[%s246 + $0xec] sm:$0xf] %vm1223, %v1154
        %1284 = vst.msk [vmem:[%s246 + $0xf0] sm:$0xf] %vm1223, %v1155
        %1285 = vst.msk [vmem:[%s246 + $0xf4] sm:$0xf] %vm1223, %v1156
        %1286 = vst.msk [vmem:[%s246 + $0xf8] sm:$0xf] %vm1223, %v1157
        %1287 = vst.msk [vmem:[%s246 + $0xfc] sm:$0xf] %vm1223, %v1158
        %vm1288 = vcmask 31744
        %v1289 = vsel %vm1288, %v713, 0.0
        %v1290 = vsel %vm1288, %v716, 0.0
        %v1291 = vadd.f32 %v1289, %v1290
        %v1292 = vsel %vm1288, %v721, 0.0
        %v1293 = vadd.f32 %v1291, %v1292
        %v1294 = vsel %vm1288, %v724, 0.0
        %v1295 = vadd.f32 %v1293, %v1294
        %v1296 = vsel %vm1288, %v729, 0.0
        %v1297 = vadd.f32 %v1295, %v1296
        %v1298 = vsel %vm1288, %v732, 0.0
        %v1299 = vadd.f32 %v1297, %v1298
        %v1300 = vsel %vm1288, %v737, 0.0
        %v1301 = vadd.f32 %v1299, %v1300
        %v1302 = vsel %vm1288, %v740, 0.0
        %v1303 = vadd.f32 %v1301, %v1302
        %v1304 = vsel %vm1288, %v745, 0.0
        %v1305 = vadd.f32 %v1303, %v1304
        %v1306 = vsel %vm1288, %v748, 0.0
        %v1307 = vadd.f32 %v1305, %v1306
        %v1308 = vsel %vm1288, %v753, 0.0
        %v1309 = vadd.f32 %v1307, %v1308
        %v1310 = vsel %vm1288, %v756, 0.0
        %v1311 = vadd.f32 %v1309, %v1310
        %v1312 = vsel %vm1288, %v761, 0.0
        %v1313 = vadd.f32 %v1311, %v1312
        %v1314 = vsel %vm1288, %v764, 0.0
        %v1315 = vadd.f32 %v1313, %v1314
        %v1316 = vsel %vm1288, %v769, 0.0
        %v1317 = vadd.f32 %v1315, %v1316
        %v1318 = vsel %vm1288, %v772, 0.0
        %v1319 = vadd.f32 %v1317, %v1318
        %v1320 = vsel %vm1288, %v777, 0.0
        %v1321 = vadd.f32 %v1319, %v1320
        %v1322 = vsel %vm1288, %v780, 0.0
        %v1323 = vadd.f32 %v1321, %v1322
        %v1324 = vsel %vm1288, %v785, 0.0
        %v1325 = vadd.f32 %v1323, %v1324
        %v1326 = vsel %vm1288, %v788, 0.0
        %v1327 = vadd.f32 %v1325, %v1326
        %v1328 = vsel %vm1288, %v793, 0.0
        %v1329 = vadd.f32 %v1327, %v1328
        %v1330 = vsel %vm1288, %v796, 0.0
        %v1331 = vadd.f32 %v1329, %v1330
        %v1332 = vsel %vm1288, %v801, 0.0
        %v1333 = vadd.f32 %v1331, %v1332
        %v1334 = vsel %vm1288, %v804, 0.0
        %v1335 = vadd.f32 %v1333, %v1334
        %v1336 = vsel %vm1288, %v809, 0.0
        %v1337 = vadd.f32 %v1335, %v1336
        %v1338 = vsel %vm1288, %v812, 0.0
        %v1339 = vadd.f32 %v1337, %v1338
        %v1340 = vsel %vm1288, %v817, 0.0
        %v1341 = vadd.f32 %v1339, %v1340
        %v1342 = vsel %vm1288, %v820, 0.0
        %v1343 = vadd.f32 %v1341, %v1342
        %v1344 = vsel %vm1288, %v825, 0.0
        %v1345 = vadd.f32 %v1343, %v1344
        %v1346 = vsel %vm1288, %v828, 0.0
        %v1347 = vadd.f32 %v1345, %v1346
        %v1348 = vsel %vm1288, %v833, 0.0
        %v1349 = vadd.f32 %v1347, %v1348
        %v1350 = vsel %vm1288, %v836, 0.0
        %v1351 = vadd.f32 %v1349, %v1350
        %v1352 = vsel %vm1288, %v841, 0.0
        %v1353 = vadd.f32 %v1351, %v1352
        %v1354 = vsel %vm1288, %v844, 0.0
        %v1355 = vadd.f32 %v1353, %v1354
        %v1356 = vsel %vm1288, %v849, 0.0
        %v1357 = vadd.f32 %v1355, %v1356
        %v1358 = vsel %vm1288, %v852, 0.0
        %v1359 = vadd.f32 %v1357, %v1358
        %v1360 = vsel %vm1288, %v857, 0.0
        %v1361 = vadd.f32 %v1359, %v1360
        %v1362 = vsel %vm1288, %v860, 0.0
        %v1363 = vadd.f32 %v1361, %v1362
        %v1364 = vsel %vm1288, %v865, 0.0
        %v1365 = vadd.f32 %v1363, %v1364
        %v1366 = vsel %vm1288, %v868, 0.0
        %v1367 = vadd.f32 %v1365, %v1366
        %v1368 = vsel %vm1288, %v873, 0.0
        %v1369 = vadd.f32 %v1367, %v1368
        %v1370 = vsel %vm1288, %v876, 0.0
        %v1371 = vadd.f32 %v1369, %v1370
        %v1372 = vsel %vm1288, %v881, 0.0
        %v1373 = vadd.f32 %v1371, %v1372
        %v1374 = vsel %vm1288, %v884, 0.0
        %v1375 = vadd.f32 %v1373, %v1374
        %v1376 = vsel %vm1288, %v889, 0.0
        %v1377 = vadd.f32 %v1375, %v1376
        %v1378 = vsel %vm1288, %v892, 0.0
        %v1379 = vadd.f32 %v1377, %v1378
        %v1380 = vsel %vm1288, %v897, 0.0
        %v1381 = vadd.f32 %v1379, %v1380
        %v1382 = vsel %vm1288, %v900, 0.0
        %v1383 = vadd.f32 %v1381, %v1382
        %v1384 = vsel %vm1288, %v905, 0.0
        %v1385 = vadd.f32 %v1383, %v1384
        %v1386 = vsel %vm1288, %v908, 0.0
        %v1387 = vadd.f32 %v1385, %v1386
        %v1388 = vsel %vm1288, %v913, 0.0
        %v1389 = vadd.f32 %v1387, %v1388
        %v1390 = vsel %vm1288, %v916, 0.0
        %v1391 = vadd.f32 %v1389, %v1390
        %v1392 = vsel %vm1288, %v921, 0.0
        %v1393 = vadd.f32 %v1391, %v1392
        %v1394 = vsel %vm1288, %v924, 0.0
        %v1395 = vadd.f32 %v1393, %v1394
        %v1396 = vsel %vm1288, %v929, 0.0
        %v1397 = vadd.f32 %v1395, %v1396
        %v1398 = vsel %vm1288, %v932, 0.0
        %v1399 = vadd.f32 %v1397, %v1398
        %v1400 = vsel %vm1288, %v937, 0.0
        %v1401 = vadd.f32 %v1399, %v1400
        %v1402 = vsel %vm1288, %v940, 0.0
        %v1403 = vadd.f32 %v1401, %v1402
        %v1404 = vsel %vm1288, %v945, 0.0
        %v1405 = vadd.f32 %v1403, %v1404
        %v1406 = vsel %vm1288, %v948, 0.0
        %v1407 = vadd.f32 %v1405, %v1406
        %v1408 = vsel %vm1288, %v953, 0.0
        %v1409 = vadd.f32 %v1407, %v1408
        %v1410 = vsel %vm1288, %v956, 0.0
        %v1411 = vadd.f32 %v1409, %v1410
        %v1412 = vsel %vm1288, %v961, 0.0
        %v1413 = vadd.f32 %v1411, %v1412
        %v1414 = vsel %vm1288, %v964, 0.0
        %v1415 = vadd.f32 %v1413, %v1414
        %v1416 = vrot.slane %v1415, 4
        %v1417 = vadd.f32 %v1415, %v1416
        %v1418 = vrot.slane %v1417, 2
        %v1419 = vadd.f32 %v1417, %v1418
        %v1420 = vrot.slane %v1419, 1
        %v1421 = vadd.f32 %v1419, %v1420
        %vm1422 = vcmask 24576
        %1423 = vst.msk [vmem:[%s266] sm:$0x1] %vm1422, %v1421
        %v1424 = vmul.f32 %v713, %v713
        %v1425 = vmul.f32 %v716, %v716
        %v1426 = vmul.f32 %v721, %v721
        %v1427 = vmul.f32 %v724, %v724
        %v1428 = vmul.f32 %v729, %v729
        %v1429 = vmul.f32 %v732, %v732
        %v1430 = vmul.f32 %v737, %v737
        %v1431 = vmul.f32 %v740, %v740
        %v1432 = vmul.f32 %v745, %v745
        %v1433 = vmul.f32 %v748, %v748
        %v1434 = vmul.f32 %v753, %v753
        %v1435 = vmul.f32 %v756, %v756
        %v1436 = vmul.f32 %v761, %v761
        %v1437 = vmul.f32 %v764, %v764
        %v1438 = vmul.f32 %v769, %v769
        %v1439 = vmul.f32 %v772, %v772
        %v1440 = vmul.f32 %v777, %v777
        %v1441 = vmul.f32 %v780, %v780
        %v1442 = vmul.f32 %v785, %v785
        %v1443 = vmul.f32 %v788, %v788
        %v1444 = vmul.f32 %v793, %v793
        %v1445 = vmul.f32 %v796, %v796
        %v1446 = vmul.f32 %v801, %v801
        %v1447 = vmul.f32 %v804, %v804
        %v1448 = vmul.f32 %v809, %v809
        %v1449 = vmul.f32 %v812, %v812
        %v1450 = vmul.f32 %v817, %v817
        %v1451 = vmul.f32 %v820, %v820
        %v1452 = vmul.f32 %v825, %v825
        %v1453 = vmul.f32 %v828, %v828
        %v1454 = vmul.f32 %v833, %v833
        %v1455 = vmul.f32 %v836, %v836
        %v1456 = vmul.f32 %v841, %v841
        %v1457 = vmul.f32 %v844, %v844
        %v1458 = vmul.f32 %v849, %v849
        %v1459 = vmul.f32 %v852, %v852
        %v1460 = vmul.f32 %v857, %v857
        %v1461 = vmul.f32 %v860, %v860
        %v1462 = vmul.f32 %v865, %v865
        %v1463 = vmul.f32 %v868, %v868
        %v1464 = vmul.f32 %v873, %v873
        %v1465 = vmul.f32 %v876, %v876
        %v1466 = vmul.f32 %v881, %v881
        %v1467 = vmul.f32 %v884, %v884
        %v1468 = vmul.f32 %v889, %v889
        %v1469 = vmul.f32 %v892, %v892
        %v1470 = vmul.f32 %v897, %v897
        %v1471 = vmul.f32 %v900, %v900
        %v1472 = vmul.f32 %v905, %v905
        %v1473 = vmul.f32 %v908, %v908
        %v1474 = vmul.f32 %v913, %v913
        %v1475 = vmul.f32 %v916, %v916
        %v1476 = vmul.f32 %v921, %v921
        %v1477 = vmul.f32 %v924, %v924
        %v1478 = vmul.f32 %v929, %v929
        %v1479 = vmul.f32 %v932, %v932
        %v1480 = vmul.f32 %v937, %v937
        %v1481 = vmul.f32 %v940, %v940
        %v1482 = vmul.f32 %v945, %v945
        %v1483 = vmul.f32 %v948, %v948
        %v1484 = vmul.f32 %v953, %v953
        %v1485 = vmul.f32 %v956, %v956
        %v1486 = vmul.f32 %v961, %v961
        %v1487 = vmul.f32 %v964, %v964
        %v1488 = vsel %vm1288, %v1424, 0.0
        %v1489 = vsel %vm1288, %v1425, 0.0
        %v1490 = vadd.f32 %v1488, %v1489
        %v1491 = vsel %vm1288, %v1426, 0.0
        %v1492 = vadd.f32 %v1490, %v1491
        %v1493 = vsel %vm1288, %v1427, 0.0
        %v1494 = vadd.f32 %v1492, %v1493
        %v1495 = vsel %vm1288, %v1428, 0.0
        %v1496 = vadd.f32 %v1494, %v1495
        %v1497 = vsel %vm1288, %v1429, 0.0
        %v1498 = vadd.f32 %v1496, %v1497
        %v1499 = vsel %vm1288, %v1430, 0.0
        %v1500 = vadd.f32 %v1498, %v1499
        %v1501 = vsel %vm1288, %v1431, 0.0
        %v1502 = vadd.f32 %v1500, %v1501
        %v1503 = vsel %vm1288, %v1432, 0.0
        %v1504 = vadd.f32 %v1502, %v1503
        %v1505 = vsel %vm1288, %v1433, 0.0
        %v1506 = vadd.f32 %v1504, %v1505
        %v1507 = vsel %vm1288, %v1434, 0.0
        %v1508 = vadd.f32 %v1506, %v1507
        %v1509 = vsel %vm1288, %v1435, 0.0
        %v1510 = vadd.f32 %v1508, %v1509
        %v1511 = vsel %vm1288, %v1436, 0.0
        %v1512 = vadd.f32 %v1510, %v1511
        %v1513 = vsel %vm1288, %v1437, 0.0
        %v1514 = vadd.f32 %v1512, %v1513
        %v1515 = vsel %vm1288, %v1438, 0.0
        %v1516 = vadd.f32 %v1514, %v1515
        %v1517 = vsel %vm1288, %v1439, 0.0
        %v1518 = vadd.f32 %v1516, %v1517
        %v1519 = vsel %vm1288, %v1440, 0.0
        %v1520 = vadd.f32 %v1518, %v1519
        %v1521 = vsel %vm1288, %v1441, 0.0
        %v1522 = vadd.f32 %v1520, %v1521
        %v1523 = vsel %vm1288, %v1442, 0.0
        %v1524 = vadd.f32 %v1522, %v1523
        %v1525 = vsel %vm1288, %v1443, 0.0
        %v1526 = vadd.f32 %v1524, %v1525
        %v1527 = vsel %vm1288, %v1444, 0.0
        %v1528 = vadd.f32 %v1526, %v1527
        %v1529 = vsel %vm1288, %v1445, 0.0
        %v1530 = vadd.f32 %v1528, %v1529
        %v1531 = vsel %vm1288, %v1446, 0.0
        %v1532 = vadd.f32 %v1530, %v1531
        %v1533 = vsel %vm1288, %v1447, 0.0
        %v1534 = vadd.f32 %v1532, %v1533
        %v1535 = vsel %vm1288, %v1448, 0.0
        %v1536 = vadd.f32 %v1534, %v1535
        %v1537 = vsel %vm1288, %v1449, 0.0
        %v1538 = vadd.f32 %v1536, %v1537
        %v1539 = vsel %vm1288, %v1450, 0.0
        %v1540 = vadd.f32 %v1538, %v1539
        %v1541 = vsel %vm1288, %v1451, 0.0
        %v1542 = vadd.f32 %v1540, %v1541
        %v1543 = vsel %vm1288, %v1452, 0.0
        %v1544 = vadd.f32 %v1542, %v1543
        %v1545 = vsel %vm1288, %v1453, 0.0
        %v1546 = vadd.f32 %v1544, %v1545
        %v1547 = vsel %vm1288, %v1454, 0.0
        %v1548 = vadd.f32 %v1546, %v1547
        %v1549 = vsel %vm1288, %v1455, 0.0
        %v1550 = vadd.f32 %v1548, %v1549
        %v1551 = vsel %vm1288, %v1456, 0.0
        %v1552 = vadd.f32 %v1550, %v1551
        %v1553 = vsel %vm1288, %v1457, 0.0
        %v1554 = vadd.f32 %v1552, %v1553
        %v1555 = vsel %vm1288, %v1458, 0.0
        %v1556 = vadd.f32 %v1554, %v1555
        %v1557 = vsel %vm1288, %v1459, 0.0
        %v1558 = vadd.f32 %v1556, %v1557
        %v1559 = vsel %vm1288, %v1460, 0.0
        %v1560 = vadd.f32 %v1558, %v1559
        %v1561 = vsel %vm1288, %v1461, 0.0
        %v1562 = vadd.f32 %v1560, %v1561
        %v1563 = vsel %vm1288, %v1462, 0.0
        %v1564 = vadd.f32 %v1562, %v1563
        %v1565 = vsel %vm1288, %v1463, 0.0
        %v1566 = vadd.f32 %v1564, %v1565
        %v1567 = vsel %vm1288, %v1464, 0.0
        %v1568 = vadd.f32 %v1566, %v1567
        %v1569 = vsel %vm1288, %v1465, 0.0
        %v1570 = vadd.f32 %v1568, %v1569
        %v1571 = vsel %vm1288, %v1466, 0.0
        %v1572 = vadd.f32 %v1570, %v1571
        %v1573 = vsel %vm1288, %v1467, 0.0
        %v1574 = vadd.f32 %v1572, %v1573
        %v1575 = vsel %vm1288, %v1468, 0.0
        %v1576 = vadd.f32 %v1574, %v1575
        %v1577 = vsel %vm1288, %v1469, 0.0
        %v1578 = vadd.f32 %v1576, %v1577
        %v1579 = vsel %vm1288, %v1470, 0.0
        %v1580 = vadd.f32 %v1578, %v1579
        %v1581 = vsel %vm1288, %v1471, 0.0
        %v1582 = vadd.f32 %v1580, %v1581
        %v1583 = vsel %vm1288, %v1472, 0.0
        %v1584 = vadd.f32 %v1582, %v1583
        %v1585 = vsel %vm1288, %v1473, 0.0
        %v1586 = vadd.f32 %v1584, %v1585
        %v1587 = vsel %vm1288, %v1474, 0.0
        %v1588 = vadd.f32 %v1586, %v1587
        %v1589 = vsel %vm1288, %v1475, 0.0
        %v1590 = vadd.f32 %v1588, %v1589
        %v1591 = vsel %vm1288, %v1476, 0.0
        %v1592 = vadd.f32 %v1590, %v1591
        %v1593 = vsel %vm1288, %v1477, 0.0
        %v1594 = vadd.f32 %v1592, %v1593
        %v1595 = vsel %vm1288, %v1478, 0.0
        %v1596 = vadd.f32 %v1594, %v1595
        %v1597 = vsel %vm1288, %v1479, 0.0
        %v1598 = vadd.f32 %v1596, %v1597
        %v1599 = vsel %vm1288, %v1480, 0.0
        %v1600 = vadd.f32 %v1598, %v1599
        %v1601 = vsel %vm1288, %v1481, 0.0
        %v1602 = vadd.f32 %v1600, %v1601
        %v1603 = vsel %vm1288, %v1482, 0.0
        %v1604 = vadd.f32 %v1602, %v1603
        %v1605 = vsel %vm1288, %v1483, 0.0
        %v1606 = vadd.f32 %v1604, %v1605
        %v1607 = vsel %vm1288, %v1484, 0.0
        %v1608 = vadd.f32 %v1606, %v1607
        %v1609 = vsel %vm1288, %v1485, 0.0
        %v1610 = vadd.f32 %v1608, %v1609
        %v1611 = vsel %vm1288, %v1486, 0.0
        %v1612 = vadd.f32 %v1610, %v1611
        %v1613 = vsel %vm1288, %v1487, 0.0
        %v1614 = vadd.f32 %v1612, %v1613
        %v1615 = vrot.slane %v1614, 4
        %v1616 = vadd.f32 %v1614, %v1615
        %v1617 = vrot.slane %v1616, 2
        %v1618 = vadd.f32 %v1616, %v1617
        %v1619 = vrot.slane %v1618, 1
        %v1620 = vadd.f32 %v1618, %v1619
        %1621 = vst.msk [vmem:[%s269] sm:$0x1] %vm1422, %v1620
        %s1622 = sand.u32 %s118, 1
        %s1623 = scalar_lea.sflag [#allocation3], %s1622
        %s1624 = sand.u32 %s118, 1
        %s1625 = smul.addr %s1624, 256
        %s1626 = scalar_lea.vmem [#allocation2], %s1625
        %p1627 = scmp.lt.s32.totalorder %s21, 1
        %s1628 = scalar_select %p1627, %s21, 1
        %s1629 = scalar_lea.vmem %s5, %s1628
        %p1630 = scmp.lt.s32.totalorder %s21, 1
        %s1631 = scalar_select %p1630, %s21, 1
        %s1632 = scalar_lea.vmem %s6, %s1631
        // Predicated region
        $region37: #{pre_act_bottleneck_forward.5} parent=35 // pred_check
          %p1633 = pneg %p128
        $region38: #{pre_act_bottleneck_forward.5} parent=35 // pred_check_branch
          %1635 = sbr.rel (%p1633) target = $region40
        $region39: #{pre_act_bottleneck_forward.5} parent=35 // pred_region
          %s1636 = smul.u32 64, %s21
          %s1638 = ssub.s32 4096, 4096
          %1639 = vsyncadd %s1623, %s1638
          %s1640 = smul.addr %s1636, 64
          %s1641 = scalar_lea.hbm %s4, %s1640
          %s1642 = sshll.u32 %s1626, 4
          %s1643 = int_to_ptr.vmem [resolvable:$true] %s1642
          %1648 = dma.vmem_to_hbm [thread:$0]  %s1643, 4096, %s1641, %s1623, 64, 64, 4
        $region40: #{pre_act_bottleneck_forward.5} parent=35 // pred_fallthru
          _
        // Predicated region
        $region41: #{pre_act_bottleneck_forward.5} parent=35 // pred_check
          %p1649 = pneg %p154
        $region42: #{pre_act_bottleneck_forward.5} parent=35 // pred_check_branch
          %1651 = sbr.rel (%p1649) target = $region44
        $region43: #{pre_act_bottleneck_forward.5} parent=35 // pred_region
          _
        $region44: #{pre_act_bottleneck_forward.5} parent=35 // pred_fallthru
          _
        // Predicated region
        $region45: #{pre_act_bottleneck_forward.5} parent=35 // pred_check
          %p1652 = pneg %p180
        $region46: #{pre_act_bottleneck_forward.5} parent=35 // pred_check_branch
          %1654 = sbr.rel (%p1652) target = $region48
        $region47: #{pre_act_bottleneck_forward.5} parent=35 // pred_region
          _
        $region48: #{pre_act_bottleneck_forward.5} parent=35 // pred_fallthru
          _
      $region36: #{pre_act_bottleneck_forward.5} parent=5 // pred_fallthru
        _
      %p1655 = scmp.le.s32.totalorder 2, %s16
      // Predicated region
      $region49: #{pre_act_bottleneck_forward.5} parent=5 // pred_check
        %p1656 = pneg %p1655
      $region50: #{pre_act_bottleneck_forward.5} parent=5 // pred_check_branch
        %1658 = sbr.rel (%p1656) target = $region52
      $region51: #{pre_act_bottleneck_forward.5} parent=5 // pred_region
        %s1659 = ssub.s32 %s16, 2
        // Predicated region
        $region53: #{pre_act_bottleneck_forward.5} parent=51 // pred_check
          %p1660 = pneg %p134
        $region54: #{pre_act_bottleneck_forward.5} parent=51 // pred_check_branch
          %1662 = sbr.rel (%p1660) target = $region56
        $region55: #{pre_act_bottleneck_forward.5} parent=51 // pred_region
          %s1663 = sand.u32 %s119, 1
          %s1664 = scalar_lea.sflag [#allocation3], %s1663
          %s1665 = sand.u32 %s119, 1
          %s1666 = smul.addr %s1665, 256
          %s1667 = scalar_lea.vmem [#allocation2], %s1666
          %1668 = dma.done %s1664, 4096
        $region56: #{pre_act_bottleneck_forward.5} parent=51 // pred_fallthru
          _
        // Predicated region
        $region57: #{pre_act_bottleneck_forward.5} parent=51 // pred_check
          %p1669 = pneg %p160
        $region58: #{pre_act_bottleneck_forward.5} parent=51 // pred_check_branch
          %1671 = sbr.rel (%p1669) target = $region60
        $region59: #{pre_act_bottleneck_forward.5} parent=51 // pred_region
          %p1672 = scmp.lt.s32.totalorder %s22, 1
          %s1673 = scalar_select %p1672, %s22, 1
          %s1674 = scalar_lea.vmem %s5, %s1673
        $region60: #{pre_act_bottleneck_forward.5} parent=51 // pred_fallthru
          _
        // Predicated region
        $region61: #{pre_act_bottleneck_forward.5} parent=51 // pred_check
          %p1675 = pneg %p186
        $region62: #{pre_act_bottleneck_forward.5} parent=51 // pred_check_branch
          %1677 = sbr.rel (%p1675) target = $region64
        $region63: #{pre_act_bottleneck_forward.5} parent=51 // pred_region
          %p1678 = scmp.lt.s32.totalorder %s22, 1
          %s1679 = scalar_select %p1678, %s22, 1
          %s1680 = scalar_lea.vmem %s6, %s1679
        $region64: #{pre_act_bottleneck_forward.5} parent=51 // pred_fallthru
          _
      $region52: #{pre_act_bottleneck_forward.5} parent=5 // pred_fallthru
        _
    $region6: #{pre_act_bottleneck_forward.5} parent=1 // loop_footer
      %s20 = sadd.s32 1, %s16
    $region7: #{pre_act_bottleneck_forward.5} parent=1 // loop_footer_branch
      %15 = sbr.rel target = $region3
    $region8: #{pre_act_bottleneck_forward.5} parent=1 // loop_exit
      _
    %1681 = vsyncpa [#allocation3], 1
    %s1682 = scalar_lea.sflag [#allocation3], 1
    %1683 = vsyncpa %s1682, 1

// kernel: pre_act_bottleneck_forward.6
$region0: #{pre_act_bottleneck_forward.6}
  #allocation0 [shape = 'u32[]', space=smem, size = 0x4, offset = 0x4, fixed_abs, tag = 'smem constant byte address 0x4 - core index']
  #allocation1 [shape = 'u32[144,128]{1,0:T(1,128)}', space=vmem, size = 0x12000, scoped, tag = 'internal scratch']
  %s0 = inlined_call_operand.hbm [shape: bf16[2,8,8,8,4], index: 0, kind: input, shape index: {}, may-alias: {0,1,2}]
  %s1 = inlined_call_operand.hbm [shape: bf16[2,8,8,8,4], index: 1, kind: input, shape index: {}, may-alias: {0,1,2}]
  %s2 = inlined_call_operand.hbm [shape: bf16[2,8,8,8,4], index: 2, kind: input, shape index: {}, may-alias: {0,1,2}]
  %s3 = inlined_call_operand.hbm [shape: f32[1,4], index: 3, kind: input, shape index: {}]
  %s4 = inlined_call_operand.hbm [shape: f32[1,4], index: 4, kind: input, shape index: {}]
  %s5 = inlined_call_operand.hbm [shape: bf16[3,3,12,4], index: 5, kind: input, shape index: {}]
  %s6 = inlined_call_operand.hbm [shape: bf16[2,8,8,8,4], index: 6, kind: output, shape index: {0}]
  %s7 = inlined_call_operand.hbm [shape: f32[2,2,1,4], index: 7, kind: output, shape index: {1}]
  %s8 = inlined_call_operand.hbm [shape: f32[2,2,1,4], index: 8, kind: output, shape index: {2}]
  %9 = xla_tuple %s6, %s7, %s8
  %s10 = sld [smem:[#allocation0]]
  $region97: #{pre_act_bottleneck_forward.6} parent=0
    _
  %s12 = ssub.s32 1, %s10
  %s13 = scalar_select 0, %s12, %s10
  $region1: #{pre_act_bottleneck_forward.6} parent=0
    #allocation2 [shape = 'u8[32768]{0}', space=vmem, size = 0x8000, scoped, tag = 'input window, operand 0']
    #allocation3 [shape = 's32[2]{0}', space=sflag, size = 0x8, scoped, tag = 'scoped memory for pre_act_bottleneck_forward.6']
    #allocation4 [shape = 's32[2]{0}', space=sflag, size = 0x8, scoped, tag = 'scoped memory for pre_act_bottleneck_forward.6']
    #allocation5 [shape = 'u8[131072]{0}', space=vmem, size = 0x20000, scoped, tag = 'input window, operand 1']
    #allocation6 [shape = 's32[2]{0}', space=sflag, size = 0x8, scoped, tag = 'scoped memory for pre_act_bottleneck_forward.6']
    #allocation7 [shape = 'u8[32768]{0}', space=vmem, size = 0x8000, scoped, tag = 'input window, operand 2']
    #allocation8 [shape = 'u8[512]{0}', space=vmem, size = 0x400, scoped, tag = 'input window, operand 3, single buffered']
    #allocation9 [shape = 's32[1]{0}', space=sflag, size = 0x4, scoped, tag = 'scoped memory for pre_act_bottleneck_forward.6']
    #allocation10 [shape = 'u8[512]{0}', space=vmem, size = 0x400, scoped, tag = 'input window, operand 4, single buffered']
    #allocation11 [shape = 'u8[36864]{0}', space=vmem, size = 0x9000, scoped, tag = 'input window, operand 5, single buffered']
    #allocation12 [shape = 's32[1]{0}', space=sflag, size = 0x4, scoped, tag = 'scoped memory for pre_act_bottleneck_forward.6']
    #allocation13 [shape = 'u8[131072]{0}', space=vmem, size = 0x20000, scoped, tag = 'output window, operand 0']
    #allocation14 [shape = 'u8[1024]{0}', space=vmem, size = 0x400, scoped, tag = 'output window, operand 1']
    #allocation15 [shape = 's32[2]{0}', space=sflag, size = 0x8, scoped, tag = 'scoped memory for pre_act_bottleneck_forward.6']
    #allocation16 [shape = 'u8[1024]{0}', space=vmem, size = 0x400, scoped, tag = 'output window, operand 2']
    %14 = vsyncpa [#allocation3], 0
    %s15 = scalar_lea.sflag [#allocation3], 1
    %16 = vsyncpa %s15, 0
    %17 = vsyncpa [#allocation6], 0
    %s18 = scalar_lea.sflag [#allocation6], 1
    %19 = vsyncpa %s18, 0
    %20 = vsyncpa [#allocation9], 0
    %21 = vsyncpa [#allocation12], 0
    %22 = vsyncpa [#allocation4], 0
    %s23 = scalar_lea.sflag [#allocation4], 1
    %24 = vsyncpa %s23, 0
    %25 = vsyncpa [#allocation15], 0
    %s26 = scalar_lea.sflag [#allocation15], 1
    %27 = vsyncpa %s26, 0
    loop: start=0, step=1, limit=6
    $region2: #{pre_act_bottleneck_forward.6} parent=1 // loop_pre_header
      _
    $region3: #{pre_act_bottleneck_forward.6} parent=1 // loop_header
      %s29 = sphi 0, %s33
      %p30 = scmp.ge.s32.totalorder %s29, 6
      %s36 = sphi 0, %s48
      %s37 = sphi 0, %s44
      %s38 = sphi 0, %s36
      %s39 = sphi 0, %s37
      %s40 = sphi 0, %s38
      %s41 = sphi 0, %s39
      %s61 = sphi 0, %s63
      %s64 = sphi 0, %s61
      %s65 = sphi 0, %s64
      %s81 = sphi 0, %s65
      %s89 = sphi 0, %s91
      %s92 = sphi 0, %s89
      %s93 = sphi 0, %s92
      %s109 = sphi 0, %s93
      %s125 = sphi 0, %s127
      %s128 = sphi 0, %s125
      %s129 = sphi 0, %s128
      %s145 = sphi 0, %s129
      %s149 = sphi 0, %s149
      %s151 = sphi 0, %s149
      %s152 = sphi 0, %s151
      %s166 = sphi 0, %s152
      %s170 = sphi 0, %s170
      %s172 = sphi 0, %s170
      %s173 = sphi 0, %s172
      %s187 = sphi 0, %s173
      %s191 = sphi 0, %s191
      %s193 = sphi 0, %s191
      %s194 = sphi 0, %s193
      %s208 = sphi 0, %s194
      %s216 = sphi 0, %s218
      %s219 = sphi 0, %s216
      %s220 = sphi 0, %s219
      %s236 = sphi 0, %s220
      %s244 = sphi 0, %s246
      %s247 = sphi 0, %s244
      %s248 = sphi 0, %s247
      %s264 = sphi 0, %s248
      %s272 = sphi 0, %s274
      %s275 = sphi 0, %s272
      %s276 = sphi 0, %s275
      %s292 = sphi 0, %s276
    $region4: #{pre_act_bottleneck_forward.6} parent=1 // loop_header_branch
      %32 = sbr.rel (%p30) target = $region8
    $region5: #{pre_act_bottleneck_forward.6} parent=1 // loop_body
      %s34 = ssub.s32 %s29, 1
      %s35 = ssub.s32 %s29, 2
      %s42 = sadd.s32 1, %s37
      %p43 = scmp.ge.s32.totalorder %s42, 2
      %s44 = scalar_select %p43, 0, %s42
      %s45 = sadd.s32 1, %s36
      %s46 = scalar_select %p43, %s45, %s36
      %p47 = scmp.ge.s32.totalorder %s46, 2
      %s48 = scalar_select %p47, 0, %s46
      %s49 = smul.u32 %s37, 4
      %s50 = ssub.s32 %s49, 1
      %p51 = scmp.gt.s32.totalorder %s50, 0
      %s52 = scalar_select %p51, %s50, 0
      %s53 = smul.u32 %s44, 4
      %s54 = ssub.s32 %s53, 1
      %p55 = scmp.gt.s32.totalorder %s54, 0
      %s56 = scalar_select %p55, %s54, 0
      %s57 = ssub.s32 %s36, %s48
      %s58 = ssub.s32 %s52, %s56
      %s59 = sor.u32 %s57, %s58
      %p60 = scmp.eq.s32.totalorder %s59, 0
      %s62 = sadd.s32 %s61, 1
      %s63 = scalar_select %p60, %s61, %s62
      %p66 = pneg %p60
      %p67 = scmp.eq.s32.totalorder %s29, 3
      %p68 = por %p66, %p67
      %p69 = scmp.ne.s32.totalorder %s61, %s64
      %p70 = scmp.eq.s32.totalorder %s29, 0
      %p71 = por %p69, %p70
      %p72 = scmp.ne.s32.totalorder %s61, %s64
      %p73 = scmp.eq.s32.totalorder %s34, 3
      %p74 = por %p72, %p73
      %p75 = scmp.ne.s32.totalorder %s64, %s65
      %p76 = scmp.eq.s32.totalorder %s34, 0
      %p77 = por %p75, %p76
      %p78 = scmp.ne.s32.totalorder %s64, %s65
      %p79 = scmp.eq.s32.totalorder %s35, 3
      %p80 = por %p78, %p79
      %p82 = scmp.ne.s32.totalorder %s65, %s81
      %p83 = scmp.eq.s32.totalorder %s35, 0
      %p84 = por %p82, %p83
      %s85 = ssub.s32 %s36, %s48
      %s86 = ssub.s32 %s37, %s44
      %s87 = sor.u32 %s85, %s86
      %p88 = scmp.eq.s32.totalorder %s87, 0
      %s90 = sadd.s32 %s89, 1
      %s91 = scalar_select %p88, %s89, %s90
      %p94 = pneg %p88
      %p95 = scmp.eq.s32.totalorder %s29, 3
      %p96 = por %p94, %p95
      %p97 = scmp.ne.s32.totalorder %s89, %s92
      %p98 = scmp.eq.s32.totalorder %s29, 0
      %p99 = por %p97, %p98
      %p100 = scmp.ne.s32.totalorder %s89, %s92
      %p101 = scmp.eq.s32.totalorder %s34, 3
      %p102 = por %p100, %p101
      %p103 = scmp.ne.s32.totalorder %s92, %s93
      %p104 = scmp.eq.s32.totalorder %s34, 0
      %p105 = por %p103, %p104
      %p106 = scmp.ne.s32.totalorder %s92, %s93
      %p107 = scmp.eq.s32.totalorder %s35, 3
      %p108 = por %p106, %p107
      %p110 = scmp.ne.s32.totalorder %s93, %s109
      %p111 = scmp.eq.s32.totalorder %s35, 0
      %p112 = por %p110, %p111
      %s113 = smul.u32 %s37, 4
      %s114 = sadd.s32 %s113, 4
      %p115 = scmp.lt.s32.totalorder %s114, 7
      %s116 = scalar_select %p115, %s114, 7
      %s117 = smul.u32 %s44, 4
      %s118 = sadd.s32 %s117, 4
      %p119 = scmp.lt.s32.totalorder %s118, 7
      %s120 = scalar_select %p119, %s118, 7
      %s121 = ssub.s32 %s36, %s48
      %s122 = ssub.s32 %s116, %s120
      %s123 = sor.u32 %s121, %s122
      %p124 = scmp.eq.s32.totalorder %s123, 0
      %s126 = sadd.s32 %s125, 1
      %s127 = scalar_select %p124, %s125, %s126
      %p130 = pneg %p124
      %p131 = scmp.eq.s32.totalorder %s29, 3
      %p132 = por %p130, %p131
      %p133 = scmp.ne.s32.totalorder %s125, %s128
      %p134 = scmp.eq.s32.totalorder %s29, 0
      %p135 = por %p133, %p134
      %p136 = scmp.ne.s32.totalorder %s125, %s128
      %p137 = scmp.eq.s32.totalorder %s34, 3
      %p138 = por %p136, %p137
      %p139 = scmp.ne.s32.totalorder %s128, %s129
      %p140 = scmp.eq.s32.totalorder %s34, 0
      %p141 = por %p139, %p140
      %p142 = scmp.ne.s32.totalorder %s128, %s129
      %p143 = scmp.eq.s32.totalorder %s35, 3
      %p144 = por %p142, %p143
      %p146 = scmp.ne.s32.totalorder %s129, %s145
      %p147 = scmp.eq.s32.totalorder %s35, 0
      %p148 = por %p146, %p147
      %s150 = sadd.s32 %s149, 1
      %p153 = scmp.eq.s32.totalorder %s29, 3
      %p154 = scmp.ne.s32.totalorder %s149, %s151
      %p155 = scmp.eq.s32.totalorder %s29, 0
      %p156 = por %p154, %p155
      %p157 = scmp.ne.s32.totalorder %s149, %s151
      %p158 = scmp.eq.s32.totalorder %s34, 3
      %p159 = por %p157, %p158
      %p160 = scmp.ne.s32.totalorder %s151, %s152
      %p161 = scmp.eq.s32.totalorder %s34, 0
      %p162 = por %p160, %p161
      %p163 = scmp.ne.s32.totalorder %s151, %s152
      %p164 = scmp.eq.s32.totalorder %s35, 3
      %p165 = por %p163, %p164
      %p167 = scmp.ne.s32.totalorder %s152, %s166
      %p168 = scmp.eq.s32.totalorder %s35, 0
      %p169 = por %p167, %p168
      %s171 = sadd.s32 %s170, 1
      %p174 = scmp.eq.s32.totalorder %s29, 3
      %p175 = scmp.ne.s32.totalorder %s170, %s172
      %p176 = scmp.eq.s32.totalorder %s29, 0
      %p177 = por %p175, %p176
      %p178 = scmp.ne.s32.totalorder %s170, %s172
      %p179 = scmp.eq.s32.totalorder %s34, 3
      %p180 = por %p178, %p179
      %p181 = scmp.ne.s32.totalorder %s172, %s173
      %p182 = scmp.eq.s32.totalorder %s34, 0
      %p183 = por %p181, %p182
      %p184 = scmp.ne.s32.totalorder %s172, %s173
      %p185 = scmp.eq.s32.totalorder %s35, 3
      %p186 = por %p184, %p185
      %p188 = scmp.ne.s32.totalorder %s173, %s187
      %p189 = scmp.eq.s32.totalorder %s35, 0
      %p190 = por %p188, %p189
      %s192 = sadd.s32 %s191, 1
      %p195 = scmp.eq.s32.totalorder %s29, 3
      %p196 = scmp.ne.s32.totalorder %s191, %s193
      %p197 = scmp.eq.s32.totalorder %s29, 0
      %p198 = por %p196, %p197
      %p199 = scmp.ne.s32.totalorder %s191, %s193
      %p200 = scmp.eq.s32.totalorder %s34, 3
      %p201 = por %p199, %p200
      %p202 = scmp.ne.s32.totalorder %s193, %s194
      %p203 = scmp.eq.s32.totalorder %s34, 0
      %p204 = por %p202, %p203
      %p205 = scmp.ne.s32.totalorder %s193, %s194
      %p206 = scmp.eq.s32.totalorder %s35, 3
      %p207 = por %p205, %p206
      %p209 = scmp.ne.s32.totalorder %s194, %s208
      %p210 = scmp.eq.s32.totalorder %s35, 0
      %p211 = por %p209, %p210
      %s212 = ssub.s32 %s36, %s48
      %s213 = ssub.s32 %s37, %s44
      %s214 = sor.u32 %s212, %s213
      %p215 = scmp.eq.s32.totalorder %s214, 0
      %s217 = sadd.s32 %s216, 1
      %s218 = scalar_select %p215, %s216, %s217
      %p221 = pneg %p215
      %p222 = scmp.eq.s32.totalorder %s29, 3
      %p223 = por %p221, %p222
      %p224 = scmp.ne.s32.totalorder %s216, %s219
      %p225 = scmp.eq.s32.totalorder %s29, 0
      %p226 = por %p224, %p225
      %p227 = scmp.ne.s32.totalorder %s216, %s219
      %p228 = scmp.eq.s32.totalorder %s34, 3
      %p229 = por %p227, %p228
      %p230 = scmp.ne.s32.totalorder %s219, %s220
      %p231 = scmp.eq.s32.totalorder %s34, 0
      %p232 = por %p230, %p231
      %p233 = scmp.ne.s32.totalorder %s219, %s220
      %p234 = scmp.eq.s32.totalorder %s35, 3
      %p235 = por %p233, %p234
      %p237 = scmp.ne.s32.totalorder %s220, %s236
      %p238 = scmp.eq.s32.totalorder %s35, 0
      %p239 = por %p237, %p238
      %s240 = ssub.s32 %s36, %s48
      %s241 = ssub.s32 %s37, %s44
      %s242 = sor.u32 %s240, %s241
      %p243 = scmp.eq.s32.totalorder %s242, 0
      %s245 = sadd.s32 %s244, 1
      %s246 = scalar_select %p243, %s244, %s245
      %p249 = pneg %p243
      %p250 = scmp.eq.s32.totalorder %s29, 3
      %p251 = por %p249, %p250
      %p252 = scmp.ne.s32.totalorder %s244, %s247
      %p253 = scmp.eq.s32.totalorder %s29, 0
      %p254 = por %p252, %p253
      %p255 = scmp.ne.s32.totalorder %s244, %s247
      %p256 = scmp.eq.s32.totalorder %s34, 3
      %p257 = por %p255, %p256
      %p258 = scmp.ne.s32.totalorder %s247, %s248
      %p259 = scmp.eq.s32.totalorder %s34, 0
      %p260 = por %p258, %p259
      %p261 = scmp.ne.s32.totalorder %s247, %s248
      %p262 = scmp.eq.s32.totalorder %s35, 3
      %p263 = por %p261, %p262
      %p265 = scmp.ne.s32.totalorder %s248, %s264
      %p266 = scmp.eq.s32.totalorder %s35, 0
      %p267 = por %p265, %p266
      %s268 = ssub.s32 %s36, %s48
      %s269 = ssub.s32 %s37, %s44
      %s270 = sor.u32 %s268, %s269
      %p271 = scmp.eq.s32.totalorder %s270, 0
      %s273 = sadd.s32 %s272, 1
      %s274 = scalar_select %p271, %s272, %s273
      %p277 = pneg %p271
      %p278 = scmp.eq.s32.totalorder %s29, 3
      %p279 = por %p277, %p278
      %p280 = scmp.ne.s32.totalorder %s272, %s275
      %p281 = scmp.eq.s32.totalorder %s29, 0
      %p282 = por %p280, %p281
      %p283 = scmp.ne.s32.totalorder %s272, %s275
      %p284 = scmp.eq.s32.totalorder %s34, 3
      %p285 = por %p283, %p284
      %p286 = scmp.ne.s32.totalorder %s275, %s276
      %p287 = scmp.eq.s32.totalorder %s34, 0
      %p288 = por %p286, %p287
      %p289 = scmp.ne.s32.totalorder %s275, %s276
      %p290 = scmp.eq.s32.totalorder %s35, 3
      %p291 = por %p289, %p290
      %p293 = scmp.ne.s32.totalorder %s276, %s292
      %p294 = scmp.eq.s32.totalorder %s35, 0
      %p295 = por %p293, %p294
      %p296 = scmp.le.s32.totalorder 1, %s29
      %p297 = scmp.lt.s32.totalorder %s29, 5
      %p298 = pnand %p296, %p297
      %p299 = pneg %p298
      // Predicated region
      $region9: #{pre_act_bottleneck_forward.6} parent=5 // pred_check
        _
      $region10: #{pre_act_bottleneck_forward.6} parent=5 // pred_check_branch
        %301 = sbr.rel (%p298) target = $region12
      $region11: #{pre_act_bottleneck_forward.6} parent=5 // pred_region
        %s302 = ssub.s32 %s29, 1
        // Predicated region
        $region13: #{pre_act_bottleneck_forward.6} parent=11 // pred_check
          %p303 = pneg %p162
        $region14: #{pre_act_bottleneck_forward.6} parent=11 // pred_check_branch
          %305 = sbr.rel (%p303) target = $region16
        $region15: #{pre_act_bottleneck_forward.6} parent=11 // pred_region
          %s307 = ssub.s32 16, 16
          %308 = vsyncadd [#allocation9], %s307
          %s310 = sshll.u32 [#allocation8], 4
          %s311 = int_to_ptr.vmem [resolvable:$true] %s310
          %313 = dma.hbm_to_vmem [thread:$0]  %s3, 16, %s311, [#allocation9]
        $region16: #{pre_act_bottleneck_forward.6} parent=11 // pred_fallthru
          _
        // Predicated region
        $region17: #{pre_act_bottleneck_forward.6} parent=11 // pred_check
          %p314 = pneg %p183
        $region18: #{pre_act_bottleneck_forward.6} parent=11 // pred_check_branch
          %316 = sbr.rel (%p314) target = $region20
        $region19: #{pre_act_bottleneck_forward.6} parent=11 // pred_region
          %s318 = ssub.s32 16, 16
          %319 = vsyncadd [#allocation9], %s318
          %s321 = sshll.u32 [#allocation10], 4
          %s322 = int_to_ptr.vmem [resolvable:$true] %s321
          %324 = dma.hbm_to_vmem [thread:$0]  %s4, 16, %s322, [#allocation9]
        $region20: #{pre_act_bottleneck_forward.6} parent=11 // pred_fallthru
          _
        // Predicated region
        $region21: #{pre_act_bottleneck_forward.6} parent=11 // pred_check
          %p325 = pneg %p204
        $region22: #{pre_act_bottleneck_forward.6} parent=11 // pred_check_branch
          %327 = sbr.rel (%p325) target = $region24
        $region23: #{pre_act_bottleneck_forward.6} parent=11 // pred_region
          %s329 = ssub.s32 1152, 1152
          %330 = vsyncadd [#allocation12], %s329
          %s331 = sshll.u32 [#allocation11], 4
          %s332 = int_to_ptr.vmem [resolvable:$true] %s331
          %337 = dma.hbm_to_vmem [thread:$0]  %s5, 1152, %s332, [#allocation12], 64, 64, 4
        $region24: #{pre_act_bottleneck_forward.6} parent=11 // pred_fallthru
          _
      $region12: #{pre_act_bottleneck_forward.6} parent=5 // pred_fallthru
        _
      %p338 = scmp.lt.s32.totalorder %s29, 4
      // Predicated region
      $region25: #{pre_act_bottleneck_forward.6} parent=5 // pred_check
        %p339 = pneg %p338
      $region26: #{pre_act_bottleneck_forward.6} parent=5 // pred_check_branch
        %341 = sbr.rel (%p339) target = $region28
      $region27: #{pre_act_bottleneck_forward.6} parent=5 // pred_region
        // Predicated region
        $region29: #{pre_act_bottleneck_forward.6} parent=27 // pred_check
          %p342 = pneg %p71
        $region30: #{pre_act_bottleneck_forward.6} parent=27 // pred_check_branch
          %344 = sbr.rel (%p342) target = $region32
        $region31: #{pre_act_bottleneck_forward.6} parent=27 // pred_region
          %s345 = sand.u32 %s61, 1
          %s346 = scalar_lea.sflag [#allocation3], %s345
          %s347 = sand.u32 %s61, 1
          %s348 = smul.addr %s347, 32
          %s349 = scalar_lea.vmem [#allocation2], %s348
          %s350 = smul.u32 %s37, 4
          %s351 = ssub.s32 %s350, 1
          %p352 = scmp.gt.s32.totalorder %s351, 0
          %s353 = scalar_select %p352, %s351, 0
          %s355 = ssub.s32 512, 512
          %356 = vsyncadd %s346, %s355
          %s357 = smul.addr %s353, 8
          %s358 = smul.addr %s36, 64
          %s359 = sadd.s32 %s357, %s358
          %s360 = smul.addr %s359, 64
          %s361 = scalar_lea.hbm %s0, %s360
          %s362 = sshll.u32 %s349, 4
          %s363 = int_to_ptr.vmem [resolvable:$true] %s362
          %368 = dma.hbm_to_vmem [thread:$0]  %s361, 512, %s363, %s346, 64, 64, 4
        $region32: #{pre_act_bottleneck_forward.6} parent=27 // pred_fallthru
          _
        // Predicated region
        $region33: #{pre_act_bottleneck_forward.6} parent=27 // pred_check
          %p369 = pneg %p99
        $region34: #{pre_act_bottleneck_forward.6} parent=27 // pred_check_branch
          %371 = sbr.rel (%p369) target = $region36
        $region35: #{pre_act_bottleneck_forward.6} parent=27 // pred_region
          %s372 = sand.u32 %s29, 1
          %s373 = scalar_lea.sflag [#allocation6], %s372
          %s374 = sand.u32 %s89, 1
          %s375 = smul.addr %s374, 128
          %s376 = scalar_lea.vmem [#allocation5], %s375
          %s377 = smul.u32 4, %s37
          %s379 = ssub.s32 2048, 2048
          %380 = vsyncadd %s373, %s379
          %s381 = smul.addr %s377, 8
          %s382 = smul.addr %s36, 64
          %s383 = sadd.s32 %s381, %s382
          %s384 = smul.addr %s383, 64
          %s385 = scalar_lea.hbm %s1, %s384
          %s386 = sshll.u32 %s376, 4
          %s387 = int_to_ptr.vmem [resolvable:$true] %s386
          %392 = dma.hbm_to_vmem [thread:$0]  %s385, 2048, %s387, %s373, 64, 64, 4
        $region36: #{pre_act_bottleneck_forward.6} parent=27 // pred_fallthru
          _
        // Predicated region
        $region37: #{pre_act_bottleneck_forward.6} parent=27 // pred_check
          %p393 = pneg %p135
        $region38: #{pre_act_bottleneck_forward.6} parent=27 // pred_check_branch
          %395 = sbr.rel (%p393) target = $region40
        $region39: #{pre_act_bottleneck_forward.6} parent=27 // pred_region
          %s396 = sand.u32 %s29, 1
          %s397 = scalar_lea.sflag [#allocation6], %s396
          %s398 = sand.u32 %s125, 1
          %s399 = smul.addr %s398, 32
          %s400 = scalar_lea.vmem [#allocation7], %s399
          %s401 = smul.u32 %s37, 4
          %s402 = sadd.s32 %s401, 4
          %p403 = scmp.lt.s32.totalorder %s402, 7
          %s404 = scalar_select %p403, %s402, 7
          %s406 = ssub.s32 512, 512
          %407 = vsyncadd %s397, %s406
          %s408 = smul.addr %s404, 8
          %s409 = smul.addr %s36, 64
          %s410 = sadd.s32 %s408, %s409
          %s411 = smul.addr %s410, 64
          %s412 = scalar_lea.hbm %s2, %s411
          %s413 = sshll.u32 %s400, 4
          %s414 = int_to_ptr.vmem [resolvable:$true] %s413
          %419 = dma.hbm_to_vmem [thread:$0]  %s412, 512, %s414, %s397, 64, 64, 4
        $region40: #{pre_act_bottleneck_forward.6} parent=27 // pred_fallthru
          _
      $region28: #{pre_act_bottleneck_forward.6} parent=5 // pred_fallthru
        _
      %p420 = scmp.le.s32.totalorder 1, %s29
      %p421 = scmp.lt.s32.totalorder %s29, 5
      %p422 = pnand %p420, %p421
      %p423 = pneg %p422
      // Predicated region
      $region41: #{pre_act_bottleneck_forward.6} parent=5 // pred_check
        _
      $region42: #{pre_act_bottleneck_forward.6} parent=5 // pred_check_branch
        %425 = sbr.rel (%p422) target = $region44
      $region43: #{pre_act_bottleneck_forward.6} parent=5 // pred_region
        %s426 = ssub.s32 %s29, 1
        %s427 = sand.u32 %s64, 1
        %s428 = scalar_lea.sflag [#allocation3], %s427
        %s429 = sand.u32 %s64, 1
        %s430 = smul.addr %s429, 32
        %s431 = scalar_lea.vmem [#allocation2], %s430
        // Predicated region
        $region45: #{pre_act_bottleneck_forward.6} parent=43 // pred_check
          %p432 = pneg %p77
        $region46: #{pre_act_bottleneck_forward.6} parent=43 // pred_check_branch
          %434 = sbr.rel (%p432) target = $region48
        $region47: #{pre_act_bottleneck_forward.6} parent=43 // pred_region
          %435 = dma.done %s428, 512
        $region48: #{pre_act_bottleneck_forward.6} parent=43 // pred_fallthru
          _
        %s436 = sand.u32 %s34, 1
        %s437 = scalar_lea.sflag [#allocation6], %s436
        %s438 = sand.u32 %s92, 1
        %s439 = smul.addr %s438, 128
        %s440 = scalar_lea.vmem [#allocation5], %s439
        // Predicated region
        $region49: #{pre_act_bottleneck_forward.6} parent=43 // pred_check
          %p441 = pneg %p105
        $region50: #{pre_act_bottleneck_forward.6} parent=43 // pred_check_branch
          %443 = sbr.rel (%p441) target = $region52
        $region51: #{pre_act_bottleneck_forward.6} parent=43 // pred_region
          %444 = dma.done %s437, 2048
        $region52: #{pre_act_bottleneck_forward.6} parent=43 // pred_fallthru
          _
        %s445 = sand.u32 %s34, 1
        %s446 = scalar_lea.sflag [#allocation6], %s445
        %s447 = sand.u32 %s128, 1
        %s448 = smul.addr %s447, 32
        %s449 = scalar_lea.vmem [#allocation7], %s448
        // Predicated region
        $region53: #{pre_act_bottleneck_forward.6} parent=43 // pred_check
          %p450 = pneg %p141
        $region54: #{pre_act_bottleneck_forward.6} parent=43 // pred_check_branch
          %452 = sbr.rel (%p450) target = $region56
        $region55: #{pre_act_bottleneck_forward.6} parent=43 // pred_region
          %453 = dma.done %s446, 512
        $region56: #{pre_act_bottleneck_forward.6} parent=43 // pred_fallthru
          _
        // Predicated region
        $region57: #{pre_act_bottleneck_forward.6} parent=43 // pred_check
          %p454 = pneg %p162
        $region58: #{pre_act_bottleneck_forward.6} parent=43 // pred_check_branch
          %456 = sbr.rel (%p454) target = $region60
        $region59: #{pre_act_bottleneck_forward.6} parent=43 // pred_region
          %457 = dma.done [#allocation9], 16
        $region60: #{pre_act_bottleneck_forward.6} parent=43 // pred_fallthru
          _
        // Predicated region
        $region61: #{pre_act_bottleneck_forward.6} parent=43 // pred_check
          %p458 = pneg %p183
        $region62: #{pre_act_bottleneck_forward.6} parent=43 // pred_check_branch
          %460 = sbr.rel (%p458) target = $region64
        $region63: #{pre_act_bottleneck_forward.6} parent=43 // pred_region
          %461 = dma.done [#allocation9], 16
        $region64: #{pre_act_bottleneck_forward.6} parent=43 // pred_fallthru
          _
        // Predicated region
        $region65: #{pre_act_bottleneck_forward.6} parent=43 // pred_check
          %p462 = pneg %p204
        $region66: #{pre_act_bottleneck_forward.6} parent=43 // pred_check_branch
          %464 = sbr.rel (%p462) target = $region68
        $region67: #{pre_act_bottleneck_forward.6} parent=43 // pred_region
          %465 = dma.done [#allocation12], 1152
        $region68: #{pre_act_bottleneck_forward.6} parent=43 // pred_fallthru
          _
        %s466 = sand.u32 %s64, 1
        %s467 = scalar_lea.sflag [#allocation3], %s466
        %s468 = sand.u32 %s64, 1
        %s469 = smul.addr %s468, 32
        %s470 = scalar_lea.vmem [#allocation2], %s469
        %p471 = pneg %p77
        %p472 = pneg %p74
        %s473 = sand.u32 %s34, 1
        %s474 = scalar_lea.sflag [#allocation6], %s473
        %s475 = sand.u32 %s92, 1
        %s476 = smul.addr %s475, 128
        %s477 = scalar_lea.vmem [#allocation5], %s476
        %p478 = pneg %p105
        %p479 = pneg %p102
        %s480 = sand.u32 %s34, 1
        %s481 = scalar_lea.sflag [#allocation6], %s480
        %s482 = sand.u32 %s128, 1
        %s483 = smul.addr %s482, 32
        %s484 = scalar_lea.vmem [#allocation7], %s483
        %p485 = pneg %p141
        %p486 = pneg %p138
        %p487 = pneg %p162
        %p488 = pneg %p159
        %p489 = pneg %p183
        %p490 = pneg %p180
        %p491 = pneg %p204
        %p492 = pneg %p201
        %p493 = pneg %p232
        %p494 = pneg %p229
        %s495 = sand.u32 %s219, 1
        %s496 = scalar_lea.sflag [#allocation4], %s495
        %s497 = sand.u32 %s219, 1
        %s498 = smul.addr %s497, 128
        %s499 = scalar_lea.vmem [#allocation13], %s498
        %p500 = pneg %p260
        %p501 = pneg %p257
        %s502 = sand.u32 %s34, 1
        %s503 = scalar_lea.sflag [#allocation15], %s502
        %s504 = sand.u32 %s247, 1
        %s505 = scalar_lea.vmem [#allocation14], %s504
        %p506 = pneg %p288
        %p507 = pneg %p285
        %s508 = sand.u32 %s34, 1
        %s509 = scalar_lea.sflag [#allocation15], %s508
        %s510 = sand.u32 %s275, 1
        %s511 = scalar_lea.vmem [#allocation16], %s510
        %s512 = smul.u32 %s39, 4
        %s513 = ssub.s32 %s512, 1
        %p514 = scmp.gt.s32.totalorder %s513, 0
        %s515 = scalar_select %p514, %s513, 0
        %s516 = smul.u32 4, %s39
        %s517 = smul.u32 %s39, 4
        %s518 = sadd.s32 %s517, 4
        %p519 = scmp.lt.s32.totalorder %s518, 7
        %s520 = scalar_select %p519, %s518, 7
        %s521 = smul.u32 4, %s39
        %v523 = vld [vmem:[#allocation8] sm:$0x1]
        %v524 = vld [vmem:[#allocation10] sm:$0x1]
        %v525 = vld [vmem:[%s440] sm:$0xf]
        %v526 = vld [vmem:[%s440 + $0x4] sm:$0xf]
        %v527 = vld [vmem:[%s440 + $0x8] sm:$0xf]
        %v528 = vld [vmem:[%s440 + $0xc] sm:$0xf]
        %v529 = vld [vmem:[%s440 + $0x10] sm:$0xf]
        %v530 = vld [vmem:[%s440 + $0x14] sm:$0xf]
        %v531 = vld [vmem:[%s440 + $0x18] sm:$0xf]
        %v532 = vld [vmem:[%s440 + $0x1c] sm:$0xf]
        %v533 = vld [vmem:[%s440 + $0x20] sm:$0xf]
        %v534 = vld [vmem:[%s440 + $0x24] sm:$0xf]
        %v535 = vld [vmem:[%s440 + $0x28] sm:$0xf]
        %v536 = vld [vmem:[%s440 + $0x2c] sm:$0xf]
        %v537 = vld [vmem:[%s440 + $0x30] sm:$0xf]
        %v538 = vld [vmem:[%s440 + $0x34] sm:$0xf]
        %v539 = vld [vmem:[%s440 + $0x38] sm:$0xf]
        %v540 = vld [vmem:[%s440 + $0x3c] sm:$0xf]
        %v541 = vld [vmem:[%s440 + $0x40] sm:$0xf]
        %v542 = vld [vmem:[%s440 + $0x44] sm:$0xf]
        %v543 = vld [vmem:[%s440 + $0x48] sm:$0xf]
        %v544 = vld [vmem:[%s440 + $0x4c] sm:$0xf]
        %v545 = vld [vmem:[%s440 + $0x50] sm:$0xf]
        %v546 = vld [vmem:[%s440 + $0x54] sm:$0xf]
        %v547 = vld [vmem:[%s440 + $0x58] sm:$0xf]
        %v548 = vld [vmem:[%s440 + $0x5c] sm:$0xf]
        %v549 = vld [vmem:[%s440 + $0x60] sm:$0xf]
        %v550 = vld [vmem:[%s440 + $0x64] sm:$0xf]
        %v551 = vld [vmem:[%s440 + $0x68] sm:$0xf]
        %v552 = vld [vmem:[%s440 + $0x6c] sm:$0xf]
        %v553 = vld [vmem:[%s440 + $0x70] sm:$0xf]
        %v554 = vld [vmem:[%s440 + $0x74] sm:$0xf]
        %v555 = vld [vmem:[%s440 + $0x78] sm:$0xf]
        %v556 = vld [vmem:[%s440 + $0x7c] sm:$0xf]
        %v557 = vunpack.c.l.bf16 %v525
        %v558 = vunpack.c.l.bf16 %v526
        %v559 = vunpack.c.l.bf16 %v527
        %v560 = vunpack.c.l.bf16 %v528
        %v561 = vunpack.c.l.bf16 %v529
        %v562 = vunpack.c.l.bf16 %v530
        %v563 = vunpack.c.l.bf16 %v531
        %v564 = vunpack.c.l.bf16 %v532
        %v565 = vunpack.c.l.bf16 %v533
        %v566 = vunpack.c.l.bf16 %v534
        %v567 = vunpack.c.l.bf16 %v535
        %v568 = vunpack.c.l.bf16 %v536
        %v569 = vunpack.c.l.bf16 %v537
        %v570 = vunpack.c.l.bf16 %v538
        %v571 = vunpack.c.l.bf16 %v539
        %v572 = vunpack.c.l.bf16 %v540
        %v573 = vunpack.c.l.bf16 %v541
        %v574 = vunpack.c.l.bf16 %v542
        %v575 = vunpack.c.l.bf16 %v543
        %v576 = vunpack.c.l.bf16 %v544
        %v577 = vunpack.c.l.bf16 %v545
        %v578 = vunpack.c.l.bf16 %v546
        %v579 = vunpack.c.l.bf16 %v547
        %v580 = vunpack.c.l.bf16 %v548
        %v581 = vunpack.c.l.bf16 %v549
        %v582 = vunpack.c.l.bf16 %v550
        %v583 = vunpack.c.l.bf16 %v551
        %v584 = vunpack.c.l.bf16 %v552
        %v585 = vunpack.c.l.bf16 %v553
        %v586 = vunpack.c.l.bf16 %v554
        %v587 = vunpack.c.l.bf16 %v555
        %v588 = vunpack.c.l.bf16 %v556
        %v590 = vlaneseq
        %v591 = vshrl.u32 %v590, 7
        %v592 = vsub.s32 0, %v591
        %v593 = vrot.slane %v523, %v592
        %v595 = vmul.f32 %v557, %v593
        %v596 = vmul.f32 %v558, %v593
        %v597 = vmul.f32 %v559, %v593
        %v598 = vmul.f32 %v560, %v593
        %v599 = vmul.f32 %v561, %v593
        %v600 = vmul.f32 %v562, %v593
        %v601 = vmul.f32 %v563, %v593
        %v602 = vmul.f32 %v564, %v593
        %v603 = vmul.f32 %v565, %v593
        %v604 = vmul.f32 %v566, %v593
        %v605 = vmul.f32 %v567, %v593
        %v606 = vmul.f32 %v568, %v593
        %v607 = vmul.f32 %v569, %v593
        %v608 = vmul.f32 %v570, %v593
        %v609 = vmul.f32 %v571, %v593
        %v610 = vmul.f32 %v572, %v593
        %v611 = vmul.f32 %v573, %v593
        %v612 = vmul.f32 %v574, %v593
        %v613 = vmul.f32 %v575, %v593
        %v614 = vmul.f32 %v576, %v593
        %v615 = vmul.f32 %v577, %v593
        %v616 = vmul.f32 %v578, %v593
        %v617 = vmul.f32 %v579, %v593
        %v618 = vmul.f32 %v580, %v593
        %v619 = vmul.f32 %v581, %v593
        %v620 = vmul.f32 %v582, %v593
        %v621 = vmul.f32 %v583, %v593
        %v622 = vmul.f32 %v584, %v593
        %v623 = vmul.f32 %v585, %v593
        %v624 = vmul.f32 %v586, %v593
        %v625 = vmul.f32 %v587, %v593
        %v626 = vmul.f32 %v588, %v593
        %v628 = vlaneseq
        %v629 = vshrl.u32 %v628, 7
        %v630 = vsub.s32 0, %v629
        %v631 = vrot.slane %v524, %v630
        %v633 = vadd.f32 %v595, %v631
        %v634 = vadd.f32 %v596, %v631
        %v635 = vadd.f32 %v597, %v631
        %v636 = vadd.f32 %v598, %v631
        %v637 = vadd.f32 %v599, %v631
        %v638 = vadd.f32 %v600, %v631
        %v639 = vadd.f32 %v601, %v631
        %v640 = vadd.f32 %v602, %v631
        %v641 = vadd.f32 %v603, %v631
        %v642 = vadd.f32 %v604, %v631
        %v643 = vadd.f32 %v605, %v631
        %v644 = vadd.f32 %v606, %v631
        %v645 = vadd.f32 %v607, %v631
        %v646 = vadd.f32 %v608, %v631
        %v647 = vadd.f32 %v609, %v631
        %v648 = vadd.f32 %v610, %v631
        %v649 = vadd.f32 %v611, %v631
        %v650 = vadd.f32 %v612, %v631
        %v651 = vadd.f32 %v613, %v631
        %v652 = vadd.f32 %v614, %v631
        %v653 = vadd.f32 %v615, %v631
        %v654 = vadd.f32 %v616, %v631
        %v655 = vadd.f32 %v617, %v631
        %v656 = vadd.f32 %v618, %v631
        %v657 = vadd.f32 %v619, %v631
        %v658 = vadd.f32 %v620, %v631
        %v659 = vadd.f32 %v621, %v631
        %v660 = vadd.f32 %v622, %v631
        %v661 = vadd.f32 %v623, %v631
        %v662 = vadd.f32 %v624, %v631
        %v663 = vadd.f32 %v625, %v631
        %v664 = vadd.f32 %v626, %v631
        %v665 = vmax.f32 %v633, 0.0
        %v666 = vmax.f32 %v634, 0.0
        %v667 = vmax.f32 %v635, 0.0
        %v668 = vmax.f32 %v636, 0.0
        %v669 = vmax.f32 %v637, 0.0
        %v670 = vmax.f32 %v638, 0.0
        %v671 = vmax.f32 %v639, 0.0
        %v672 = vmax.f32 %v640, 0.0
        %v673 = vmax.f32 %v641, 0.0
        %v674 = vmax.f32 %v642, 0.0
        %v675 = vmax.f32 %v643, 0.0
        %v676 = vmax.f32 %v644, 0.0
        %v677 = vmax.f32 %v645, 0.0
        %v678 = vmax.f32 %v646, 0.0
        %v679 = vmax.f32 %v647, 0.0
        %v680 = vmax.f32 %v648, 0.0
        %v681 = vmax.f32 %v649, 0.0
        %v682 = vmax.f32 %v650, 0.0
        %v683 = vmax.f32 %v651, 0.0
        %v684 = vmax.f32 %v652, 0.0
        %v685 = vmax.f32 %v653, 0.0
        %v686 = vmax.f32 %v654, 0.0
        %v687 = vmax.f32 %v655, 0.0
        %v688 = vmax.f32 %v656, 0.0
        %v689 = vmax.f32 %v657, 0.0
        %v690 = vmax.f32 %v658, 0.0
        %v691 = vmax.f32 %v659, 0.0
        %v692 = vmax.f32 %v660, 0.0
        %v693 = vmax.f32 %v661, 0.0
        %v694 = vmax.f32 %v662, 0.0
        %v695 = vmax.f32 %v663, 0.0
        %v696 = vmax.f32 %v664, 0.0
        %v697 = vld [vmem:[%s431] sm:$0xf]
        %v698 = vld [vmem:[%s431 + $0x4] sm:$0xf]
        %v699 = vld [vmem:[%s431 + $0x8] sm:$0xf]
        %v700 = vld [vmem:[%s431 + $0xc] sm:$0xf]
        %v701 = vld [vmem:[%s431 + $0x10] sm:$0xf]
        %v702 = vld [vmem:[%s431 + $0x14] sm:$0xf]
        %v703 = vld [vmem:[%s431 + $0x18] sm:$0xf]
        %v704 = vld [vmem:[%s431 + $0x1c] sm:$0xf]
        %p705 = scmp.gt.s32.totalorder %s39, 0
        %s706 = scalar_select %p705, 1, 0
        %s707 = scvt.s32.f32 %s706
        %v708 = vunpack.c.l.bf16 %v697
        %v709 = vunpack.c.l.bf16 %v698
        %v710 = vunpack.c.l.bf16 %v699
        %v711 = vunpack.c.l.bf16 %v700
        %v712 = vunpack.c.l.bf16 %v701
        %v713 = vunpack.c.l.bf16 %v702
        %v714 = vunpack.c.l.bf16 %v703
        %v715 = vunpack.c.l.bf16 %v704
        %v716 = vmul.f32 %v708, %v593
        %v717 = vmul.f32 %v709, %v593
        %v718 = vmul.f32 %v710, %v593
        %v719 = vmul.f32 %v711, %v593
        %v720 = vmul.f32 %v712, %v593
        %v721 = vmul.f32 %v713, %v593
        %v722 = vmul.f32 %v714, %v593
        %v723 = vmul.f32 %v715, %v593
        %v724 = vadd.f32 %v716, %v631
        %v725 = vadd.f32 %v717, %v631
        %v726 = vadd.f32 %v718, %v631
        %v727 = vadd.f32 %v719, %v631
        %v728 = vadd.f32 %v720, %v631
        %v729 = vadd.f32 %v721, %v631
        %v730 = vadd.f32 %v722, %v631
        %v731 = vadd.f32 %v723, %v631
        %v732 = vmax.f32 %v724, 0.0
        %v733 = vmax.f32 %v725, 0.0
        %v734 = vmax.f32 %v726, 0.0
        %v735 = vmax.f32 %v727, 0.0
        %v736 = vmax.f32 %v728, 0.0
        %v737 = vmax.f32 %v729, 0.0
        %v738 = vmax.f32 %v730, 0.0
        %v739 = vmax.f32 %v731, 0.0
        %v740 = vstv %s707
        %v741 = vmul.f32 %v732, %v740
        %v742 = vmul.f32 %v733, %v740
        %v743 = vmul.f32 %v734, %v740
        %v744 = vmul.f32 %v735, %v740
        %v745 = vmul.f32 %v736, %v740
        %v746 = vmul.f32 %v737, %v740
        %v747 = vmul.f32 %v738, %v740
        %v748 = vmul.f32 %v739, %v740
        %v749 = vld [vmem:[%s449] sm:$0xf]
        %v750 = vld [vmem:[%s449 + $0x4] sm:$0xf]
        %v751 = vld [vmem:[%s449 + $0x8] sm:$0xf]
        %v752 = vld [vmem:[%s449 + $0xc] sm:$0xf]
        %v753 = vld [vmem:[%s449 + $0x10] sm:$0xf]
        %v754 = vld [vmem:[%s449 + $0x14] sm:$0xf]
        %v755 = vld [vmem:[%s449 + $0x18] sm:$0xf]
        %v756 = vld [vmem:[%s449 + $0x1c] sm:$0xf]
        %p757 = scmp.lt.s32.totalorder %s39, 1
        %s758 = scalar_select %p757, 1, 0
        %s759 = scvt.s32.f32 %s758
        %v760 = vunpack.c.l.bf16 %v749
        %v761 = vunpack.c.l.bf16 %v750
        %v762 = vunpack.c.l.bf16 %v751
        %v763 = vunpack.c.l.bf16 %v752
        %v764 = vunpack.c.l.bf16 %v753
        %v765 = vunpack.c.l.bf16 %v754
        %v766 = vunpack.c.l.bf16 %v755
        %v767 = vunpack.c.l.bf16 %v756
        %v768 = vmul.f32 %v760, %v593
        %v769 = vmul.f32 %v761, %v593
        %v770 = vmul.f32 %v762, %v593
        %v771 = vmul.f32 %v763, %v593
        %v772 = vmul.f32 %v764, %v593
        %v773 = vmul.f32 %v765, %v593
        %v774 = vmul.f32 %v766, %v593
        %v775 = vmul.f32 %v767, %v593
        %v776 = vadd.f32 %v768, %v631
        %v777 = vadd.f32 %v769, %v631
        %v778 = vadd.f32 %v770, %v631
        %v779 = vadd.f32 %v771, %v631
        %v780 = vadd.f32 %v772, %v631
        %v781 = vadd.f32 %v773, %v631
        %v782 = vadd.f32 %v774, %v631
        %v783 = vadd.f32 %v775, %v631
        %v784 = vmax.f32 %v776, 0.0
        %v785 = vmax.f32 %v777, 0.0
        %v786 = vmax.f32 %v778, 0.0
        %v787 = vmax.f32 %v779, 0.0
        %v788 = vmax.f32 %v780, 0.0
        %v789 = vmax.f32 %v781, 0.0
        %v790 = vmax.f32 %v782, 0.0
        %v791 = vmax.f32 %v783, 0.0
        %v792 = vstv %s759
        %v793 = vmul.f32 %v784, %v792
        %v794 = vmul.f32 %v785, %v792
        %v795 = vmul.f32 %v786, %v792
        %v796 = vmul.f32 %v787, %v792
        %v797 = vmul.f32 %v788, %v792
        %v798 = vmul.f32 %v789, %v792
        %v799 = vmul.f32 %v790, %v792
        %v800 = vmul.f32 %v791, %v792
        %v801 = vpack.c.bf16 %v741, %v741
        %v802 = vpack.c.bf16 %v742, %v742
        %v803 = vpack.c.bf16 %v743, %v743
        %v804 = vpack.c.bf16 %v744, %v744
        %v805 = vpack.c.bf16 %v745, %v745
        %v806 = vpack.c.bf16 %v746, %v746
        %v807 = vpack.c.bf16 %v747, %v747
        %v808 = vpack.c.bf16 %v748, %v748
        %v809 = vpack.c.bf16 %v665, %v665
        %v810 = vpack.c.bf16 %v666, %v666
        %v811 = vpack.c.bf16 %v667, %v667
        %v812 = vpack.c.bf16 %v668, %v668
        %v813 = vpack.c.bf16 %v669, %v669
        %v814 = vpack.c.bf16 %v670, %v670
        %v815 = vpack.c.bf16 %v671, %v671
        %v816 = vpack.c.bf16 %v672, %v672
        %v817 = vpack.c.bf16 %v673, %v673
        %v818 = vpack.c.bf16 %v674, %v674
        %v819 = vpack.c.bf16 %v675, %v675
        %v820 = vpack.c.bf16 %v676, %v676
        %v821 = vpack.c.bf16 %v677, %v677
        %v822 = vpack.c.bf16 %v678, %v678
        %v823 = vpack.c.bf16 %v679, %v679
        %v824 = vpack.c.bf16 %v680, %v680
        %v825 = vpack.c.bf16 %v681, %v681
        %v826 = vpack.c.bf16 %v682, %v682
        %v827 = vpack.c.bf16 %v683, %v683
        %v828 = vpack.c.bf16 %v684, %v684
        %v829 = vpack.c.bf16 %v685, %v685
        %v830 = vpack.c.bf16 %v686, %v686
        %v831 = vpack.c.bf16 %v687, %v687
        %v832 = vpack.c.bf16 %v688, %v688
        %v833 = vpack.c.bf16 %v689, %v689
        %v834 = vpack.c.bf16 %v690, %v690
        %v835 = vpack.c.bf16 %v691, %v691
        %v836 = vpack.c.bf16 %v692, %v692
        %v837 = vpack.c.bf16 %v693, %v693
        %v838 = vpack.c.bf16 %v694, %v694
        %v839 = vpack.c.bf16 %v695, %v695
        %v840 = vpack.c.bf16 %v696, %v696
        %v841 = vpack.c.bf16 %v793, %v793
        %v842 = vpack.c.bf16 %v794, %v794
        %v843 = vpack.c.bf16 %v795, %v795
        %v844 = vpack.c.bf16 %v796, %v796
        %v845 = vpack.c.bf16 %v797, %v797
        %v846 = vpack.c.bf16 %v798, %v798
        %v847 = vpack.c.bf16 %v799, %v799
        %v848 = vpack.c.bf16 %v800, %v800
        %v850 = vshrl.u32 0, 16
        %v852 = vrot.slane %v850, 7
        %v853 = vshll.u32 0, 16
        %v855 = vor.u32 %v852, %v853
        %v857 = vshrl.u32 %v801, 16
        %v859 = vrot.slane %v857, 7
        %v860 = vshll.u32 %v801, 16
        %v862 = vor.u32 %v859, %v860
        %v864 = vshrl.u32 %v802, 16
        %v866 = vrot.slane %v864, 7
        %v867 = vshll.u32 %v802, 16
        %v869 = vor.u32 %v866, %v867
        %v871 = vshrl.u32 %v803, 16
        %v873 = vrot.slane %v871, 7
        %v874 = vshll.u32 %v803, 16
        %v876 = vor.u32 %v873, %v874
        %v878 = vshrl.u32 %v804, 16
        %v880 = vrot.slane %v878, 7
        %v881 = vshll.u32 %v804, 16
        %v883 = vor.u32 %v880, %v881
        %v885 = vshrl.u32 %v805, 16
        %v887 = vrot.slane %v885, 7
        %v888 = vshll.u32 %v805, 16
        %v890 = vor.u32 %v887, %v888
        %v892 = vshrl.u32 %v806, 16
        %v894 = vrot.slane %v892, 7
        %v895 = vshll.u32 %v806, 16
        %v897 = vor.u32 %v894, %v895
        %v899 = vshrl.u32 %v807, 16
        %v901 = vrot.slane %v899, 7
        %v902 = vshll.u32 %v807, 16
        %v904 = vor.u32 %v901, %v902
        %v906 = vshrl.u32 %v808, 16
        %v908 = vrot.slane %v906, 7
        %v909 = vshll.u32 %v808, 16
        %v911 = vor.u32 %v908, %v909
        %v913 = vshrl.u32 %v809, 16
        %v915 = vrot.slane %v913, 7
        %v916 = vshll.u32 %v809, 16
        %v918 = vor.u32 %v915, %v916
        %v920 = vshrl.u32 %v810, 16
        %v922 = vrot.slane %v920, 7
        %v923 = vshll.u32 %v810, 16
        %v925 = vor.u32 %v922, %v923
        %v927 = vshrl.u32 %v811, 16
        %v929 = vrot.slane %v927, 7
        %v930 = vshll.u32 %v811, 16
        %v932 = vor.u32 %v929, %v930
        %v934 = vshrl.u32 %v812, 16
        %v936 = vrot.slane %v934, 7
        %v937 = vshll.u32 %v812, 16
        %v939 = vor.u32 %v936, %v937
        %v941 = vshrl.u32 %v813, 16
        %v943 = vrot.slane %v941, 7
        %v944 = vshll.u32 %v813, 16
        %v946 = vor.u32 %v943, %v944
        %v948 = vshrl.u32 %v814, 16
        %v950 = vrot.slane %v948, 7
        %v951 = vshll.u32 %v814, 16
        %v953 = vor.u32 %v950, %v951
        %v955 = vshrl.u32 %v815, 16
        %v957 = vrot.slane %v955, 7
        %v958 = vshll.u32 %v815, 16
        %v960 = vor.u32 %v957, %v958
        %v962 = vshrl.u32 %v816, 16
        %v964 = vrot.slane %v962, 7
        %v965 = vshll.u32 %v816, 16
        %v967 = vor.u32 %v964, %v965
        %v969 = vshrl.u32 %v817, 16
        %v971 = vrot.slane %v969, 7
        %v972 = vshll.u32 %v817, 16
        %v974 = vor.u32 %v971, %v972
        %v976 = vshrl.u32 %v818, 16
        %v978 = vrot.slane %v976, 7
        %v979 = vshll.u32 %v818, 16
        %v981 = vor.u32 %v978, %v979
        %v983 = vshrl.u32 %v819, 16
        %v985 = vrot.slane %v983, 7
        %v986 = vshll.u32 %v819, 16
        %v988 = vor.u32 %v985, %v986
        %v990 = vshrl.u32 %v820, 16
        %v992 = vrot.slane %v990, 7
        %v993 = vshll.u32 %v820, 16
        %v995 = vor.u32 %v992, %v993
        %v997 = vshrl.u32 %v821, 16
        %v999 = vrot.slane %v997, 7
        %v1000 = vshll.u32 %v821, 16
        %v1002 = vor.u32 %v999, %v1000
        %v1004 = vshrl.u32 %v822, 16
        %v1006 = vrot.slane %v1004, 7
        %v1007 = vshll.u32 %v822, 16
        %v1009 = vor.u32 %v1006, %v1007
        %v1011 = vshrl.u32 %v823, 16
        %v1013 = vrot.slane %v1011, 7
        %v1014 = vshll.u32 %v823, 16
        %v1016 = vor.u32 %v1013, %v1014
        %v1018 = vshrl.u32 %v824, 16
        %v1020 = vrot.slane %v1018, 7
        %v1021 = vshll.u32 %v824, 16
        %v1023 = vor.u32 %v1020, %v1021
        %v1025 = vshrl.u32 %v825, 16
        %v1027 = vrot.slane %v1025, 7
        %v1028 = vshll.u32 %v825, 16
        %v1030 = vor.u32 %v1027, %v1028
        %v1032 = vshrl.u32 %v826, 16
        %v1034 = vrot.slane %v1032, 7
        %v1035 = vshll.u32 %v826, 16
        %v1037 = vor.u32 %v1034, %v1035
        %v1039 = vshrl.u32 %v827, 16
        %v1041 = vrot.slane %v1039, 7
        %v1042 = vshll.u32 %v827, 16
        %v1044 = vor.u32 %v1041, %v1042
        %v1046 = vshrl.u32 %v828, 16
        %v1048 = vrot.slane %v1046, 7
        %v1049 = vshll.u32 %v828, 16
        %v1051 = vor.u32 %v1048, %v1049
        %v1053 = vshrl.u32 %v829, 16
        %v1055 = vrot.slane %v1053, 7
        %v1056 = vshll.u32 %v829, 16
        %v1058 = vor.u32 %v1055, %v1056
        %v1060 = vshrl.u32 %v830, 16
        %v1062 = vrot.slane %v1060, 7
        %v1063 = vshll.u32 %v830, 16
        %v1065 = vor.u32 %v1062, %v1063
        %v1067 = vshrl.u32 %v831, 16
        %v1069 = vrot.slane %v1067, 7
        %v1070 = vshll.u32 %v831, 16
        %v1072 = vor.u32 %v1069, %v1070
        %v1074 = vshrl.u32 %v832, 16
        %v1076 = vrot.slane %v1074, 7
        %v1077 = vshll.u32 %v832, 16
        %v1079 = vor.u32 %v1076, %v1077
        %v1081 = vshrl.u32 %v833, 16
        %v1083 = vrot.slane %v1081, 7
        %v1084 = vshll.u32 %v833, 16
        %v1086 = vor.u32 %v1083, %v1084
        %v1088 = vshrl.u32 %v834, 16
        %v1090 = vrot.slane %v1088, 7
        %v1091 = vshll.u32 %v834, 16
        %v1093 = vor.u32 %v1090, %v1091
        %v1095 = vshrl.u32 %v835, 16
        %v1097 = vrot.slane %v1095, 7
        %v1098 = vshll.u32 %v835, 16
        %v1100 = vor.u32 %v1097, %v1098
        %v1102 = vshrl.u32 %v836, 16
        %v1104 = vrot.slane %v1102, 7
        %v1105 = vshll.u32 %v836, 16
        %v1107 = vor.u32 %v1104, %v1105
        %v1109 = vshrl.u32 %v837, 16
        %v1111 = vrot.slane %v1109, 7
        %v1112 = vshll.u32 %v837, 16
        %v1114 = vor.u32 %v1111, %v1112
        %v1116 = vshrl.u32 %v838, 16
        %v1118 = vrot.slane %v1116, 7
        %v1119 = vshll.u32 %v838, 16
        %v1121 = vor.u32 %v1118, %v1119
        %v1123 = vshrl.u32 %v839, 16
        %v1125 = vrot.slane %v1123, 7
        %v1126 = vshll.u32 %v839, 16
        %v1128 = vor.u32 %v1125, %v1126
        %v1130 = vshrl.u32 %v840, 16
        %v1132 = vrot.slane %v1130, 7
        %v1133 = vshll.u32 %v840, 16
        %v1135 = vor.u32 %v1132, %v1133
        %v1137 = vshrl.u32 %v841, 16
        %v1139 = vrot.slane %v1137, 7
        %v1140 = vshll.u32 %v841, 16
        %v1142 = vor.u32 %v1139, %v1140
        %v1144 = vshrl.u32 %v842, 16
        %v1146 = vrot.slane %v1144, 7
        %v1147 = vshll.u32 %v842, 16
        %v1149 = vor.u32 %v1146, %v1147
        %v1151 = vshrl.u32 %v843, 16
        %v1153 = vrot.slane %v1151, 7
        %v1154 = vshll.u32 %v843, 16
        %v1156 = vor.u32 %v1153, %v1154
        %v1158 = vshrl.u32 %v844, 16
        %v1160 = vrot.slane %v1158, 7
        %v1161 = vshll.u32 %v844, 16
        %v1163 = vor.u32 %v1160, %v1161
        %v1165 = vshrl.u32 %v845, 16
        %v1167 = vrot.slane %v1165, 7
        %v1168 = vshll.u32 %v845, 16
        %v1170 = vor.u32 %v1167, %v1168
        %v1172 = vshrl.u32 %v846, 16
        %v1174 = vrot.slane %v1172, 7
        %v1175 = vshll.u32 %v846, 16
        %v1177 = vor.u32 %v1174, %v1175
        %v1179 = vshrl.u32 %v847, 16
        %v1181 = vrot.slane %v1179, 7
        %v1182 = vshll.u32 %v847, 16
        %v1184 = vor.u32 %v1181, %v1182
        %v1186 = vshrl.u32 %v848, 16
        %v1188 = vrot.slane %v1186, 7
        %v1189 = vshll.u32 %v848, 16
        %v1191 = vor.u32 %v1188, %v1189
        %vm1241 = vcmask 1040384
        %vm1242 = vsmask.f32 256
        %vm1243 = vmand %vm1241, %vm1242
        %v1244 = vsel %vm1243, 0, %v855
        %v1245 = vsel %vm1243, 0, %v862
        %v1246 = vsel %vm1243, 0, %v869
        %v1247 = vsel %vm1243, 0, %v876
        %v1248 = vsel %vm1243, 0, %v883
        %v1249 = vsel %vm1243, 0, %v890
        %v1250 = vsel %vm1243, 0, %v897
        %v1251 = vsel %vm1243, 0, %v904
        %v1252 = vsel %vm1243, 0, %v911
        %v1253 = vsel %vm1243, 0, %v918
        %v1254 = vsel %vm1243, 0, %v925
        %v1255 = vsel %vm1243, 0, %v932
        %v1256 = vsel %vm1243, 0, %v939
        %v1257 = vsel %vm1243, 0, %v946
        %v1258 = vsel %vm1243, 0, %v953
        %v1259 = vsel %vm1243, 0, %v960
        %v1260 = vsel %vm1243, 0, %v967
        %v1261 = vsel %vm1243, 0, %v974
        %v1262 = vsel %vm1243, 0, %v981
        %v1263 = vsel %vm1243, 0, %v988
        %v1264 = vsel %vm1243, 0, %v995
        %v1265 = vsel %vm1243, 0, %v1002
        %v1266 = vsel %vm1243, 0, %v1009
        %v1267 = vsel %vm1243, 0, %v1016
        %v1268 = vsel %vm1243, 0, %v1023
        %v1269 = vsel %vm1243, 0, %v1030
        %v1270 = vsel %vm1243, 0, %v1037
        %v1271 = vsel %vm1243, 0, %v1044
        %v1272 = vsel %vm1243, 0, %v1051
        %v1273 = vsel %vm1243, 0, %v1058
        %v1274 = vsel %vm1243, 0, %v1065
        %v1275 = vsel %vm1243, 0, %v1072
        %v1276 = vsel %vm1243, 0, %v1079
        %v1277 = vsel %vm1243, 0, %v1086
        %v1278 = vsel %vm1243, 0, %v1093
        %v1279 = vsel %vm1243, 0, %v1100
        %v1280 = vsel %vm1243, 0, %v1107
        %v1281 = vsel %vm1243, 0, %v1114
        %v1282 = vsel %vm1243, 0, %v1121
        %v1283 = vsel %vm1243, 0, %v1128
        %v1284 = vsel %vm1243, 0, %v1135
        %v1285 = vsel %vm1243, 0, %v1142
        %v1286 = vsel %vm1243, 0, %v1149
        %v1287 = vsel %vm1243, 0, %v1156
        %v1288 = vsel %vm1243, 0, %v1163
        %v1289 = vsel %vm1243, 0, %v1170
        %v1290 = vsel %vm1243, 0, %v1177
        %v1291 = vsel %vm1243, 0, %v1184
        %v1292 = vsel %vm1243, 0, %v1191
        %vm1293 = vcmask 1044480
        %vm1294 = vsmask.f32 4352
        %vm1295 = vmand %vm1293, %vm1294
        %v1296 = vsel %vm1295, %v1244, 0
        %v1297 = vsel %vm1295, %v1245, 0
        %v1298 = vsel %vm1295, %v1246, 0
        %v1299 = vsel %vm1295, %v1247, 0
        %v1300 = vsel %vm1295, %v1248, 0
        %v1301 = vsel %vm1295, %v1249, 0
        %v1302 = vsel %vm1295, %v1250, 0
        %v1303 = vsel %vm1295, %v1251, 0
        %v1304 = vsel %vm1295, %v1252, 0
        %v1305 = vsel %vm1295, %v1253, 0
        %v1306 = vsel %vm1295, %v1254, 0
        %v1307 = vsel %vm1295, %v1255, 0
        %v1308 = vsel %vm1295, %v1256, 0
        %v1309 = vsel %vm1295, %v1257, 0
        %v1310 = vsel %vm1295, %v1258, 0
        %v1311 = vsel %vm1295, %v1259, 0
        %v1312 = vsel %vm1295, %v1260, 0
        %v1313 = vsel %vm1295, %v1261, 0
        %v1314 = vsel %vm1295, %v1262, 0
        %v1315 = vsel %vm1295, %v1263, 0
        %v1316 = vsel %vm1295, %v1264, 0
        %v1317 = vsel %vm1295, %v1265, 0
        %v1318 = vsel %vm1295, %v1266, 0
        %v1319 = vsel %vm1295, %v1267, 0
        %v1320 = vsel %vm1295, %v1268, 0
        %v1321 = vsel %vm1295, %v1269, 0
        %v1322 = vsel %vm1295, %v1270, 0
        %v1323 = vsel %vm1295, %v1271, 0
        %v1324 = vsel %vm1295, %v1272, 0
        %v1325 = vsel %vm1295, %v1273, 0
        %v1326 = vsel %vm1295, %v1274, 0
        %v1327 = vsel %vm1295, %v1275, 0
        %v1328 = vsel %vm1295, %v1276, 0
        %v1329 = vsel %vm1295, %v1277, 0
        %v1330 = vsel %vm1295, %v1278, 0
        %v1331 = vsel %vm1295, %v1279, 0
        %v1332 = vsel %vm1295, %v1280, 0
        %v1333 = vsel %vm1295, %v1281, 0
        %v1334 = vsel %vm1295, %v1282, 0
        %v1335 = vsel %vm1295, %v1283, 0
        %v1336 = vsel %vm1295, %v1284, 0
        %v1337 = vsel %vm1295, %v1285, 0
        %v1338 = vsel %vm1295, %v1286, 0
        %v1339 = vsel %vm1295, %v1287, 0
        %v1340 = vsel %vm1295, %v1288, 0
        %v1341 = vsel %vm1295, %v1289, 0
        %v1342 = vsel %vm1295, %v1290, 0
        %v1343 = vsel %vm1295, %v1291, 0
        %v1344 = vsel %vm1295, %v1292, 0
        %v1346 = vshrl.u32 %v1296, 16
        %v1348 = vshll.u32 %v1296, 16
        %v1350 = vrot.slane %v1348, 1
        %v1351 = vor.u32 %v1346, %v1350
        %v1353 = vshrl.u32 %v1297, 16
        %v1355 = vshll.u32 %v1297, 16
        %v1357 = vrot.slane %v1355, 1
        %v1358 = vor.u32 %v1353, %v1357
        %v1360 = vshrl.u32 %v1298, 16
        %v1362 = vshll.u32 %v1298, 16
        %v1364 = vrot.slane %v1362, 1
        %v1365 = vor.u32 %v1360, %v1364
        %v1367 = vshrl.u32 %v1299, 16
        %v1369 = vshll.u32 %v1299, 16
        %v1371 = vrot.slane %v1369, 1
        %v1372 = vor.u32 %v1367, %v1371
        %v1374 = vshrl.u32 %v1300, 16
        %v1376 = vshll.u32 %v1300, 16
        %v1378 = vrot.slane %v1376, 1
        %v1379 = vor.u32 %v1374, %v1378
        %v1381 = vshrl.u32 %v1301, 16
        %v1383 = vshll.u32 %v1301, 16
        %v1385 = vrot.slane %v1383, 1
        %v1386 = vor.u32 %v1381, %v1385
        %v1388 = vshrl.u32 %v1302, 16
        %v1390 = vshll.u32 %v1302, 16
        %v1392 = vrot.slane %v1390, 1
        %v1393 = vor.u32 %v1388, %v1392
        %v1395 = vshrl.u32 %v1303, 16
        %v1397 = vshll.u32 %v1303, 16
        %v1399 = vrot.slane %v1397, 1
        %v1400 = vor.u32 %v1395, %v1399
        %v1402 = vshrl.u32 %v1304, 16
        %v1404 = vshll.u32 %v1304, 16
        %v1406 = vrot.slane %v1404, 1
        %v1407 = vor.u32 %v1402, %v1406
        %v1409 = vshrl.u32 %v1305, 16
        %v1411 = vshll.u32 %v1305, 16
        %v1413 = vrot.slane %v1411, 1
        %v1414 = vor.u32 %v1409, %v1413
        %v1416 = vshrl.u32 %v1306, 16
        %v1418 = vshll.u32 %v1306, 16
        %v1420 = vrot.slane %v1418, 1
        %v1421 = vor.u32 %v1416, %v1420
        %v1423 = vshrl.u32 %v1307, 16
        %v1425 = vshll.u32 %v1307, 16
        %v1427 = vrot.slane %v1425, 1
        %v1428 = vor.u32 %v1423, %v1427
        %v1430 = vshrl.u32 %v1308, 16
        %v1432 = vshll.u32 %v1308, 16
        %v1434 = vrot.slane %v1432, 1
        %v1435 = vor.u32 %v1430, %v1434
        %v1437 = vshrl.u32 %v1309, 16
        %v1439 = vshll.u32 %v1309, 16
        %v1441 = vrot.slane %v1439, 1
        %v1442 = vor.u32 %v1437, %v1441
        %v1444 = vshrl.u32 %v1310, 16
        %v1446 = vshll.u32 %v1310, 16
        %v1448 = vrot.slane %v1446, 1
        %v1449 = vor.u32 %v1444, %v1448
        %v1451 = vshrl.u32 %v1311, 16
        %v1453 = vshll.u32 %v1311, 16
        %v1455 = vrot.slane %v1453, 1
        %v1456 = vor.u32 %v1451, %v1455
        %v1458 = vshrl.u32 %v1312, 16
        %v1460 = vshll.u32 %v1312, 16
        %v1462 = vrot.slane %v1460, 1
        %v1463 = vor.u32 %v1458, %v1462
        %v1465 = vshrl.u32 %v1313, 16
        %v1467 = vshll.u32 %v1313, 16
        %v1469 = vrot.slane %v1467, 1
        %v1470 = vor.u32 %v1465, %v1469
        %v1472 = vshrl.u32 %v1314, 16
        %v1474 = vshll.u32 %v1314, 16
        %v1476 = vrot.slane %v1474, 1
        %v1477 = vor.u32 %v1472, %v1476
        %v1479 = vshrl.u32 %v1315, 16
        %v1481 = vshll.u32 %v1315, 16
        %v1483 = vrot.slane %v1481, 1
        %v1484 = vor.u32 %v1479, %v1483
        %v1486 = vshrl.u32 %v1316, 16
        %v1488 = vshll.u32 %v1316, 16
        %v1490 = vrot.slane %v1488, 1
        %v1491 = vor.u32 %v1486, %v1490
        %v1493 = vshrl.u32 %v1317, 16
        %v1495 = vshll.u32 %v1317, 16
        %v1497 = vrot.slane %v1495, 1
        %v1498 = vor.u32 %v1493, %v1497
        %v1500 = vshrl.u32 %v1318, 16
        %v1502 = vshll.u32 %v1318, 16
        %v1504 = vrot.slane %v1502, 1
        %v1505 = vor.u32 %v1500, %v1504
        %v1507 = vshrl.u32 %v1319, 16
        %v1509 = vshll.u32 %v1319, 16
        %v1511 = vrot.slane %v1509, 1
        %v1512 = vor.u32 %v1507, %v1511
        %v1514 = vshrl.u32 %v1320, 16
        %v1516 = vshll.u32 %v1320, 16
        %v1518 = vrot.slane %v1516, 1
        %v1519 = vor.u32 %v1514, %v1518
        %v1521 = vshrl.u32 %v1321, 16
        %v1523 = vshll.u32 %v1321, 16
        %v1525 = vrot.slane %v1523, 1
        %v1526 = vor.u32 %v1521, %v1525
        %v1528 = vshrl.u32 %v1322, 16
        %v1530 = vshll.u32 %v1322, 16
        %v1532 = vrot.slane %v1530, 1
        %v1533 = vor.u32 %v1528, %v1532
        %v1535 = vshrl.u32 %v1323, 16
        %v1537 = vshll.u32 %v1323, 16
        %v1539 = vrot.slane %v1537, 1
        %v1540 = vor.u32 %v1535, %v1539
        %v1542 = vshrl.u32 %v1324, 16
        %v1544 = vshll.u32 %v1324, 16
        %v1546 = vrot.slane %v1544, 1
        %v1547 = vor.u32 %v1542, %v1546
        %v1549 = vshrl.u32 %v1325, 16
        %v1551 = vshll.u32 %v1325, 16
        %v1553 = vrot.slane %v1551, 1
        %v1554 = vor.u32 %v1549, %v1553
        %v1556 = vshrl.u32 %v1326, 16
        %v1558 = vshll.u32 %v1326, 16
        %v1560 = vrot.slane %v1558, 1
        %v1561 = vor.u32 %v1556, %v1560
        %v1563 = vshrl.u32 %v1327, 16
        %v1565 = vshll.u32 %v1327, 16
        %v1567 = vrot.slane %v1565, 1
        %v1568 = vor.u32 %v1563, %v1567
        %v1570 = vshrl.u32 %v1328, 16
        %v1572 = vshll.u32 %v1328, 16
        %v1574 = vrot.slane %v1572, 1
        %v1575 = vor.u32 %v1570, %v1574
        %v1577 = vshrl.u32 %v1329, 16
        %v1579 = vshll.u32 %v1329, 16
        %v1581 = vrot.slane %v1579, 1
        %v1582 = vor.u32 %v1577, %v1581
        %v1584 = vshrl.u32 %v1330, 16
        %v1586 = vshll.u32 %v1330, 16
        %v1588 = vrot.slane %v1586, 1
        %v1589 = vor.u32 %v1584, %v1588
        %v1591 = vshrl.u32 %v1331, 16
        %v1593 = vshll.u32 %v1331, 16
        %v1595 = vrot.slane %v1593, 1
        %v1596 = vor.u32 %v1591, %v1595
        %v1598 = vshrl.u32 %v1332, 16
        %v1600 = vshll.u32 %v1332, 16
        %v1602 = vrot.slane %v1600, 1
        %v1603 = vor.u32 %v1598, %v1602
        %v1605 = vshrl.u32 %v1333, 16
        %v1607 = vshll.u32 %v1333, 16
        %v1609 = vrot.slane %v1607, 1
        %v1610 = vor.u32 %v1605, %v1609
        %v1612 = vshrl.u32 %v1334, 16
        %v1614 = vshll.u32 %v1334, 16
        %v1616 = vrot.slane %v1614, 1
        %v1617 = vor.u32 %v1612, %v1616
        %v1619 = vshrl.u32 %v1335, 16
        %v1621 = vshll.u32 %v1335, 16
        %v1623 = vrot.slane %v1621, 1
        %v1624 = vor.u32 %v1619, %v1623
        %v1626 = vshrl.u32 %v1336, 16
        %v1628 = vshll.u32 %v1336, 16
        %v1630 = vrot.slane %v1628, 1
        %v1631 = vor.u32 %v1626, %v1630
        %v1633 = vshrl.u32 %v1337, 16
        %v1635 = vshll.u32 %v1337, 16
        %v1637 = vrot.slane %v1635, 1
        %v1638 = vor.u32 %v1633, %v1637
        %v1640 = vshrl.u32 %v1338, 16
        %v1642 = vshll.u32 %v1338, 16
        %v1644 = vrot.slane %v1642, 1
        %v1645 = vor.u32 %v1640, %v1644
        %v1647 = vshrl.u32 %v1339, 16
        %v1649 = vshll.u32 %v1339, 16
        %v1651 = vrot.slane %v1649, 1
        %v1652 = vor.u32 %v1647, %v1651
        %v1654 = vshrl.u32 %v1340, 16
        %v1656 = vshll.u32 %v1340, 16
        %v1658 = vrot.slane %v1656, 1
        %v1659 = vor.u32 %v1654, %v1658
        %v1661 = vshrl.u32 %v1341, 16
        %v1663 = vshll.u32 %v1341, 16
        %v1665 = vrot.slane %v1663, 1
        %v1666 = vor.u32 %v1661, %v1665
        %v1668 = vshrl.u32 %v1342, 16
        %v1670 = vshll.u32 %v1342, 16
        %v1672 = vrot.slane %v1670, 1
        %v1673 = vor.u32 %v1668, %v1672
        %v1675 = vshrl.u32 %v1343, 16
        %v1677 = vshll.u32 %v1343, 16
        %v1679 = vrot.slane %v1677, 1
        %v1680 = vor.u32 %v1675, %v1679
        %v1682 = vshrl.u32 %v1344, 16
        %v1684 = vshll.u32 %v1344, 16
        %v1686 = vrot.slane %v1684, 1
        %v1687 = vor.u32 %v1682, %v1686
        %1688 = vrot.lane.b32.xlu0 %v1351, 4
        %v1689 = vpop.permute.xlu0 %1688
        %1690 = vrot.lane.b32.xlu0 %v1358, 4
        %v1691 = vpop.permute.xlu0 %1690
        %1692 = vrot.lane.b32.xlu0 %v1365, 4
        %v1693 = vpop.permute.xlu0 %1692
        %1694 = vrot.lane.b32.xlu0 %v1372, 4
        %v1695 = vpop.permute.xlu0 %1694
        %1696 = vrot.lane.b32.xlu0 %v1379, 4
        %v1697 = vpop.permute.xlu0 %1696
        %1698 = vrot.lane.b32.xlu0 %v1386, 4
        %v1699 = vpop.permute.xlu0 %1698
        %1700 = vrot.lane.b32.xlu0 %v1393, 4
        %v1701 = vpop.permute.xlu0 %1700
        %1702 = vrot.lane.b32.xlu0 %v1400, 4
        %v1703 = vpop.permute.xlu0 %1702
        %1704 = vrot.lane.b32.xlu0 %v1407, 4
        %v1705 = vpop.permute.xlu0 %1704
        %1706 = vrot.lane.b32.xlu0 %v1414, 4
        %v1707 = vpop.permute.xlu0 %1706
        %1708 = vrot.lane.b32.xlu0 %v1421, 4
        %v1709 = vpop.permute.xlu0 %1708
        %1710 = vrot.lane.b32.xlu0 %v1428, 4
        %v1711 = vpop.permute.xlu0 %1710
        %1712 = vrot.lane.b32.xlu0 %v1435, 4
        %v1713 = vpop.permute.xlu0 %1712
        %1714 = vrot.lane.b32.xlu0 %v1442, 4
        %v1715 = vpop.permute.xlu0 %1714
        %1716 = vrot.lane.b32.xlu0 %v1449, 4
        %v1717 = vpop.permute.xlu0 %1716
        %1718 = vrot.lane.b32.xlu0 %v1456, 4
        %v1719 = vpop.permute.xlu0 %1718
        %1720 = vrot.lane.b32.xlu0 %v1463, 4
        %v1721 = vpop.permute.xlu0 %1720
        %1722 = vrot.lane.b32.xlu0 %v1470, 4
        %v1723 = vpop.permute.xlu0 %1722
        %1724 = vrot.lane.b32.xlu0 %v1477, 4
        %v1725 = vpop.permute.xlu0 %1724
        %1726 = vrot.lane.b32.xlu0 %v1484, 4
        %v1727 = vpop.permute.xlu0 %1726
        %1728 = vrot.lane.b32.xlu0 %v1491, 4
        %v1729 = vpop.permute.xlu0 %1728
        %1730 = vrot.lane.b32.xlu0 %v1498, 4
        %v1731 = vpop.permute.xlu0 %1730
        %1732 = vrot.lane.b32.xlu0 %v1505, 4
        %v1733 = vpop.permute.xlu0 %1732
        %1734 = vrot.lane.b32.xlu0 %v1512, 4
        %v1735 = vpop.permute.xlu0 %1734
        %1736 = vrot.lane.b32.xlu0 %v1519, 4
        %v1737 = vpop.permute.xlu0 %1736
        %1738 = vrot.lane.b32.xlu0 %v1526, 4
        %v1739 = vpop.permute.xlu0 %1738
        %1740 = vrot.lane.b32.xlu0 %v1533, 4
        %v1741 = vpop.permute.xlu0 %1740
        %1742 = vrot.lane.b32.xlu0 %v1540, 4
        %v1743 = vpop.permute.xlu0 %1742
        %1744 = vrot.lane.b32.xlu0 %v1547, 4
        %v1745 = vpop.permute.xlu0 %1744
        %1746 = vrot.lane.b32.xlu0 %v1554, 4
        %v1747 = vpop.permute.xlu0 %1746
        %1748 = vrot.lane.b32.xlu0 %v1561, 4
        %v1749 = vpop.permute.xlu0 %1748
        %1750 = vrot.lane.b32.xlu0 %v1568, 4
        %v1751 = vpop.permute.xlu0 %1750
        %1752 = vrot.lane.b32.xlu0 %v1575, 4
        %v1753 = vpop.permute.xlu0 %1752
        %1754 = vrot.lane.b32.xlu0 %v1582, 4
        %v1755 = vpop.permute.xlu0 %1754
        %1756 = vrot.lane.b32.xlu0 %v1589, 4
        %v1757 = vpop.permute.xlu0 %1756
        %1758 = vrot.lane.b32.xlu0 %v1596, 4
        %v1759 = vpop.permute.xlu0 %1758
        %1760 = vrot.lane.b32.xlu0 %v1603, 4
        %v1761 = vpop.permute.xlu0 %1760
        %1762 = vrot.lane.b32.xlu0 %v1610, 4
        %v1763 = vpop.permute.xlu0 %1762
        %1764 = vrot.lane.b32.xlu0 %v1617, 4
        %v1765 = vpop.permute.xlu0 %1764
        %1766 = vrot.lane.b32.xlu0 %v1624, 4
        %v1767 = vpop.permute.xlu0 %1766
        %1768 = vrot.lane.b32.xlu0 %v1631, 4
        %v1769 = vpop.permute.xlu0 %1768
        %1770 = vrot.lane.b32.xlu0 %v1638, 4
        %v1771 = vpop.permute.xlu0 %1770
        %1772 = vrot.lane.b32.xlu0 %v1645, 4
        %v1773 = vpop.permute.xlu0 %1772
        %1774 = vrot.lane.b32.xlu0 %v1652, 4
        %v1775 = vpop.permute.xlu0 %1774
        %1776 = vrot.lane.b32.xlu0 %v1659, 4
        %v1777 = vpop.permute.xlu0 %1776
        %1778 = vrot.lane.b32.xlu0 %v1666, 4
        %v1779 = vpop.permute.xlu0 %1778
        %1780 = vrot.lane.b32.xlu0 %v1673, 4
        %v1781 = vpop.permute.xlu0 %1780
        %1782 = vrot.lane.b32.xlu0 %v1680, 4
        %v1783 = vpop.permute.xlu0 %1782
        %1784 = vrot.lane.b32.xlu0 %v1687, 4
        %v1785 = vpop.permute.xlu0 %1784
        %v1835 = vrot.slane %v1296, 1
        %v1836 = vrot.slane %v1297, 1
        %v1837 = vrot.slane %v1298, 1
        %v1838 = vrot.slane %v1299, 1
        %v1839 = vrot.slane %v1300, 1
        %v1840 = vrot.slane %v1301, 1
        %v1841 = vrot.slane %v1302, 1
        %v1842 = vrot.slane %v1303, 1
        %v1843 = vrot.slane %v1304, 1
        %v1844 = vrot.slane %v1305, 1
        %v1845 = vrot.slane %v1306, 1
        %v1846 = vrot.slane %v1307, 1
        %v1847 = vrot.slane %v1308, 1
        %v1848 = vrot.slane %v1309, 1
        %v1849 = vrot.slane %v1310, 1
        %v1850 = vrot.slane %v1311, 1
        %v1851 = vrot.slane %v1312, 1
        %v1852 = vrot.slane %v1313, 1
        %v1853 = vrot.slane %v1314, 1
        %v1854 = vrot.slane %v1315, 1
        %v1855 = vrot.slane %v1316, 1
        %v1856 = vrot.slane %v1317, 1
        %v1857 = vrot.slane %v1318, 1
        %v1858 = vrot.slane %v1319, 1
        %v1859 = vrot.slane %v1320, 1
        %v1860 = vrot.slane %v1321, 1
        %v1861 = vrot.slane %v1322, 1
        %v1862 = vrot.slane %v1323, 1
        %v1863 = vrot.slane %v1324, 1
        %v1864 = vrot.slane %v1325, 1
        %v1865 = vrot.slane %v1326, 1
        %v1866 = vrot.slane %v1327, 1
        %v1867 = vrot.slane %v1328, 1
        %v1868 = vrot.slane %v1329, 1
        %v1869 = vrot.slane %v1330, 1
        %v1870 = vrot.slane %v1331, 1
        %v1871 = vrot.slane %v1332, 1
        %v1872 = vrot.slane %v1333, 1
        %v1873 = vrot.slane %v1334, 1
        %v1874 = vrot.slane %v1335, 1
        %v1875 = vrot.slane %v1336, 1
        %v1876 = vrot.slane %v1337, 1
        %v1877 = vrot.slane %v1338, 1
        %v1878 = vrot.slane %v1339, 1
        %v1879 = vrot.slane %v1340, 1
        %v1880 = vrot.slane %v1341, 1
        %v1881 = vrot.slane %v1342, 1
        %v1882 = vrot.slane %v1343, 1
        %v1883 = vrot.slane %v1344, 1
        %1884 = vrot.lane.b32.xlu0 %v1835, 8
        %v1885 = vpop.permute.xlu0 %1884
        %1886 = vrot.lane.b32.xlu0 %v1836, 8
        %v1887 = vpop.permute.xlu0 %1886
        %1888 = vrot.lane.b32.xlu0 %v1837, 8
        %v1889 = vpop.permute.xlu0 %1888
        %1890 = vrot.lane.b32.xlu0 %v1838, 8
        %v1891 = vpop.permute.xlu0 %1890
        %1892 = vrot.lane.b32.xlu0 %v1839, 8
        %v1893 = vpop.permute.xlu0 %1892
        %1894 = vrot.lane.b32.xlu0 %v1840, 8
        %v1895 = vpop.permute.xlu0 %1894
        %1896 = vrot.lane.b32.xlu0 %v1841, 8
        %v1897 = vpop.permute.xlu0 %1896
        %1898 = vrot.lane.b32.xlu0 %v1842, 8
        %v1899 = vpop.permute.xlu0 %1898
        %1900 = vrot.lane.b32.xlu0 %v1843, 8
        %v1901 = vpop.permute.xlu0 %1900
        %1902 = vrot.lane.b32.xlu0 %v1844, 8
        %v1903 = vpop.permute.xlu0 %1902
        %1904 = vrot.lane.b32.xlu0 %v1845, 8
        %v1905 = vpop.permute.xlu0 %1904
        %1906 = vrot.lane.b32.xlu0 %v1846, 8
        %v1907 = vpop.permute.xlu0 %1906
        %1908 = vrot.lane.b32.xlu0 %v1847, 8
        %v1909 = vpop.permute.xlu0 %1908
        %1910 = vrot.lane.b32.xlu0 %v1848, 8
        %v1911 = vpop.permute.xlu0 %1910
        %1912 = vrot.lane.b32.xlu0 %v1849, 8
        %v1913 = vpop.permute.xlu0 %1912
        %1914 = vrot.lane.b32.xlu0 %v1850, 8
        %v1915 = vpop.permute.xlu0 %1914
        %1916 = vrot.lane.b32.xlu0 %v1851, 8
        %v1917 = vpop.permute.xlu0 %1916
        %1918 = vrot.lane.b32.xlu0 %v1852, 8
        %v1919 = vpop.permute.xlu0 %1918
        %1920 = vrot.lane.b32.xlu0 %v1853, 8
        %v1921 = vpop.permute.xlu0 %1920
        %1922 = vrot.lane.b32.xlu0 %v1854, 8
        %v1923 = vpop.permute.xlu0 %1922
        %1924 = vrot.lane.b32.xlu0 %v1855, 8
        %v1925 = vpop.permute.xlu0 %1924
        %1926 = vrot.lane.b32.xlu0 %v1856, 8
        %v1927 = vpop.permute.xlu0 %1926
        %1928 = vrot.lane.b32.xlu0 %v1857, 8
        %v1929 = vpop.permute.xlu0 %1928
        %1930 = vrot.lane.b32.xlu0 %v1858, 8
        %v1931 = vpop.permute.xlu0 %1930
        %1932 = vrot.lane.b32.xlu0 %v1859, 8
        %v1933 = vpop.permute.xlu0 %1932
        %1934 = vrot.lane.b32.xlu0 %v1860, 8
        %v1935 = vpop.permute.xlu0 %1934
        %1936 = vrot.lane.b32.xlu0 %v1861, 8
        %v1937 = vpop.permute.xlu0 %1936
        %1938 = vrot.lane.b32.xlu0 %v1862, 8
        %v1939 = vpop.permute.xlu0 %1938
        %1940 = vrot.lane.b32.xlu0 %v1863, 8
        %v1941 = vpop.permute.xlu0 %1940
        %1942 = vrot.lane.b32.xlu0 %v1864, 8
        %v1943 = vpop.permute.xlu0 %1942
        %1944 = vrot.lane.b32.xlu0 %v1865, 8
        %v1945 = vpop.permute.xlu0 %1944
        %1946 = vrot.lane.b32.xlu0 %v1866, 8
        %v1947 = vpop.permute.xlu0 %1946
        %1948 = vrot.lane.b32.xlu0 %v1867, 8
        %v1949 = vpop.permute.xlu0 %1948
        %1950 = vrot.lane.b32.xlu0 %v1868, 8
        %v1951 = vpop.permute.xlu0 %1950
        %1952 = vrot.lane.b32.xlu0 %v1869, 8
        %v1953 = vpop.permute.xlu0 %1952
        %1954 = vrot.lane.b32.xlu0 %v1870, 8
        %v1955 = vpop.permute.xlu0 %1954
        %1956 = vrot.lane.b32.xlu0 %v1871, 8
        %v1957 = vpop.permute.xlu0 %1956
        %1958 = vrot.lane.b32.xlu0 %v1872, 8
        %v1959 = vpop.permute.xlu0 %1958
        %1960 = vrot.lane.b32.xlu0 %v1873, 8
        %v1961 = vpop.permute.xlu0 %1960
        %1962 = vrot.lane.b32.xlu0 %v1874, 8
        %v1963 = vpop.permute.xlu0 %1962
        %1964 = vrot.lane.b32.xlu0 %v1875, 8
        %v1965 = vpop.permute.xlu0 %1964
        %1966 = vrot.lane.b32.xlu0 %v1876, 8
        %v1967 = vpop.permute.xlu0 %1966
        %1968 = vrot.lane.b32.xlu0 %v1877, 8
        %v1969 = vpop.permute.xlu0 %1968
        %1970 = vrot.lane.b32.xlu0 %v1878, 8
        %v1971 = vpop.permute.xlu0 %1970
        %1972 = vrot.lane.b32.xlu0 %v1879, 8
        %v1973 = vpop.permute.xlu0 %1972
        %1974 = vrot.lane.b32.xlu0 %v1880, 8
        %v1975 = vpop.permute.xlu0 %1974
        %1976 = vrot.lane.b32.xlu0 %v1881, 8
        %v1977 = vpop.permute.xlu0 %1976
        %1978 = vrot.lane.b32.xlu0 %v1882, 8
        %v1979 = vpop.permute.xlu0 %1978
        %1980 = vrot.lane.b32.xlu0 %v1883, 8
        %v1981 = vpop.permute.xlu0 %1980
        %vm1982 = vcmask 31744
        %v1984 = vsel %vm1982, %v1296, %v1689
        %v1986 = vsel %vm1982, %v1297, %v1691
        %v1988 = vsel %vm1982, %v1298, %v1693
        %v1990 = vsel %vm1982, %v1299, %v1695
        %v1992 = vsel %vm1982, %v1300, %v1697
        %v1994 = vsel %vm1982, %v1301, %v1699
        %v1996 = vsel %vm1982, %v1302, %v1701
        %v1998 = vsel %vm1982, %v1303, %v1703
        %v2000 = vsel %vm1982, %v1304, %v1705
        %v2002 = vsel %vm1982, %v1305, %v1707
        %v2004 = vsel %vm1982, %v1306, %v1709
        %v2006 = vsel %vm1982, %v1307, %v1711
        %v2008 = vsel %vm1982, %v1308, %v1713
        %v2010 = vsel %vm1982, %v1309, %v1715
        %v2012 = vsel %vm1982, %v1310, %v1717
        %v2014 = vsel %vm1982, %v1311, %v1719
        %v2016 = vsel %vm1982, %v1312, %v1721
        %v2018 = vsel %vm1982, %v1313, %v1723
        %v2020 = vsel %vm1982, %v1314, %v1725
        %v2022 = vsel %vm1982, %v1315, %v1727
        %v2024 = vsel %vm1982, %v1316, %v1729
        %v2026 = vsel %vm1982, %v1317, %v1731
        %v2028 = vsel %vm1982, %v1318, %v1733
        %v2030 = vsel %vm1982, %v1319, %v1735
        %v2032 = vsel %vm1982, %v1320, %v1737
        %v2034 = vsel %vm1982, %v1321, %v1739
        %v2036 = vsel %vm1982, %v1322, %v1741
        %v2038 = vsel %vm1982, %v1323, %v1743
        %v2040 = vsel %vm1982, %v1324, %v1745
        %v2042 = vsel %vm1982, %v1325, %v1747
        %v2044 = vsel %vm1982, %v1326, %v1749
        %v2046 = vsel %vm1982, %v1327, %v1751
        %v2048 = vsel %vm1982, %v1328, %v1753
        %v2050 = vsel %vm1982, %v1329, %v1755
        %v2052 = vsel %vm1982, %v1330, %v1757
        %v2054 = vsel %vm1982, %v1331, %v1759
        %v2056 = vsel %vm1982, %v1332, %v1761
        %v2058 = vsel %vm1982, %v1333, %v1763
        %v2060 = vsel %vm1982, %v1334, %v1765
        %v2062 = vsel %vm1982, %v1335, %v1767
        %v2064 = vsel %vm1982, %v1336, %v1769
        %v2066 = vsel %vm1982, %v1337, %v1771
        %v2068 = vsel %vm1982, %v1338, %v1773
        %v2070 = vsel %vm1982, %v1339, %v1775
        %v2072 = vsel %vm1982, %v1340, %v1777
        %v2074 = vsel %vm1982, %v1341, %v1779
        %v2076 = vsel %vm1982, %v1342, %v1781
        %v2078 = vsel %vm1982, %v1343, %v1783
        %v2080 = vsel %vm1982, %v1344, %v1785
        %vm2081 = vcmask 64512
        %v2083 = vsel %vm2081, %v1984, %v1885
        %v2085 = vsel %vm2081, %v1986, %v1887
        %v2087 = vsel %vm2081, %v1988, %v1889
        %v2089 = vsel %vm2081, %v1990, %v1891
        %v2091 = vsel %vm2081, %v1992, %v1893
        %v2093 = vsel %vm2081, %v1994, %v1895
        %v2095 = vsel %vm2081, %v1996, %v1897
        %v2097 = vsel %vm2081, %v1998, %v1899
        %v2099 = vsel %vm2081, %v2000, %v1901
        %v2101 = vsel %vm2081, %v2002, %v1903
        %v2103 = vsel %vm2081, %v2004, %v1905
        %v2105 = vsel %vm2081, %v2006, %v1907
        %v2107 = vsel %vm2081, %v2008, %v1909
        %v2109 = vsel %vm2081, %v2010, %v1911
        %v2111 = vsel %vm2081, %v2012, %v1913
        %v2113 = vsel %vm2081, %v2014, %v1915
        %v2115 = vsel %vm2081, %v2016, %v1917
        %v2117 = vsel %vm2081, %v2018, %v1919
        %v2119 = vsel %vm2081, %v2020, %v1921
        %v2121 = vsel %vm2081, %v2022, %v1923
        %v2123 = vsel %vm2081, %v2024, %v1925
        %v2125 = vsel %vm2081, %v2026, %v1927
        %v2127 = vsel %vm2081, %v2028, %v1929
        %v2129 = vsel %vm2081, %v2030, %v1931
        %v2131 = vsel %vm2081, %v2032, %v1933
        %v2133 = vsel %vm2081, %v2034, %v1935
        %v2135 = vsel %vm2081, %v2036, %v1937
        %v2137 = vsel %vm2081, %v2038, %v1939
        %v2139 = vsel %vm2081, %v2040, %v1941
        %v2141 = vsel %vm2081, %v2042, %v1943
        %v2143 = vsel %vm2081, %v2044, %v1945
        %v2145 = vsel %vm2081, %v2046, %v1947
        %v2147 = vsel %vm2081, %v2048, %v1949
        %v2149 = vsel %vm2081, %v2050, %v1951
        %v2151 = vsel %vm2081, %v2052, %v1953
        %v2153 = vsel %vm2081, %v2054, %v1955
        %v2155 = vsel %vm2081, %v2056, %v1957
        %v2157 = vsel %vm2081, %v2058, %v1959
        %v2159 = vsel %vm2081, %v2060, %v1961
        %v2161 = vsel %vm2081, %v2062, %v1963
        %v2163 = vsel %vm2081, %v2064, %v1965
        %v2165 = vsel %vm2081, %v2066, %v1967
        %v2167 = vsel %vm2081, %v2068, %v1969
        %v2169 = vsel %vm2081, %v2070, %v1971
        %v2171 = vsel %vm2081, %v2072, %v1973
        %v2173 = vsel %vm2081, %v2074, %v1975
        %v2175 = vsel %vm2081, %v2076, %v1977
        %v2177 = vsel %vm2081, %v2078, %v1979
        %v2179 = vsel %vm2081, %v2080, %v1981
        %v2180 = vld [vmem:[#allocation11] sm:$0xf]
        %v2181 = vld [vmem:[#allocation11 + $0x4] sm:$0x3]
        %v2182 = vld [vmem:[#allocation11 + $0x8] sm:$0xf]
        %v2183 = vld [vmem:[#allocation11 + $0xc] sm:$0x3]
        %v2184 = vld [vmem:[#allocation11 + $0x10] sm:$0xf]
        %v2185 = vld [vmem:[#allocation11 + $0x14] sm:$0x3]
        %v2186 = vld [vmem:[#allocation11 + $0x18] sm:$0xf]
        %v2187 = vld [vmem:[#allocation11 + $0x1c] sm:$0x3]
        %v2188 = vld [vmem:[#allocation11 + $0x20] sm:$0xf]
        %v2189 = vld [vmem:[#allocation11 + $0x24] sm:$0x3]
        %v2190 = vld [vmem:[#allocation11 + $0x28] sm:$0xf]
        %v2191 = vld [vmem:[#allocation11 + $0x2c] sm:$0x3]
        %v2192 = vld [vmem:[#allocation11 + $0x30] sm:$0xf]
        %v2193 = vld [vmem:[#allocation11 + $0x34] sm:$0x3]
        %v2194 = vld [vmem:[#allocation11 + $0x38] sm:$0xf]
        %v2195 = vld [vmem:[#allocation11 + $0x3c] sm:$0x3]
        %v2196 = vld [vmem:[#allocation11 + $0x40] sm:$0xf]
        %v2197 = vld [vmem:[#allocation11 + $0x44] sm:$0x3]
        %v2230 = vunpack.c.l.b16 %v2085
        %v2231 = vunpack.c.l.b16 %v2087
        %v2232 = vunpack.c.l.b16 %v2089
        %v2233 = vunpack.c.l.b16 %v2091
        %v2234 = vunpack.c.l.b16 %v2093
        %v2235 = vunpack.c.l.b16 %v2095
        %v2236 = vunpack.c.l.b16 %v2097
        %v2237 = vunpack.c.l.b16 %v2099
        %v2238 = vunpack.c.l.b16 %v2101
        %v2239 = vunpack.c.l.b16 %v2103
        %v2240 = vunpack.c.l.b16 %v2105
        %v2241 = vunpack.c.l.b16 %v2107
        %v2242 = vunpack.c.l.b16 %v2109
        %v2243 = vunpack.c.l.b16 %v2111
        %v2244 = vunpack.c.l.b16 %v2113
        %v2245 = vunpack.c.l.b16 %v2115
        %v2246 = vunpack.c.l.b16 %v2117
        %v2247 = vunpack.c.l.b16 %v2119
        %v2248 = vunpack.c.l.b16 %v2121
        %v2249 = vunpack.c.l.b16 %v2123
        %v2250 = vunpack.c.l.b16 %v2125
        %v2251 = vunpack.c.l.b16 %v2127
        %v2252 = vunpack.c.l.b16 %v2129
        %v2253 = vunpack.c.l.b16 %v2131
        %v2254 = vunpack.c.l.b16 %v2133
        %v2255 = vunpack.c.l.b16 %v2135
        %v2256 = vunpack.c.l.b16 %v2137
        %v2257 = vunpack.c.l.b16 %v2139
        %v2258 = vunpack.c.l.b16 %v2141
        %v2259 = vunpack.c.l.b16 %v2143
        %v2260 = vunpack.c.l.b16 %v2145
        %v2261 = vunpack.c.l.b16 %v2147
        %v2262 = vpack.c.b16 %v2231, %v2230
        %v2263 = vpack.c.b16 %v2233, %v2232
        %v2264 = vpack.c.b16 %v2235, %v2234
        %v2265 = vpack.c.b16 %v2237, %v2236
        %v2266 = vpack.c.b16 %v2239, %v2238
        %v2267 = vpack.c.b16 %v2241, %v2240
        %v2268 = vpack.c.b16 %v2243, %v2242
        %v2269 = vpack.c.b16 %v2245, %v2244
        %v2270 = vpack.c.b16 %v2247, %v2246
        %v2271 = vpack.c.b16 %v2249, %v2248
        %v2272 = vpack.c.b16 %v2251, %v2250
        %v2273 = vpack.c.b16 %v2253, %v2252
        %v2274 = vpack.c.b16 %v2255, %v2254
        %v2275 = vpack.c.b16 %v2257, %v2256
        %v2276 = vpack.c.b16 %v2259, %v2258
        %v2277 = vpack.c.b16 %v2261, %v2260
        %v2280 = vunpack.c.l.b16 %v2182
        %v2281 = vunpack.c.l.b16 %v2183
        %v2282 = vpack.c.b16 %v2281, %v2280
        %vm2283 = vcmask 97280
        %v2285 = vsel %vm2283, %v2262, 0
        %v2288 = vsel %vm2283, %v2263, 0
        %v2291 = vsel %vm2283, %v2264, 0
        %v2294 = vsel %vm2283, %v2265, 0
        %v2297 = vsel %vm2283, %v2266, 0
        %v2300 = vsel %vm2283, %v2267, 0
        %v2303 = vsel %vm2283, %v2268, 0
        %v2306 = vsel %vm2283, %v2269, 0
        %v2309 = vsel %vm2283, %v2270, 0
        %v2312 = vsel %vm2283, %v2271, 0
        %v2315 = vsel %vm2283, %v2272, 0
        %v2318 = vsel %vm2283, %v2273, 0
        %v2321 = vsel %vm2283, %v2274, 0
        %v2324 = vsel %vm2283, %v2275, 0
        %v2327 = vsel %vm2283, %v2276, 0
        %v2330 = vsel %vm2283, %v2277, 0
        %vm2332 = vcmask 1045504
        %v2334 = vsel %vm2332, %v2282, 0
        %2336 = vmatprep.subr.bf16.mxu0 0
        %2337 = vmatpush1.bf16.msra.mxu0 %v2334
        %2338 = vmatprep.subr.bf16.mxu0 0
        %2339 = vmatpush1.bf16.msra.mxu0 0
        %2340 = vmatprep.subr.bf16.mxu0 0
        %2341 = vmatpush1.bf16.msra.mxu0 0
        %2342 = vmatprep.subr.bf16.mxu0 0
        %2343 = vmatpush1.bf16.msra.mxu0 0
        %2344 = vmatprep.subr.bf16.mxu0 0
        %2345 = vmatpush1.bf16.msra.mxu0 0
        %2346 = vmatprep.subr.bf16.mxu0 0
        %2347 = vmatpush1.bf16.msra.mxu0 0
        %2348 = vmatprep.subr.bf16.mxu0 0
        %2349 = vmatpush1.bf16.msra.mxu0 0
        %2350 = vmatprep.subr.bf16.mxu0 0
        %2351 = vmatpush1.bf16.msra.mxu0 0
        %2352 = vmatprep.subr.bf16.mxu0 0
        %2353 = vmatpush1.bf16.msra.mxu0 0
        %2354 = vmatprep.subr.bf16.mxu0 0
        %2355 = vmatpush1.bf16.msra.mxu0 0
        %2356 = vmatprep.subr.bf16.mxu0 0
        %2357 = vmatpush1.bf16.msra.mxu0 0
        %2358 = vmatprep.subr.bf16.mxu0 0
        %2359 = vmatpush1.bf16.msra.mxu0 0
        %2360 = vmatprep.subr.bf16.mxu0 0
        %2361 = vmatpush1.bf16.msra.mxu0 0
        %2362 = vmatprep.subr.bf16.mxu0 0
        %2363 = vmatpush1.bf16.msra.mxu0 0
        %2364 = vmatprep.subr.bf16.mxu0 0
        %2365 = vmatpush1.bf16.msra.mxu0 0
        %2366 = vmatprep.subr.bf16.mxu0 0
        %2367 = vmatpush1.bf16.msra.mxu0 0
        %2368 = vmatprep.mubr.bf16.mxu0 0
        %2369 = vmatmul.mubr.bf16.gmra.mrb[0].mxu0 %v2285
        %v2370 = vpop.f32.mrb[0].mxu0
        %v2371 = vadd.f32 0.0, %v2370
        %v2372 = vpop.f32.mrb[0].mxu0
        %v2373 = vpop.f32.mrb[0].mxu0
        %v2374 = vadd.f32 0.0, %v2373
        %v2375 = vpop.f32.mrb[0].mxu0
        %2376 = vmatprep.mubr.bf16.mxu0 0
        %2377 = vmatmul.mubr.bf16.gmra.mrb[0].mxu0 %v2288
        %v2378 = vpop.f32.mrb[0].mxu0
        %v2379 = vadd.f32 0.0, %v2378
        %v2380 = vpop.f32.mrb[0].mxu0
        %v2381 = vpop.f32.mrb[0].mxu0
        %v2382 = vadd.f32 0.0, %v2381
        %v2383 = vpop.f32.mrb[0].mxu0
        %2384 = vmatprep.mubr.bf16.mxu0 0
        %2385 = vmatmul.mubr.bf16.gmra.mrb[0].mxu0 %v2291
        %v2386 = vpop.f32.mrb[0].mxu0
        %v2387 = vadd.f32 0.0, %v2386
        %v2388 = vpop.f32.mrb[0].mxu0
        %v2389 = vpop.f32.mrb[0].mxu0
        %v2390 = vadd.f32 0.0, %v2389
        %v2391 = vpop.f32.mrb[0].mxu0
        %2392 = vmatprep.mubr.bf16.mxu0 0
        %2393 = vmatmul.mubr.bf16.gmra.mrb[0].mxu0 %v2294
        %v2394 = vpop.f32.mrb[0].mxu0
        %v2395 = vadd.f32 0.0, %v2394
        %v2396 = vpop.f32.mrb[0].mxu0
        %v2397 = vpop.f32.mrb[0].mxu0
        %v2398 = vadd.f32 0.0, %v2397
        %v2399 = vpop.f32.mrb[0].mxu0
        %2400 = vmatprep.mubr.bf16.mxu0 0
        %2401 = vmatmul.mubr.bf16.gmra.mrb[0].mxu0 %v2297
        %v2402 = vpop.f32.mrb[0].mxu0
        %v2403 = vadd.f32 0.0, %v2402
        %v2404 = vpop.f32.mrb[0].mxu0
        %v2405 = vpop.f32.mrb[0].mxu0
        %v2406 = vadd.f32 0.0, %v2405
        %v2407 = vpop.f32.mrb[0].mxu0
        %2408 = vmatprep.mubr.bf16.mxu0 0
        %2409 = vmatmul.mubr.bf16.gmra.mrb[0].mxu0 %v2300
        %v2410 = vpop.f32.mrb[0].mxu0
        %v2411 = vadd.f32 0.0, %v2410
        %v2412 = vpop.f32.mrb[0].mxu0
        %v2413 = vpop.f32.mrb[0].mxu0
        %v2414 = vadd.f32 0.0, %v2413
        %v2415 = vpop.f32.mrb[0].mxu0
        %2416 = vmatprep.mubr.bf16.mxu0 0
        %2417 = vmatmul.mubr.bf16.gmra.mrb[0].mxu0 %v2303
        %v2418 = vpop.f32.mrb[0].mxu0
        %v2419 = vadd.f32 0.0, %v2418
        %v2420 = vpop.f32.mrb[0].mxu0
        %v2421 = vpop.f32.mrb[0].mxu0
        %v2422 = vadd.f32 0.0, %v2421
        %v2423 = vpop.f32.mrb[0].mxu0
        %2424 = vmatprep.mubr.bf16.mxu0 0
        %2425 = vmatmul.mubr.bf16.gmra.mrb[0].mxu0 %v2306
        %v2426 = vpop.f32.mrb[0].mxu0
        %v2427 = vadd.f32 0.0, %v2426
        %v2428 = vpop.f32.mrb[0].mxu0
        %v2429 = vpop.f32.mrb[0].mxu0
        %v2430 = vadd.f32 0.0, %v2429
        %v2431 = vpop.f32.mrb[0].mxu0
        %2432 = vmatprep.mubr.bf16.mxu0 0
        %2433 = vmatmul.mubr.bf16.gmra.mrb[0].mxu0 %v2309
        %v2434 = vpop.f32.mrb[0].mxu0
        %v2435 = vadd.f32 0.0, %v2434
        %v2436 = vpop.f32.mrb[0].mxu0
        %v2437 = vpop.f32.mrb[0].mxu0
        %v2438 = vadd.f32 0.0, %v2437
        %v2439 = vpop.f32.mrb[0].mxu0
        %2440 = vmatprep.mubr.bf16.mxu0 0
        %2441 = vmatmul.mubr.bf16.gmra.mrb[0].mxu0 %v2312
        %v2442 = vpop.f32.mrb[0].mxu0
        %v2443 = vadd.f32 0.0, %v2442
        %v2444 = vpop.f32.mrb[0].mxu0
        %v2445 = vpop.f32.mrb[0].mxu0
        %v2446 = vadd.f32 0.0, %v2445
        %v2447 = vpop.f32.mrb[0].mxu0
        %2448 = vmatprep.mubr.bf16.mxu0 0
        %2449 = vmatmul.mubr.bf16.gmra.mrb[0].mxu0 %v2315
        %v2450 = vpop.f32.mrb[0].mxu0
        %v2451 = vadd.f32 0.0, %v2450
        %v2452 = vpop.f32.mrb[0].mxu0
        %v2453 = vpop.f32.mrb[0].mxu0
        %v2454 = vadd.f32 0.0, %v2453
        %v2455 = vpop.f32.mrb[0].mxu0
        %2456 = vmatprep.mubr.bf16.mxu0 0
        %2457 = vmatmul.mubr.bf16.gmra.mrb[0].mxu0 %v2318
        %v2458 = vpop.f32.mrb[0].mxu0
        %v2459 = vadd.f32 0.0, %v2458
        %v2460 = vpop.f32.mrb[0].mxu0
        %v2461 = vpop.f32.mrb[0].mxu0
        %v2462 = vadd.f32 0.0, %v2461
        %v2463 = vpop.f32.mrb[0].mxu0
        %2464 = vmatprep.mubr.bf16.mxu0 0
        %2465 = vmatmul.mubr.bf16.gmra.mrb[0].mxu0 %v2321
        %v2466 = vpop.f32.mrb[0].mxu0
        %v2467 = vadd.f32 0.0, %v2466
        %v2468 = vpop.f32.mrb[0].mxu0
        %v2469 = vpop.f32.mrb[0].mxu0
        %v2470 = vadd.f32 0.0, %v2469
        %v2471 = vpop.f32.mrb[0].mxu0
        %2472 = vmatprep.mubr.bf16.mxu0 0
        %2473 = vmatmul.mubr.bf16.gmra.mrb[0].mxu0 %v2324
        %v2474 = vpop.f32.mrb[0].mxu0
        %v2475 = vadd.f32 0.0, %v2474
        %v2476 = vpop.f32.mrb[0].mxu0
        %v2477 = vpop.f32.mrb[0].mxu0
        %v2478 = vadd.f32 0.0, %v2477
        %v2479 = vpop.f32.mrb[0].mxu0
        %2480 = vmatprep.mubr.bf16.mxu0 0
        %2481 = vmatmul.mubr.bf16.gmra.mrb[0].mxu0 %v2327
        %v2482 = vpop.f32.mrb[0].mxu0
        %v2483 = vadd.f32 0.0, %v2482
        %v2484 = vpop.f32.mrb[0].mxu0
        %v2485 = vpop.f32.mrb[0].mxu0
        %v2486 = vadd.f32 0.0, %v2485
        %v2487 = vpop.f32.mrb[0].mxu0
        %2488 = vmatprep.mubr.bf16.mxu0 0
        %2489 = vmatmul.mubr.bf16.gmra.mrb[0].mxu0 %v2330
        %v2490 = vpop.f32.mrb[0].mxu0
        %v2491 = vadd.f32 0.0, %v2490
        %v2492 = vpop.f32.mrb[0].mxu0
        %v2493 = vpop.f32.mrb[0].mxu0
        %v2494 = vadd.f32 0.0, %v2493
        %v2495 = vpop.f32.mrb[0].mxu0
        %2496 = vdwg.mxu0
        %v2498 = vunpack.c.l.b16 %v2083
        %v2499 = vpack.c.b16 %v2230, %v2498
        %v2500 = vpack.c.b16 %v2232, %v2231
        %v2501 = vpack.c.b16 %v2234, %v2233
        %v2502 = vpack.c.b16 %v2236, %v2235
        %v2503 = vpack.c.b16 %v2238, %v2498
        %v2504 = vpack.c.b16 %v2240, %v2239
        %v2505 = vpack.c.b16 %v2242, %v2241
        %v2506 = vpack.c.b16 %v2244, %v2243
        %v2507 = vpack.c.b16 %v2246, %v2498
        %v2508 = vpack.c.b16 %v2248, %v2247
        %v2509 = vpack.c.b16 %v2250, %v2249
        %v2510 = vpack.c.b16 %v2252, %v2251
        %v2511 = vpack.c.b16 %v2254, %v2498
        %v2512 = vpack.c.b16 %v2256, %v2255
        %v2513 = vpack.c.b16 %v2258, %v2257
        %v2514 = vpack.c.b16 %v2260, %v2259
        %v2517 = vunpack.c.l.b16 %v2180
        %v2518 = vunpack.c.l.b16 %v2181
        %v2519 = vpack.c.b16 %v2518, %v2517
        %v2521 = vsel %vm2283, %v2499, 0
        %v2524 = vsel %vm2283, %v2500, 0
        %v2527 = vsel %vm2283, %v2501, 0
        %v2530 = vsel %vm2283, %v2502, 0
        %v2533 = vsel %vm2283, %v2503, 0
        %v2536 = vsel %vm2283, %v2504, 0
        %v2539 = vsel %vm2283, %v2505, 0
        %v2542 = vsel %vm2283, %v2506, 0
        %v2545 = vsel %vm2283, %v2507, 0
        %v2548 = vsel %vm2283, %v2508, 0
        %v2551 = vsel %vm2283, %v2509, 0
        %v2554 = vsel %vm2283, %v2510, 0
        %v2557 = vsel %vm2283, %v2511, 0
        %v2560 = vsel %vm2283, %v2512, 0
        %v2563 = vsel %vm2283, %v2513, 0
        %v2566 = vsel %vm2283, %v2514, 0
        %v2569 = vsel %vm2332, %v2519, 0
        %2571 = vmatprep.subr.bf16.mxu0 0
        %2572 = vmatpush1.bf16.msra.mxu0 %v2569
        %2573 = vmatprep.subr.bf16.mxu0 0
        %2574 = vmatpush1.bf16.msra.mxu0 0
        %2575 = vmatprep.subr.bf16.mxu0 0
        %2576 = vmatpush1.bf16.msra.mxu0 0
        %2577 = vmatprep.subr.bf16.mxu0 0
        %2578 = vmatpush1.bf16.msra.mxu0 0
        %2579 = vmatprep.subr.bf16.mxu0 0
        %2580 = vmatpush1.bf16.msra.mxu0 0
        %2581 = vmatprep.subr.bf16.mxu0 0
        %2582 = vmatpush1.bf16.msra.mxu0 0
        %2583 = vmatprep.subr.bf16.mxu0 0
        %2584 = vmatpush1.bf16.msra.mxu0 0
        %2585 = vmatprep.subr.bf16.mxu0 0
        %2586 = vmatpush1.bf16.msra.mxu0 0
        %2587 = vmatprep.subr.bf16.mxu0 0
        %2588 = vmatpush1.bf16.msra.mxu0 0
        %2589 = vmatprep.subr.bf16.mxu0 0
        %2590 = vmatpush1.bf16.msra.mxu0 0
        %2591 = vmatprep.subr.bf16.mxu0 0
        %2592 = vmatpush1.bf16.msra.mxu0 0
        %2593 = vmatprep.subr.bf16.mxu0 0
        %2594 = vmatpush1.bf16.msra.mxu0 0
        %2595 = vmatprep.subr.bf16.mxu0 0
        %2596 = vmatpush1.bf16.msra.mxu0 0
        %2597 = vmatprep.subr.bf16.mxu0 0
        %2598 = vmatpush1.bf16.msra.mxu0 0
        %2599 = vmatprep.subr.bf16.mxu0 0
        %2600 = vmatpush1.bf16.msra.mxu0 0
        %2601 = vmatprep.subr.bf16.mxu0 0
        %2602 = vmatpush1.bf16.msra.mxu0 0
        %2603 = vmatprep.mubr.bf16.mxu0 0
        %2604 = vmatmul.mubr.bf16.gmra.mrb[0].mxu0 %v2521
        %v2605 = vpop.f32.mrb[0].mxu0
        %v2606 = vadd.f32 %v2371, %v2605
        %v2607 = vpop.f32.mrb[0].mxu0
        %v2608 = vpop.f32.mrb[0].mxu0
        %v2609 = vadd.f32 %v2374, %v2608
        %v2610 = vpop.f32.mrb[0].mxu0
        %2611 = vmatprep.mubr.bf16.mxu0 0
        %2612 = vmatmul.mubr.bf16.gmra.mrb[0].mxu0 %v2524
        %v2613 = vpop.f32.mrb[0].mxu0
        %v2614 = vadd.f32 %v2379, %v2613
        %v2615 = vpop.f32.mrb[0].mxu0
        %v2616 = vpop.f32.mrb[0].mxu0
        %v2617 = vadd.f32 %v2382, %v2616
        %v2618 = vpop.f32.mrb[0].mxu0
        %2619 = vmatprep.mubr.bf16.mxu0 0
        %2620 = vmatmul.mubr.bf16.gmra.mrb[0].mxu0 %v2527
        %v2621 = vpop.f32.mrb[0].mxu0
        %v2622 = vadd.f32 %v2387, %v2621
        %v2623 = vpop.f32.mrb[0].mxu0
        %v2624 = vpop.f32.mrb[0].mxu0
        %v2625 = vadd.f32 %v2390, %v2624
        %v2626 = vpop.f32.mrb[0].mxu0
        %2627 = vmatprep.mubr.bf16.mxu0 0
        %2628 = vmatmul.mubr.bf16.gmra.mrb[0].mxu0 %v2530
        %v2629 = vpop.f32.mrb[0].mxu0
        %v2630 = vadd.f32 %v2395, %v2629
        %v2631 = vpop.f32.mrb[0].mxu0
        %v2632 = vpop.f32.mrb[0].mxu0
        %v2633 = vadd.f32 %v2398, %v2632
        %v2634 = vpop.f32.mrb[0].mxu0
        %2635 = vmatprep.mubr.bf16.mxu0 0
        %2636 = vmatmul.mubr.bf16.gmra.mrb[0].mxu0 %v2533
        %v2637 = vpop.f32.mrb[0].mxu0
        %v2638 = vadd.f32 %v2403, %v2637
        %v2639 = vpop.f32.mrb[0].mxu0
        %v2640 = vpop.f32.mrb[0].mxu0
        %v2641 = vadd.f32 %v2406, %v2640
        %v2642 = vpop.f32.mrb[0].mxu0
        %2643 = vmatprep.mubr.bf16.mxu0 0
        %2644 = vmatmul.mubr.bf16.gmra.mrb[0].mxu0 %v2536
        %v2645 = vpop.f32.mrb[0].mxu0
        %v2646 = vadd.f32 %v2411, %v2645
        %v2647 = vpop.f32.mrb[0].mxu0
        %v2648 = vpop.f32.mrb[0].mxu0
        %v2649 = vadd.f32 %v2414, %v2648
        %v2650 = vpop.f32.mrb[0].mxu0
        %2651 = vmatprep.mubr.bf16.mxu0 0
        %2652 = vmatmul.mubr.bf16.gmra.mrb[0].mxu0 %v2539
        %v2653 = vpop.f32.mrb[0].mxu0
        %v2654 = vadd.f32 %v2419, %v2653
        %v2655 = vpop.f32.mrb[0].mxu0
        %v2656 = vpop.f32.mrb[0].mxu0
        %v2657 = vadd.f32 %v2422, %v2656
        %v2658 = vpop.f32.mrb[0].mxu0
        %2659 = vmatprep.mubr.bf16.mxu0 0
        %2660 = vmatmul.mubr.bf16.gmra.mrb[0].mxu0 %v2542
        %v2661 = vpop.f32.mrb[0].mxu0
        %v2662 = vadd.f32 %v2427, %v2661
        %v2663 = vpop.f32.mrb[0].mxu0
        %v2664 = vpop.f32.mrb[0].mxu0
        %v2665 = vadd.f32 %v2430, %v2664
        %v2666 = vpop.f32.mrb[0].mxu0
        %2667 = vmatprep.mubr.bf16.mxu0 0
        %2668 = vmatmul.mubr.bf16.gmra.mrb[0].mxu0 %v2545
        %v2669 = vpop.f32.mrb[0].mxu0
        %v2670 = vadd.f32 %v2435, %v2669
        %v2671 = vpop.f32.mrb[0].mxu0
        %v2672 = vpop.f32.mrb[0].mxu0
        %v2673 = vadd.f32 %v2438, %v2672
        %v2674 = vpop.f32.mrb[0].mxu0
        %2675 = vmatprep.mubr.bf16.mxu0 0
        %2676 = vmatmul.mubr.bf16.gmra.mrb[0].mxu0 %v2548
        %v2677 = vpop.f32.mrb[0].mxu0
        %v2678 = vadd.f32 %v2443, %v2677
        %v2679 = vpop.f32.mrb[0].mxu0
        %v2680 = vpop.f32.mrb[0].mxu0
        %v2681 = vadd.f32 %v2446, %v2680
        %v2682 = vpop.f32.mrb[0].mxu0
        %2683 = vmatprep.mubr.bf16.mxu0 0
        %2684 = vmatmul.mubr.bf16.gmra.mrb[0].mxu0 %v2551
        %v2685 = vpop.f32.mrb[0].mxu0
        %v2686 = vadd.f32 %v2451, %v2685
        %v2687 = vpop.f32.mrb[0].mxu0
        %v2688 = vpop.f32.mrb[0].mxu0
        %v2689 = vadd.f32 %v2454, %v2688
        %v2690 = vpop.f32.mrb[0].mxu0
        %2691 = vmatprep.mubr.bf16.mxu0 0
        %2692 = vmatmul.mubr.bf16.gmra.mrb[0].mxu0 %v2554
        %v2693 = vpop.f32.mrb[0].mxu0
        %v2694 = vadd.f32 %v2459, %v2693
        %v2695 = vpop.f32.mrb[0].mxu0
        %v2696 = vpop.f32.mrb[0].mxu0
        %v2697 = vadd.f32 %v2462, %v2696
        %v2698 = vpop.f32.mrb[0].mxu0
        %2699 = vmatprep.mubr.bf16.mxu0 0
        %2700 = vmatmul.mubr.bf16.gmra.mrb[0].mxu0 %v2557
        %v2701 = vpop.f32.mrb[0].mxu0
        %v2702 = vadd.f32 %v2467, %v2701
        %v2703 = vpop.f32.mrb[0].mxu0
        %v2704 = vpop.f32.mrb[0].mxu0
        %v2705 = vadd.f32 %v2470, %v2704
        %v2706 = vpop.f32.mrb[0].mxu0
        %2707 = vmatprep.mubr.bf16.mxu0 0
        %2708 = vmatmul.mubr.bf16.gmra.mrb[0].mxu0 %v2560
        %v2709 = vpop.f32.mrb[0].mxu0
        %v2710 = vadd.f32 %v2475, %v2709
        %v2711 = vpop.f32.mrb[0].mxu0
        %v2712 = vpop.f32.mrb[0].mxu0
        %v2713 = vadd.f32 %v2478, %v2712
        %v2714 = vpop.f32.mrb[0].mxu0
        %2715 = vmatprep.mubr.bf16.mxu0 0
        %2716 = vmatmul.mubr.bf16.gmra.mrb[0].mxu0 %v2563
        %v2717 = vpop.f32.mrb[0].mxu0
        %v2718 = vadd.f32 %v2483, %v2717
        %v2719 = vpop.f32.mrb[0].mxu0
        %v2720 = vpop.f32.mrb[0].mxu0
        %v2721 = vadd.f32 %v2486, %v2720
        %v2722 = vpop.f32.mrb[0].mxu0
        %2723 = vmatprep.mubr.bf16.mxu0 0
        %2724 = vmatmul.mubr.bf16.gmra.mrb[0].mxu0 %v2566
        %v2725 = vpop.f32.mrb[0].mxu0
        %v2726 = vadd.f32 %v2491, %v2725
        %v2727 = vpop.f32.mrb[0].mxu0
        %v2728 = vpop.f32.mrb[0].mxu0
        %v2729 = vadd.f32 %v2494, %v2728
        %v2730 = vpop.f32.mrb[0].mxu0
        %2731 = vdwg.mxu0
        %v2732 = vpack.c.b16 %v2498, %v2237
        %v2733 = vpack.c.b16 %v2498, %v2245
        %v2734 = vpack.c.b16 %v2498, %v2253
        %v2735 = vpack.c.b16 %v2498, %v2261
        %v2738 = vunpack.c.l.b16 %v2184
        %v2739 = vunpack.c.l.b16 %v2185
        %v2740 = vpack.c.b16 %v2739, %v2738
        %v2742 = vsel %vm2283, %v2732, 0
        %v2745 = vsel %vm2283, %v2733, 0
        %v2748 = vsel %vm2283, %v2734, 0
        %v2751 = vsel %vm2283, %v2735, 0
        %v2754 = vsel %vm2332, %v2740, 0
        %2756 = vmatprep.subr.bf16.mxu0 0
        %2757 = vmatpush1.bf16.msra.mxu0 %v2754
        %2758 = vmatprep.subr.bf16.mxu0 0
        %2759 = vmatpush1.bf16.msra.mxu0 0
        %2760 = vmatprep.subr.bf16.mxu0 0
        %2761 = vmatpush1.bf16.msra.mxu0 0
        %2762 = vmatprep.subr.bf16.mxu0 0
        %2763 = vmatpush1.bf16.msra.mxu0 0
        %2764 = vmatprep.subr.bf16.mxu0 0
        %2765 = vmatpush1.bf16.msra.mxu0 0
        %2766 = vmatprep.subr.bf16.mxu0 0
        %2767 = vmatpush1.bf16.msra.mxu0 0
        %2768 = vmatprep.subr.bf16.mxu0 0
        %2769 = vmatpush1.bf16.msra.mxu0 0
        %2770 = vmatprep.subr.bf16.mxu0 0
        %2771 = vmatpush1.bf16.msra.mxu0 0
        %2772 = vmatprep.subr.bf16.mxu0 0
        %2773 = vmatpush1.bf16.msra.mxu0 0
        %2774 = vmatprep.subr.bf16.mxu0 0
        %2775 = vmatpush1.bf16.msra.mxu0 0
        %2776 = vmatprep.subr.bf16.mxu0 0
        %2777 = vmatpush1.bf16.msra.mxu0 0
        %2778 = vmatprep.subr.bf16.mxu0 0
        %2779 = vmatpush1.bf16.msra.mxu0 0
        %2780 = vmatprep.subr.bf16.mxu0 0
        %2781 = vmatpush1.bf16.msra.mxu0 0
        %2782 = vmatprep.subr.bf16.mxu0 0
        %2783 = vmatpush1.bf16.msra.mxu0 0
        %2784 = vmatprep.subr.bf16.mxu0 0
        %2785 = vmatpush1.bf16.msra.mxu0 0
        %2786 = vmatprep.subr.bf16.mxu0 0
        %2787 = vmatpush1.bf16.msra.mxu0 0
        %2788 = vmatprep.mubr.bf16.mxu0 0
        %2789 = vmatmul.mubr.bf16.gmra.mrb[0].mxu0 %v2524
        %v2790 = vpop.f32.mrb[0].mxu0
        %v2791 = vadd.f32 0.0, %v2790
        %v2792 = vpop.f32.mrb[0].mxu0
        %v2793 = vpop.f32.mrb[0].mxu0
        %v2794 = vadd.f32 0.0, %v2793
        %v2795 = vpop.f32.mrb[0].mxu0
        %2796 = vmatprep.mubr.bf16.mxu0 0
        %2797 = vmatmul.mubr.bf16.gmra.mrb[0].mxu0 %v2527
        %v2798 = vpop.f32.mrb[0].mxu0
        %v2799 = vadd.f32 0.0, %v2798
        %v2800 = vpop.f32.mrb[0].mxu0
        %v2801 = vpop.f32.mrb[0].mxu0
        %v2802 = vadd.f32 0.0, %v2801
        %v2803 = vpop.f32.mrb[0].mxu0
        %2804 = vmatprep.mubr.bf16.mxu0 0
        %2805 = vmatmul.mubr.bf16.gmra.mrb[0].mxu0 %v2530
        %v2806 = vpop.f32.mrb[0].mxu0
        %v2807 = vadd.f32 0.0, %v2806
        %v2808 = vpop.f32.mrb[0].mxu0
        %v2809 = vpop.f32.mrb[0].mxu0
        %v2810 = vadd.f32 0.0, %v2809
        %v2811 = vpop.f32.mrb[0].mxu0
        %2812 = vmatprep.mubr.bf16.mxu0 0
        %2813 = vmatmul.mubr.bf16.gmra.mrb[0].mxu0 %v2742
        %v2814 = vpop.f32.mrb[0].mxu0
        %v2815 = vadd.f32 0.0, %v2814
        %v2816 = vpop.f32.mrb[0].mxu0
        %v2817 = vpop.f32.mrb[0].mxu0
        %v2818 = vadd.f32 0.0, %v2817
        %v2819 = vpop.f32.mrb[0].mxu0
        %2820 = vmatprep.mubr.bf16.mxu0 0
        %2821 = vmatmul.mubr.bf16.gmra.mrb[0].mxu0 %v2536
        %v2822 = vpop.f32.mrb[0].mxu0
        %v2823 = vadd.f32 0.0, %v2822
        %v2824 = vpop.f32.mrb[0].mxu0
        %v2825 = vpop.f32.mrb[0].mxu0
        %v2826 = vadd.f32 0.0, %v2825
        %v2827 = vpop.f32.mrb[0].mxu0
        %2828 = vmatprep.mubr.bf16.mxu0 0
        %2829 = vmatmul.mubr.bf16.gmra.mrb[0].mxu0 %v2539
        %v2830 = vpop.f32.mrb[0].mxu0
        %v2831 = vadd.f32 0.0, %v2830
        %v2832 = vpop.f32.mrb[0].mxu0
        %v2833 = vpop.f32.mrb[0].mxu0
        %v2834 = vadd.f32 0.0, %v2833
        %v2835 = vpop.f32.mrb[0].mxu0
        %2836 = vmatprep.mubr.bf16.mxu0 0
        %2837 = vmatmul.mubr.bf16.gmra.mrb[0].mxu0 %v2542
        %v2838 = vpop.f32.mrb[0].mxu0
        %v2839 = vadd.f32 0.0, %v2838
        %v2840 = vpop.f32.mrb[0].mxu0
        %v2841 = vpop.f32.mrb[0].mxu0
        %v2842 = vadd.f32 0.0, %v2841
        %v2843 = vpop.f32.mrb[0].mxu0
        %2844 = vmatprep.mubr.bf16.mxu0 0
        %2845 = vmatmul.mubr.bf16.gmra.mrb[0].mxu0 %v2745
        %v2846 = vpop.f32.mrb[0].mxu0
        %v2847 = vadd.f32 0.0, %v2846
        %v2848 = vpop.f32.mrb[0].mxu0
        %v2849 = vpop.f32.mrb[0].mxu0
        %v2850 = vadd.f32 0.0, %v2849
        %v2851 = vpop.f32.mrb[0].mxu0
        %2852 = vmatprep.mubr.bf16.mxu0 0
        %2853 = vmatmul.mubr.bf16.gmra.mrb[0].mxu0 %v2548
        %v2854 = vpop.f32.mrb[0].mxu0
        %v2855 = vadd.f32 0.0, %v2854
        %v2856 = vpop.f32.mrb[0].mxu0
        %v2857 = vpop.f32.mrb[0].mxu0
        %v2858 = vadd.f32 0.0, %v2857
        %v2859 = vpop.f32.mrb[0].mxu0
        %2860 = vmatprep.mubr.bf16.mxu0 0
        %2861 = vmatmul.mubr.bf16.gmra.mrb[0].mxu0 %v2551
        %v2862 = vpop.f32.mrb[0].mxu0
        %v2863 = vadd.f32 0.0, %v2862
        %v2864 = vpop.f32.mrb[0].mxu0
        %v2865 = vpop.f32.mrb[0].mxu0
        %v2866 = vadd.f32 0.0, %v2865
        %v2867 = vpop.f32.mrb[0].mxu0
        %2868 = vmatprep.mubr.bf16.mxu0 0
        %2869 = vmatmul.mubr.bf16.gmra.mrb[0].mxu0 %v2554
        %v2870 = vpop.f32.mrb[0].mxu0
        %v2871 = vadd.f32 0.0, %v2870
        %v2872 = vpop.f32.mrb[0].mxu0
        %v2873 = vpop.f32.mrb[0].mxu0
        %v2874 = vadd.f32 0.0, %v2873
        %v2875 = vpop.f32.mrb[0].mxu0
        %2876 = vmatprep.mubr.bf16.mxu0 0
        %2877 = vmatmul.mubr.bf16.gmra.mrb[0].mxu0 %v2748
        %v2878 = vpop.f32.mrb[0].mxu0
        %v2879 = vadd.f32 0.0, %v2878
        %v2880 = vpop.f32.mrb[0].mxu0
        %v2881 = vpop.f32.mrb[0].mxu0
        %v2882 = vadd.f32 0.0, %v2881
        %v2883 = vpop.f32.mrb[0].mxu0
        %2884 = vmatprep.mubr.bf16.mxu0 0
        %2885 = vmatmul.mubr.bf16.gmra.mrb[0].mxu0 %v2560
        %v2886 = vpop.f32.mrb[0].mxu0
        %v2887 = vadd.f32 0.0, %v2886
        %v2888 = vpop.f32.mrb[0].mxu0
        %v2889 = vpop.f32.mrb[0].mxu0
        %v2890 = vadd.f32 0.0, %v2889
        %v2891 = vpop.f32.mrb[0].mxu0
        %2892 = vmatprep.mubr.bf16.mxu0 0
        %2893 = vmatmul.mubr.bf16.gmra.mrb[0].mxu0 %v2563
        %v2894 = vpop.f32.mrb[0].mxu0
        %v2895 = vadd.f32 0.0, %v2894
        %v2896 = vpop.f32.mrb[0].mxu0
        %v2897 = vpop.f32.mrb[0].mxu0
        %v2898 = vadd.f32 0.0, %v2897
        %v2899 = vpop.f32.mrb[0].mxu0
        %2900 = vmatprep.mubr.bf16.mxu0 0
        %2901 = vmatmul.mubr.bf16.gmra.mrb[0].mxu0 %v2566
        %v2902 = vpop.f32.mrb[0].mxu0
        %v2903 = vadd.f32 0.0, %v2902
        %v2904 = vpop.f32.mrb[0].mxu0
        %v2905 = vpop.f32.mrb[0].mxu0
        %v2906 = vadd.f32 0.0, %v2905
        %v2907 = vpop.f32.mrb[0].mxu0
        %2908 = vmatprep.mubr.bf16.mxu0 0
        %2909 = vmatmul.mubr.bf16.gmra.mrb[0].mxu0 %v2751
        %v2910 = vpop.f32.mrb[0].mxu0
        %v2911 = vadd.f32 0.0, %v2910
        %v2912 = vpop.f32.mrb[0].mxu0
        %v2913 = vpop.f32.mrb[0].mxu0
        %v2914 = vadd.f32 0.0, %v2913
        %v2915 = vpop.f32.mrb[0].mxu0
        %2916 = vdwg.mxu0
        %v2917 = vadd.f32 %v2606, %v2791
        %v2918 = vadd.f32 %v2609, %v2794
        %v2919 = vadd.f32 %v2614, %v2799
        %v2920 = vadd.f32 %v2617, %v2802
        %v2921 = vadd.f32 %v2622, %v2807
        %v2922 = vadd.f32 %v2625, %v2810
        %v2923 = vadd.f32 %v2630, %v2815
        %v2924 = vadd.f32 %v2633, %v2818
        %v2925 = vadd.f32 %v2638, %v2823
        %v2926 = vadd.f32 %v2641, %v2826
        %v2927 = vadd.f32 %v2646, %v2831
        %v2928 = vadd.f32 %v2649, %v2834
        %v2929 = vadd.f32 %v2654, %v2839
        %v2930 = vadd.f32 %v2657, %v2842
        %v2931 = vadd.f32 %v2662, %v2847
        %v2932 = vadd.f32 %v2665, %v2850
        %v2933 = vadd.f32 %v2670, %v2855
        %v2934 = vadd.f32 %v2673, %v2858
        %v2935 = vadd.f32 %v2678, %v2863
        %v2936 = vadd.f32 %v2681, %v2866
        %v2937 = vadd.f32 %v2686, %v2871
        %v2938 = vadd.f32 %v2689, %v2874
        %v2939 = vadd.f32 %v2694, %v2879
        %v2940 = vadd.f32 %v2697, %v2882
        %v2941 = vadd.f32 %v2702, %v2887
        %v2942 = vadd.f32 %v2705, %v2890
        %v2943 = vadd.f32 %v2710, %v2895
        %v2944 = vadd.f32 %v2713, %v2898
        %v2945 = vadd.f32 %v2718, %v2903
        %v2946 = vadd.f32 %v2721, %v2906
        %v2947 = vadd.f32 %v2726, %v2911
        %v2948 = vadd.f32 %v2729, %v2914
        %v2956 = vunpack.c.l.b16 %v2149
        %v2957 = vunpack.c.l.b16 %v2151
        %v2958 = vunpack.c.l.b16 %v2153
        %v2959 = vunpack.c.l.b16 %v2155
        %v2960 = vunpack.c.l.b16 %v2157
        %v2961 = vunpack.c.l.b16 %v2159
        %v2962 = vunpack.c.l.b16 %v2161
        %v2963 = vpack.c.b16 %v2956, %v2498
        %v2964 = vpack.c.b16 %v2958, %v2957
        %v2965 = vpack.c.b16 %v2960, %v2959
        %v2966 = vpack.c.b16 %v2962, %v2961
        %v2969 = vunpack.c.l.b16 %v2186
        %v2970 = vunpack.c.l.b16 %v2187
        %v2971 = vpack.c.b16 %v2970, %v2969
        %v2973 = vsel %vm2283, %v2963, 0
        %v2976 = vsel %vm2283, %v2964, 0
        %v2979 = vsel %vm2283, %v2965, 0
        %v2982 = vsel %vm2283, %v2966, 0
        %v2985 = vsel %vm2332, %v2971, 0
        %2987 = vmatprep.subr.bf16.mxu0 0
        %2988 = vmatpush1.bf16.msra.mxu0 %v2985
        %2989 = vmatprep.subr.bf16.mxu0 0
        %2990 = vmatpush1.bf16.msra.mxu0 0
        %2991 = vmatprep.subr.bf16.mxu0 0
        %2992 = vmatpush1.bf16.msra.mxu0 0
        %2993 = vmatprep.subr.bf16.mxu0 0
        %2994 = vmatpush1.bf16.msra.mxu0 0
        %2995 = vmatprep.subr.bf16.mxu0 0
        %2996 = vmatpush1.bf16.msra.mxu0 0
        %2997 = vmatprep.subr.bf16.mxu0 0
        %2998 = vmatpush1.bf16.msra.mxu0 0
        %2999 = vmatprep.subr.bf16.mxu0 0
        %3000 = vmatpush1.bf16.msra.mxu0 0
        %3001 = vmatprep.subr.bf16.mxu0 0
        %3002 = vmatpush1.bf16.msra.mxu0 0
        %3003 = vmatprep.subr.bf16.mxu0 0
        %3004 = vmatpush1.bf16.msra.mxu0 0
        %3005 = vmatprep.subr.bf16.mxu0 0
        %3006 = vmatpush1.bf16.msra.mxu0 0
        %3007 = vmatprep.subr.bf16.mxu0 0
        %3008 = vmatpush1.bf16.msra.mxu0 0
        %3009 = vmatprep.subr.bf16.mxu0 0
        %3010 = vmatpush1.bf16.msra.mxu0 0
        %3011 = vmatprep.subr.bf16.mxu0 0
        %3012 = vmatpush1.bf16.msra.mxu0 0
        %3013 = vmatprep.subr.bf16.mxu0 0
        %3014 = vmatpush1.bf16.msra.mxu0 0
        %3015 = vmatprep.subr.bf16.mxu0 0
        %3016 = vmatpush1.bf16.msra.mxu0 0
        %3017 = vmatprep.subr.bf16.mxu0 0
        %3018 = vmatpush1.bf16.msra.mxu0 0
        %3019 = vmatprep.mubr.bf16.mxu0 0
        %3020 = vmatmul.mubr.bf16.gmra.mrb[0].mxu0 %v2533
        %v3021 = vpop.f32.mrb[0].mxu0
        %v3022 = vadd.f32 0.0, %v3021
        %v3023 = vpop.f32.mrb[0].mxu0
        %v3024 = vpop.f32.mrb[0].mxu0
        %v3025 = vadd.f32 0.0, %v3024
        %v3026 = vpop.f32.mrb[0].mxu0
        %3027 = vmatprep.mubr.bf16.mxu0 0
        %3028 = vmatmul.mubr.bf16.gmra.mrb[0].mxu0 %v2536
        %v3029 = vpop.f32.mrb[0].mxu0
        %v3030 = vadd.f32 0.0, %v3029
        %v3031 = vpop.f32.mrb[0].mxu0
        %v3032 = vpop.f32.mrb[0].mxu0
        %v3033 = vadd.f32 0.0, %v3032
        %v3034 = vpop.f32.mrb[0].mxu0
        %3035 = vmatprep.mubr.bf16.mxu0 0
        %3036 = vmatmul.mubr.bf16.gmra.mrb[0].mxu0 %v2539
        %v3037 = vpop.f32.mrb[0].mxu0
        %v3038 = vadd.f32 0.0, %v3037
        %v3039 = vpop.f32.mrb[0].mxu0
        %v3040 = vpop.f32.mrb[0].mxu0
        %v3041 = vadd.f32 0.0, %v3040
        %v3042 = vpop.f32.mrb[0].mxu0
        %3043 = vmatprep.mubr.bf16.mxu0 0
        %3044 = vmatmul.mubr.bf16.gmra.mrb[0].mxu0 %v2542
        %v3045 = vpop.f32.mrb[0].mxu0
        %v3046 = vadd.f32 0.0, %v3045
        %v3047 = vpop.f32.mrb[0].mxu0
        %v3048 = vpop.f32.mrb[0].mxu0
        %v3049 = vadd.f32 0.0, %v3048
        %v3050 = vpop.f32.mrb[0].mxu0
        %3051 = vmatprep.mubr.bf16.mxu0 0
        %3052 = vmatmul.mubr.bf16.gmra.mrb[0].mxu0 %v2545
        %v3053 = vpop.f32.mrb[0].mxu0
        %v3054 = vadd.f32 0.0, %v3053
        %v3055 = vpop.f32.mrb[0].mxu0
        %v3056 = vpop.f32.mrb[0].mxu0
        %v3057 = vadd.f32 0.0, %v3056
        %v3058 = vpop.f32.mrb[0].mxu0
        %3059 = vmatprep.mubr.bf16.mxu0 0
        %3060 = vmatmul.mubr.bf16.gmra.mrb[0].mxu0 %v2548
        %v3061 = vpop.f32.mrb[0].mxu0
        %v3062 = vadd.f32 0.0, %v3061
        %v3063 = vpop.f32.mrb[0].mxu0
        %v3064 = vpop.f32.mrb[0].mxu0
        %v3065 = vadd.f32 0.0, %v3064
        %v3066 = vpop.f32.mrb[0].mxu0
        %3067 = vmatprep.mubr.bf16.mxu0 0
        %3068 = vmatmul.mubr.bf16.gmra.mrb[0].mxu0 %v2551
        %v3069 = vpop.f32.mrb[0].mxu0
        %v3070 = vadd.f32 0.0, %v3069
        %v3071 = vpop.f32.mrb[0].mxu0
        %v3072 = vpop.f32.mrb[0].mxu0
        %v3073 = vadd.f32 0.0, %v3072
        %v3074 = vpop.f32.mrb[0].mxu0
        %3075 = vmatprep.mubr.bf16.mxu0 0
        %3076 = vmatmul.mubr.bf16.gmra.mrb[0].mxu0 %v2554
        %v3077 = vpop.f32.mrb[0].mxu0
        %v3078 = vadd.f32 0.0, %v3077
        %v3079 = vpop.f32.mrb[0].mxu0
        %v3080 = vpop.f32.mrb[0].mxu0
        %v3081 = vadd.f32 0.0, %v3080
        %v3082 = vpop.f32.mrb[0].mxu0
        %3083 = vmatprep.mubr.bf16.mxu0 0
        %3084 = vmatmul.mubr.bf16.gmra.mrb[0].mxu0 %v2557
        %v3085 = vpop.f32.mrb[0].mxu0
        %v3086 = vadd.f32 0.0, %v3085
        %v3087 = vpop.f32.mrb[0].mxu0
        %v3088 = vpop.f32.mrb[0].mxu0
        %v3089 = vadd.f32 0.0, %v3088
        %v3090 = vpop.f32.mrb[0].mxu0
        %3091 = vmatprep.mubr.bf16.mxu0 0
        %3092 = vmatmul.mubr.bf16.gmra.mrb[0].mxu0 %v2560
        %v3093 = vpop.f32.mrb[0].mxu0
        %v3094 = vadd.f32 0.0, %v3093
        %v3095 = vpop.f32.mrb[0].mxu0
        %v3096 = vpop.f32.mrb[0].mxu0
        %v3097 = vadd.f32 0.0, %v3096
        %v3098 = vpop.f32.mrb[0].mxu0
        %3099 = vmatprep.mubr.bf16.mxu0 0
        %3100 = vmatmul.mubr.bf16.gmra.mrb[0].mxu0 %v2563
        %v3101 = vpop.f32.mrb[0].mxu0
        %v3102 = vadd.f32 0.0, %v3101
        %v3103 = vpop.f32.mrb[0].mxu0
        %v3104 = vpop.f32.mrb[0].mxu0
        %v3105 = vadd.f32 0.0, %v3104
        %v3106 = vpop.f32.mrb[0].mxu0
        %3107 = vmatprep.mubr.bf16.mxu0 0
        %3108 = vmatmul.mubr.bf16.gmra.mrb[0].mxu0 %v2566
        %v3109 = vpop.f32.mrb[0].mxu0
        %v3110 = vadd.f32 0.0, %v3109
        %v3111 = vpop.f32.mrb[0].mxu0
        %v3112 = vpop.f32.mrb[0].mxu0
        %v3113 = vadd.f32 0.0, %v3112
        %v3114 = vpop.f32.mrb[0].mxu0
        %3115 = vmatprep.mubr.bf16.mxu0 0
        %3116 = vmatmul.mubr.bf16.gmra.mrb[0].mxu0 %v2973
        %v3117 = vpop.f32.mrb[0].mxu0
        %v3118 = vadd.f32 0.0, %v3117
        %v3119 = vpop.f32.mrb[0].mxu0
        %v3120 = vpop.f32.mrb[0].mxu0
        %v3121 = vadd.f32 0.0, %v3120
        %v3122 = vpop.f32.mrb[0].mxu0
        %3123 = vmatprep.mubr.bf16.mxu0 0
        %3124 = vmatmul.mubr.bf16.gmra.mrb[0].mxu0 %v2976
        %v3125 = vpop.f32.mrb[0].mxu0
        %v3126 = vadd.f32 0.0, %v3125
        %v3127 = vpop.f32.mrb[0].mxu0
        %v3128 = vpop.f32.mrb[0].mxu0
        %v3129 = vadd.f32 0.0, %v3128
        %v3130 = vpop.f32.mrb[0].mxu0
        %3131 = vmatprep.mubr.bf16.mxu0 0
        %3132 = vmatmul.mubr.bf16.gmra.mrb[0].mxu0 %v2979
        %v3133 = vpop.f32.mrb[0].mxu0
        %v3134 = vadd.f32 0.0, %v3133
        %v3135 = vpop.f32.mrb[0].mxu0
        %v3136 = vpop.f32.mrb[0].mxu0
        %v3137 = vadd.f32 0.0, %v3136
        %v3138 = vpop.f32.mrb[0].mxu0
        %3139 = vmatprep.mubr.bf16.mxu0 0
        %3140 = vmatmul.mubr.bf16.gmra.mrb[0].mxu0 %v2982
        %v3141 = vpop.f32.mrb[0].mxu0
        %v3142 = vadd.f32 0.0, %v3141
        %v3143 = vpop.f32.mrb[0].mxu0
        %v3144 = vpop.f32.mrb[0].mxu0
        %v3145 = vadd.f32 0.0, %v3144
        %v3146 = vpop.f32.mrb[0].mxu0
        %3147 = vdwg.mxu0
        %v3148 = vadd.f32 %v2917, %v3022
        %v3149 = vadd.f32 %v2918, %v3025
        %v3150 = vadd.f32 %v2919, %v3030
        %v3151 = vadd.f32 %v2920, %v3033
        %v3152 = vadd.f32 %v2921, %v3038
        %v3153 = vadd.f32 %v2922, %v3041
        %v3154 = vadd.f32 %v2923, %v3046
        %v3155 = vadd.f32 %v2924, %v3049
        %v3156 = vadd.f32 %v2925, %v3054
        %v3157 = vadd.f32 %v2926, %v3057
        %v3158 = vadd.f32 %v2927, %v3062
        %v3159 = vadd.f32 %v2928, %v3065
        %v3160 = vadd.f32 %v2929, %v3070
        %v3161 = vadd.f32 %v2930, %v3073
        %v3162 = vadd.f32 %v2931, %v3078
        %v3163 = vadd.f32 %v2932, %v3081
        %v3164 = vadd.f32 %v2933, %v3086
        %v3165 = vadd.f32 %v2934, %v3089
        %v3166 = vadd.f32 %v2935, %v3094
        %v3167 = vadd.f32 %v2936, %v3097
        %v3168 = vadd.f32 %v2937, %v3102
        %v3169 = vadd.f32 %v2938, %v3105
        %v3170 = vadd.f32 %v2939, %v3110
        %v3171 = vadd.f32 %v2940, %v3113
        %v3172 = vadd.f32 %v2941, %v3118
        %v3173 = vadd.f32 %v2942, %v3121
        %v3174 = vadd.f32 %v2943, %v3126
        %v3175 = vadd.f32 %v2944, %v3129
        %v3176 = vadd.f32 %v2945, %v3134
        %v3177 = vadd.f32 %v2946, %v3137
        %v3178 = vadd.f32 %v2947, %v3142
        %v3179 = vadd.f32 %v2948, %v3145
        %v3181 = vunpack.c.l.b16 %v2163
        %v3182 = vpack.c.b16 %v2957, %v2956
        %v3183 = vpack.c.b16 %v2959, %v2958
        %v3184 = vpack.c.b16 %v2961, %v2960
        %v3185 = vpack.c.b16 %v3181, %v2962
        %v3188 = vunpack.c.l.b16 %v2188
        %v3189 = vunpack.c.l.b16 %v2189
        %v3190 = vpack.c.b16 %v3189, %v3188
        %v3192 = vsel %vm2283, %v3182, 0
        %v3195 = vsel %vm2283, %v3183, 0
        %v3198 = vsel %vm2283, %v3184, 0
        %v3201 = vsel %vm2283, %v3185, 0
        %v3204 = vsel %vm2332, %v3190, 0
        %3206 = vmatprep.subr.bf16.mxu0 0
        %3207 = vmatpush1.bf16.msra.mxu0 %v3204
        %3208 = vmatprep.subr.bf16.mxu0 0
        %3209 = vmatpush1.bf16.msra.mxu0 0
        %3210 = vmatprep.subr.bf16.mxu0 0
        %3211 = vmatpush1.bf16.msra.mxu0 0
        %3212 = vmatprep.subr.bf16.mxu0 0
        %3213 = vmatpush1.bf16.msra.mxu0 0
        %3214 = vmatprep.subr.bf16.mxu0 0
        %3215 = vmatpush1.bf16.msra.mxu0 0
        %3216 = vmatprep.subr.bf16.mxu0 0
        %3217 = vmatpush1.bf16.msra.mxu0 0
        %3218 = vmatprep.subr.bf16.mxu0 0
        %3219 = vmatpush1.bf16.msra.mxu0 0
        %3220 = vmatprep.subr.bf16.mxu0 0
        %3221 = vmatpush1.bf16.msra.mxu0 0
        %3222 = vmatprep.subr.bf16.mxu0 0
        %3223 = vmatpush1.bf16.msra.mxu0 0
        %3224 = vmatprep.subr.bf16.mxu0 0
        %3225 = vmatpush1.bf16.msra.mxu0 0
        %3226 = vmatprep.subr.bf16.mxu0 0
        %3227 = vmatpush1.bf16.msra.mxu0 0
        %3228 = vmatprep.subr.bf16.mxu0 0
        %3229 = vmatpush1.bf16.msra.mxu0 0
        %3230 = vmatprep.subr.bf16.mxu0 0
        %3231 = vmatpush1.bf16.msra.mxu0 0
        %3232 = vmatprep.subr.bf16.mxu0 0
        %3233 = vmatpush1.bf16.msra.mxu0 0
        %3234 = vmatprep.subr.bf16.mxu0 0
        %3235 = vmatpush1.bf16.msra.mxu0 0
        %3236 = vmatprep.subr.bf16.mxu0 0
        %3237 = vmatpush1.bf16.msra.mxu0 0
        %3238 = vmatprep.mubr.bf16.mxu0 0
        %3239 = vmatmul.mubr.bf16.gmra.mrb[0].mxu0 %v2297
        %v3240 = vpop.f32.mrb[0].mxu0
        %v3241 = vadd.f32 0.0, %v3240
        %v3242 = vpop.f32.mrb[0].mxu0
        %v3243 = vpop.f32.mrb[0].mxu0
        %v3244 = vadd.f32 0.0, %v3243
        %v3245 = vpop.f32.mrb[0].mxu0
        %3246 = vmatprep.mubr.bf16.mxu0 0
        %3247 = vmatmul.mubr.bf16.gmra.mrb[0].mxu0 %v2300
        %v3248 = vpop.f32.mrb[0].mxu0
        %v3249 = vadd.f32 0.0, %v3248
        %v3250 = vpop.f32.mrb[0].mxu0
        %v3251 = vpop.f32.mrb[0].mxu0
        %v3252 = vadd.f32 0.0, %v3251
        %v3253 = vpop.f32.mrb[0].mxu0
        %3254 = vmatprep.mubr.bf16.mxu0 0
        %3255 = vmatmul.mubr.bf16.gmra.mrb[0].mxu0 %v2303
        %v3256 = vpop.f32.mrb[0].mxu0
        %v3257 = vadd.f32 0.0, %v3256
        %v3258 = vpop.f32.mrb[0].mxu0
        %v3259 = vpop.f32.mrb[0].mxu0
        %v3260 = vadd.f32 0.0, %v3259
        %v3261 = vpop.f32.mrb[0].mxu0
        %3262 = vmatprep.mubr.bf16.mxu0 0
        %3263 = vmatmul.mubr.bf16.gmra.mrb[0].mxu0 %v2306
        %v3264 = vpop.f32.mrb[0].mxu0
        %v3265 = vadd.f32 0.0, %v3264
        %v3266 = vpop.f32.mrb[0].mxu0
        %v3267 = vpop.f32.mrb[0].mxu0
        %v3268 = vadd.f32 0.0, %v3267
        %v3269 = vpop.f32.mrb[0].mxu0
        %3270 = vmatprep.mubr.bf16.mxu0 0
        %3271 = vmatmul.mubr.bf16.gmra.mrb[0].mxu0 %v2309
        %v3272 = vpop.f32.mrb[0].mxu0
        %v3273 = vadd.f32 0.0, %v3272
        %v3274 = vpop.f32.mrb[0].mxu0
        %v3275 = vpop.f32.mrb[0].mxu0
        %v3276 = vadd.f32 0.0, %v3275
        %v3277 = vpop.f32.mrb[0].mxu0
        %3278 = vmatprep.mubr.bf16.mxu0 0
        %3279 = vmatmul.mubr.bf16.gmra.mrb[0].mxu0 %v2312
        %v3280 = vpop.f32.mrb[0].mxu0
        %v3281 = vadd.f32 0.0, %v3280
        %v3282 = vpop.f32.mrb[0].mxu0
        %v3283 = vpop.f32.mrb[0].mxu0
        %v3284 = vadd.f32 0.0, %v3283
        %v3285 = vpop.f32.mrb[0].mxu0
        %3286 = vmatprep.mubr.bf16.mxu0 0
        %3287 = vmatmul.mubr.bf16.gmra.mrb[0].mxu0 %v2315
        %v3288 = vpop.f32.mrb[0].mxu0
        %v3289 = vadd.f32 0.0, %v3288
        %v3290 = vpop.f32.mrb[0].mxu0
        %v3291 = vpop.f32.mrb[0].mxu0
        %v3292 = vadd.f32 0.0, %v3291
        %v3293 = vpop.f32.mrb[0].mxu0
        %3294 = vmatprep.mubr.bf16.mxu0 0
        %3295 = vmatmul.mubr.bf16.gmra.mrb[0].mxu0 %v2318
        %v3296 = vpop.f32.mrb[0].mxu0
        %v3297 = vadd.f32 0.0, %v3296
        %v3298 = vpop.f32.mrb[0].mxu0
        %v3299 = vpop.f32.mrb[0].mxu0
        %v3300 = vadd.f32 0.0, %v3299
        %v3301 = vpop.f32.mrb[0].mxu0
        %3302 = vmatprep.mubr.bf16.mxu0 0
        %3303 = vmatmul.mubr.bf16.gmra.mrb[0].mxu0 %v2321
        %v3304 = vpop.f32.mrb[0].mxu0
        %v3305 = vadd.f32 0.0, %v3304
        %v3306 = vpop.f32.mrb[0].mxu0
        %v3307 = vpop.f32.mrb[0].mxu0
        %v3308 = vadd.f32 0.0, %v3307
        %v3309 = vpop.f32.mrb[0].mxu0
        %3310 = vmatprep.mubr.bf16.mxu0 0
        %3311 = vmatmul.mubr.bf16.gmra.mrb[0].mxu0 %v2324
        %v3312 = vpop.f32.mrb[0].mxu0
        %v3313 = vadd.f32 0.0, %v3312
        %v3314 = vpop.f32.mrb[0].mxu0
        %v3315 = vpop.f32.mrb[0].mxu0
        %v3316 = vadd.f32 0.0, %v3315
        %v3317 = vpop.f32.mrb[0].mxu0
        %3318 = vmatprep.mubr.bf16.mxu0 0
        %3319 = vmatmul.mubr.bf16.gmra.mrb[0].mxu0 %v2327
        %v3320 = vpop.f32.mrb[0].mxu0
        %v3321 = vadd.f32 0.0, %v3320
        %v3322 = vpop.f32.mrb[0].mxu0
        %v3323 = vpop.f32.mrb[0].mxu0
        %v3324 = vadd.f32 0.0, %v3323
        %v3325 = vpop.f32.mrb[0].mxu0
        %3326 = vmatprep.mubr.bf16.mxu0 0
        %3327 = vmatmul.mubr.bf16.gmra.mrb[0].mxu0 %v2330
        %v3328 = vpop.f32.mrb[0].mxu0
        %v3329 = vadd.f32 0.0, %v3328
        %v3330 = vpop.f32.mrb[0].mxu0
        %v3331 = vpop.f32.mrb[0].mxu0
        %v3332 = vadd.f32 0.0, %v3331
        %v3333 = vpop.f32.mrb[0].mxu0
        %3334 = vmatprep.mubr.bf16.mxu0 0
        %3335 = vmatmul.mubr.bf16.gmra.mrb[0].mxu0 %v3192
        %v3336 = vpop.f32.mrb[0].mxu0
        %v3337 = vadd.f32 0.0, %v3336
        %v3338 = vpop.f32.mrb[0].mxu0
        %v3339 = vpop.f32.mrb[0].mxu0
        %v3340 = vadd.f32 0.0, %v3339
        %v3341 = vpop.f32.mrb[0].mxu0
        %3342 = vmatprep.mubr.bf16.mxu0 0
        %3343 = vmatmul.mubr.bf16.gmra.mrb[0].mxu0 %v3195
        %v3344 = vpop.f32.mrb[0].mxu0
        %v3345 = vadd.f32 0.0, %v3344
        %v3346 = vpop.f32.mrb[0].mxu0
        %v3347 = vpop.f32.mrb[0].mxu0
        %v3348 = vadd.f32 0.0, %v3347
        %v3349 = vpop.f32.mrb[0].mxu0
        %3350 = vmatprep.mubr.bf16.mxu0 0
        %3351 = vmatmul.mubr.bf16.gmra.mrb[0].mxu0 %v3198
        %v3352 = vpop.f32.mrb[0].mxu0
        %v3353 = vadd.f32 0.0, %v3352
        %v3354 = vpop.f32.mrb[0].mxu0
        %v3355 = vpop.f32.mrb[0].mxu0
        %v3356 = vadd.f32 0.0, %v3355
        %v3357 = vpop.f32.mrb[0].mxu0
        %3358 = vmatprep.mubr.bf16.mxu0 0
        %3359 = vmatmul.mubr.bf16.gmra.mrb[0].mxu0 %v3201
        %v3360 = vpop.f32.mrb[0].mxu0
        %v3361 = vadd.f32 0.0, %v3360
        %v3362 = vpop.f32.mrb[0].mxu0
        %v3363 = vpop.f32.mrb[0].mxu0
        %v3364 = vadd.f32 0.0, %v3363
        %v3365 = vpop.f32.mrb[0].mxu0
        %3366 = vdwg.mxu0
        %v3367 = vadd.f32 %v3148, %v3241
        %v3368 = vadd.f32 %v3149, %v3244
        %v3369 = vadd.f32 %v3150, %v3249
        %v3370 = vadd.f32 %v3151, %v3252
        %v3371 = vadd.f32 %v3152, %v3257
        %v3372 = vadd.f32 %v3153, %v3260
        %v3373 = vadd.f32 %v3154, %v3265
        %v3374 = vadd.f32 %v3155, %v3268
        %v3375 = vadd.f32 %v3156, %v3273
        %v3376 = vadd.f32 %v3157, %v3276
        %v3377 = vadd.f32 %v3158, %v3281
        %v3378 = vadd.f32 %v3159, %v3284
        %v3379 = vadd.f32 %v3160, %v3289
        %v3380 = vadd.f32 %v3161, %v3292
        %v3381 = vadd.f32 %v3162, %v3297
        %v3382 = vadd.f32 %v3163, %v3300
        %v3383 = vadd.f32 %v3164, %v3305
        %v3384 = vadd.f32 %v3165, %v3308
        %v3385 = vadd.f32 %v3166, %v3313
        %v3386 = vadd.f32 %v3167, %v3316
        %v3387 = vadd.f32 %v3168, %v3321
        %v3388 = vadd.f32 %v3169, %v3324
        %v3389 = vadd.f32 %v3170, %v3329
        %v3390 = vadd.f32 %v3171, %v3332
        %v3391 = vadd.f32 %v3172, %v3337
        %v3392 = vadd.f32 %v3173, %v3340
        %v3393 = vadd.f32 %v3174, %v3345
        %v3394 = vadd.f32 %v3175, %v3348
        %v3395 = vadd.f32 %v3176, %v3353
        %v3396 = vadd.f32 %v3177, %v3356
        %v3397 = vadd.f32 %v3178, %v3361
        %v3398 = vadd.f32 %v3179, %v3364
        %v3399 = vpack.c.b16 %v2498, %v3181
        %v3402 = vunpack.c.l.b16 %v2190
        %v3403 = vunpack.c.l.b16 %v2191
        %v3404 = vpack.c.b16 %v3403, %v3402
        %v3406 = vsel %vm2283, %v3399, 0
        %v3409 = vsel %vm2332, %v3404, 0
        %3411 = vmatprep.subr.bf16.mxu0 0
        %3412 = vmatpush1.bf16.msra.mxu0 %v3409
        %3413 = vmatprep.subr.bf16.mxu0 0
        %3414 = vmatpush1.bf16.msra.mxu0 0
        %3415 = vmatprep.subr.bf16.mxu0 0
        %3416 = vmatpush1.bf16.msra.mxu0 0
        %3417 = vmatprep.subr.bf16.mxu0 0
        %3418 = vmatpush1.bf16.msra.mxu0 0
        %3419 = vmatprep.subr.bf16.mxu0 0
        %3420 = vmatpush1.bf16.msra.mxu0 0
        %3421 = vmatprep.subr.bf16.mxu0 0
        %3422 = vmatpush1.bf16.msra.mxu0 0
        %3423 = vmatprep.subr.bf16.mxu0 0
        %3424 = vmatpush1.bf16.msra.mxu0 0
        %3425 = vmatprep.subr.bf16.mxu0 0
        %3426 = vmatpush1.bf16.msra.mxu0 0
        %3427 = vmatprep.subr.bf16.mxu0 0
        %3428 = vmatpush1.bf16.msra.mxu0 0
        %3429 = vmatprep.subr.bf16.mxu0 0
        %3430 = vmatpush1.bf16.msra.mxu0 0
        %3431 = vmatprep.subr.bf16.mxu0 0
        %3432 = vmatpush1.bf16.msra.mxu0 0
        %3433 = vmatprep.subr.bf16.mxu0 0
        %3434 = vmatpush1.bf16.msra.mxu0 0
        %3435 = vmatprep.subr.bf16.mxu0 0
        %3436 = vmatpush1.bf16.msra.mxu0 0
        %3437 = vmatprep.subr.bf16.mxu0 0
        %3438 = vmatpush1.bf16.msra.mxu0 0
        %3439 = vmatprep.subr.bf16.mxu0 0
        %3440 = vmatpush1.bf16.msra.mxu0 0
        %3441 = vmatprep.subr.bf16.mxu0 0
        %3442 = vmatpush1.bf16.msra.mxu0 0
        %3443 = vmatprep.mubr.bf16.mxu0 0
        %3444 = vmatmul.mubr.bf16.gmra.mrb[0].mxu0 %v2536
        %v3445 = vpop.f32.mrb[0].mxu0
        %v3446 = vadd.f32 0.0, %v3445
        %v3447 = vpop.f32.mrb[0].mxu0
        %v3448 = vpop.f32.mrb[0].mxu0
        %v3449 = vadd.f32 0.0, %v3448
        %v3450 = vpop.f32.mrb[0].mxu0
        %3451 = vmatprep.mubr.bf16.mxu0 0
        %3452 = vmatmul.mubr.bf16.gmra.mrb[0].mxu0 %v2539
        %v3453 = vpop.f32.mrb[0].mxu0
        %v3454 = vadd.f32 0.0, %v3453
        %v3455 = vpop.f32.mrb[0].mxu0
        %v3456 = vpop.f32.mrb[0].mxu0
        %v3457 = vadd.f32 0.0, %v3456
        %v3458 = vpop.f32.mrb[0].mxu0
        %3459 = vmatprep.mubr.bf16.mxu0 0
        %3460 = vmatmul.mubr.bf16.gmra.mrb[0].mxu0 %v2542
        %v3461 = vpop.f32.mrb[0].mxu0
        %v3462 = vadd.f32 0.0, %v3461
        %v3463 = vpop.f32.mrb[0].mxu0
        %v3464 = vpop.f32.mrb[0].mxu0
        %v3465 = vadd.f32 0.0, %v3464
        %v3466 = vpop.f32.mrb[0].mxu0
        %3467 = vmatprep.mubr.bf16.mxu0 0
        %3468 = vmatmul.mubr.bf16.gmra.mrb[0].mxu0 %v2745
        %v3469 = vpop.f32.mrb[0].mxu0
        %v3470 = vadd.f32 0.0, %v3469
        %v3471 = vpop.f32.mrb[0].mxu0
        %v3472 = vpop.f32.mrb[0].mxu0
        %v3473 = vadd.f32 0.0, %v3472
        %v3474 = vpop.f32.mrb[0].mxu0
        %3475 = vmatprep.mubr.bf16.mxu0 0
        %3476 = vmatmul.mubr.bf16.gmra.mrb[0].mxu0 %v2548
        %v3477 = vpop.f32.mrb[0].mxu0
        %v3478 = vadd.f32 0.0, %v3477
        %v3479 = vpop.f32.mrb[0].mxu0
        %v3480 = vpop.f32.mrb[0].mxu0
        %v3481 = vadd.f32 0.0, %v3480
        %v3482 = vpop.f32.mrb[0].mxu0
        %3483 = vmatprep.mubr.bf16.mxu0 0
        %3484 = vmatmul.mubr.bf16.gmra.mrb[0].mxu0 %v2551
        %v3485 = vpop.f32.mrb[0].mxu0
        %v3486 = vadd.f32 0.0, %v3485
        %v3487 = vpop.f32.mrb[0].mxu0
        %v3488 = vpop.f32.mrb[0].mxu0
        %v3489 = vadd.f32 0.0, %v3488
        %v3490 = vpop.f32.mrb[0].mxu0
        %3491 = vmatprep.mubr.bf16.mxu0 0
        %3492 = vmatmul.mubr.bf16.gmra.mrb[0].mxu0 %v2554
        %v3493 = vpop.f32.mrb[0].mxu0
        %v3494 = vadd.f32 0.0, %v3493
        %v3495 = vpop.f32.mrb[0].mxu0
        %v3496 = vpop.f32.mrb[0].mxu0
        %v3497 = vadd.f32 0.0, %v3496
        %v3498 = vpop.f32.mrb[0].mxu0
        %3499 = vmatprep.mubr.bf16.mxu0 0
        %3500 = vmatmul.mubr.bf16.gmra.mrb[0].mxu0 %v2748
        %v3501 = vpop.f32.mrb[0].mxu0
        %v3502 = vadd.f32 0.0, %v3501
        %v3503 = vpop.f32.mrb[0].mxu0
        %v3504 = vpop.f32.mrb[0].mxu0
        %v3505 = vadd.f32 0.0, %v3504
        %v3506 = vpop.f32.mrb[0].mxu0
        %3507 = vmatprep.mubr.bf16.mxu0 0
        %3508 = vmatmul.mubr.bf16.gmra.mrb[0].mxu0 %v2560
        %v3509 = vpop.f32.mrb[0].mxu0
        %v3510 = vadd.f32 0.0, %v3509
        %v3511 = vpop.f32.mrb[0].mxu0
        %v3512 = vpop.f32.mrb[0].mxu0
        %v3513 = vadd.f32 0.0, %v3512
        %v3514 = vpop.f32.mrb[0].mxu0
        %3515 = vmatprep.mubr.bf16.mxu0 0
        %3516 = vmatmul.mubr.bf16.gmra.mrb[0].mxu0 %v2563
        %v3517 = vpop.f32.mrb[0].mxu0
        %v3518 = vadd.f32 0.0, %v3517
        %v3519 = vpop.f32.mrb[0].mxu0
        %v3520 = vpop.f32.mrb[0].mxu0
        %v3521 = vadd.f32 0.0, %v3520
        %v3522 = vpop.f32.mrb[0].mxu0
        %3523 = vmatprep.mubr.bf16.mxu0 0
        %3524 = vmatmul.mubr.bf16.gmra.mrb[0].mxu0 %v2566
        %v3525 = vpop.f32.mrb[0].mxu0
        %v3526 = vadd.f32 0.0, %v3525
        %v3527 = vpop.f32.mrb[0].mxu0
        %v3528 = vpop.f32.mrb[0].mxu0
        %v3529 = vadd.f32 0.0, %v3528
        %v3530 = vpop.f32.mrb[0].mxu0
        %3531 = vmatprep.mubr.bf16.mxu0 0
        %3532 = vmatmul.mubr.bf16.gmra.mrb[0].mxu0 %v2751
        %v3533 = vpop.f32.mrb[0].mxu0
        %v3534 = vadd.f32 0.0, %v3533
        %v3535 = vpop.f32.mrb[0].mxu0
        %v3536 = vpop.f32.mrb[0].mxu0
        %v3537 = vadd.f32 0.0, %v3536
        %v3538 = vpop.f32.mrb[0].mxu0
        %3539 = vmatprep.mubr.bf16.mxu0 0
        %3540 = vmatmul.mubr.bf16.gmra.mrb[0].mxu0 %v2976
        %v3541 = vpop.f32.mrb[0].mxu0
        %v3542 = vadd.f32 0.0, %v3541
        %v3543 = vpop.f32.mrb[0].mxu0
        %v3544 = vpop.f32.mrb[0].mxu0
        %v3545 = vadd.f32 0.0, %v3544
        %v3546 = vpop.f32.mrb[0].mxu0
        %3547 = vmatprep.mubr.bf16.mxu0 0
        %3548 = vmatmul.mubr.bf16.gmra.mrb[0].mxu0 %v2979
        %v3549 = vpop.f32.mrb[0].mxu0
        %v3550 = vadd.f32 0.0, %v3549
        %v3551 = vpop.f32.mrb[0].mxu0
        %v3552 = vpop.f32.mrb[0].mxu0
        %v3553 = vadd.f32 0.0, %v3552
        %v3554 = vpop.f32.mrb[0].mxu0
        %3555 = vmatprep.mubr.bf16.mxu0 0
        %3556 = vmatmul.mubr.bf16.gmra.mrb[0].mxu0 %v2982
        %v3557 = vpop.f32.mrb[0].mxu0
        %v3558 = vadd.f32 0.0, %v3557
        %v3559 = vpop.f32.mrb[0].mxu0
        %v3560 = vpop.f32.mrb[0].mxu0
        %v3561 = vadd.f32 0.0, %v3560
        %v3562 = vpop.f32.mrb[0].mxu0
        %3563 = vmatprep.mubr.bf16.mxu0 0
        %3564 = vmatmul.mubr.bf16.gmra.mrb[0].mxu0 %v3406
        %v3565 = vpop.f32.mrb[0].mxu0
        %v3566 = vadd.f32 0.0, %v3565
        %v3567 = vpop.f32.mrb[0].mxu0
        %v3568 = vpop.f32.mrb[0].mxu0
        %v3569 = vadd.f32 0.0, %v3568
        %v3570 = vpop.f32.mrb[0].mxu0
        %3571 = vdwg.mxu0
        %v3572 = vadd.f32 %v3367, %v3446
        %v3573 = vadd.f32 %v3368, %v3449
        %v3574 = vadd.f32 %v3369, %v3454
        %v3575 = vadd.f32 %v3370, %v3457
        %v3576 = vadd.f32 %v3371, %v3462
        %v3577 = vadd.f32 %v3372, %v3465
        %v3578 = vadd.f32 %v3373, %v3470
        %v3579 = vadd.f32 %v3374, %v3473
        %v3580 = vadd.f32 %v3375, %v3478
        %v3581 = vadd.f32 %v3376, %v3481
        %v3582 = vadd.f32 %v3377, %v3486
        %v3583 = vadd.f32 %v3378, %v3489
        %v3584 = vadd.f32 %v3379, %v3494
        %v3585 = vadd.f32 %v3380, %v3497
        %v3586 = vadd.f32 %v3381, %v3502
        %v3587 = vadd.f32 %v3382, %v3505
        %v3588 = vadd.f32 %v3383, %v3510
        %v3589 = vadd.f32 %v3384, %v3513
        %v3590 = vadd.f32 %v3385, %v3518
        %v3591 = vadd.f32 %v3386, %v3521
        %v3592 = vadd.f32 %v3387, %v3526
        %v3593 = vadd.f32 %v3388, %v3529
        %v3594 = vadd.f32 %v3389, %v3534
        %v3595 = vadd.f32 %v3390, %v3537
        %v3596 = vadd.f32 %v3391, %v3542
        %v3597 = vadd.f32 %v3392, %v3545
        %v3598 = vadd.f32 %v3393, %v3550
        %v3599 = vadd.f32 %v3394, %v3553
        %v3600 = vadd.f32 %v3395, %v3558
        %v3601 = vadd.f32 %v3396, %v3561
        %v3602 = vadd.f32 %v3397, %v3566
        %v3603 = vadd.f32 %v3398, %v3569
        %v3611 = vunpack.c.l.b16 %v2165
        %v3612 = vunpack.c.l.b16 %v2167
        %v3613 = vunpack.c.l.b16 %v2169
        %v3614 = vunpack.c.l.b16 %v2171
        %v3615 = vunpack.c.l.b16 %v2173
        %v3616 = vunpack.c.l.b16 %v2175
        %v3617 = vunpack.c.l.b16 %v2177
        %v3618 = vpack.c.b16 %v3611, %v2498
        %v3619 = vpack.c.b16 %v3613, %v3612
        %v3620 = vpack.c.b16 %v3615, %v3614
        %v3621 = vpack.c.b16 %v3617, %v3616
        %v3624 = vunpack.c.l.b16 %v2192
        %v3625 = vunpack.c.l.b16 %v2193
        %v3626 = vpack.c.b16 %v3625, %v3624
        %v3628 = vsel %vm2283, %v3618, 0
        %v3631 = vsel %vm2283, %v3619, 0
        %v3634 = vsel %vm2283, %v3620, 0
        %v3637 = vsel %vm2283, %v3621, 0
        %v3640 = vsel %vm2332, %v3626, 0
        %3642 = vmatprep.subr.bf16.mxu0 0
        %3643 = vmatpush1.bf16.msra.mxu0 %v3640
        %3644 = vmatprep.subr.bf16.mxu0 0
        %3645 = vmatpush1.bf16.msra.mxu0 0
        %3646 = vmatprep.subr.bf16.mxu0 0
        %3647 = vmatpush1.bf16.msra.mxu0 0
        %3648 = vmatprep.subr.bf16.mxu0 0
        %3649 = vmatpush1.bf16.msra.mxu0 0
        %3650 = vmatprep.subr.bf16.mxu0 0
        %3651 = vmatpush1.bf16.msra.mxu0 0
        %3652 = vmatprep.subr.bf16.mxu0 0
        %3653 = vmatpush1.bf16.msra.mxu0 0
        %3654 = vmatprep.subr.bf16.mxu0 0
        %3655 = vmatpush1.bf16.msra.mxu0 0
        %3656 = vmatprep.subr.bf16.mxu0 0
        %3657 = vmatpush1.bf16.msra.mxu0 0
        %3658 = vmatprep.subr.bf16.mxu0 0
        %3659 = vmatpush1.bf16.msra.mxu0 0
        %3660 = vmatprep.subr.bf16.mxu0 0
        %3661 = vmatpush1.bf16.msra.mxu0 0
        %3662 = vmatprep.subr.bf16.mxu0 0
        %3663 = vmatpush1.bf16.msra.mxu0 0
        %3664 = vmatprep.subr.bf16.mxu0 0
        %3665 = vmatpush1.bf16.msra.mxu0 0
        %3666 = vmatprep.subr.bf16.mxu0 0
        %3667 = vmatpush1.bf16.msra.mxu0 0
        %3668 = vmatprep.subr.bf16.mxu0 0
        %3669 = vmatpush1.bf16.msra.mxu0 0
        %3670 = vmatprep.subr.bf16.mxu0 0
        %3671 = vmatpush1.bf16.msra.mxu0 0
        %3672 = vmatprep.subr.bf16.mxu0 0
        %3673 = vmatpush1.bf16.msra.mxu0 0
        %3674 = vmatprep.mubr.bf16.mxu0 0
        %3675 = vmatmul.mubr.bf16.gmra.mrb[0].mxu0 %v2545
        %v3676 = vpop.f32.mrb[0].mxu0
        %v3677 = vadd.f32 0.0, %v3676
        %v3678 = vpop.f32.mrb[0].mxu0
        %v3679 = vpop.f32.mrb[0].mxu0
        %v3680 = vadd.f32 0.0, %v3679
        %v3681 = vpop.f32.mrb[0].mxu0
        %3682 = vmatprep.mubr.bf16.mxu0 0
        %3683 = vmatmul.mubr.bf16.gmra.mrb[0].mxu0 %v2548
        %v3684 = vpop.f32.mrb[0].mxu0
        %v3685 = vadd.f32 0.0, %v3684
        %v3686 = vpop.f32.mrb[0].mxu0
        %v3687 = vpop.f32.mrb[0].mxu0
        %v3688 = vadd.f32 0.0, %v3687
        %v3689 = vpop.f32.mrb[0].mxu0
        %3690 = vmatprep.mubr.bf16.mxu0 0
        %3691 = vmatmul.mubr.bf16.gmra.mrb[0].mxu0 %v2551
        %v3692 = vpop.f32.mrb[0].mxu0
        %v3693 = vadd.f32 0.0, %v3692
        %v3694 = vpop.f32.mrb[0].mxu0
        %v3695 = vpop.f32.mrb[0].mxu0
        %v3696 = vadd.f32 0.0, %v3695
        %v3697 = vpop.f32.mrb[0].mxu0
        %3698 = vmatprep.mubr.bf16.mxu0 0
        %3699 = vmatmul.mubr.bf16.gmra.mrb[0].mxu0 %v2554
        %v3700 = vpop.f32.mrb[0].mxu0
        %v3701 = vadd.f32 0.0, %v3700
        %v3702 = vpop.f32.mrb[0].mxu0
        %v3703 = vpop.f32.mrb[0].mxu0
        %v3704 = vadd.f32 0.0, %v3703
        %v3705 = vpop.f32.mrb[0].mxu0
        %3706 = vmatprep.mubr.bf16.mxu0 0
        %3707 = vmatmul.mubr.bf16.gmra.mrb[0].mxu0 %v2557
        %v3708 = vpop.f32.mrb[0].mxu0
        %v3709 = vadd.f32 0.0, %v3708
        %v3710 = vpop.f32.mrb[0].mxu0
        %v3711 = vpop.f32.mrb[0].mxu0
        %v3712 = vadd.f32 0.0, %v3711
        %v3713 = vpop.f32.mrb[0].mxu0
        %3714 = vmatprep.mubr.bf16.mxu0 0
        %3715 = vmatmul.mubr.bf16.gmra.mrb[0].mxu0 %v2560
        %v3716 = vpop.f32.mrb[0].mxu0
        %v3717 = vadd.f32 0.0, %v3716
        %v3718 = vpop.f32.mrb[0].mxu0
        %v3719 = vpop.f32.mrb[0].mxu0
        %v3720 = vadd.f32 0.0, %v3719
        %v3721 = vpop.f32.mrb[0].mxu0
        %3722 = vmatprep.mubr.bf16.mxu0 0
        %3723 = vmatmul.mubr.bf16.gmra.mrb[0].mxu0 %v2563
        %v3724 = vpop.f32.mrb[0].mxu0
        %v3725 = vadd.f32 0.0, %v3724
        %v3726 = vpop.f32.mrb[0].mxu0
        %v3727 = vpop.f32.mrb[0].mxu0
        %v3728 = vadd.f32 0.0, %v3727
        %v3729 = vpop.f32.mrb[0].mxu0
        %3730 = vmatprep.mubr.bf16.mxu0 0
        %3731 = vmatmul.mubr.bf16.gmra.mrb[0].mxu0 %v2566
        %v3732 = vpop.f32.mrb[0].mxu0
        %v3733 = vadd.f32 0.0, %v3732
        %v3734 = vpop.f32.mrb[0].mxu0
        %v3735 = vpop.f32.mrb[0].mxu0
        %v3736 = vadd.f32 0.0, %v3735
        %v3737 = vpop.f32.mrb[0].mxu0
        %3738 = vmatprep.mubr.bf16.mxu0 0
        %3739 = vmatmul.mubr.bf16.gmra.mrb[0].mxu0 %v2973
        %v3740 = vpop.f32.mrb[0].mxu0
        %v3741 = vadd.f32 0.0, %v3740
        %v3742 = vpop.f32.mrb[0].mxu0
        %v3743 = vpop.f32.mrb[0].mxu0
        %v3744 = vadd.f32 0.0, %v3743
        %v3745 = vpop.f32.mrb[0].mxu0
        %3746 = vmatprep.mubr.bf16.mxu0 0
        %3747 = vmatmul.mubr.bf16.gmra.mrb[0].mxu0 %v2976
        %v3748 = vpop.f32.mrb[0].mxu0
        %v3749 = vadd.f32 0.0, %v3748
        %v3750 = vpop.f32.mrb[0].mxu0
        %v3751 = vpop.f32.mrb[0].mxu0
        %v3752 = vadd.f32 0.0, %v3751
        %v3753 = vpop.f32.mrb[0].mxu0
        %3754 = vmatprep.mubr.bf16.mxu0 0
        %3755 = vmatmul.mubr.bf16.gmra.mrb[0].mxu0 %v2979
        %v3756 = vpop.f32.mrb[0].mxu0
        %v3757 = vadd.f32 0.0, %v3756
        %v3758 = vpop.f32.mrb[0].mxu0
        %v3759 = vpop.f32.mrb[0].mxu0
        %v3760 = vadd.f32 0.0, %v3759
        %v3761 = vpop.f32.mrb[0].mxu0
        %3762 = vmatprep.mubr.bf16.mxu0 0
        %3763 = vmatmul.mubr.bf16.gmra.mrb[0].mxu0 %v2982
        %v3764 = vpop.f32.mrb[0].mxu0
        %v3765 = vadd.f32 0.0, %v3764
        %v3766 = vpop.f32.mrb[0].mxu0
        %v3767 = vpop.f32.mrb[0].mxu0
        %v3768 = vadd.f32 0.0, %v3767
        %v3769 = vpop.f32.mrb[0].mxu0
        %3770 = vmatprep.mubr.bf16.mxu0 0
        %3771 = vmatmul.mubr.bf16.gmra.mrb[0].mxu0 %v3628
        %v3772 = vpop.f32.mrb[0].mxu0
        %v3773 = vadd.f32 0.0, %v3772
        %v3774 = vpop.f32.mrb[0].mxu0
        %v3775 = vpop.f32.mrb[0].mxu0
        %v3776 = vadd.f32 0.0, %v3775
        %v3777 = vpop.f32.mrb[0].mxu0
        %3778 = vmatprep.mubr.bf16.mxu0 0
        %3779 = vmatmul.mubr.bf16.gmra.mrb[0].mxu0 %v3631
        %v3780 = vpop.f32.mrb[0].mxu0
        %v3781 = vadd.f32 0.0, %v3780
        %v3782 = vpop.f32.mrb[0].mxu0
        %v3783 = vpop.f32.mrb[0].mxu0
        %v3784 = vadd.f32 0.0, %v3783
        %v3785 = vpop.f32.mrb[0].mxu0
        %3786 = vmatprep.mubr.bf16.mxu0 0
        %3787 = vmatmul.mubr.bf16.gmra.mrb[0].mxu0 %v3634
        %v3788 = vpop.f32.mrb[0].mxu0
        %v3789 = vadd.f32 0.0, %v3788
        %v3790 = vpop.f32.mrb[0].mxu0
        %v3791 = vpop.f32.mrb[0].mxu0
        %v3792 = vadd.f32 0.0, %v3791
        %v3793 = vpop.f32.mrb[0].mxu0
        %3794 = vmatprep.mubr.bf16.mxu0 0
        %3795 = vmatmul.mubr.bf16.gmra.mrb[0].mxu0 %v3637
        %v3796 = vpop.f32.mrb[0].mxu0
        %v3797 = vadd.f32 0.0, %v3796
        %v3798 = vpop.f32.mrb[0].mxu0
        %v3799 = vpop.f32.mrb[0].mxu0
        %v3800 = vadd.f32 0.0, %v3799
        %v3801 = vpop.f32.mrb[0].mxu0
        %3802 = vdwg.mxu0
        %v3803 = vadd.f32 %v3572, %v3677
        %v3804 = vadd.f32 %v3573, %v3680
        %v3805 = vadd.f32 %v3574, %v3685
        %v3806 = vadd.f32 %v3575, %v3688
        %v3807 = vadd.f32 %v3576, %v3693
        %v3808 = vadd.f32 %v3577, %v3696
        %v3809 = vadd.f32 %v3578, %v3701
        %v3810 = vadd.f32 %v3579, %v3704
        %v3811 = vadd.f32 %v3580, %v3709
        %v3812 = vadd.f32 %v3581, %v3712
        %v3813 = vadd.f32 %v3582, %v3717
        %v3814 = vadd.f32 %v3583, %v3720
        %v3815 = vadd.f32 %v3584, %v3725
        %v3816 = vadd.f32 %v3585, %v3728
        %v3817 = vadd.f32 %v3586, %v3733
        %v3818 = vadd.f32 %v3587, %v3736
        %v3819 = vadd.f32 %v3588, %v3741
        %v3820 = vadd.f32 %v3589, %v3744
        %v3821 = vadd.f32 %v3590, %v3749
        %v3822 = vadd.f32 %v3591, %v3752
        %v3823 = vadd.f32 %v3592, %v3757
        %v3824 = vadd.f32 %v3593, %v3760
        %v3825 = vadd.f32 %v3594, %v3765
        %v3826 = vadd.f32 %v3595, %v3768
        %v3827 = vadd.f32 %v3596, %v3773
        %v3828 = vadd.f32 %v3597, %v3776
        %v3829 = vadd.f32 %v3598, %v3781
        %v3830 = vadd.f32 %v3599, %v3784
        %v3831 = vadd.f32 %v3600, %v3789
        %v3832 = vadd.f32 %v3601, %v3792
        %v3833 = vadd.f32 %v3602, %v3797
        %v3834 = vadd.f32 %v3603, %v3800
        %v3836 = vunpack.c.l.b16 %v2179
        %v3837 = vpack.c.b16 %v3612, %v3611
        %v3838 = vpack.c.b16 %v3614, %v3613
        %v3839 = vpack.c.b16 %v3616, %v3615
        %v3840 = vpack.c.b16 %v3836, %v3617
        %v3843 = vunpack.c.l.b16 %v2194
        %v3844 = vunpack.c.l.b16 %v2195
        %v3845 = vpack.c.b16 %v3844, %v3843
        %v3847 = vsel %vm2283, %v3837, 0
        %v3850 = vsel %vm2283, %v3838, 0
        %v3853 = vsel %vm2283, %v3839, 0
        %v3856 = vsel %vm2283, %v3840, 0
        %v3859 = vsel %vm2332, %v3845, 0
        %3861 = vmatprep.subr.bf16.mxu0 0
        %3862 = vmatpush1.bf16.msra.mxu0 %v3859
        %3863 = vmatprep.subr.bf16.mxu0 0
        %3864 = vmatpush1.bf16.msra.mxu0 0
        %3865 = vmatprep.subr.bf16.mxu0 0
        %3866 = vmatpush1.bf16.msra.mxu0 0
        %3867 = vmatprep.subr.bf16.mxu0 0
        %3868 = vmatpush1.bf16.msra.mxu0 0
        %3869 = vmatprep.subr.bf16.mxu0 0
        %3870 = vmatpush1.bf16.msra.mxu0 0
        %3871 = vmatprep.subr.bf16.mxu0 0
        %3872 = vmatpush1.bf16.msra.mxu0 0
        %3873 = vmatprep.subr.bf16.mxu0 0
        %3874 = vmatpush1.bf16.msra.mxu0 0
        %3875 = vmatprep.subr.bf16.mxu0 0
        %3876 = vmatpush1.bf16.msra.mxu0 0
        %3877 = vmatprep.subr.bf16.mxu0 0
        %3878 = vmatpush1.bf16.msra.mxu0 0
        %3879 = vmatprep.subr.bf16.mxu0 0
        %3880 = vmatpush1.bf16.msra.mxu0 0
        %3881 = vmatprep.subr.bf16.mxu0 0
        %3882 = vmatpush1.bf16.msra.mxu0 0
        %3883 = vmatprep.subr.bf16.mxu0 0
        %3884 = vmatpush1.bf16.msra.mxu0 0
        %3885 = vmatprep.subr.bf16.mxu0 0
        %3886 = vmatpush1.bf16.msra.mxu0 0
        %3887 = vmatprep.subr.bf16.mxu0 0
        %3888 = vmatpush1.bf16.msra.mxu0 0
        %3889 = vmatprep.subr.bf16.mxu0 0
        %3890 = vmatpush1.bf16.msra.mxu0 0
        %3891 = vmatprep.subr.bf16.mxu0 0
        %3892 = vmatpush1.bf16.msra.mxu0 0
        %3893 = vmatprep.mubr.bf16.mxu0 0
        %3894 = vmatmul.mubr.bf16.gmra.mrb[0].mxu0 %v2309
        %v3895 = vpop.f32.mrb[0].mxu0
        %v3896 = vadd.f32 0.0, %v3895
        %v3897 = vpop.f32.mrb[0].mxu0
        %v3898 = vpop.f32.mrb[0].mxu0
        %v3899 = vadd.f32 0.0, %v3898
        %v3900 = vpop.f32.mrb[0].mxu0
        %3901 = vmatprep.mubr.bf16.mxu0 0
        %3902 = vmatmul.mubr.bf16.gmra.mrb[0].mxu0 %v2312
        %v3903 = vpop.f32.mrb[0].mxu0
        %v3904 = vadd.f32 0.0, %v3903
        %v3905 = vpop.f32.mrb[0].mxu0
        %v3906 = vpop.f32.mrb[0].mxu0
        %v3907 = vadd.f32 0.0, %v3906
        %v3908 = vpop.f32.mrb[0].mxu0
        %3909 = vmatprep.mubr.bf16.mxu0 0
        %3910 = vmatmul.mubr.bf16.gmra.mrb[0].mxu0 %v2315
        %v3911 = vpop.f32.mrb[0].mxu0
        %v3912 = vadd.f32 0.0, %v3911
        %v3913 = vpop.f32.mrb[0].mxu0
        %v3914 = vpop.f32.mrb[0].mxu0
        %v3915 = vadd.f32 0.0, %v3914
        %v3916 = vpop.f32.mrb[0].mxu0
        %3917 = vmatprep.mubr.bf16.mxu0 0
        %3918 = vmatmul.mubr.bf16.gmra.mrb[0].mxu0 %v2318
        %v3919 = vpop.f32.mrb[0].mxu0
        %v3920 = vadd.f32 0.0, %v3919
        %v3921 = vpop.f32.mrb[0].mxu0
        %v3922 = vpop.f32.mrb[0].mxu0
        %v3923 = vadd.f32 0.0, %v3922
        %v3924 = vpop.f32.mrb[0].mxu0
        %3925 = vmatprep.mubr.bf16.mxu0 0
        %3926 = vmatmul.mubr.bf16.gmra.mrb[0].mxu0 %v2321
        %v3927 = vpop.f32.mrb[0].mxu0
        %v3928 = vadd.f32 0.0, %v3927
        %v3929 = vpop.f32.mrb[0].mxu0
        %v3930 = vpop.f32.mrb[0].mxu0
        %v3931 = vadd.f32 0.0, %v3930
        %v3932 = vpop.f32.mrb[0].mxu0
        %3933 = vmatprep.mubr.bf16.mxu0 0
        %3934 = vmatmul.mubr.bf16.gmra.mrb[0].mxu0 %v2324
        %v3935 = vpop.f32.mrb[0].mxu0
        %v3936 = vadd.f32 0.0, %v3935
        %v3937 = vpop.f32.mrb[0].mxu0
        %v3938 = vpop.f32.mrb[0].mxu0
        %v3939 = vadd.f32 0.0, %v3938
        %v3940 = vpop.f32.mrb[0].mxu0
        %3941 = vmatprep.mubr.bf16.mxu0 0
        %3942 = vmatmul.mubr.bf16.gmra.mrb[0].mxu0 %v2327
        %v3943 = vpop.f32.mrb[0].mxu0
        %v3944 = vadd.f32 0.0, %v3943
        %v3945 = vpop.f32.mrb[0].mxu0
        %v3946 = vpop.f32.mrb[0].mxu0
        %v3947 = vadd.f32 0.0, %v3946
        %v3948 = vpop.f32.mrb[0].mxu0
        %3949 = vmatprep.mubr.bf16.mxu0 0
        %3950 = vmatmul.mubr.bf16.gmra.mrb[0].mxu0 %v2330
        %v3951 = vpop.f32.mrb[0].mxu0
        %v3952 = vadd.f32 0.0, %v3951
        %v3953 = vpop.f32.mrb[0].mxu0
        %v3954 = vpop.f32.mrb[0].mxu0
        %v3955 = vadd.f32 0.0, %v3954
        %v3956 = vpop.f32.mrb[0].mxu0
        %3957 = vmatprep.mubr.bf16.mxu0 0
        %3958 = vmatmul.mubr.bf16.gmra.mrb[0].mxu0 %v3192
        %v3959 = vpop.f32.mrb[0].mxu0
        %v3960 = vadd.f32 0.0, %v3959
        %v3961 = vpop.f32.mrb[0].mxu0
        %v3962 = vpop.f32.mrb[0].mxu0
        %v3963 = vadd.f32 0.0, %v3962
        %v3964 = vpop.f32.mrb[0].mxu0
        %3965 = vmatprep.mubr.bf16.mxu0 0
        %3966 = vmatmul.mubr.bf16.gmra.mrb[0].mxu0 %v3195
        %v3967 = vpop.f32.mrb[0].mxu0
        %v3968 = vadd.f32 0.0, %v3967
        %v3969 = vpop.f32.mrb[0].mxu0
        %v3970 = vpop.f32.mrb[0].mxu0
        %v3971 = vadd.f32 0.0, %v3970
        %v3972 = vpop.f32.mrb[0].mxu0
        %3973 = vmatprep.mubr.bf16.mxu0 0
        %3974 = vmatmul.mubr.bf16.gmra.mrb[0].mxu0 %v3198
        %v3975 = vpop.f32.mrb[0].mxu0
        %v3976 = vadd.f32 0.0, %v3975
        %v3977 = vpop.f32.mrb[0].mxu0
        %v3978 = vpop.f32.mrb[0].mxu0
        %v3979 = vadd.f32 0.0, %v3978
        %v3980 = vpop.f32.mrb[0].mxu0
        %3981 = vmatprep.mubr.bf16.mxu0 0
        %3982 = vmatmul.mubr.bf16.gmra.mrb[0].mxu0 %v3201
        %v3983 = vpop.f32.mrb[0].mxu0
        %v3984 = vadd.f32 0.0, %v3983
        %v3985 = vpop.f32.mrb[0].mxu0
        %v3986 = vpop.f32.mrb[0].mxu0
        %v3987 = vadd.f32 0.0, %v3986
        %v3988 = vpop.f32.mrb[0].mxu0
        %3989 = vmatprep.mubr.bf16.mxu0 0
        %3990 = vmatmul.mubr.bf16.gmra.mrb[0].mxu0 %v3847
        %v3991 = vpop.f32.mrb[0].mxu0
        %v3992 = vadd.f32 0.0, %v3991
        %v3993 = vpop.f32.mrb[0].mxu0
        %v3994 = vpop.f32.mrb[0].mxu0
        %v3995 = vadd.f32 0.0, %v3994
        %v3996 = vpop.f32.mrb[0].mxu0
        %3997 = vmatprep.mubr.bf16.mxu0 0
        %3998 = vmatmul.mubr.bf16.gmra.mrb[0].mxu0 %v3850
        %v3999 = vpop.f32.mrb[0].mxu0
        %v4000 = vadd.f32 0.0, %v3999
        %v4001 = vpop.f32.mrb[0].mxu0
        %v4002 = vpop.f32.mrb[0].mxu0
        %v4003 = vadd.f32 0.0, %v4002
        %v4004 = vpop.f32.mrb[0].mxu0
        %4005 = vmatprep.mubr.bf16.mxu0 0
        %4006 = vmatmul.mubr.bf16.gmra.mrb[0].mxu0 %v3853
        %v4007 = vpop.f32.mrb[0].mxu0
        %v4008 = vadd.f32 0.0, %v4007
        %v4009 = vpop.f32.mrb[0].mxu0
        %v4010 = vpop.f32.mrb[0].mxu0
        %v4011 = vadd.f32 0.0, %v4010
        %v4012 = vpop.f32.mrb[0].mxu0
        %4013 = vmatprep.mubr.bf16.mxu0 0
        %4014 = vmatmul.mubr.bf16.gmra.mrb[0].mxu0 %v3856
        %v4015 = vpop.f32.mrb[0].mxu0
        %v4016 = vadd.f32 0.0, %v4015
        %v4017 = vpop.f32.mrb[0].mxu0
        %v4018 = vpop.f32.mrb[0].mxu0
        %v4019 = vadd.f32 0.0, %v4018
        %v4020 = vpop.f32.mrb[0].mxu0
        %4021 = vdwg.mxu0
        %v4022 = vadd.f32 %v3803, %v3896
        %v4023 = vadd.f32 %v3804, %v3899
        %v4024 = vadd.f32 %v3805, %v3904
        %v4025 = vadd.f32 %v3806, %v3907
        %v4026 = vadd.f32 %v3807, %v3912
        %v4027 = vadd.f32 %v3808, %v3915
        %v4028 = vadd.f32 %v3809, %v3920
        %v4029 = vadd.f32 %v3810, %v3923
        %v4030 = vadd.f32 %v3811, %v3928
        %v4031 = vadd.f32 %v3812, %v3931
        %v4032 = vadd.f32 %v3813, %v3936
        %v4033 = vadd.f32 %v3814, %v3939
        %v4034 = vadd.f32 %v3815, %v3944
        %v4035 = vadd.f32 %v3816, %v3947
        %v4036 = vadd.f32 %v3817, %v3952
        %v4037 = vadd.f32 %v3818, %v3955
        %v4038 = vadd.f32 %v3819, %v3960
        %v4039 = vadd.f32 %v3820, %v3963
        %v4040 = vadd.f32 %v3821, %v3968
        %v4041 = vadd.f32 %v3822, %v3971
        %v4042 = vadd.f32 %v3823, %v3976
        %v4043 = vadd.f32 %v3824, %v3979
        %v4044 = vadd.f32 %v3825, %v3984
        %v4045 = vadd.f32 %v3826, %v3987
        %v4046 = vadd.f32 %v3827, %v3992
        %v4047 = vadd.f32 %v3828, %v3995
        %v4048 = vadd.f32 %v3829, %v4000
        %v4049 = vadd.f32 %v3830, %v4003
        %v4050 = vadd.f32 %v3831, %v4008
        %v4051 = vadd.f32 %v3832, %v4011
        %v4052 = vadd.f32 %v3833, %v4016
        %v4053 = vadd.f32 %v3834, %v4019
        %v4054 = vpack.c.b16 %v2498, %v3836
        %v4057 = vunpack.c.l.b16 %v2196
        %v4058 = vunpack.c.l.b16 %v2197
        %v4059 = vpack.c.b16 %v4058, %v4057
        %v4061 = vsel %vm2283, %v4054, 0
        %v4064 = vsel %vm2332, %v4059, 0
        %4066 = vmatprep.subr.bf16.mxu0 0
        %4067 = vmatpush1.bf16.msra.mxu0 %v4064
        %4068 = vmatprep.subr.bf16.mxu0 0
        %4069 = vmatpush1.bf16.msra.mxu0 0
        %4070 = vmatprep.subr.bf16.mxu0 0
        %4071 = vmatpush1.bf16.msra.mxu0 0
        %4072 = vmatprep.subr.bf16.mxu0 0
        %4073 = vmatpush1.bf16.msra.mxu0 0
        %4074 = vmatprep.subr.bf16.mxu0 0
        %4075 = vmatpush1.bf16.msra.mxu0 0
        %4076 = vmatprep.subr.bf16.mxu0 0
        %4077 = vmatpush1.bf16.msra.mxu0 0
        %4078 = vmatprep.subr.bf16.mxu0 0
        %4079 = vmatpush1.bf16.msra.mxu0 0
        %4080 = vmatprep.subr.bf16.mxu0 0
        %4081 = vmatpush1.bf16.msra.mxu0 0
        %4082 = vmatprep.subr.bf16.mxu0 0
        %4083 = vmatpush1.bf16.msra.mxu0 0
        %4084 = vmatprep.subr.bf16.mxu0 0
        %4085 = vmatpush1.bf16.msra.mxu0 0
        %4086 = vmatprep.subr.bf16.mxu0 0
        %4087 = vmatpush1.bf16.msra.mxu0 0
        %4088 = vmatprep.subr.bf16.mxu0 0
        %4089 = vmatpush1.bf16.msra.mxu0 0
        %4090 = vmatprep.subr.bf16.mxu0 0
        %4091 = vmatpush1.bf16.msra.mxu0 0
        %4092 = vmatprep.subr.bf16.mxu0 0
        %4093 = vmatpush1.bf16.msra.mxu0 0
        %4094 = vmatprep.subr.bf16.mxu0 0
        %4095 = vmatpush1.bf16.msra.mxu0 0
        %4096 = vmatprep.subr.bf16.mxu0 0
        %4097 = vmatpush1.bf16.msra.mxu0 0
        %4098 = vmatprep.mubr.bf16.mxu0 0
        %4099 = vmatmul.mubr.bf16.gmra.mrb[0].mxu0 %v2548
        %v4100 = vpop.f32.mrb[0].mxu0
        %v4101 = vadd.f32 0.0, %v4100
        %v4102 = vpop.f32.mrb[0].mxu0
        %v4103 = vpop.f32.mrb[0].mxu0
        %v4104 = vadd.f32 0.0, %v4103
        %v4105 = vpop.f32.mrb[0].mxu0
        %4106 = vmatprep.mubr.bf16.mxu0 0
        %4107 = vmatmul.mubr.bf16.gmra.mrb[0].mxu0 %v2551
        %v4108 = vpop.f32.mrb[0].mxu0
        %v4109 = vadd.f32 0.0, %v4108
        %v4110 = vpop.f32.mrb[0].mxu0
        %v4111 = vpop.f32.mrb[0].mxu0
        %v4112 = vadd.f32 0.0, %v4111
        %v4113 = vpop.f32.mrb[0].mxu0
        %4114 = vmatprep.mubr.bf16.mxu0 0
        %4115 = vmatmul.mubr.bf16.gmra.mrb[0].mxu0 %v2554
        %v4116 = vpop.f32.mrb[0].mxu0
        %v4117 = vadd.f32 0.0, %v4116
        %v4118 = vpop.f32.mrb[0].mxu0
        %v4119 = vpop.f32.mrb[0].mxu0
        %v4120 = vadd.f32 0.0, %v4119
        %v4121 = vpop.f32.mrb[0].mxu0
        %4122 = vmatprep.mubr.bf16.mxu0 0
        %4123 = vmatmul.mubr.bf16.gmra.mrb[0].mxu0 %v2748
        %v4124 = vpop.f32.mrb[0].mxu0
        %v4125 = vadd.f32 0.0, %v4124
        %v4126 = vpop.f32.mrb[0].mxu0
        %v4127 = vpop.f32.mrb[0].mxu0
        %v4128 = vadd.f32 0.0, %v4127
        %v4129 = vpop.f32.mrb[0].mxu0
        %4130 = vmatprep.mubr.bf16.mxu0 0
        %4131 = vmatmul.mubr.bf16.gmra.mrb[0].mxu0 %v2560
        %v4132 = vpop.f32.mrb[0].mxu0
        %v4133 = vadd.f32 0.0, %v4132
        %v4134 = vpop.f32.mrb[0].mxu0
        %v4135 = vpop.f32.mrb[0].mxu0
        %v4136 = vadd.f32 0.0, %v4135
        %v4137 = vpop.f32.mrb[0].mxu0
        %4138 = vmatprep.mubr.bf16.mxu0 0
        %4139 = vmatmul.mubr.bf16.gmra.mrb[0].mxu0 %v2563
        %v4140 = vpop.f32.mrb[0].mxu0
        %v4141 = vadd.f32 0.0, %v4140
        %v4142 = vpop.f32.mrb[0].mxu0
        %v4143 = vpop.f32.mrb[0].mxu0
        %v4144 = vadd.f32 0.0, %v4143
        %v4145 = vpop.f32.mrb[0].mxu0
        %4146 = vmatprep.mubr.bf16.mxu0 0
        %4147 = vmatmul.mubr.bf16.gmra.mrb[0].mxu0 %v2566
        %v4148 = vpop.f32.mrb[0].mxu0
        %v4149 = vadd.f32 0.0, %v4148
        %v4150 = vpop.f32.mrb[0].mxu0
        %v4151 = vpop.f32.mrb[0].mxu0
        %v4152 = vadd.f32 0.0, %v4151
        %v4153 = vpop.f32.mrb[0].mxu0
        %4154 = vmatprep.mubr.bf16.mxu0 0
        %4155 = vmatmul.mubr.bf16.gmra.mrb[0].mxu0 %v2751
        %v4156 = vpop.f32.mrb[0].mxu0
        %v4157 = vadd.f32 0.0, %v4156
        %v4158 = vpop.f32.mrb[0].mxu0
        %v4159 = vpop.f32.mrb[0].mxu0
        %v4160 = vadd.f32 0.0, %v4159
        %v4161 = vpop.f32.mrb[0].mxu0
        %4162 = vmatprep.mubr.bf16.mxu0 0
        %4163 = vmatmul.mubr.bf16.gmra.mrb[0].mxu0 %v2976
        %v4164 = vpop.f32.mrb[0].mxu0
        %v4165 = vadd.f32 0.0, %v4164
        %v4166 = vpop.f32.mrb[0].mxu0
        %v4167 = vpop.f32.mrb[0].mxu0
        %v4168 = vadd.f32 0.0, %v4167
        %v4169 = vpop.f32.mrb[0].mxu0
        %4170 = vmatprep.mubr.bf16.mxu0 0
        %4171 = vmatmul.mubr.bf16.gmra.mrb[0].mxu0 %v2979
        %v4172 = vpop.f32.mrb[0].mxu0
        %v4173 = vadd.f32 0.0, %v4172
        %v4174 = vpop.f32.mrb[0].mxu0
        %v4175 = vpop.f32.mrb[0].mxu0
        %v4176 = vadd.f32 0.0, %v4175
        %v4177 = vpop.f32.mrb[0].mxu0
        %4178 = vmatprep.mubr.bf16.mxu0 0
        %4179 = vmatmul.mubr.bf16.gmra.mrb[0].mxu0 %v2982
        %v4180 = vpop.f32.mrb[0].mxu0
        %v4181 = vadd.f32 0.0, %v4180
        %v4182 = vpop.f32.mrb[0].mxu0
        %v4183 = vpop.f32.mrb[0].mxu0
        %v4184 = vadd.f32 0.0, %v4183
        %v4185 = vpop.f32.mrb[0].mxu0
        %4186 = vmatprep.mubr.bf16.mxu0 0
        %4187 = vmatmul.mubr.bf16.gmra.mrb[0].mxu0 %v3406
        %v4188 = vpop.f32.mrb[0].mxu0
        %v4189 = vadd.f32 0.0, %v4188
        %v4190 = vpop.f32.mrb[0].mxu0
        %v4191 = vpop.f32.mrb[0].mxu0
        %v4192 = vadd.f32 0.0, %v4191
        %v4193 = vpop.f32.mrb[0].mxu0
        %4194 = vmatprep.mubr.bf16.mxu0 0
        %4195 = vmatmul.mubr.bf16.gmra.mrb[0].mxu0 %v3631
        %v4196 = vpop.f32.mrb[0].mxu0
        %v4197 = vadd.f32 0.0, %v4196
        %v4198 = vpop.f32.mrb[0].mxu0
        %v4199 = vpop.f32.mrb[0].mxu0
        %v4200 = vadd.f32 0.0, %v4199
        %v4201 = vpop.f32.mrb[0].mxu0
        %4202 = vmatprep.mubr.bf16.mxu0 0
        %4203 = vmatmul.mubr.bf16.gmra.mrb[0].mxu0 %v3634
        %v4204 = vpop.f32.mrb[0].mxu0
        %v4205 = vadd.f32 0.0, %v4204
        %v4206 = vpop.f32.mrb[0].mxu0
        %v4207 = vpop.f32.mrb[0].mxu0
        %v4208 = vadd.f32 0.0, %v4207
        %v4209 = vpop.f32.mrb[0].mxu0
        %4210 = vmatprep.mubr.bf16.mxu0 0
        %4211 = vmatmul.mubr.bf16.gmra.mrb[0].mxu0 %v3637
        %v4212 = vpop.f32.mrb[0].mxu0
        %v4213 = vadd.f32 0.0, %v4212
        %v4214 = vpop.f32.mrb[0].mxu0
        %v4215 = vpop.f32.mrb[0].mxu0
        %v4216 = vadd.f32 0.0, %v4215
        %v4217 = vpop.f32.mrb[0].mxu0
        %4218 = vmatprep.mubr.bf16.mxu0 0
        %4219 = vmatmul.mubr.bf16.gmra.mrb[0].mxu0 %v4061
        %v4220 = vpop.f32.mrb[0].mxu0
        %v4221 = vadd.f32 0.0, %v4220
        %v4222 = vpop.f32.mrb[0].mxu0
        %v4223 = vpop.f32.mrb[0].mxu0
        %v4224 = vadd.f32 0.0, %v4223
        %v4225 = vpop.f32.mrb[0].mxu0
        %4226 = vdwg.mxu0
        %v4227 = vadd.f32 %v4022, %v4101
        %v4228 = vadd.f32 %v4023, %v4104
        %v4229 = vadd.f32 %v4024, %v4109
        %v4230 = vadd.f32 %v4025, %v4112
        %v4231 = vadd.f32 %v4026, %v4117
        %v4232 = vadd.f32 %v4027, %v4120
        %v4233 = vadd.f32 %v4028, %v4125
        %v4234 = vadd.f32 %v4029, %v4128
        %v4235 = vadd.f32 %v4030, %v4133
        %v4236 = vadd.f32 %v4031, %v4136
        %v4237 = vadd.f32 %v4032, %v4141
        %v4238 = vadd.f32 %v4033, %v4144
        %v4239 = vadd.f32 %v4034, %v4149
        %v4240 = vadd.f32 %v4035, %v4152
        %v4241 = vadd.f32 %v4036, %v4157
        %v4242 = vadd.f32 %v4037, %v4160
        %v4243 = vadd.f32 %v4038, %v4165
        %v4244 = vadd.f32 %v4039, %v4168
        %v4245 = vadd.f32 %v4040, %v4173
        %v4246 = vadd.f32 %v4041, %v4176
        %v4247 = vadd.f32 %v4042, %v4181
        %v4248 = vadd.f32 %v4043, %v4184
        %v4249 = vadd.f32 %v4044, %v4189
        %v4250 = vadd.f32 %v4045, %v4192
        %v4251 = vadd.f32 %v4046, %v4197
        %v4252 = vadd.f32 %v4047, %v4200
        %v4253 = vadd.f32 %v4048, %v4205
        %v4254 = vadd.f32 %v4049, %v4208
        %v4255 = vadd.f32 %v4050, %v4213
        %v4256 = vadd.f32 %v4051, %v4216
        %v4257 = vadd.f32 %v4052, %v4221
        %v4258 = vadd.f32 %v4053, %v4224
        %v4259 = vpack.c.bf16 %v4227, %v4227
        %v4260 = vpack.c.bf16 %v4228, %v4228
        %v4261 = vpack.c.bf16 %v4229, %v4229
        %v4262 = vpack.c.bf16 %v4230, %v4230
        %v4263 = vpack.c.bf16 %v4231, %v4231
        %v4264 = vpack.c.bf16 %v4232, %v4232
        %v4265 = vpack.c.bf16 %v4233, %v4233
        %v4266 = vpack.c.bf16 %v4234, %v4234
        %v4267 = vpack.c.bf16 %v4235, %v4235
        %v4268 = vpack.c.bf16 %v4236, %v4236
        %v4269 = vpack.c.bf16 %v4237, %v4237
        %v4270 = vpack.c.bf16 %v4238, %v4238
        %v4271 = vpack.c.bf16 %v4239, %v4239
        %v4272 = vpack.c.bf16 %v4240, %v4240
        %v4273 = vpack.c.bf16 %v4241, %v4241
        %v4274 = vpack.c.bf16 %v4242, %v4242
        %v4275 = vpack.c.bf16 %v4243, %v4243
        %v4276 = vpack.c.bf16 %v4244, %v4244
        %v4277 = vpack.c.bf16 %v4245, %v4245
        %v4278 = vpack.c.bf16 %v4246, %v4246
        %v4279 = vpack.c.bf16 %v4247, %v4247
        %v4280 = vpack.c.bf16 %v4248, %v4248
        %v4281 = vpack.c.bf16 %v4249, %v4249
        %v4282 = vpack.c.bf16 %v4250, %v4250
        %v4283 = vpack.c.bf16 %v4251, %v4251
        %v4284 = vpack.c.bf16 %v4252, %v4252
        %v4285 = vpack.c.bf16 %v4253, %v4253
        %v4286 = vpack.c.bf16 %v4254, %v4254
        %v4287 = vpack.c.bf16 %v4255, %v4255
        %v4288 = vpack.c.bf16 %v4256, %v4256
        %v4289 = vpack.c.bf16 %v4257, %v4257
        %v4290 = vpack.c.bf16 %v4258, %v4258
        %vm4291 = vcmask 27648
        %4292 = vst.msk [vmem:[%s499] sm:$0xf] %vm4291, %v4259
        %4293 = vst.msk [vmem:[%s499 + $0x4] sm:$0xf] %vm4291, %v4260
        %4294 = vst.msk [vmem:[%s499 + $0x8] sm:$0xf] %vm4291, %v4261
        %4295 = vst.msk [vmem:[%s499 + $0xc] sm:$0xf] %vm4291, %v4262
        %4296 = vst.msk [vmem:[%s499 + $0x10] sm:$0xf] %vm4291, %v4263
        %4297 = vst.msk [vmem:[%s499 + $0x14] sm:$0xf] %vm4291, %v4264
        %4298 = vst.msk [vmem:[%s499 + $0x18] sm:$0xf] %vm4291, %v4265
        %4299 = vst.msk [vmem:[%s499 + $0x1c] sm:$0xf] %vm4291, %v4266
        %4300 = vst.msk [vmem:[%s499 + $0x20] sm:$0xf] %vm4291, %v4267
        %4301 = vst.msk [vmem:[%s499 + $0x24] sm:$0xf] %vm4291, %v4268
        %4302 = vst.msk [vmem:[%s499 + $0x28] sm:$0xf] %vm4291, %v4269
        %4303 = vst.msk [vmem:[%s499 + $0x2c] sm:$0xf] %vm4291, %v4270
        %4304 = vst.msk [vmem:[%s499 + $0x30] sm:$0xf] %vm4291, %v4271
        %4305 = vst.msk [vmem:[%s499 + $0x34] sm:$0xf] %vm4291, %v4272
        %4306 = vst.msk [vmem:[%s499 + $0x38] sm:$0xf] %vm4291, %v4273
        %4307 = vst.msk [vmem:[%s499 + $0x3c] sm:$0xf] %vm4291, %v4274
        %4308 = vst.msk [vmem:[%s499 + $0x40] sm:$0xf] %vm4291, %v4275
        %4309 = vst.msk [vmem:[%s499 + $0x44] sm:$0xf] %vm4291, %v4276
        %4310 = vst.msk [vmem:[%s499 + $0x48] sm:$0xf] %vm4291, %v4277
        %4311 = vst.msk [vmem:[%s499 + $0x4c] sm:$0xf] %vm4291, %v4278
        %4312 = vst.msk [vmem:[%s499 + $0x50] sm:$0xf] %vm4291, %v4279
        %4313 = vst.msk [vmem:[%s499 + $0x54] sm:$0xf] %vm4291, %v4280
        %4314 = vst.msk [vmem:[%s499 + $0x58] sm:$0xf] %vm4291, %v4281
        %4315 = vst.msk [vmem:[%s499 + $0x5c] sm:$0xf] %vm4291, %v4282
        %4316 = vst.msk [vmem:[%s499 + $0x60] sm:$0xf] %vm4291, %v4283
        %4317 = vst.msk [vmem:[%s499 + $0x64] sm:$0xf] %vm4291, %v4284
        %4318 = vst.msk [vmem:[%s499 + $0x68] sm:$0xf] %vm4291, %v4285
        %4319 = vst.msk [vmem:[%s499 + $0x6c] sm:$0xf] %vm4291, %v4286
        %4320 = vst.msk [vmem:[%s499 + $0x70] sm:$0xf] %vm4291, %v4287
        %4321 = vst.msk [vmem:[%s499 + $0x74] sm:$0xf] %vm4291, %v4288
        %4322 = vst.msk [vmem:[%s499 + $0x78] sm:$0xf] %vm4291, %v4289
        %4323 = vst.msk [vmem:[%s499 + $0x7c] sm:$0xf] %vm4291, %v4290
        %v4324 = vsel %vm1982, %v4227, 0.0
        %v4325 = vsel %vm1982, %v4228, 0.0
        %v4326 = vadd.f32 %v4324, %v4325
        %v4327 = vsel %vm1982, %v4229, 0.0
        %v4328 = vadd.f32 %v4326, %v4327
        %v4329 = vsel %vm1982, %v4230, 0.0
        %v4330 = vadd.f32 %v4328, %v4329
        %v4331 = vsel %vm1982, %v4231, 0.0
        %v4332 = vadd.f32 %v4330, %v4331
        %v4333 = vsel %vm1982, %v4232, 0.0
        %v4334 = vadd.f32 %v4332, %v4333
        %v4335 = vsel %vm1982, %v4233, 0.0
        %v4336 = vadd.f32 %v4334, %v4335
        %v4337 = vsel %vm1982, %v4234, 0.0
        %v4338 = vadd.f32 %v4336, %v4337
        %v4339 = vsel %vm1982, %v4235, 0.0
        %v4340 = vadd.f32 %v4338, %v4339
        %v4341 = vsel %vm1982, %v4236, 0.0
        %v4342 = vadd.f32 %v4340, %v4341
        %v4343 = vsel %vm1982, %v4237, 0.0
        %v4344 = vadd.f32 %v4342, %v4343
        %v4345 = vsel %vm1982, %v4238, 0.0
        %v4346 = vadd.f32 %v4344, %v4345
        %v4347 = vsel %vm1982, %v4239, 0.0
        %v4348 = vadd.f32 %v4346, %v4347
        %v4349 = vsel %vm1982, %v4240, 0.0
        %v4350 = vadd.f32 %v4348, %v4349
        %v4351 = vsel %vm1982, %v4241, 0.0
        %v4352 = vadd.f32 %v4350, %v4351
        %v4353 = vsel %vm1982, %v4242, 0.0
        %v4354 = vadd.f32 %v4352, %v4353
        %v4355 = vsel %vm1982, %v4243, 0.0
        %v4356 = vadd.f32 %v4354, %v4355
        %v4357 = vsel %vm1982, %v4244, 0.0
        %v4358 = vadd.f32 %v4356, %v4357
        %v4359 = vsel %vm1982, %v4245, 0.0
        %v4360 = vadd.f32 %v4358, %v4359
        %v4361 = vsel %vm1982, %v4246, 0.0
        %v4362 = vadd.f32 %v4360, %v4361
        %v4363 = vsel %vm1982, %v4247, 0.0
        %v4364 = vadd.f32 %v4362, %v4363
        %v4365 = vsel %vm1982, %v4248, 0.0
        %v4366 = vadd.f32 %v4364, %v4365
        %v4367 = vsel %vm1982, %v4249, 0.0
        %v4368 = vadd.f32 %v4366, %v4367
        %v4369 = vsel %vm1982, %v4250, 0.0
        %v4370 = vadd.f32 %v4368, %v4369
        %v4371 = vsel %vm1982, %v4251, 0.0
        %v4372 = vadd.f32 %v4370, %v4371
        %v4373 = vsel %vm1982, %v4252, 0.0
        %v4374 = vadd.f32 %v4372, %v4373
        %v4375 = vsel %vm1982, %v4253, 0.0
        %v4376 = vadd.f32 %v4374, %v4375
        %v4377 = vsel %vm1982, %v4254, 0.0
        %v4378 = vadd.f32 %v4376, %v4377
        %v4379 = vsel %vm1982, %v4255, 0.0
        %v4380 = vadd.f32 %v4378, %v4379
        %v4381 = vsel %vm1982, %v4256, 0.0
        %v4382 = vadd.f32 %v4380, %v4381
        %v4383 = vsel %vm1982, %v4257, 0.0
        %v4384 = vadd.f32 %v4382, %v4383
        %v4385 = vsel %vm1982, %v4258, 0.0
        %v4386 = vadd.f32 %v4384, %v4385
        %v4387 = vrot.slane %v4386, 4
        %v4388 = vadd.f32 %v4386, %v4387
        %v4389 = vrot.slane %v4388, 2
        %v4390 = vadd.f32 %v4388, %v4389
        %v4391 = vrot.slane %v4390, 1
        %v4392 = vadd.f32 %v4390, %v4391
        %vm4393 = vcmask 24576
        %4394 = vst.msk [vmem:[%s505] sm:$0x1] %vm4393, %v4392
        %v4395 = vmul.f32 %v4227, %v4227
        %v4396 = vmul.f32 %v4228, %v4228
        %v4397 = vmul.f32 %v4229, %v4229
        %v4398 = vmul.f32 %v4230, %v4230
        %v4399 = vmul.f32 %v4231, %v4231
        %v4400 = vmul.f32 %v4232, %v4232
        %v4401 = vmul.f32 %v4233, %v4233
        %v4402 = vmul.f32 %v4234, %v4234
        %v4403 = vmul.f32 %v4235, %v4235
        %v4404 = vmul.f32 %v4236, %v4236
        %v4405 = vmul.f32 %v4237, %v4237
        %v4406 = vmul.f32 %v4238, %v4238
        %v4407 = vmul.f32 %v4239, %v4239
        %v4408 = vmul.f32 %v4240, %v4240
        %v4409 = vmul.f32 %v4241, %v4241
        %v4410 = vmul.f32 %v4242, %v4242
        %v4411 = vmul.f32 %v4243, %v4243
        %v4412 = vmul.f32 %v4244, %v4244
        %v4413 = vmul.f32 %v4245, %v4245
        %v4414 = vmul.f32 %v4246, %v4246
        %v4415 = vmul.f32 %v4247, %v4247
        %v4416 = vmul.f32 %v4248, %v4248
        %v4417 = vmul.f32 %v4249, %v4249
        %v4418 = vmul.f32 %v4250, %v4250
        %v4419 = vmul.f32 %v4251, %v4251
        %v4420 = vmul.f32 %v4252, %v4252
        %v4421 = vmul.f32 %v4253, %v4253
        %v4422 = vmul.f32 %v4254, %v4254
        %v4423 = vmul.f32 %v4255, %v4255
        %v4424 = vmul.f32 %v4256, %v4256
        %v4425 = vmul.f32 %v4257, %v4257
        %v4426 = vmul.f32 %v4258, %v4258
        %v4427 = vsel %vm1982, %v4395, 0.0
        %v4428 = vsel %vm1982, %v4396, 0.0
        %v4429 = vadd.f32 %v4427, %v4428
        %v4430 = vsel %vm1982, %v4397, 0.0
        %v4431 = vadd.f32 %v4429, %v4430
        %v4432 = vsel %vm1982, %v4398, 0.0
        %v4433 = vadd.f32 %v4431, %v4432
        %v4434 = vsel %vm1982, %v4399, 0.0
        %v4435 = vadd.f32 %v4433, %v4434
        %v4436 = vsel %vm1982, %v4400, 0.0
        %v4437 = vadd.f32 %v4435, %v4436
        %v4438 = vsel %vm1982, %v4401, 0.0
        %v4439 = vadd.f32 %v4437, %v4438
        %v4440 = vsel %vm1982, %v4402, 0.0
        %v4441 = vadd.f32 %v4439, %v4440
        %v4442 = vsel %vm1982, %v4403, 0.0
        %v4443 = vadd.f32 %v4441, %v4442
        %v4444 = vsel %vm1982, %v4404, 0.0
        %v4445 = vadd.f32 %v4443, %v4444
        %v4446 = vsel %vm1982, %v4405, 0.0
        %v4447 = vadd.f32 %v4445, %v4446
        %v4448 = vsel %vm1982, %v4406, 0.0
        %v4449 = vadd.f32 %v4447, %v4448
        %v4450 = vsel %vm1982, %v4407, 0.0
        %v4451 = vadd.f32 %v4449, %v4450
        %v4452 = vsel %vm1982, %v4408, 0.0
        %v4453 = vadd.f32 %v4451, %v4452
        %v4454 = vsel %vm1982, %v4409, 0.0
        %v4455 = vadd.f32 %v4453, %v4454
        %v4456 = vsel %vm1982, %v4410, 0.0
        %v4457 = vadd.f32 %v4455, %v4456
        %v4458 = vsel %vm1982, %v4411, 0.0
        %v4459 = vadd.f32 %v4457, %v4458
        %v4460 = vsel %vm1982, %v4412, 0.0
        %v4461 = vadd.f32 %v4459, %v4460
        %v4462 = vsel %vm1982, %v4413, 0.0
        %v4463 = vadd.f32 %v4461, %v4462
        %v4464 = vsel %vm1982, %v4414, 0.0
        %v4465 = vadd.f32 %v4463, %v4464
        %v4466 = vsel %vm1982, %v4415, 0.0
        %v4467 = vadd.f32 %v4465, %v4466
        %v4468 = vsel %vm1982, %v4416, 0.0
        %v4469 = vadd.f32 %v4467, %v4468
        %v4470 = vsel %vm1982, %v4417, 0.0
        %v4471 = vadd.f32 %v4469, %v4470
        %v4472 = vsel %vm1982, %v4418, 0.0
        %v4473 = vadd.f32 %v4471, %v4472
        %v4474 = vsel %vm1982, %v4419, 0.0
        %v4475 = vadd.f32 %v4473, %v4474
        %v4476 = vsel %vm1982, %v4420, 0.0
        %v4477 = vadd.f32 %v4475, %v4476
        %v4478 = vsel %vm1982, %v4421, 0.0
        %v4479 = vadd.f32 %v4477, %v4478
        %v4480 = vsel %vm1982, %v4422, 0.0
        %v4481 = vadd.f32 %v4479, %v4480
        %v4482 = vsel %vm1982, %v4423, 0.0
        %v4483 = vadd.f32 %v4481, %v4482
        %v4484 = vsel %vm1982, %v4424, 0.0
        %v4485 = vadd.f32 %v4483, %v4484
        %v4486 = vsel %vm1982, %v4425, 0.0
        %v4487 = vadd.f32 %v4485, %v4486
        %v4488 = vsel %vm1982, %v4426, 0.0
        %v4489 = vadd.f32 %v4487, %v4488
        %v4490 = vrot.slane %v4489, 4
        %v4491 = vadd.f32 %v4489, %v4490
        %v4492 = vrot.slane %v4491, 2
        %v4493 = vadd.f32 %v4491, %v4492
        %v4494 = vrot.slane %v4493, 1
        %v4495 = vadd.f32 %v4493, %v4494
        %4496 = vst.msk [vmem:[%s511] sm:$0x1] %vm4393, %v4495
        %s4497 = sand.u32 %s219, 1
        %s4498 = scalar_lea.sflag [#allocation4], %s4497
        %s4499 = sand.u32 %s219, 1
        %s4500 = smul.addr %s4499, 128
        %s4501 = scalar_lea.vmem [#allocation13], %s4500
        %s4502 = sand.u32 %s34, 1
        %s4503 = scalar_lea.sflag [#allocation15], %s4502
        %s4504 = sand.u32 %s247, 1
        %s4505 = scalar_lea.vmem [#allocation14], %s4504
        %s4506 = sand.u32 %s34, 1
        %s4507 = scalar_lea.sflag [#allocation15], %s4506
        %s4508 = sand.u32 %s275, 1
        %s4509 = scalar_lea.vmem [#allocation16], %s4508
        // Predicated region
        $region69: #{pre_act_bottleneck_forward.6} parent=43 // pred_check
          %p4510 = pneg %p229
        $region70: #{pre_act_bottleneck_forward.6} parent=43 // pred_check_branch
          %4512 = sbr.rel (%p4510) target = $region72
        $region71: #{pre_act_bottleneck_forward.6} parent=43 // pred_region
          %s4513 = smul.u32 4, %s39
          %s4515 = ssub.s32 2048, 2048
          %4516 = vsyncadd %s4498, %s4515
          %s4517 = smul.addr %s4513, 8
          %s4518 = smul.addr %s38, 64
          %s4519 = sadd.s32 %s4517, %s4518
          %s4520 = smul.addr %s4519, 64
          %s4521 = scalar_lea.hbm %s6, %s4520
          %s4522 = sshll.u32 %s4501, 4
          %s4523 = int_to_ptr.vmem [resolvable:$true] %s4522
          %4528 = dma.vmem_to_hbm [thread:$0]  %s4523, 2048, %s4521, %s4498, 64, 64, 4
        $region72: #{pre_act_bottleneck_forward.6} parent=43 // pred_fallthru
          _
        // Predicated region
        $region73: #{pre_act_bottleneck_forward.6} parent=43 // pred_check
          %p4529 = pneg %p257
        $region74: #{pre_act_bottleneck_forward.6} parent=43 // pred_check_branch
          %4531 = sbr.rel (%p4529) target = $region76
        $region75: #{pre_act_bottleneck_forward.6} parent=43 // pred_region
          %s4533 = ssub.s32 16, 16
          %4534 = vsyncadd %s4503, %s4533
          %s4535 = smul.addr %s38, 2
          %s4536 = sadd.s32 %s39, %s4535
          %s4537 = smul.addr %s4536, 16
          %s4538 = scalar_lea.hbm %s7, %s4537
          %s4540 = sshll.u32 %s4505, 4
          %s4541 = int_to_ptr.vmem [resolvable:$true] %s4540
          %4543 = dma.vmem_to_hbm [thread:$0]  %s4541, 16, %s4538, %s4503
        $region76: #{pre_act_bottleneck_forward.6} parent=43 // pred_fallthru
          _
        // Predicated region
        $region77: #{pre_act_bottleneck_forward.6} parent=43 // pred_check
          %p4544 = pneg %p285
        $region78: #{pre_act_bottleneck_forward.6} parent=43 // pred_check_branch
          %4546 = sbr.rel (%p4544) target = $region80
        $region79: #{pre_act_bottleneck_forward.6} parent=43 // pred_region
          %s4548 = ssub.s32 16, 16
          %4549 = vsyncadd %s4507, %s4548
          %s4550 = smul.addr %s38, 2
          %s4551 = sadd.s32 %s39, %s4550
          %s4552 = smul.addr %s4551, 16
          %s4553 = scalar_lea.hbm %s8, %s4552
          %s4555 = sshll.u32 %s4509, 4
          %s4556 = int_to_ptr.vmem [resolvable:$true] %s4555
          %4558 = dma.vmem_to_hbm [thread:$0]  %s4556, 16, %s4553, %s4507
        $region80: #{pre_act_bottleneck_forward.6} parent=43 // pred_fallthru
          _
      $region44: #{pre_act_bottleneck_forward.6} parent=5 // pred_fallthru
        _
      %p4559 = scmp.le.s32.totalorder 2, %s29
      // Predicated region
      $region81: #{pre_act_bottleneck_forward.6} parent=5 // pred_check
        %p4560 = pneg %p4559
      $region82: #{pre_act_bottleneck_forward.6} parent=5 // pred_check_branch
        %4562 = sbr.rel (%p4560) target = $region84
      $region83: #{pre_act_bottleneck_forward.6} parent=5 // pred_region
        %s4563 = ssub.s32 %s29, 2
        // Predicated region
        $region85: #{pre_act_bottleneck_forward.6} parent=83 // pred_check
          %p4564 = pneg %p235
        $region86: #{pre_act_bottleneck_forward.6} parent=83 // pred_check_branch
          %4566 = sbr.rel (%p4564) target = $region88
        $region87: #{pre_act_bottleneck_forward.6} parent=83 // pred_region
          %s4567 = sand.u32 %s220, 1
          %s4568 = scalar_lea.sflag [#allocation4], %s4567
          %s4569 = sand.u32 %s220, 1
          %s4570 = smul.addr %s4569, 128
          %s4571 = scalar_lea.vmem [#allocation13], %s4570
          %4572 = dma.done %s4568, 2048
        $region88: #{pre_act_bottleneck_forward.6} parent=83 // pred_fallthru
          _
        // Predicated region
        $region89: #{pre_act_bottleneck_forward.6} parent=83 // pred_check
          %p4573 = pneg %p263
        $region90: #{pre_act_bottleneck_forward.6} parent=83 // pred_check_branch
          %4575 = sbr.rel (%p4573) target = $region92
        $region91: #{pre_act_bottleneck_forward.6} parent=83 // pred_region
          %s4576 = sand.u32 %s35, 1
          %s4577 = scalar_lea.sflag [#allocation15], %s4576
          %s4578 = sand.u32 %s248, 1
          %s4579 = scalar_lea.vmem [#allocation14], %s4578
          %4580 = dma.done %s4577, 16
        $region92: #{pre_act_bottleneck_forward.6} parent=83 // pred_fallthru
          _
        // Predicated region
        $region93: #{pre_act_bottleneck_forward.6} parent=83 // pred_check
          %p4581 = pneg %p291
        $region94: #{pre_act_bottleneck_forward.6} parent=83 // pred_check_branch
          %4583 = sbr.rel (%p4581) target = $region96
        $region95: #{pre_act_bottleneck_forward.6} parent=83 // pred_region
          %s4584 = sand.u32 %s35, 1
          %s4585 = scalar_lea.sflag [#allocation15], %s4584
          %s4586 = sand.u32 %s276, 1
          %s4587 = scalar_lea.vmem [#allocation16], %s4586
          %4588 = dma.done %s4585, 16
        $region96: #{pre_act_bottleneck_forward.6} parent=83 // pred_fallthru
          _
      $region84: #{pre_act_bottleneck_forward.6} parent=5 // pred_fallthru
        _
    $region6: #{pre_act_bottleneck_forward.6} parent=1 // loop_footer
      %s33 = sadd.s32 1, %s29
    $region7: #{pre_act_bottleneck_forward.6} parent=1 // loop_footer_branch
      %28 = sbr.rel target = $region3
    $region8: #{pre_act_bottleneck_forward.6} parent=1 // loop_exit
      _
    %4589 = vsyncpa [#allocation3], 1
    %s4590 = scalar_lea.sflag [#allocation3], 1
    %4591 = vsyncpa %s4590, 1
    %4592 = vsyncpa [#allocation6], 1
    %s4593 = scalar_lea.sflag [#allocation6], 1
    %4594 = vsyncpa %s4593, 1
    %4595 = vsyncpa [#allocation9], 1
    %4596 = vsyncpa [#allocation12], 1
    %4597 = vsyncpa [#allocation4], 1
    %s4598 = scalar_lea.sflag [#allocation4], 1
    %4599 = vsyncpa %s4598, 1
    %4600 = vsyncpa [#allocation15], 1
    %s4601 = scalar_lea.sflag [#allocation15], 1
    %4602 = vsyncpa %s4601, 1

</llo_original>
